<compile_context>
chip_gen: v7x
topology: tpu7x:2x2x1
jax: 0.10.0
libtpu: 0.0.40
codegen_flags: <defaults>
</compile_context>

<pallas_src>
import functools

import numpy as np
import jax
import jax.numpy as jnp
from jax.experimental import pallas as pl
from jax.experimental.pallas import tpu as pltpu


_VMEM_LIMIT = 48 * 1024 * 1024   # below v7x's 64 MiB physical VMEM, ample on v5e/v6e


# ---------------------------------------------------------------------------
# Pallas kernels
# ---------------------------------------------------------------------------
def _conv_relu_pool_kernel(xe_ref, xo_ref, we_ref, wo_ref, b_ref, o_ref, *,
                           rows, half, in_kernel_fold):
    """Fused 'same' 5x5 conv + bias + ReLU + 2x2 max-pool for one batch tile.

    Row-parity formulation: even conv rows come from one deep dot, odd conv
    rows from a second; the 2x2 pool is max(even, odd) along H followed by a
    max of the two width-parity column halves.

    in_kernel_fold=False:
      xe_ref/xo_ref : (tb*hp2, 5*kdim)  LHS already folded over the 5 kernel
                      rows at trace time (layer 1).
    in_kernel_fold=True:
      xe_ref/xo_ref : (tb*hp2, kdim)    even / odd padded input rows; the fold
                      is built here from 6 shifted slices (kdim = 256, so all
                      concat pieces are 128-lane aligned).
    we_ref/wo_ref   : (5*kdim, nout)    kh-slab weights for even / odd rows.
    b_ref           : (1, nout)         bias (zero on pad columns), f32.
    o_ref           : (tb*hp2, half)    pooled output, col = pw*Cout + co.
    """
    if in_kernel_fold:
        e0 = xe_ref[pl.ds(0, rows), :]
        e1 = xe_ref[pl.ds(1, rows), :]
        e2 = xe_ref[pl.ds(2, rows), :]
        o0 = xo_ref[pl.ds(0, rows), :]
        o1 = xo_ref[pl.ds(1, rows), :]
        o2 = xo_ref[pl.ds(2, rows), :]
        lhs_e = jnp.concatenate([e0, e1, e2, o0, o1], axis=1)   # kh 0,2,4,1,3
        lhs_o = jnp.concatenate([e1, e2, o0, o1, o2], axis=1)   # kh 1,3,0,2,4
    else:
        lhs_e = xe_ref[...]
        lhs_o = xo_ref[...]

    acc_e = jnp.dot(lhs_e, we_ref[...], preferred_element_type=jnp.float32)
    acc_o = jnp.dot(lhs_o, wo_ref[...], preferred_element_type=jnp.float32)

    # H-pool first, then bias + ReLU (both monotonic, so the reorder is exact).
    z = jnp.maximum(jnp.maximum(acc_e, acc_o) + b_ref[...], 0.0)
    p = jnp.maximum(z[:, :half], z[:, half:])                   # W-pool (dw halves)
    o_ref[pl.ds(0, rows), :] = p.astype(o_ref.dtype)

    tail = o_ref.shape[0] - rows
    if tail:   # keep (dropped) tail rows finite for downstream zero-weight dots
        o_ref[pl.ds(rows, tail), :] = jnp.zeros((tail, half), o_ref.dtype)


def _linear_kernel(x_ref, w_ref, b_ref, o_ref):
    """out = x @ w + b ; x:(tb, K) bf16, w:(K, 128) bf16 resident, b:(1, 128) f32."""
    o_ref[...] = (jnp.dot(x_ref[...], w_ref[...],
                          preferred_element_type=jnp.float32)
                  + b_ref[...]).astype(o_ref.dtype)


# ---------------------------------------------------------------------------
# Trace-time weight / bias preparation
# ---------------------------------------------------------------------------
def _folded_weights(w_oihw, *, w_in, w_real, wo_pad):
    """(Cout,Cin,5,5) -> (we, wo): two (5*w_in*Cin, 2*wo_pad*Cout) bf16 slabs.

    Row blocks of `we` are the kh = 0,2,4,1,3 banded matrices (matching the
    even-row LHS piece order [xe[j], xe[j+1], xe[j+2], xo[j], xo[j+1]]); `wo`
    uses kh = 1,3,0,2,4 (pieces [xe[j+1], xe[j+2], xo[j], xo[j+1], xo[j+2]]).
    Each banded matrix maps input column (iw, ci) to output (dw, pw, co) with
    the W zero-halo and the pooled-width padding encoded as dropped taps /
    zero columns.
    """
    cout, cin, k, k2 = w_oihw.shape
    assert k == 5 and k2 == 5
    pad = k // 2
    wo_real = w_real // 2
    wt = jnp.transpose(w_oihw, (2, 3, 1, 0)).astype(jnp.float32)   # (kh, kw, ci, co)
    sel = np.zeros((k, w_in, 2, wo_pad), np.float32)
    for kw in range(k):
        for pw in range(wo_real):
            for dw in range(2):
                iw = 2 * pw + dw + kw - pad     # input col tapped by out col 2*pw+dw
                if 0 <= iw < w_real:
                    sel[kw, iw, dw, pw] = 1.0
    band = jnp.einsum('qwdp,hqic->hwidpc', jnp.asarray(sel), wt)
    band = band.reshape(k, w_in * cin, 2 * wo_pad * cout)
    we = jnp.concatenate([band[0], band[2], band[4], band[1], band[3]], axis=0)
    wo = jnp.concatenate([band[1], band[3], band[0], band[2], band[4]], axis=0)
    return we.astype(jnp.bfloat16), wo.astype(jnp.bfloat16)


def _bias_cols(bias, *, wo_pad, wo_real):
    """Bias broadcast over (dw, pw, co) columns, zero on pooled-width pad columns."""
    mask = jnp.asarray((np.arange(wo_pad) < wo_real).astype(np.float32))
    bb = mask[:, None] * bias.astype(jnp.float32)[None, :]        # (wo_pad, cout)
    return jnp.tile(bb.reshape(1, -1), (1, 2))                    # (1, 2*wo_pad*cout)


# ---------------------------------------------------------------------------
# pallas_call wrappers
# ---------------------------------------------------------------------------
def _pick_tb(batch, block_batch):
    r8 = lambda v: -(-v // 8) * 8
    if batch <= 8:
        return 8
    # keep >= 2 grid steps so both v7x TensorCores get work; cap tile for VMEM.
    return max(8, min(r8(block_batch), r8(-(-batch // 2))))


def _conv_layer(xe, xo, we, wo, bcols, *, tb, hp2, half, in_kernel_fold):
    n_rows, lhs_cols = xe.shape
    bp = n_rows // hp2
    kslab, nout = we.shape
    rows = tb * hp2 - (2 if in_kernel_fold else 0)
    grid = (bp // tb,)
    flops = int(grid[0] * 4 * rows * kslab * nout)
    bytes_accessed = int(2 * n_rows * lhs_cols * 2 + 2 * kslab * nout * 2
                         + n_rows * half * 2)
    kernel = functools.partial(_conv_relu_pool_kernel, rows=rows, half=half,
                               in_kernel_fold=in_kernel_fold)
    return pl.pallas_call(
        kernel,
        grid=grid,
        in_specs=[
            pl.BlockSpec((tb * hp2, lhs_cols), lambda i: (i, 0)),
            pl.BlockSpec((tb * hp2, lhs_cols), lambda i: (i, 0)),
            # TODO(synk): single-buffer these constant-index-map operands via
            # pipeline_mode=pl.Buffered(1) to reclaim VMEM headroom on v7x.
            pl.BlockSpec((kslab, nout), lambda i: (0, 0)),        # VMEM resident
            pl.BlockSpec((kslab, nout), lambda i: (0, 0)),        # VMEM resident
            pl.BlockSpec((1, nout), lambda i: (0, 0)),            # VMEM resident
        ],
        out_specs=pl.BlockSpec((tb * hp2, half), lambda i: (i, 0)),
        out_shape=jax.ShapeDtypeStruct((n_rows, half), jnp.bfloat16),
        compiler_params=pltpu.CompilerParams(
            dimension_semantics=("parallel",),
            vmem_limit_bytes=_VMEM_LIMIT,
        ),
        cost_estimate=pl.CostEstimate(flops=flops, transcendentals=0,
                                      bytes_accessed=bytes_accessed),
    )(xe, xo, we, wo, bcols)


def _linear(x, w, bcols, *, tb):
    m, kdim = x.shape
    n = w.shape[1]
    return pl.pallas_call(
        _linear_kernel,
        grid=(m // tb,),
        in_specs=[
            pl.BlockSpec((tb, kdim), lambda i: (i, 0)),
            pl.BlockSpec((kdim, n), lambda i: (0, 0)),            # VMEM resident
            pl.BlockSpec((1, n), lambda i: (0, 0)),               # VMEM resident
        ],
        out_specs=pl.BlockSpec((tb, n), lambda i: (i, 0)),
        out_shape=jax.ShapeDtypeStruct((m, n), jnp.float32),
        compiler_params=pltpu.CompilerParams(
            dimension_semantics=("parallel",),
            vmem_limit_bytes=_VMEM_LIMIT,
        ),
        cost_estimate=pl.CostEstimate(
            flops=int(2 * m * kdim * n), transcendentals=0,
            bytes_accessed=int(m * kdim * 2 + kdim * n * 2 + m * n * 4)),
    )(x, w, bcols)


# ---------------------------------------------------------------------------
# Forward pass (matches the PyTorch CNN)
# ---------------------------------------------------------------------------
def cnn_forward(x_nchw, params, *, block_batch=64):
    """Matches CNN.forward(x) for x of shape (B, 1, 28, 28).

    block_batch: samples per grid step; 64 fits v7x's 64 MiB VMEM with margin,
    v5e / v6e (128 MiB VMEM) can raise it to 128.
    """
    b, cin, h, w = x_nchw.shape
    assert (cin, h, w) == (1, 28, 28)
    tb = _pick_tb(b, block_batch)
    bp = -(-b // tb) * tb

    # ---- layer 1: Conv2d(1,16,5,pad=2) + ReLU + MaxPool(2) -----------------
    x = jnp.transpose(x_nchw, (0, 2, 3, 1)).reshape(b, h, w)      # NHWC, Cin=1
    if bp != b:
        x = jnp.pad(x, ((0, bp - b), (0, 0), (0, 0)))
    xph = jnp.pad(x, ((0, 0), (2, 2), (0, 0))).astype(jnp.bfloat16)   # H halo only
    xe, xo = xph[:, 0::2], xph[:, 1::2]                            # (bp, 16, 28)

    def _sh(a, m):   # per-sample shift "down" along padded-H, zero fill
        return jnp.pad(a, ((0, 0), (0, m), (0, 0)))[:, m:m + a.shape[1]]

    hp2_1 = (h + 4) // 2                                           # 16
    xe_cat = jnp.concatenate(
        [xe, _sh(xe, 1), _sh(xe, 2), xo, _sh(xo, 1)], axis=2
    ).reshape(bp * hp2_1, 5 * w)                                   # kh 0,2,4,1,3
    xo_cat = jnp.concatenate(
        [_sh(xe, 1), _sh(xe, 2), xo, _sh(xo, 1), _sh(xo, 2)], axis=2
    ).reshape(bp * hp2_1, 5 * w)                                   # kh 1,3,0,2,4

    wo_pad1, cout1 = 16, params["w1"].shape[0]                     # pooled W 14 -> 16
    we1, wo1 = _folded_weights(params["w1"], w_in=w, w_real=w, wo_pad=wo_pad1)
    b1 = _bias_cols(params["b1"], wo_pad=wo_pad1, wo_real=w // 2)
    y1 = _conv_layer(xe_cat, xo_cat, we1, wo1, b1, tb=tb, hp2=hp2_1,
                     half=wo_pad1 * cout1, in_kernel_fold=False)   # (bp*16, 256)

    # ---- layer 2: Conv2d(16,32,5,pad=2) + ReLU + MaxPool(2) ----------------
    # TODO(synk): this H-pad + parity-split glue is the last inter-layer HBM
    # round trip; it could be folded into conv1's epilogue with a 4-way
    # row-parity accumulator split.
    h2, w2 = h // 2, w // 2                                        # 14, 14
    y1 = y1.reshape(bp, hp2_1, wo_pad1 * cout1)[:, :h2]            # drop tail rows
    y1 = jnp.pad(y1, ((0, 0), (2, 2), (0, 0)))                     # (bp, 18, 256)
    hp2_2 = (h2 + 4) // 2                                          # 9
    xe2 = y1[:, 0::2].reshape(bp * hp2_2, wo_pad1 * cout1)
    xo2 = y1[:, 1::2].reshape(bp * hp2_2, wo_pad1 * cout1)

    wo_pad2, cout2 = 8, params["w2"].shape[0]                      # pooled W 7 -> 8
    we2, wo2 = _folded_weights(params["w2"], w_in=wo_pad1, w_real=w2,
                               wo_pad=wo_pad2)
    b2 = _bias_cols(params["b2"], wo_pad=wo_pad2, wo_real=w2 // 2)
    y2 = _conv_layer(xe2, xo2, we2, wo2, b2, tb=tb, hp2=hp2_2,
                     half=wo_pad2 * cout2, in_kernel_fold=True)    # (bp*9, 256)

    # ---- Linear(32*7*7 -> 10) -----------------------------------------------
    # Free row-major reshape of conv2's padded output; garbage rows / pad cols
    # hit all-zero weight rows.  Output padded to 128 lanes, sliced outside.
    feat = y2.reshape(bp, hp2_2 * wo_pad2 * cout2)                 # (bp, 2304)
    n_cls = params["b_out"].shape[0]
    ho2, wo2_ = h2 // 2, w2 // 2                                   # 7, 7
    wl = jnp.zeros((hp2_2, wo_pad2, cout2, n_cls), jnp.float32)
    wl = wl.at[:ho2, :wo2_].set(
        jnp.transpose(params["w_out"].reshape(cout2, ho2, wo2_, n_cls),
                      (1, 2, 0, 3)))                               # (h, w, c, n)
    wl = jnp.pad(wl.reshape(-1, n_cls), ((0, 0), (0, 128 - n_cls)))
    bl = jnp.pad(params["b_out"].astype(jnp.float32),
                 (0, 128 - n_cls)).reshape(1, 128)
    logits = _linear(feat, wl.astype(jnp.bfloat16), bl, tb=tb)     # (bp, 128)
    return logits[:b, :n_cls]


# ---------------------------------------------------------------------------
# Pure-JAX reference (for correctness check)
# ---------------------------------------------------------------------------
def cnn_reference(x_nchw, params):
    def conv_block(x, w, b):
        y = jax.lax.conv_general_dilated(
            x, w, window_strides=(1, 1), padding=((2, 2), (2, 2)),
            dimension_numbers=("NCHW", "OIHW", "NCHW"))
        y = y + b.reshape(1, -1, 1, 1)
        y = jnp.maximum(y, 0.0)
        return jax.lax.reduce_window(
            y, -jnp.inf, jax.lax.max,
            window_dimensions=(1, 1, 2, 2), window_strides=(1, 1, 2, 2),
            padding="VALID")

    y = conv_block(x_nchw, params["w1"], params["b1"])
    y = conv_block(y, params["w2"], params["b2"])
    y = y.reshape(y.shape[0], -1)
    return y @ params["w_out"] + params["b_out"]


# ---------------------------------------------------------------------------
if __name__ == "__main__":
    key = jax.random.PRNGKey(0)
    kx, k1, kb1, k2, kb2, k3, kb3 = jax.random.split(key, 7)

    # Deterministic parameters (shapes from the PyTorch module __init__).
    params = {
        "w1": jax.random.normal(k1, (16, 1, 5, 5), jnp.float32) * 0.1,
        "b1": jax.random.normal(kb1, (16,), jnp.float32) * 0.1,
        "w2": jax.random.normal(k2, (32, 16, 5, 5), jnp.float32) * 0.05,
        "b2": jax.random.normal(kb2, (32,), jnp.float32) * 0.05,
        # stored as (in_features, out_features) = Linear.weight.T, rows in
        # PyTorch's (c, h, w) flatten order.
        "w_out": jax.random.normal(k3, (32 * 7 * 7, 10), jnp.float32) * 0.02,
        "b_out": jax.random.normal(kb3, (10,), jnp.float32) * 0.02,
    }

    # The Linear(32*7*7, 10) layer implies 28x28 spatial input (MNIST-like).
    x = jax.random.normal(kx, (2, 1, 28, 28), jnp.float32)

    fwd = jax.jit(cnn_forward)
    out = jax.block_until_ready(fwd(x, params))
    ref = jax.block_until_ready(cnn_reference(x, params))

    assert out.shape == (2, 10), out.shape
    # bf16 dot operands with f32 accumulation -> compare with a bf16-level
    # tolerance against the f32 reference.
    assert np.allclose(np.asarray(out), np.asarray(ref), rtol=3e-2, atol=3e-2), (
        "Pallas CNN output mismatch vs. JAX reference: "
        f"max abs diff = {np.abs(np.asarray(out) - np.asarray(ref)).max()}")

    print("KERNEL_OK")
</pallas_src>

<mosaic_0001>
module attributes {stable_mosaic.version = 11 : i64} {
  func.func @_conv_relu_pool_kernel(%arg0: i32, %arg1: memref<128x140xbf16, #tpu.memory_space<vmem>>, %arg2: memref<128x140xbf16, #tpu.memory_space<vmem>>, %arg3: memref<140x512xbf16, #tpu.memory_space<vmem>>, %arg4: memref<140x512xbf16, #tpu.memory_space<vmem>>, %arg5: memref<1x512xf32, #tpu.memory_space<vmem>>, %arg6: memref<128x256xbf16, #tpu.memory_space<vmem>>) attributes {dimension_semantics = [#tpu.dimension_semantics<parallel>], iteration_bounds = array<i64: 1>, scalar_prefetch = 0 : i64, scratch_operands = 0 : i64, tpu.core_type = #tpu.core_type<tc>, window_params = [{transform_indices = @transform_0, window_bounds = array<i64: 128, 140>}, {transform_indices = @transform_1, window_bounds = array<i64: 128, 140>}, {pipeline_mode = #tpu.pipeline_mode<synchronous>, transform_indices = @transform_2, window_bounds = array<i64: 140, 512>}, {pipeline_mode = #tpu.pipeline_mode<synchronous>, transform_indices = @transform_3, window_bounds = array<i64: 140, 512>}, {pipeline_mode = #tpu.pipeline_mode<synchronous>, transform_indices = @transform_4, window_bounds = array<i64: 1, 512>}, {transform_indices = @transform_5, window_bounds = array<i64: 128, 256>}]} {
    %c0 = arith.constant 0 : index
    %c0_0 = arith.constant 0 : index
    %0 = vector.load %arg1[%c0, %c0_0] : memref<128x140xbf16, #tpu.memory_space<vmem>>, vector<128x140xbf16>
    %c0_1 = arith.constant 0 : index
    %c0_2 = arith.constant 0 : index
    %1 = vector.load %arg2[%c0_1, %c0_2] : memref<128x140xbf16, #tpu.memory_space<vmem>>, vector<128x140xbf16>
    %c0_3 = arith.constant 0 : index
    %c0_4 = arith.constant 0 : index
    %2 = vector.load %arg3[%c0_3, %c0_4] : memref<140x512xbf16, #tpu.memory_space<vmem>>, vector<140x512xbf16>
    %cst = arith.constant dense<0.000000e+00> : vector<128x512xf32>
    %3 = tpu.matmul %0, %2, %cst {dimension_numbers = #tpu.dot_dimension_numbers<[1], [0], [0], [1], [0, 0, 1, 1], [], []>} : vector<128x140xbf16>, vector<140x512xbf16>, vector<128x512xf32> -> vector<128x512xf32>
    %c0_5 = arith.constant 0 : index
    %c0_6 = arith.constant 0 : index
    %4 = vector.load %arg4[%c0_5, %c0_6] : memref<140x512xbf16, #tpu.memory_space<vmem>>, vector<140x512xbf16>
    %cst_7 = arith.constant dense<0.000000e+00> : vector<128x512xf32>
    %5 = tpu.matmul %1, %4, %cst_7 {dimension_numbers = #tpu.dot_dimension_numbers<[1], [0], [0], [1], [0, 0, 1, 1], [], []>} : vector<128x140xbf16>, vector<140x512xbf16>, vector<128x512xf32> -> vector<128x512xf32>
    %6 = arith.maximumf %3, %5 : vector<128x512xf32>
    %c0_8 = arith.constant 0 : index
    %c0_9 = arith.constant 0 : index
    %7 = vector.load %arg5[%c0_8, %c0_9] : memref<1x512xf32, #tpu.memory_space<vmem>>, vector<1x512xf32>
    %8 = vector.broadcast %7 : vector<1x512xf32> to vector<128x512xf32>
    %9 = arith.addf %6, %8 : vector<128x512xf32>
    %cst_10 = arith.constant 0.000000e+00 : f32
    %10 = vector.broadcast %cst_10 : f32 to vector<128x512xf32>
    %11 = arith.maximumf %9, %10 : vector<128x512xf32>
    %12 = vector.extract_strided_slice %11 {offsets = [0, 0], sizes = [128, 256], strides = [1, 1]} : vector<128x512xf32> to vector<128x256xf32>
    %13 = vector.extract_strided_slice %11 {offsets = [0, 256], sizes = [128, 256], strides = [1, 1]} : vector<128x512xf32> to vector<128x256xf32>
    %14 = arith.maximumf %12, %13 : vector<128x256xf32>
    %15 = arith.truncf %14 : vector<128x256xf32> to vector<128x256xbf16>
    %c0_11 = arith.constant 0 : index
    %c0_12 = arith.constant 0 : index
    %16 = vector.load %arg6[%c0_11, %c0_12] : memref<128x256xbf16, #tpu.memory_space<vmem>>, vector<128x256xbf16>
    tpu.vector_store %arg6[%c0_11, %c0_12], %15 {strides = array<i32>} : memref<128x256xbf16, #tpu.memory_space<vmem>>, vector<128x256xbf16>,
    return
  }
  func.func @transform_0(%arg0: i32) -> (i32, i32) {
    %c0_i32 = arith.constant 0 : i32
    %c0_i32_0 = arith.constant 0 : i32
    return %arg0, %c0_i32 : i32, i32
  }
  func.func @transform_1(%arg0: i32) -> (i32, i32) {
    %c0_i32 = arith.constant 0 : i32
    %c0_i32_0 = arith.constant 0 : i32
    return %arg0, %c0_i32 : i32, i32
  }
  func.func @transform_2(%arg0: i32) -> (i32, i32) {
    %c0_i32 = arith.constant 0 : i32
    %c0_i32_0 = arith.constant 0 : i32
    %c0_i32_1 = arith.constant 0 : i32
    return %c0_i32, %c0_i32_0 : i32, i32
  }
  func.func @transform_3(%arg0: i32) -> (i32, i32) {
    %c0_i32 = arith.constant 0 : i32
    %c0_i32_0 = arith.constant 0 : i32
    %c0_i32_1 = arith.constant 0 : i32
    return %c0_i32, %c0_i32_0 : i32, i32
  }
  func.func @transform_4(%arg0: i32) -> (i32, i32) {
    %c0_i32 = arith.constant 0 : i32
    %c0_i32_0 = arith.constant 0 : i32
    %c0_i32_1 = arith.constant 0 : i32
    return %c0_i32, %c0_i32_0 : i32, i32
  }
  func.func @transform_5(%arg0: i32) -> (i32, i32) {
    %c0_i32 = arith.constant 0 : i32
    %c0_i32_0 = arith.constant 0 : i32
    return %arg0, %c0_i32 : i32, i32
  }
}

module attributes {stable_mosaic.version = 11 : i64} {
  func.func @_conv_relu_pool_kernel(%arg0: i32, %arg1: memref<72x256xbf16, #tpu.memory_space<vmem>>, %arg2: memref<72x256xbf16, #tpu.memory_space<vmem>>, %arg3: memref<1280x512xbf16, #tpu.memory_space<vmem>>, %arg4: memref<1280x512xbf16, #tpu.memory_space<vmem>>, %arg5: memref<1x512xf32, #tpu.memory_space<vmem>>, %arg6: memref<72x256xbf16, #tpu.memory_space<vmem>>) attributes {dimension_semantics = [#tpu.dimension_semantics<parallel>], iteration_bounds = array<i64: 1>, scalar_prefetch = 0 : i64, scratch_operands = 0 : i64, tpu.core_type = #tpu.core_type<tc>, window_params = [{transform_indices = @transform_0, window_bounds = array<i64: 72, 256>}, {transform_indices = @transform_1, window_bounds = array<i64: 72, 256>}, {pipeline_mode = #tpu.pipeline_mode<synchronous>, transform_indices = @transform_2, window_bounds = array<i64: 1280, 512>}, {pipeline_mode = #tpu.pipeline_mode<synchronous>, transform_indices = @transform_3, window_bounds = array<i64: 1280, 512>}, {pipeline_mode = #tpu.pipeline_mode<synchronous>, transform_indices = @transform_4, window_bounds = array<i64: 1, 512>}, {transform_indices = @transform_5, window_bounds = array<i64: 72, 256>}]} {
    %c0 = arith.constant 0 : index
    %c0_0 = arith.constant 0 : index
    %0 = vector.load %arg1[%c0, %c0_0] : memref<72x256xbf16, #tpu.memory_space<vmem>>, vector<70x256xbf16>
    %c1 = arith.constant 1 : index
    %c0_1 = arith.constant 0 : index
    %1 = vector.load %arg1[%c1, %c0_1] : memref<72x256xbf16, #tpu.memory_space<vmem>>, vector<70x256xbf16>
    %c2 = arith.constant 2 : index
    %c0_2 = arith.constant 0 : index
    %2 = vector.load %arg1[%c2, %c0_2] : memref<72x256xbf16, #tpu.memory_space<vmem>>, vector<70x256xbf16>
    %c0_3 = arith.constant 0 : index
    %c0_4 = arith.constant 0 : index
    %3 = vector.load %arg2[%c0_3, %c0_4] : memref<72x256xbf16, #tpu.memory_space<vmem>>, vector<70x256xbf16>
    %c1_5 = arith.constant 1 : index
    %c0_6 = arith.constant 0 : index
    %4 = vector.load %arg2[%c1_5, %c0_6] : memref<72x256xbf16, #tpu.memory_space<vmem>>, vector<70x256xbf16>
    %c2_7 = arith.constant 2 : index
    %c0_8 = arith.constant 0 : index
    %5 = vector.load %arg2[%c2_7, %c0_8] : memref<72x256xbf16, #tpu.memory_space<vmem>>, vector<70x256xbf16>
    %6 = tpu.concatenate %0, %1, %2, %3, %4 in 1 : vector<70x256xbf16>, vector<70x256xbf16>, vector<70x256xbf16>, vector<70x256xbf16>, vector<70x256xbf16> -> vector<70x1280xbf16>
    %7 = tpu.concatenate %1, %2, %3, %4, %5 in 1 : vector<70x256xbf16>, vector<70x256xbf16>, vector<70x256xbf16>, vector<70x256xbf16>, vector<70x256xbf16> -> vector<70x1280xbf16>
    %c0_9 = arith.constant 0 : index
    %c0_10 = arith.constant 0 : index
    %8 = vector.load %arg3[%c0_9, %c0_10] : memref<1280x512xbf16, #tpu.memory_space<vmem>>, vector<1280x512xbf16>
    %cst = arith.constant dense<0.000000e+00> : vector<70x512xf32>
    %9 = tpu.matmul %6, %8, %cst {dimension_numbers = #tpu.dot_dimension_numbers<[1], [0], [0], [1], [0, 0, 1, 1], [], []>} : vector<70x1280xbf16>, vector<1280x512xbf16>, vector<70x512xf32> -> vector<70x512xf32>
    %c0_11 = arith.constant 0 : index
    %c0_12 = arith.constant 0 : index
    %10 = vector.load %arg4[%c0_11, %c0_12] : memref<1280x512xbf16, #tpu.memory_space<vmem>>, vector<1280x512xbf16>
    %cst_13 = arith.constant dense<0.000000e+00> : vector<70x512xf32>
    %11 = tpu.matmul %7, %10, %cst_13 {dimension_numbers = #tpu.dot_dimension_numbers<[1], [0], [0], [1], [0, 0, 1, 1], [], []>} : vector<70x1280xbf16>, vector<1280x512xbf16>, vector<70x512xf32> -> vector<70x512xf32>
    %12 = arith.maximumf %9, %11 : vector<70x512xf32>
    %c0_14 = arith.constant 0 : index
    %c0_15 = arith.constant 0 : index
    %13 = vector.load %arg5[%c0_14, %c0_15] : memref<1x512xf32, #tpu.memory_space<vmem>>, vector<1x512xf32>
    %14 = vector.broadcast %13 : vector<1x512xf32> to vector<70x512xf32>
    %15 = arith.addf %12, %14 : vector<70x512xf32>
    %cst_16 = arith.constant 0.000000e+00 : f32
    %16 = vector.broadcast %cst_16 : f32 to vector<70x512xf32>
    %17 = arith.maximumf %15, %16 : vector<70x512xf32>
    %18 = vector.extract_strided_slice %17 {offsets = [0, 0], sizes = [70, 256], strides = [1, 1]} : vector<70x512xf32> to vector<70x256xf32>
    %19 = vector.extract_strided_slice %17 {offsets = [0, 256], sizes = [70, 256], strides = [1, 1]} : vector<70x512xf32> to vector<70x256xf32>
    %20 = arith.maximumf %18, %19 : vector<70x256xf32>
    %21 = arith.truncf %20 : vector<70x256xf32> to vector<70x256xbf16>
    %c0_17 = arith.constant 0 : index
    %c0_18 = arith.constant 0 : index
    %22 = vector.load %arg6[%c0_17, %c0_18] : memref<72x256xbf16, #tpu.memory_space<vmem>>, vector<70x256xbf16>
    tpu.vector_store %arg6[%c0_17, %c0_18], %21 {strides = array<i32>} : memref<72x256xbf16, #tpu.memory_space<vmem>>, vector<70x256xbf16>,
    %cst_19 = arith.constant 0.000000e+00 : bf16
    %23 = vector.broadcast %cst_19 : bf16 to vector<2x256xbf16>
    %c70 = arith.constant 70 : index
    %c0_20 = arith.constant 0 : index
    %24 = vector.load %arg6[%c70, %c0_20] : memref<72x256xbf16, #tpu.memory_space<vmem>>, vector<2x256xbf16>
    tpu.vector_store %arg6[%c70, %c0_20], %23 {strides = array<i32>} : memref<72x256xbf16, #tpu.memory_space<vmem>>, vector<2x256xbf16>,
    return
  }
  func.func @transform_0(%arg0: i32) -> (i32, i32) {
    %c0_i32 = arith.constant 0 : i32
    %c0_i32_0 = arith.constant 0 : i32
    return %arg0, %c0_i32 : i32, i32
  }
  func.func @transform_1(%arg0: i32) -> (i32, i32) {
    %c0_i32 = arith.constant 0 : i32
    %c0_i32_0 = arith.constant 0 : i32
    return %arg0, %c0_i32 : i32, i32
  }
  func.func @transform_2(%arg0: i32) -> (i32, i32) {
    %c0_i32 = arith.constant 0 : i32
    %c0_i32_0 = arith.constant 0 : i32
    %c0_i32_1 = arith.constant 0 : i32
    return %c0_i32, %c0_i32_0 : i32, i32
  }
  func.func @transform_3(%arg0: i32) -> (i32, i32) {
    %c0_i32 = arith.constant 0 : i32
    %c0_i32_0 = arith.constant 0 : i32
    %c0_i32_1 = arith.constant 0 : i32
    return %c0_i32, %c0_i32_0 : i32, i32
  }
  func.func @transform_4(%arg0: i32) -> (i32, i32) {
    %c0_i32 = arith.constant 0 : i32
    %c0_i32_0 = arith.constant 0 : i32
    %c0_i32_1 = arith.constant 0 : i32
    return %c0_i32, %c0_i32_0 : i32, i32
  }
  func.func @transform_5(%arg0: i32) -> (i32, i32) {
    %c0_i32 = arith.constant 0 : i32
    %c0_i32_0 = arith.constant 0 : i32
    return %arg0, %c0_i32 : i32, i32
  }
}

module attributes {stable_mosaic.version = 11 : i64} {
  func.func @_linear_kernel(%arg0: i32, %arg1: memref<8x2304xbf16, #tpu.memory_space<vmem>>, %arg2: memref<2304x128xbf16, #tpu.memory_space<vmem>>, %arg3: memref<1x128xf32, #tpu.memory_space<vmem>>, %arg4: memref<8x128xf32, #tpu.memory_space<vmem>>) attributes {dimension_semantics = [#tpu.dimension_semantics<parallel>], iteration_bounds = array<i64: 1>, scalar_prefetch = 0 : i64, scratch_operands = 0 : i64, tpu.core_type = #tpu.core_type<tc>, window_params = [{transform_indices = @transform_0, window_bounds = array<i64: 8, 2304>}, {pipeline_mode = #tpu.pipeline_mode<synchronous>, transform_indices = @transform_1, window_bounds = array<i64: 2304, 128>}, {pipeline_mode = #tpu.pipeline_mode<synchronous>, transform_indices = @transform_2, window_bounds = array<i64: 1, 128>}, {transform_indices = @transform_3, window_bounds = array<i64: 8, 128>}]} {
    %c0 = arith.constant 0 : index
    %c0_0 = arith.constant 0 : index
    %0 = vector.load %arg1[%c0, %c0_0] : memref<8x2304xbf16, #tpu.memory_space<vmem>>, vector<8x2304xbf16>
    %c0_1 = arith.constant 0 : index
    %c0_2 = arith.constant 0 : index
    %1 = vector.load %arg2[%c0_1, %c0_2] : memref<2304x128xbf16, #tpu.memory_space<vmem>>, vector<2304x128xbf16>
    %cst = arith.constant dense<0.000000e+00> : vector<8x128xf32>
    %2 = tpu.matmul %0, %1, %cst {dimension_numbers = #tpu.dot_dimension_numbers<[1], [0], [0], [1], [0, 0, 1, 1], [], []>} : vector<8x2304xbf16>, vector<2304x128xbf16>, vector<8x128xf32> -> vector<8x128xf32>
    %c0_3 = arith.constant 0 : index
    %c0_4 = arith.constant 0 : index
    %3 = vector.load %arg3[%c0_3, %c0_4] : memref<1x128xf32, #tpu.memory_space<vmem>>, vector<1x128xf32>
    %4 = vector.broadcast %3 : vector<1x128xf32> to vector<8x128xf32>
    %5 = arith.addf %2, %4 : vector<8x128xf32>
    %c0_5 = arith.constant 0 : index
    %c0_6 = arith.constant 0 : index
    %6 = vector.load %arg4[%c0_5, %c0_6] : memref<8x128xf32, #tpu.memory_space<vmem>>, vector<8x128xf32>
    tpu.vector_store %arg4[%c0_5, %c0_6], %5 {strides = array<i32>} : memref<8x128xf32, #tpu.memory_space<vmem>>, vector<8x128xf32>,
    return
  }
  func.func @transform_0(%arg0: i32) -> (i32, i32) {
    %c0_i32 = arith.constant 0 : i32
    %c0_i32_0 = arith.constant 0 : i32
    return %arg0, %c0_i32 : i32, i32
  }
  func.func @transform_1(%arg0: i32) -> (i32, i32) {
    %c0_i32 = arith.constant 0 : i32
    %c0_i32_0 = arith.constant 0 : i32
    %c0_i32_1 = arith.constant 0 : i32
    return %c0_i32, %c0_i32_0 : i32, i32
  }
  func.func @transform_2(%arg0: i32) -> (i32, i32) {
    %c0_i32 = arith.constant 0 : i32
    %c0_i32_0 = arith.constant 0 : i32
    %c0_i32_1 = arith.constant 0 : i32
    return %c0_i32, %c0_i32_0 : i32, i32
  }
  func.func @transform_3(%arg0: i32) -> (i32, i32) {
    %c0_i32 = arith.constant 0 : i32
    %c0_i32_0 = arith.constant 0 : i32
    return %arg0, %c0_i32 : i32, i32
  }
}

</mosaic_0001>

<llo_original>
// kernel: cnn_forward.3
$region0: #{cnn_forward.3}
  #allocation0 [shape = 'u32[]', space=smem, size = 0x4, offset = 0x4, fixed_abs, tag = 'smem constant byte address 0x4 - core index']
  #allocation1 [shape = 'u32[144,128]{1,0:T(1,128)}', space=vmem, size = 0x12000, scoped, tag = 'internal scratch']
  %s0 = inlined_call_operand.vmem [shape: bf16[128,140], index: 0, kind: input, shape index: {}]
  %s1 = inlined_call_operand.vmem [shape: bf16[128,140], index: 1, kind: input, shape index: {}]
  %s2 = inlined_call_operand.vmem [shape: bf16[140,512], index: 2, kind: input, shape index: {}]
  %s3 = inlined_call_operand.vmem [shape: bf16[140,512], index: 3, kind: input, shape index: {}]
  %s4 = inlined_call_operand.vmem [shape: f32[1,512], index: 4, kind: input, shape index: {}]
  %s5 = inlined_call_operand.vmem [shape: bf16[128,256], index: 5, kind: output, shape index: {}]
  %s6 = sld [smem:[#allocation0]]
  $region30: #{cnn_forward.3} parent=0
    _
  %s8 = ssub.s32 1, %s6
  %s9 = scalar_select 0, %s8, %s6
  // Predicated region
  $region2: #{cnn_forward.3} parent=0 // pred_check
    _
  $region3: #{cnn_forward.3} parent=0 // pred_check_branch
    %11 = sbr.rel (0) target = $region5
  $region4: #{cnn_forward.3} parent=0 // pred_region
    _
  $region5: #{cnn_forward.3} parent=0 // pred_fallthru
    _
  // Predicated region
  $region6: #{cnn_forward.3} parent=0 // pred_check
    _
  $region7: #{cnn_forward.3} parent=0 // pred_check_branch
    %13 = sbr.rel (0) target = $region9
  $region8: #{cnn_forward.3} parent=0 // pred_region
    _
  $region9: #{cnn_forward.3} parent=0 // pred_fallthru
    _
  // Predicated region
  $region10: #{cnn_forward.3} parent=0 // pred_check
    _
  $region11: #{cnn_forward.3} parent=0 // pred_check_branch
    %15 = sbr.rel (0) target = $region13
  $region12: #{cnn_forward.3} parent=0 // pred_region
    _
  $region13: #{cnn_forward.3} parent=0 // pred_fallthru
    _
  // Predicated region
  $region14: #{cnn_forward.3} parent=0 // pred_check
    _
  $region15: #{cnn_forward.3} parent=0 // pred_check_branch
    %17 = sbr.rel (0) target = $region17
  $region16: #{cnn_forward.3} parent=0 // pred_region
    _
  $region17: #{cnn_forward.3} parent=0 // pred_fallthru
    _
  // Predicated region
  $region18: #{cnn_forward.3} parent=0 // pred_check
    _
  $region19: #{cnn_forward.3} parent=0 // pred_check_branch
    %19 = sbr.rel (0) target = $region21
  $region20: #{cnn_forward.3} parent=0 // pred_region
    _
  $region21: #{cnn_forward.3} parent=0 // pred_fallthru
    _
  %v21 = vld [vmem:[%s0] sm:$0xff]
  %v22 = vld [vmem:[%s0 + $0x8] sm:$0xff]
  %v23 = vld [vmem:[%s0 + $0x10] sm:$0xff]
  %v24 = vld [vmem:[%s0 + $0x18] sm:$0xff]
  %v25 = vld [vmem:[%s0 + $0x20] sm:$0xff]
  %v26 = vld [vmem:[%s0 + $0x28] sm:$0xff]
  %v27 = vld [vmem:[%s0 + $0x30] sm:$0xff]
  %v28 = vld [vmem:[%s0 + $0x38] sm:$0xff]
  %v29 = vld [vmem:[%s0 + $0x40] sm:$0xff]
  %v30 = vld [vmem:[%s0 + $0x48] sm:$0xff]
  %v31 = vld [vmem:[%s0 + $0x50] sm:$0xff]
  %v32 = vld [vmem:[%s0 + $0x58] sm:$0xff]
  %v33 = vld [vmem:[%s0 + $0x60] sm:$0xff]
  %v34 = vld [vmem:[%s0 + $0x68] sm:$0xff]
  %v35 = vld [vmem:[%s0 + $0x70] sm:$0xff]
  %v36 = vld [vmem:[%s0 + $0x78] sm:$0xff]
  %v37 = vld [vmem:[%s1] sm:$0xff]
  %v38 = vld [vmem:[%s1 + $0x8] sm:$0xff]
  %v39 = vld [vmem:[%s1 + $0x10] sm:$0xff]
  %v40 = vld [vmem:[%s1 + $0x18] sm:$0xff]
  %v41 = vld [vmem:[%s1 + $0x20] sm:$0xff]
  %v42 = vld [vmem:[%s1 + $0x28] sm:$0xff]
  %v43 = vld [vmem:[%s1 + $0x30] sm:$0xff]
  %v44 = vld [vmem:[%s1 + $0x38] sm:$0xff]
  %v45 = vld [vmem:[%s1 + $0x40] sm:$0xff]
  %v46 = vld [vmem:[%s1 + $0x48] sm:$0xff]
  %v47 = vld [vmem:[%s1 + $0x50] sm:$0xff]
  %v48 = vld [vmem:[%s1 + $0x58] sm:$0xff]
  %v49 = vld [vmem:[%s1 + $0x60] sm:$0xff]
  %v50 = vld [vmem:[%s1 + $0x68] sm:$0xff]
  %v51 = vld [vmem:[%s1 + $0x70] sm:$0xff]
  %v52 = vld [vmem:[%s1 + $0x78] sm:$0xff]
  %v53 = vld [vmem:[%s2] sm:$0xff]
  %v54 = vld [vmem:[%s2 + $0x8] sm:$0xff]
  %v55 = vld [vmem:[%s2 + $0x10] sm:$0xff]
  %v56 = vld [vmem:[%s2 + $0x18] sm:$0xff]
  %v57 = vld [vmem:[%s2 + $0x20] sm:$0xff]
  %v58 = vld [vmem:[%s2 + $0x28] sm:$0xff]
  %v59 = vld [vmem:[%s2 + $0x30] sm:$0xff]
  %v60 = vld [vmem:[%s2 + $0x38] sm:$0xff]
  %v61 = vld [vmem:[%s2 + $0x40] sm:$0xff]
  %v62 = vld [vmem:[%s2 + $0x48] sm:$0xff]
  %v63 = vld [vmem:[%s2 + $0x50] sm:$0xff]
  %v64 = vld [vmem:[%s2 + $0x58] sm:$0xff]
  %v65 = vld [vmem:[%s2 + $0x60] sm:$0xff]
  %v66 = vld [vmem:[%s2 + $0x68] sm:$0xff]
  %v67 = vld [vmem:[%s2 + $0x70] sm:$0xff]
  %v68 = vld [vmem:[%s2 + $0x78] sm:$0xff]
  %v69 = vld [vmem:[%s2 + $0x80] sm:$0xff]
  %v70 = vld [vmem:[%s2 + $0x88] sm:$0xff]
  %v71 = vld [vmem:[%s2 + $0x90] sm:$0xff]
  %v72 = vld [vmem:[%s2 + $0x98] sm:$0xff]
  %v73 = vld [vmem:[%s2 + $0xa0] sm:$0xff]
  %v74 = vld [vmem:[%s2 + $0xa8] sm:$0xff]
  %v75 = vld [vmem:[%s2 + $0xb0] sm:$0xff]
  %v76 = vld [vmem:[%s2 + $0xb8] sm:$0xff]
  %v77 = vld [vmem:[%s2 + $0xc0] sm:$0xff]
  %v78 = vld [vmem:[%s2 + $0xc8] sm:$0xff]
  %v79 = vld [vmem:[%s2 + $0xd0] sm:$0xff]
  %v80 = vld [vmem:[%s2 + $0xd8] sm:$0xff]
  %v81 = vld [vmem:[%s2 + $0xe0] sm:$0xff]
  %v82 = vld [vmem:[%s2 + $0xe8] sm:$0xff]
  %v83 = vld [vmem:[%s2 + $0xf0] sm:$0xff]
  %v84 = vld [vmem:[%s2 + $0xf8] sm:$0xff]
  %v85 = vld [vmem:[%s2 + $0x100] sm:$0xff]
  %v86 = vld [vmem:[%s2 + $0x108] sm:$0xff]
  %v87 = vld [vmem:[%s2 + $0x110] sm:$0x33]
  %v88 = vld [vmem:[%s2 + $0x118] sm:$0x33]
  %v105 = vunpack.c.l.b16 %v21
  %v106 = vunpack.c.h.b16 %v21
  %v107 = vunpack.c.l.b16 %v22
  %v108 = vunpack.c.h.b16 %v22
  %v109 = vunpack.c.l.b16 %v23
  %v110 = vunpack.c.h.b16 %v23
  %v111 = vunpack.c.l.b16 %v24
  %v112 = vunpack.c.h.b16 %v24
  %v113 = vunpack.c.l.b16 %v25
  %v114 = vunpack.c.h.b16 %v25
  %v115 = vunpack.c.l.b16 %v26
  %v116 = vunpack.c.h.b16 %v26
  %v117 = vunpack.c.l.b16 %v27
  %v118 = vunpack.c.h.b16 %v27
  %v119 = vunpack.c.l.b16 %v28
  %v120 = vunpack.c.h.b16 %v28
  %v121 = vunpack.c.l.b16 %v29
  %v122 = vunpack.c.h.b16 %v29
  %v123 = vunpack.c.l.b16 %v30
  %v124 = vunpack.c.h.b16 %v30
  %v125 = vunpack.c.l.b16 %v31
  %v126 = vunpack.c.h.b16 %v31
  %v127 = vunpack.c.l.b16 %v32
  %v128 = vunpack.c.h.b16 %v32
  %v129 = vunpack.c.l.b16 %v33
  %v130 = vunpack.c.h.b16 %v33
  %v131 = vunpack.c.l.b16 %v34
  %v132 = vunpack.c.h.b16 %v34
  %v133 = vunpack.c.l.b16 %v35
  %v134 = vunpack.c.h.b16 %v35
  %v135 = vunpack.c.l.b16 %v36
  %v136 = vunpack.c.h.b16 %v36
  %v137 = vpack.c.b16 %v107, %v105
  %v138 = vpack.c.b16 %v108, %v106
  %v139 = vpack.c.b16 %v111, %v109
  %v140 = vpack.c.b16 %v112, %v110
  %v141 = vpack.c.b16 %v115, %v113
  %v142 = vpack.c.b16 %v116, %v114
  %v143 = vpack.c.b16 %v119, %v117
  %v144 = vpack.c.b16 %v120, %v118
  %v145 = vpack.c.b16 %v123, %v121
  %v146 = vpack.c.b16 %v124, %v122
  %v147 = vpack.c.b16 %v127, %v125
  %v148 = vpack.c.b16 %v128, %v126
  %v149 = vpack.c.b16 %v131, %v129
  %v150 = vpack.c.b16 %v132, %v130
  %v151 = vpack.c.b16 %v135, %v133
  %v152 = vpack.c.b16 %v136, %v134
  %v197 = vunpack.c.l.b16 %v53
  %v198 = vunpack.c.h.b16 %v53
  %v199 = vunpack.c.l.b16 %v54
  %v200 = vunpack.c.h.b16 %v54
  %v201 = vunpack.c.l.b16 %v55
  %v202 = vunpack.c.h.b16 %v55
  %v203 = vunpack.c.l.b16 %v56
  %v204 = vunpack.c.h.b16 %v56
  %v205 = vunpack.c.l.b16 %v57
  %v206 = vunpack.c.h.b16 %v57
  %v207 = vunpack.c.l.b16 %v58
  %v208 = vunpack.c.h.b16 %v58
  %v209 = vunpack.c.l.b16 %v59
  %v210 = vunpack.c.h.b16 %v59
  %v211 = vunpack.c.l.b16 %v60
  %v212 = vunpack.c.h.b16 %v60
  %v213 = vunpack.c.l.b16 %v61
  %v214 = vunpack.c.h.b16 %v61
  %v215 = vunpack.c.l.b16 %v62
  %v216 = vunpack.c.h.b16 %v62
  %v217 = vunpack.c.l.b16 %v63
  %v218 = vunpack.c.h.b16 %v63
  %v219 = vunpack.c.l.b16 %v64
  %v220 = vunpack.c.h.b16 %v64
  %v221 = vunpack.c.l.b16 %v65
  %v222 = vunpack.c.h.b16 %v65
  %v223 = vunpack.c.l.b16 %v66
  %v224 = vunpack.c.h.b16 %v66
  %v225 = vunpack.c.l.b16 %v67
  %v226 = vunpack.c.h.b16 %v67
  %v227 = vunpack.c.l.b16 %v68
  %v228 = vunpack.c.h.b16 %v68
  %v229 = vunpack.c.l.b16 %v69
  %v230 = vunpack.c.h.b16 %v69
  %v231 = vunpack.c.l.b16 %v70
  %v232 = vunpack.c.h.b16 %v70
  %v233 = vunpack.c.l.b16 %v71
  %v234 = vunpack.c.h.b16 %v71
  %v235 = vunpack.c.l.b16 %v72
  %v236 = vunpack.c.h.b16 %v72
  %v237 = vunpack.c.l.b16 %v73
  %v238 = vunpack.c.h.b16 %v73
  %v239 = vunpack.c.l.b16 %v74
  %v240 = vunpack.c.h.b16 %v74
  %v241 = vunpack.c.l.b16 %v75
  %v242 = vunpack.c.h.b16 %v75
  %v243 = vunpack.c.l.b16 %v76
  %v244 = vunpack.c.h.b16 %v76
  %v245 = vunpack.c.l.b16 %v77
  %v246 = vunpack.c.h.b16 %v77
  %v247 = vunpack.c.l.b16 %v78
  %v248 = vunpack.c.h.b16 %v78
  %v249 = vunpack.c.l.b16 %v79
  %v250 = vunpack.c.h.b16 %v79
  %v251 = vunpack.c.l.b16 %v80
  %v252 = vunpack.c.h.b16 %v80
  %v253 = vunpack.c.l.b16 %v81
  %v254 = vunpack.c.h.b16 %v81
  %v255 = vunpack.c.l.b16 %v82
  %v256 = vunpack.c.h.b16 %v82
  %v257 = vunpack.c.l.b16 %v83
  %v258 = vunpack.c.h.b16 %v83
  %v259 = vunpack.c.l.b16 %v84
  %v260 = vunpack.c.h.b16 %v84
  %v261 = vunpack.c.l.b16 %v85
  %v262 = vunpack.c.h.b16 %v85
  %v263 = vunpack.c.l.b16 %v86
  %v264 = vunpack.c.h.b16 %v86
  %v265 = vunpack.c.l.b16 %v87
  %v266 = vunpack.c.h.b16 %v87
  %v267 = vunpack.c.l.b16 %v88
  %v268 = vunpack.c.h.b16 %v88
  %v269 = vpack.c.b16 %v201, %v197
  %v270 = vpack.c.b16 %v202, %v198
  %v271 = vpack.c.b16 %v203, %v199
  %v272 = vpack.c.b16 %v204, %v200
  %v273 = vpack.c.b16 %v209, %v205
  %v274 = vpack.c.b16 %v210, %v206
  %v275 = vpack.c.b16 %v211, %v207
  %v276 = vpack.c.b16 %v212, %v208
  %v277 = vpack.c.b16 %v217, %v213
  %v278 = vpack.c.b16 %v218, %v214
  %v279 = vpack.c.b16 %v219, %v215
  %v280 = vpack.c.b16 %v220, %v216
  %v281 = vpack.c.b16 %v225, %v221
  %v282 = vpack.c.b16 %v226, %v222
  %v283 = vpack.c.b16 %v227, %v223
  %v284 = vpack.c.b16 %v228, %v224
  %v285 = vpack.c.b16 %v233, %v229
  %v286 = vpack.c.b16 %v234, %v230
  %v287 = vpack.c.b16 %v235, %v231
  %v288 = vpack.c.b16 %v236, %v232
  %v289 = vpack.c.b16 %v241, %v237
  %v290 = vpack.c.b16 %v242, %v238
  %v291 = vpack.c.b16 %v243, %v239
  %v292 = vpack.c.b16 %v244, %v240
  %v293 = vpack.c.b16 %v249, %v245
  %v294 = vpack.c.b16 %v250, %v246
  %v295 = vpack.c.b16 %v251, %v247
  %v296 = vpack.c.b16 %v252, %v248
  %v297 = vpack.c.b16 %v257, %v253
  %v298 = vpack.c.b16 %v258, %v254
  %v299 = vpack.c.b16 %v259, %v255
  %v300 = vpack.c.b16 %v260, %v256
  %v301 = vpack.c.b16 %v265, %v261
  %v302 = vpack.c.b16 %v266, %v262
  %v303 = vpack.c.b16 %v267, %v263
  %v304 = vpack.c.b16 %v268, %v264
  %vm337 = vcmask 97280
  %v339 = vsel %vm337, %v138, 0
  %v342 = vsel %vm337, %v140, 0
  %v345 = vsel %vm337, %v142, 0
  %v348 = vsel %vm337, %v144, 0
  %v351 = vsel %vm337, %v146, 0
  %v354 = vsel %vm337, %v148, 0
  %v357 = vsel %vm337, %v150, 0
  %v360 = vsel %vm337, %v152, 0
  %vm362 = vcmask 1045504
  %v364 = vsel %vm362, %v301, 0
  %v367 = vsel %vm362, %v302, 0
  %v370 = vsel %vm362, %v303, 0
  %v373 = vsel %vm362, %v304, 0
  %375 = vmatprep.subr.bf16.mxu0 %v270
  %376 = vmatpush1.bf16.msra.mxu0 %v269
  %377 = vmatprep.subr.bf16.mxu0 %v274
  %378 = vmatpush1.bf16.msra.mxu0 %v273
  %379 = vmatprep.subr.bf16.mxu0 %v278
  %380 = vmatpush1.bf16.msra.mxu0 %v277
  %381 = vmatprep.subr.bf16.mxu0 %v282
  %382 = vmatpush1.bf16.msra.mxu0 %v281
  %383 = vmatprep.subr.bf16.mxu0 %v286
  %384 = vmatpush1.bf16.msra.mxu0 %v285
  %385 = vmatprep.subr.bf16.mxu0 %v290
  %386 = vmatpush1.bf16.msra.mxu0 %v289
  %387 = vmatprep.subr.bf16.mxu0 %v294
  %388 = vmatpush1.bf16.msra.mxu0 %v293
  %389 = vmatprep.subr.bf16.mxu0 %v298
  %390 = vmatpush1.bf16.msra.mxu0 %v297
  %391 = vmatprep.subr.bf16.mxu0 %v367
  %392 = vmatpush1.bf16.msra.mxu0 %v364
  %393 = vmatprep.subr.bf16.mxu0 0
  %394 = vmatpush1.bf16.msra.mxu0 0
  %395 = vmatprep.subr.bf16.mxu0 0
  %396 = vmatpush1.bf16.msra.mxu0 0
  %397 = vmatprep.subr.bf16.mxu0 0
  %398 = vmatpush1.bf16.msra.mxu0 0
  %399 = vmatprep.subr.bf16.mxu0 0
  %400 = vmatpush1.bf16.msra.mxu0 0
  %401 = vmatprep.subr.bf16.mxu0 0
  %402 = vmatpush1.bf16.msra.mxu0 0
  %403 = vmatprep.subr.bf16.mxu0 0
  %404 = vmatpush1.bf16.msra.mxu0 0
  %405 = vmatprep.subr.bf16.mxu0 0
  %406 = vmatpush1.bf16.msra.mxu0 0
  %407 = vmatprep.mubr.bf16.mxu0 %v339
  %408 = vmatmul.mubr.bf16.gmra.mrb[0].mxu0 %v137
  %v409 = vpop.f32.mrb[0].mxu0
  %v410 = vadd.f32 0.0, %v409
  %v411 = vpop.f32.mrb[0].mxu0
  %v412 = vadd.f32 0.0, %v411
  %v413 = vpop.f32.mrb[0].mxu0
  %v414 = vadd.f32 0.0, %v413
  %v415 = vpop.f32.mrb[0].mxu0
  %v416 = vadd.f32 0.0, %v415
  %417 = vmatprep.mubr.bf16.mxu0 %v342
  %418 = vmatmul.mubr.bf16.gmra.mrb[0].mxu0 %v139
  %v419 = vpop.f32.mrb[0].mxu0
  %v420 = vadd.f32 0.0, %v419
  %v421 = vpop.f32.mrb[0].mxu0
  %v422 = vadd.f32 0.0, %v421
  %v423 = vpop.f32.mrb[0].mxu0
  %v424 = vadd.f32 0.0, %v423
  %v425 = vpop.f32.mrb[0].mxu0
  %v426 = vadd.f32 0.0, %v425
  %427 = vmatprep.mubr.bf16.mxu0 %v345
  %428 = vmatmul.mubr.bf16.gmra.mrb[0].mxu0 %v141
  %v429 = vpop.f32.mrb[0].mxu0
  %v430 = vadd.f32 0.0, %v429
  %v431 = vpop.f32.mrb[0].mxu0
  %v432 = vadd.f32 0.0, %v431
  %v433 = vpop.f32.mrb[0].mxu0
  %v434 = vadd.f32 0.0, %v433
  %v435 = vpop.f32.mrb[0].mxu0
  %v436 = vadd.f32 0.0, %v435
  %437 = vmatprep.mubr.bf16.mxu0 %v348
  %438 = vmatmul.mubr.bf16.gmra.mrb[0].mxu0 %v143
  %v439 = vpop.f32.mrb[0].mxu0
  %v440 = vadd.f32 0.0, %v439
  %v441 = vpop.f32.mrb[0].mxu0
  %v442 = vadd.f32 0.0, %v441
  %v443 = vpop.f32.mrb[0].mxu0
  %v444 = vadd.f32 0.0, %v443
  %v445 = vpop.f32.mrb[0].mxu0
  %v446 = vadd.f32 0.0, %v445
  %447 = vmatprep.mubr.bf16.mxu0 %v351
  %448 = vmatmul.mubr.bf16.gmra.mrb[0].mxu0 %v145
  %v449 = vpop.f32.mrb[0].mxu0
  %v450 = vadd.f32 0.0, %v449
  %v451 = vpop.f32.mrb[0].mxu0
  %v452 = vadd.f32 0.0, %v451
  %v453 = vpop.f32.mrb[0].mxu0
  %v454 = vadd.f32 0.0, %v453
  %v455 = vpop.f32.mrb[0].mxu0
  %v456 = vadd.f32 0.0, %v455
  %457 = vmatprep.mubr.bf16.mxu0 %v354
  %458 = vmatmul.mubr.bf16.gmra.mrb[0].mxu0 %v147
  %v459 = vpop.f32.mrb[0].mxu0
  %v460 = vadd.f32 0.0, %v459
  %v461 = vpop.f32.mrb[0].mxu0
  %v462 = vadd.f32 0.0, %v461
  %v463 = vpop.f32.mrb[0].mxu0
  %v464 = vadd.f32 0.0, %v463
  %v465 = vpop.f32.mrb[0].mxu0
  %v466 = vadd.f32 0.0, %v465
  %467 = vmatprep.mubr.bf16.mxu0 %v357
  %468 = vmatmul.mubr.bf16.gmra.mrb[0].mxu0 %v149
  %v469 = vpop.f32.mrb[0].mxu0
  %v470 = vadd.f32 0.0, %v469
  %v471 = vpop.f32.mrb[0].mxu0
  %v472 = vadd.f32 0.0, %v471
  %v473 = vpop.f32.mrb[0].mxu0
  %v474 = vadd.f32 0.0, %v473
  %v475 = vpop.f32.mrb[0].mxu0
  %v476 = vadd.f32 0.0, %v475
  %477 = vmatprep.mubr.bf16.mxu0 %v360
  %478 = vmatmul.mubr.bf16.gmra.mrb[0].mxu0 %v151
  %v479 = vpop.f32.mrb[0].mxu0
  %v480 = vadd.f32 0.0, %v479
  %v481 = vpop.f32.mrb[0].mxu0
  %v482 = vadd.f32 0.0, %v481
  %v483 = vpop.f32.mrb[0].mxu0
  %v484 = vadd.f32 0.0, %v483
  %v485 = vpop.f32.mrb[0].mxu0
  %v486 = vadd.f32 0.0, %v485
  %487 = vdwg.mxu0
  %488 = vmatprep.subr.bf16.mxu0 %v272
  %489 = vmatpush1.bf16.msra.mxu0 %v271
  %490 = vmatprep.subr.bf16.mxu0 %v276
  %491 = vmatpush1.bf16.msra.mxu0 %v275
  %492 = vmatprep.subr.bf16.mxu0 %v280
  %493 = vmatpush1.bf16.msra.mxu0 %v279
  %494 = vmatprep.subr.bf16.mxu0 %v284
  %495 = vmatpush1.bf16.msra.mxu0 %v283
  %496 = vmatprep.subr.bf16.mxu0 %v288
  %497 = vmatpush1.bf16.msra.mxu0 %v287
  %498 = vmatprep.subr.bf16.mxu0 %v292
  %499 = vmatpush1.bf16.msra.mxu0 %v291
  %500 = vmatprep.subr.bf16.mxu0 %v296
  %501 = vmatpush1.bf16.msra.mxu0 %v295
  %502 = vmatprep.subr.bf16.mxu0 %v300
  %503 = vmatpush1.bf16.msra.mxu0 %v299
  %504 = vmatprep.subr.bf16.mxu0 %v373
  %505 = vmatpush1.bf16.msra.mxu0 %v370
  %506 = vmatprep.subr.bf16.mxu0 0
  %507 = vmatpush1.bf16.msra.mxu0 0
  %508 = vmatprep.subr.bf16.mxu0 0
  %509 = vmatpush1.bf16.msra.mxu0 0
  %510 = vmatprep.subr.bf16.mxu0 0
  %511 = vmatpush1.bf16.msra.mxu0 0
  %512 = vmatprep.subr.bf16.mxu0 0
  %513 = vmatpush1.bf16.msra.mxu0 0
  %514 = vmatprep.subr.bf16.mxu0 0
  %515 = vmatpush1.bf16.msra.mxu0 0
  %516 = vmatprep.subr.bf16.mxu0 0
  %517 = vmatpush1.bf16.msra.mxu0 0
  %518 = vmatprep.subr.bf16.mxu0 0
  %519 = vmatpush1.bf16.msra.mxu0 0
  %520 = vmatprep.mubr.bf16.mxu0 %v339
  %521 = vmatmul.mubr.bf16.gmra.mrb[0].mxu0 %v137
  %v522 = vpop.f32.mrb[0].mxu0
  %v523 = vadd.f32 0.0, %v522
  %v524 = vpop.f32.mrb[0].mxu0
  %v525 = vadd.f32 0.0, %v524
  %v526 = vpop.f32.mrb[0].mxu0
  %v527 = vadd.f32 0.0, %v526
  %v528 = vpop.f32.mrb[0].mxu0
  %v529 = vadd.f32 0.0, %v528
  %530 = vmatprep.mubr.bf16.mxu0 %v342
  %531 = vmatmul.mubr.bf16.gmra.mrb[0].mxu0 %v139
  %v532 = vpop.f32.mrb[0].mxu0
  %v533 = vadd.f32 0.0, %v532
  %v534 = vpop.f32.mrb[0].mxu0
  %v535 = vadd.f32 0.0, %v534
  %v536 = vpop.f32.mrb[0].mxu0
  %v537 = vadd.f32 0.0, %v536
  %v538 = vpop.f32.mrb[0].mxu0
  %v539 = vadd.f32 0.0, %v538
  %540 = vmatprep.mubr.bf16.mxu0 %v345
  %541 = vmatmul.mubr.bf16.gmra.mrb[0].mxu0 %v141
  %v542 = vpop.f32.mrb[0].mxu0
  %v543 = vadd.f32 0.0, %v542
  %v544 = vpop.f32.mrb[0].mxu0
  %v545 = vadd.f32 0.0, %v544
  %v546 = vpop.f32.mrb[0].mxu0
  %v547 = vadd.f32 0.0, %v546
  %v548 = vpop.f32.mrb[0].mxu0
  %v549 = vadd.f32 0.0, %v548
  %550 = vmatprep.mubr.bf16.mxu0 %v348
  %551 = vmatmul.mubr.bf16.gmra.mrb[0].mxu0 %v143
  %v552 = vpop.f32.mrb[0].mxu0
  %v553 = vadd.f32 0.0, %v552
  %v554 = vpop.f32.mrb[0].mxu0
  %v555 = vadd.f32 0.0, %v554
  %v556 = vpop.f32.mrb[0].mxu0
  %v557 = vadd.f32 0.0, %v556
  %v558 = vpop.f32.mrb[0].mxu0
  %v559 = vadd.f32 0.0, %v558
  %560 = vmatprep.mubr.bf16.mxu0 %v351
  %561 = vmatmul.mubr.bf16.gmra.mrb[0].mxu0 %v145
  %v562 = vpop.f32.mrb[0].mxu0
  %v563 = vadd.f32 0.0, %v562
  %v564 = vpop.f32.mrb[0].mxu0
  %v565 = vadd.f32 0.0, %v564
  %v566 = vpop.f32.mrb[0].mxu0
  %v567 = vadd.f32 0.0, %v566
  %v568 = vpop.f32.mrb[0].mxu0
  %v569 = vadd.f32 0.0, %v568
  %570 = vmatprep.mubr.bf16.mxu0 %v354
  %571 = vmatmul.mubr.bf16.gmra.mrb[0].mxu0 %v147
  %v572 = vpop.f32.mrb[0].mxu0
  %v573 = vadd.f32 0.0, %v572
  %v574 = vpop.f32.mrb[0].mxu0
  %v575 = vadd.f32 0.0, %v574
  %v576 = vpop.f32.mrb[0].mxu0
  %v577 = vadd.f32 0.0, %v576
  %v578 = vpop.f32.mrb[0].mxu0
  %v579 = vadd.f32 0.0, %v578
  %580 = vmatprep.mubr.bf16.mxu0 %v357
  %581 = vmatmul.mubr.bf16.gmra.mrb[0].mxu0 %v149
  %v582 = vpop.f32.mrb[0].mxu0
  %v583 = vadd.f32 0.0, %v582
  %v584 = vpop.f32.mrb[0].mxu0
  %v585 = vadd.f32 0.0, %v584
  %v586 = vpop.f32.mrb[0].mxu0
  %v587 = vadd.f32 0.0, %v586
  %v588 = vpop.f32.mrb[0].mxu0
  %v589 = vadd.f32 0.0, %v588
  %590 = vmatprep.mubr.bf16.mxu0 %v360
  %591 = vmatmul.mubr.bf16.gmra.mrb[0].mxu0 %v151
  %v592 = vpop.f32.mrb[0].mxu0
  %v593 = vadd.f32 0.0, %v592
  %v594 = vpop.f32.mrb[0].mxu0
  %v595 = vadd.f32 0.0, %v594
  %v596 = vpop.f32.mrb[0].mxu0
  %v597 = vadd.f32 0.0, %v596
  %v598 = vpop.f32.mrb[0].mxu0
  %v599 = vadd.f32 0.0, %v598
  %600 = vdwg.mxu0
  %v601 = vld [vmem:[%s3] sm:$0xff]
  %v602 = vld [vmem:[%s3 + $0x8] sm:$0xff]
  %v603 = vld [vmem:[%s3 + $0x10] sm:$0xff]
  %v604 = vld [vmem:[%s3 + $0x18] sm:$0xff]
  %v605 = vld [vmem:[%s3 + $0x20] sm:$0xff]
  %v606 = vld [vmem:[%s3 + $0x28] sm:$0xff]
  %v607 = vld [vmem:[%s3 + $0x30] sm:$0xff]
  %v608 = vld [vmem:[%s3 + $0x38] sm:$0xff]
  %v609 = vld [vmem:[%s3 + $0x40] sm:$0xff]
  %v610 = vld [vmem:[%s3 + $0x48] sm:$0xff]
  %v611 = vld [vmem:[%s3 + $0x50] sm:$0xff]
  %v612 = vld [vmem:[%s3 + $0x58] sm:$0xff]
  %v613 = vld [vmem:[%s3 + $0x60] sm:$0xff]
  %v614 = vld [vmem:[%s3 + $0x68] sm:$0xff]
  %v615 = vld [vmem:[%s3 + $0x70] sm:$0xff]
  %v616 = vld [vmem:[%s3 + $0x78] sm:$0xff]
  %v617 = vld [vmem:[%s3 + $0x80] sm:$0xff]
  %v618 = vld [vmem:[%s3 + $0x88] sm:$0xff]
  %v619 = vld [vmem:[%s3 + $0x90] sm:$0xff]
  %v620 = vld [vmem:[%s3 + $0x98] sm:$0xff]
  %v621 = vld [vmem:[%s3 + $0xa0] sm:$0xff]
  %v622 = vld [vmem:[%s3 + $0xa8] sm:$0xff]
  %v623 = vld [vmem:[%s3 + $0xb0] sm:$0xff]
  %v624 = vld [vmem:[%s3 + $0xb8] sm:$0xff]
  %v625 = vld [vmem:[%s3 + $0xc0] sm:$0xff]
  %v626 = vld [vmem:[%s3 + $0xc8] sm:$0xff]
  %v627 = vld [vmem:[%s3 + $0xd0] sm:$0xff]
  %v628 = vld [vmem:[%s3 + $0xd8] sm:$0xff]
  %v629 = vld [vmem:[%s3 + $0xe0] sm:$0xff]
  %v630 = vld [vmem:[%s3 + $0xe8] sm:$0xff]
  %v631 = vld [vmem:[%s3 + $0xf0] sm:$0xff]
  %v632 = vld [vmem:[%s3 + $0xf8] sm:$0xff]
  %v633 = vld [vmem:[%s3 + $0x100] sm:$0xff]
  %v634 = vld [vmem:[%s3 + $0x108] sm:$0xff]
  %v635 = vld [vmem:[%s3 + $0x110] sm:$0x33]
  %v636 = vld [vmem:[%s3 + $0x118] sm:$0x33]
  %v653 = vunpack.c.l.b16 %v37
  %v654 = vunpack.c.h.b16 %v37
  %v655 = vunpack.c.l.b16 %v38
  %v656 = vunpack.c.h.b16 %v38
  %v657 = vunpack.c.l.b16 %v39
  %v658 = vunpack.c.h.b16 %v39
  %v659 = vunpack.c.l.b16 %v40
  %v660 = vunpack.c.h.b16 %v40
  %v661 = vunpack.c.l.b16 %v41
  %v662 = vunpack.c.h.b16 %v41
  %v663 = vunpack.c.l.b16 %v42
  %v664 = vunpack.c.h.b16 %v42
  %v665 = vunpack.c.l.b16 %v43
  %v666 = vunpack.c.h.b16 %v43
  %v667 = vunpack.c.l.b16 %v44
  %v668 = vunpack.c.h.b16 %v44
  %v669 = vunpack.c.l.b16 %v45
  %v670 = vunpack.c.h.b16 %v45
  %v671 = vunpack.c.l.b16 %v46
  %v672 = vunpack.c.h.b16 %v46
  %v673 = vunpack.c.l.b16 %v47
  %v674 = vunpack.c.h.b16 %v47
  %v675 = vunpack.c.l.b16 %v48
  %v676 = vunpack.c.h.b16 %v48
  %v677 = vunpack.c.l.b16 %v49
  %v678 = vunpack.c.h.b16 %v49
  %v679 = vunpack.c.l.b16 %v50
  %v680 = vunpack.c.h.b16 %v50
  %v681 = vunpack.c.l.b16 %v51
  %v682 = vunpack.c.h.b16 %v51
  %v683 = vunpack.c.l.b16 %v52
  %v684 = vunpack.c.h.b16 %v52
  %v685 = vpack.c.b16 %v655, %v653
  %v686 = vpack.c.b16 %v656, %v654
  %v687 = vpack.c.b16 %v659, %v657
  %v688 = vpack.c.b16 %v660, %v658
  %v689 = vpack.c.b16 %v663, %v661
  %v690 = vpack.c.b16 %v664, %v662
  %v691 = vpack.c.b16 %v667, %v665
  %v692 = vpack.c.b16 %v668, %v666
  %v693 = vpack.c.b16 %v671, %v669
  %v694 = vpack.c.b16 %v672, %v670
  %v695 = vpack.c.b16 %v675, %v673
  %v696 = vpack.c.b16 %v676, %v674
  %v697 = vpack.c.b16 %v679, %v677
  %v698 = vpack.c.b16 %v680, %v678
  %v699 = vpack.c.b16 %v683, %v681
  %v700 = vpack.c.b16 %v684, %v682
  %v745 = vunpack.c.l.b16 %v601
  %v746 = vunpack.c.h.b16 %v601
  %v747 = vunpack.c.l.b16 %v602
  %v748 = vunpack.c.h.b16 %v602
  %v749 = vunpack.c.l.b16 %v603
  %v750 = vunpack.c.h.b16 %v603
  %v751 = vunpack.c.l.b16 %v604
  %v752 = vunpack.c.h.b16 %v604
  %v753 = vunpack.c.l.b16 %v605
  %v754 = vunpack.c.h.b16 %v605
  %v755 = vunpack.c.l.b16 %v606
  %v756 = vunpack.c.h.b16 %v606
  %v757 = vunpack.c.l.b16 %v607
  %v758 = vunpack.c.h.b16 %v607
  %v759 = vunpack.c.l.b16 %v608
  %v760 = vunpack.c.h.b16 %v608
  %v761 = vunpack.c.l.b16 %v609
  %v762 = vunpack.c.h.b16 %v609
  %v763 = vunpack.c.l.b16 %v610
  %v764 = vunpack.c.h.b16 %v610
  %v765 = vunpack.c.l.b16 %v611
  %v766 = vunpack.c.h.b16 %v611
  %v767 = vunpack.c.l.b16 %v612
  %v768 = vunpack.c.h.b16 %v612
  %v769 = vunpack.c.l.b16 %v613
  %v770 = vunpack.c.h.b16 %v613
  %v771 = vunpack.c.l.b16 %v614
  %v772 = vunpack.c.h.b16 %v614
  %v773 = vunpack.c.l.b16 %v615
  %v774 = vunpack.c.h.b16 %v615
  %v775 = vunpack.c.l.b16 %v616
  %v776 = vunpack.c.h.b16 %v616
  %v777 = vunpack.c.l.b16 %v617
  %v778 = vunpack.c.h.b16 %v617
  %v779 = vunpack.c.l.b16 %v618
  %v780 = vunpack.c.h.b16 %v618
  %v781 = vunpack.c.l.b16 %v619
  %v782 = vunpack.c.h.b16 %v619
  %v783 = vunpack.c.l.b16 %v620
  %v784 = vunpack.c.h.b16 %v620
  %v785 = vunpack.c.l.b16 %v621
  %v786 = vunpack.c.h.b16 %v621
  %v787 = vunpack.c.l.b16 %v622
  %v788 = vunpack.c.h.b16 %v622
  %v789 = vunpack.c.l.b16 %v623
  %v790 = vunpack.c.h.b16 %v623
  %v791 = vunpack.c.l.b16 %v624
  %v792 = vunpack.c.h.b16 %v624
  %v793 = vunpack.c.l.b16 %v625
  %v794 = vunpack.c.h.b16 %v625
  %v795 = vunpack.c.l.b16 %v626
  %v796 = vunpack.c.h.b16 %v626
  %v797 = vunpack.c.l.b16 %v627
  %v798 = vunpack.c.h.b16 %v627
  %v799 = vunpack.c.l.b16 %v628
  %v800 = vunpack.c.h.b16 %v628
  %v801 = vunpack.c.l.b16 %v629
  %v802 = vunpack.c.h.b16 %v629
  %v803 = vunpack.c.l.b16 %v630
  %v804 = vunpack.c.h.b16 %v630
  %v805 = vunpack.c.l.b16 %v631
  %v806 = vunpack.c.h.b16 %v631
  %v807 = vunpack.c.l.b16 %v632
  %v808 = vunpack.c.h.b16 %v632
  %v809 = vunpack.c.l.b16 %v633
  %v810 = vunpack.c.h.b16 %v633
  %v811 = vunpack.c.l.b16 %v634
  %v812 = vunpack.c.h.b16 %v634
  %v813 = vunpack.c.l.b16 %v635
  %v814 = vunpack.c.h.b16 %v635
  %v815 = vunpack.c.l.b16 %v636
  %v816 = vunpack.c.h.b16 %v636
  %v817 = vpack.c.b16 %v749, %v745
  %v818 = vpack.c.b16 %v750, %v746
  %v819 = vpack.c.b16 %v751, %v747
  %v820 = vpack.c.b16 %v752, %v748
  %v821 = vpack.c.b16 %v757, %v753
  %v822 = vpack.c.b16 %v758, %v754
  %v823 = vpack.c.b16 %v759, %v755
  %v824 = vpack.c.b16 %v760, %v756
  %v825 = vpack.c.b16 %v765, %v761
  %v826 = vpack.c.b16 %v766, %v762
  %v827 = vpack.c.b16 %v767, %v763
  %v828 = vpack.c.b16 %v768, %v764
  %v829 = vpack.c.b16 %v773, %v769
  %v830 = vpack.c.b16 %v774, %v770
  %v831 = vpack.c.b16 %v775, %v771
  %v832 = vpack.c.b16 %v776, %v772
  %v833 = vpack.c.b16 %v781, %v777
  %v834 = vpack.c.b16 %v782, %v778
  %v835 = vpack.c.b16 %v783, %v779
  %v836 = vpack.c.b16 %v784, %v780
  %v837 = vpack.c.b16 %v789, %v785
  %v838 = vpack.c.b16 %v790, %v786
  %v839 = vpack.c.b16 %v791, %v787
  %v840 = vpack.c.b16 %v792, %v788
  %v841 = vpack.c.b16 %v797, %v793
  %v842 = vpack.c.b16 %v798, %v794
  %v843 = vpack.c.b16 %v799, %v795
  %v844 = vpack.c.b16 %v800, %v796
  %v845 = vpack.c.b16 %v805, %v801
  %v846 = vpack.c.b16 %v806, %v802
  %v847 = vpack.c.b16 %v807, %v803
  %v848 = vpack.c.b16 %v808, %v804
  %v849 = vpack.c.b16 %v813, %v809
  %v850 = vpack.c.b16 %v814, %v810
  %v851 = vpack.c.b16 %v815, %v811
  %v852 = vpack.c.b16 %v816, %v812
  %v886 = vsel %vm337, %v686, 0
  %v889 = vsel %vm337, %v688, 0
  %v892 = vsel %vm337, %v690, 0
  %v895 = vsel %vm337, %v692, 0
  %v898 = vsel %vm337, %v694, 0
  %v901 = vsel %vm337, %v696, 0
  %v904 = vsel %vm337, %v698, 0
  %v907 = vsel %vm337, %v700, 0
  %v910 = vsel %vm362, %v849, 0
  %v913 = vsel %vm362, %v850, 0
  %v916 = vsel %vm362, %v851, 0
  %v919 = vsel %vm362, %v852, 0
  %921 = vmatprep.subr.bf16.mxu0 %v818
  %922 = vmatpush1.bf16.msra.mxu0 %v817
  %923 = vmatprep.subr.bf16.mxu0 %v822
  %924 = vmatpush1.bf16.msra.mxu0 %v821
  %925 = vmatprep.subr.bf16.mxu0 %v826
  %926 = vmatpush1.bf16.msra.mxu0 %v825
  %927 = vmatprep.subr.bf16.mxu0 %v830
  %928 = vmatpush1.bf16.msra.mxu0 %v829
  %929 = vmatprep.subr.bf16.mxu0 %v834
  %930 = vmatpush1.bf16.msra.mxu0 %v833
  %931 = vmatprep.subr.bf16.mxu0 %v838
  %932 = vmatpush1.bf16.msra.mxu0 %v837
  %933 = vmatprep.subr.bf16.mxu0 %v842
  %934 = vmatpush1.bf16.msra.mxu0 %v841
  %935 = vmatprep.subr.bf16.mxu0 %v846
  %936 = vmatpush1.bf16.msra.mxu0 %v845
  %937 = vmatprep.subr.bf16.mxu0 %v913
  %938 = vmatpush1.bf16.msra.mxu0 %v910
  %939 = vmatprep.subr.bf16.mxu0 0
  %940 = vmatpush1.bf16.msra.mxu0 0
  %941 = vmatprep.subr.bf16.mxu0 0
  %942 = vmatpush1.bf16.msra.mxu0 0
  %943 = vmatprep.subr.bf16.mxu0 0
  %944 = vmatpush1.bf16.msra.mxu0 0
  %945 = vmatprep.subr.bf16.mxu0 0
  %946 = vmatpush1.bf16.msra.mxu0 0
  %947 = vmatprep.subr.bf16.mxu0 0
  %948 = vmatpush1.bf16.msra.mxu0 0
  %949 = vmatprep.subr.bf16.mxu0 0
  %950 = vmatpush1.bf16.msra.mxu0 0
  %951 = vmatprep.subr.bf16.mxu0 0
  %952 = vmatpush1.bf16.msra.mxu0 0
  %953 = vmatprep.mubr.bf16.mxu0 %v886
  %954 = vmatmul.mubr.bf16.gmra.mrb[0].mxu0 %v685
  %v955 = vpop.f32.mrb[0].mxu0
  %v956 = vadd.f32 0.0, %v955
  %v957 = vpop.f32.mrb[0].mxu0
  %v958 = vadd.f32 0.0, %v957
  %v959 = vpop.f32.mrb[0].mxu0
  %v960 = vadd.f32 0.0, %v959
  %v961 = vpop.f32.mrb[0].mxu0
  %v962 = vadd.f32 0.0, %v961
  %963 = vmatprep.mubr.bf16.mxu0 %v889
  %964 = vmatmul.mubr.bf16.gmra.mrb[0].mxu0 %v687
  %v965 = vpop.f32.mrb[0].mxu0
  %v966 = vadd.f32 0.0, %v965
  %v967 = vpop.f32.mrb[0].mxu0
  %v968 = vadd.f32 0.0, %v967
  %v969 = vpop.f32.mrb[0].mxu0
  %v970 = vadd.f32 0.0, %v969
  %v971 = vpop.f32.mrb[0].mxu0
  %v972 = vadd.f32 0.0, %v971
  %973 = vmatprep.mubr.bf16.mxu0 %v892
  %974 = vmatmul.mubr.bf16.gmra.mrb[0].mxu0 %v689
  %v975 = vpop.f32.mrb[0].mxu0
  %v976 = vadd.f32 0.0, %v975
  %v977 = vpop.f32.mrb[0].mxu0
  %v978 = vadd.f32 0.0, %v977
  %v979 = vpop.f32.mrb[0].mxu0
  %v980 = vadd.f32 0.0, %v979
  %v981 = vpop.f32.mrb[0].mxu0
  %v982 = vadd.f32 0.0, %v981
  %983 = vmatprep.mubr.bf16.mxu0 %v895
  %984 = vmatmul.mubr.bf16.gmra.mrb[0].mxu0 %v691
  %v985 = vpop.f32.mrb[0].mxu0
  %v986 = vadd.f32 0.0, %v985
  %v987 = vpop.f32.mrb[0].mxu0
  %v988 = vadd.f32 0.0, %v987
  %v989 = vpop.f32.mrb[0].mxu0
  %v990 = vadd.f32 0.0, %v989
  %v991 = vpop.f32.mrb[0].mxu0
  %v992 = vadd.f32 0.0, %v991
  %993 = vmatprep.mubr.bf16.mxu0 %v898
  %994 = vmatmul.mubr.bf16.gmra.mrb[0].mxu0 %v693
  %v995 = vpop.f32.mrb[0].mxu0
  %v996 = vadd.f32 0.0, %v995
  %v997 = vpop.f32.mrb[0].mxu0
  %v998 = vadd.f32 0.0, %v997
  %v999 = vpop.f32.mrb[0].mxu0
  %v1000 = vadd.f32 0.0, %v999
  %v1001 = vpop.f32.mrb[0].mxu0
  %v1002 = vadd.f32 0.0, %v1001
  %1003 = vmatprep.mubr.bf16.mxu0 %v901
  %1004 = vmatmul.mubr.bf16.gmra.mrb[0].mxu0 %v695
  %v1005 = vpop.f32.mrb[0].mxu0
  %v1006 = vadd.f32 0.0, %v1005
  %v1007 = vpop.f32.mrb[0].mxu0
  %v1008 = vadd.f32 0.0, %v1007
  %v1009 = vpop.f32.mrb[0].mxu0
  %v1010 = vadd.f32 0.0, %v1009
  %v1011 = vpop.f32.mrb[0].mxu0
  %v1012 = vadd.f32 0.0, %v1011
  %1013 = vmatprep.mubr.bf16.mxu0 %v904
  %1014 = vmatmul.mubr.bf16.gmra.mrb[0].mxu0 %v697
  %v1015 = vpop.f32.mrb[0].mxu0
  %v1016 = vadd.f32 0.0, %v1015
  %v1017 = vpop.f32.mrb[0].mxu0
  %v1018 = vadd.f32 0.0, %v1017
  %v1019 = vpop.f32.mrb[0].mxu0
  %v1020 = vadd.f32 0.0, %v1019
  %v1021 = vpop.f32.mrb[0].mxu0
  %v1022 = vadd.f32 0.0, %v1021
  %1023 = vmatprep.mubr.bf16.mxu0 %v907
  %1024 = vmatmul.mubr.bf16.gmra.mrb[0].mxu0 %v699
  %v1025 = vpop.f32.mrb[0].mxu0
  %v1026 = vadd.f32 0.0, %v1025
  %v1027 = vpop.f32.mrb[0].mxu0
  %v1028 = vadd.f32 0.0, %v1027
  %v1029 = vpop.f32.mrb[0].mxu0
  %v1030 = vadd.f32 0.0, %v1029
  %v1031 = vpop.f32.mrb[0].mxu0
  %v1032 = vadd.f32 0.0, %v1031
  %1033 = vdwg.mxu0
  %1034 = vmatprep.subr.bf16.mxu0 %v820
  %1035 = vmatpush1.bf16.msra.mxu0 %v819
  %1036 = vmatprep.subr.bf16.mxu0 %v824
  %1037 = vmatpush1.bf16.msra.mxu0 %v823
  %1038 = vmatprep.subr.bf16.mxu0 %v828
  %1039 = vmatpush1.bf16.msra.mxu0 %v827
  %1040 = vmatprep.subr.bf16.mxu0 %v832
  %1041 = vmatpush1.bf16.msra.mxu0 %v831
  %1042 = vmatprep.subr.bf16.mxu0 %v836
  %1043 = vmatpush1.bf16.msra.mxu0 %v835
  %1044 = vmatprep.subr.bf16.mxu0 %v840
  %1045 = vmatpush1.bf16.msra.mxu0 %v839
  %1046 = vmatprep.subr.bf16.mxu0 %v844
  %1047 = vmatpush1.bf16.msra.mxu0 %v843
  %1048 = vmatprep.subr.bf16.mxu0 %v848
  %1049 = vmatpush1.bf16.msra.mxu0 %v847
  %1050 = vmatprep.subr.bf16.mxu0 %v919
  %1051 = vmatpush1.bf16.msra.mxu0 %v916
  %1052 = vmatprep.subr.bf16.mxu0 0
  %1053 = vmatpush1.bf16.msra.mxu0 0
  %1054 = vmatprep.subr.bf16.mxu0 0
  %1055 = vmatpush1.bf16.msra.mxu0 0
  %1056 = vmatprep.subr.bf16.mxu0 0
  %1057 = vmatpush1.bf16.msra.mxu0 0
  %1058 = vmatprep.subr.bf16.mxu0 0
  %1059 = vmatpush1.bf16.msra.mxu0 0
  %1060 = vmatprep.subr.bf16.mxu0 0
  %1061 = vmatpush1.bf16.msra.mxu0 0
  %1062 = vmatprep.subr.bf16.mxu0 0
  %1063 = vmatpush1.bf16.msra.mxu0 0
  %1064 = vmatprep.subr.bf16.mxu0 0
  %1065 = vmatpush1.bf16.msra.mxu0 0
  %1066 = vmatprep.mubr.bf16.mxu0 %v886
  %1067 = vmatmul.mubr.bf16.gmra.mrb[0].mxu0 %v685
  %v1068 = vpop.f32.mrb[0].mxu0
  %v1069 = vadd.f32 0.0, %v1068
  %v1070 = vpop.f32.mrb[0].mxu0
  %v1071 = vadd.f32 0.0, %v1070
  %v1072 = vpop.f32.mrb[0].mxu0
  %v1073 = vadd.f32 0.0, %v1072
  %v1074 = vpop.f32.mrb[0].mxu0
  %v1075 = vadd.f32 0.0, %v1074
  %1076 = vmatprep.mubr.bf16.mxu0 %v889
  %1077 = vmatmul.mubr.bf16.gmra.mrb[0].mxu0 %v687
  %v1078 = vpop.f32.mrb[0].mxu0
  %v1079 = vadd.f32 0.0, %v1078
  %v1080 = vpop.f32.mrb[0].mxu0
  %v1081 = vadd.f32 0.0, %v1080
  %v1082 = vpop.f32.mrb[0].mxu0
  %v1083 = vadd.f32 0.0, %v1082
  %v1084 = vpop.f32.mrb[0].mxu0
  %v1085 = vadd.f32 0.0, %v1084
  %1086 = vmatprep.mubr.bf16.mxu0 %v892
  %1087 = vmatmul.mubr.bf16.gmra.mrb[0].mxu0 %v689
  %v1088 = vpop.f32.mrb[0].mxu0
  %v1089 = vadd.f32 0.0, %v1088
  %v1090 = vpop.f32.mrb[0].mxu0
  %v1091 = vadd.f32 0.0, %v1090
  %v1092 = vpop.f32.mrb[0].mxu0
  %v1093 = vadd.f32 0.0, %v1092
  %v1094 = vpop.f32.mrb[0].mxu0
  %v1095 = vadd.f32 0.0, %v1094
  %1096 = vmatprep.mubr.bf16.mxu0 %v895
  %1097 = vmatmul.mubr.bf16.gmra.mrb[0].mxu0 %v691
  %v1098 = vpop.f32.mrb[0].mxu0
  %v1099 = vadd.f32 0.0, %v1098
  %v1100 = vpop.f32.mrb[0].mxu0
  %v1101 = vadd.f32 0.0, %v1100
  %v1102 = vpop.f32.mrb[0].mxu0
  %v1103 = vadd.f32 0.0, %v1102
  %v1104 = vpop.f32.mrb[0].mxu0
  %v1105 = vadd.f32 0.0, %v1104
  %1106 = vmatprep.mubr.bf16.mxu0 %v898
  %1107 = vmatmul.mubr.bf16.gmra.mrb[0].mxu0 %v693
  %v1108 = vpop.f32.mrb[0].mxu0
  %v1109 = vadd.f32 0.0, %v1108
  %v1110 = vpop.f32.mrb[0].mxu0
  %v1111 = vadd.f32 0.0, %v1110
  %v1112 = vpop.f32.mrb[0].mxu0
  %v1113 = vadd.f32 0.0, %v1112
  %v1114 = vpop.f32.mrb[0].mxu0
  %v1115 = vadd.f32 0.0, %v1114
  %1116 = vmatprep.mubr.bf16.mxu0 %v901
  %1117 = vmatmul.mubr.bf16.gmra.mrb[0].mxu0 %v695
  %v1118 = vpop.f32.mrb[0].mxu0
  %v1119 = vadd.f32 0.0, %v1118
  %v1120 = vpop.f32.mrb[0].mxu0
  %v1121 = vadd.f32 0.0, %v1120
  %v1122 = vpop.f32.mrb[0].mxu0
  %v1123 = vadd.f32 0.0, %v1122
  %v1124 = vpop.f32.mrb[0].mxu0
  %v1125 = vadd.f32 0.0, %v1124
  %1126 = vmatprep.mubr.bf16.mxu0 %v904
  %1127 = vmatmul.mubr.bf16.gmra.mrb[0].mxu0 %v697
  %v1128 = vpop.f32.mrb[0].mxu0
  %v1129 = vadd.f32 0.0, %v1128
  %v1130 = vpop.f32.mrb[0].mxu0
  %v1131 = vadd.f32 0.0, %v1130
  %v1132 = vpop.f32.mrb[0].mxu0
  %v1133 = vadd.f32 0.0, %v1132
  %v1134 = vpop.f32.mrb[0].mxu0
  %v1135 = vadd.f32 0.0, %v1134
  %1136 = vmatprep.mubr.bf16.mxu0 %v907
  %1137 = vmatmul.mubr.bf16.gmra.mrb[0].mxu0 %v699
  %v1138 = vpop.f32.mrb[0].mxu0
  %v1139 = vadd.f32 0.0, %v1138
  %v1140 = vpop.f32.mrb[0].mxu0
  %v1141 = vadd.f32 0.0, %v1140
  %v1142 = vpop.f32.mrb[0].mxu0
  %v1143 = vadd.f32 0.0, %v1142
  %v1144 = vpop.f32.mrb[0].mxu0
  %v1145 = vadd.f32 0.0, %v1144
  %1146 = vdwg.mxu0
  %v1147 = vmax.f32 %v410, %v956
  %v1148 = vmax.f32 %v412, %v958
  %v1149 = vmax.f32 %v523, %v1069
  %v1150 = vmax.f32 %v525, %v1071
  %v1151 = vmax.f32 %v414, %v960
  %v1152 = vmax.f32 %v416, %v962
  %v1153 = vmax.f32 %v527, %v1073
  %v1154 = vmax.f32 %v529, %v1075
  %v1155 = vmax.f32 %v420, %v966
  %v1156 = vmax.f32 %v422, %v968
  %v1157 = vmax.f32 %v533, %v1079
  %v1158 = vmax.f32 %v535, %v1081
  %v1159 = vmax.f32 %v424, %v970
  %v1160 = vmax.f32 %v426, %v972
  %v1161 = vmax.f32 %v537, %v1083
  %v1162 = vmax.f32 %v539, %v1085
  %v1163 = vmax.f32 %v430, %v976
  %v1164 = vmax.f32 %v432, %v978
  %v1165 = vmax.f32 %v543, %v1089
  %v1166 = vmax.f32 %v545, %v1091
  %v1167 = vmax.f32 %v434, %v980
  %v1168 = vmax.f32 %v436, %v982
  %v1169 = vmax.f32 %v547, %v1093
  %v1170 = vmax.f32 %v549, %v1095
  %v1171 = vmax.f32 %v440, %v986
  %v1172 = vmax.f32 %v442, %v988
  %v1173 = vmax.f32 %v553, %v1099
  %v1174 = vmax.f32 %v555, %v1101
  %v1175 = vmax.f32 %v444, %v990
  %v1176 = vmax.f32 %v446, %v992
  %v1177 = vmax.f32 %v557, %v1103
  %v1178 = vmax.f32 %v559, %v1105
  %v1179 = vmax.f32 %v450, %v996
  %v1180 = vmax.f32 %v452, %v998
  %v1181 = vmax.f32 %v563, %v1109
  %v1182 = vmax.f32 %v565, %v1111
  %v1183 = vmax.f32 %v454, %v1000
  %v1184 = vmax.f32 %v456, %v1002
  %v1185 = vmax.f32 %v567, %v1113
  %v1186 = vmax.f32 %v569, %v1115
  %v1187 = vmax.f32 %v460, %v1006
  %v1188 = vmax.f32 %v462, %v1008
  %v1189 = vmax.f32 %v573, %v1119
  %v1190 = vmax.f32 %v575, %v1121
  %v1191 = vmax.f32 %v464, %v1010
  %v1192 = vmax.f32 %v466, %v1012
  %v1193 = vmax.f32 %v577, %v1123
  %v1194 = vmax.f32 %v579, %v1125
  %v1195 = vmax.f32 %v470, %v1016
  %v1196 = vmax.f32 %v472, %v1018
  %v1197 = vmax.f32 %v583, %v1129
  %v1198 = vmax.f32 %v585, %v1131
  %v1199 = vmax.f32 %v474, %v1020
  %v1200 = vmax.f32 %v476, %v1022
  %v1201 = vmax.f32 %v587, %v1133
  %v1202 = vmax.f32 %v589, %v1135
  %v1203 = vmax.f32 %v480, %v1026
  %v1204 = vmax.f32 %v482, %v1028
  %v1205 = vmax.f32 %v593, %v1139
  %v1206 = vmax.f32 %v595, %v1141
  %v1207 = vmax.f32 %v484, %v1030
  %v1208 = vmax.f32 %v486, %v1032
  %v1209 = vmax.f32 %v597, %v1143
  %v1210 = vmax.f32 %v599, %v1145
  %v1211 = vld [vmem:[%s4] sm:$0xf]
  %v1213 = vlaneseq
  %v1214 = vshrl.u32 %v1213, 7
  %v1215 = vsub.s32 0, %v1214
  %v1216 = vrot.slane %v1211, %v1215
  %v1217 = vlaneseq
  %v1218 = vshrl.u32 %v1217, 7
  %v1219 = vsub.s32 1, %v1218
  %v1220 = vrot.slane %v1211, %v1219
  %v1221 = vlaneseq
  %v1222 = vshrl.u32 %v1221, 7
  %v1223 = vsub.s32 2, %v1222
  %v1224 = vrot.slane %v1211, %v1223
  %v1225 = vlaneseq
  %v1226 = vshrl.u32 %v1225, 7
  %v1227 = vsub.s32 3, %v1226
  %v1228 = vrot.slane %v1211, %v1227
  %v1233 = vadd.f32 %v1147, %v1216
  %v1234 = vadd.f32 %v1148, %v1220
  %v1235 = vadd.f32 %v1149, %v1224
  %v1236 = vadd.f32 %v1150, %v1228
  %v1237 = vadd.f32 %v1151, %v1216
  %v1238 = vadd.f32 %v1152, %v1220
  %v1239 = vadd.f32 %v1153, %v1224
  %v1240 = vadd.f32 %v1154, %v1228
  %v1241 = vadd.f32 %v1155, %v1216
  %v1242 = vadd.f32 %v1156, %v1220
  %v1243 = vadd.f32 %v1157, %v1224
  %v1244 = vadd.f32 %v1158, %v1228
  %v1245 = vadd.f32 %v1159, %v1216
  %v1246 = vadd.f32 %v1160, %v1220
  %v1247 = vadd.f32 %v1161, %v1224
  %v1248 = vadd.f32 %v1162, %v1228
  %v1249 = vadd.f32 %v1163, %v1216
  %v1250 = vadd.f32 %v1164, %v1220
  %v1251 = vadd.f32 %v1165, %v1224
  %v1252 = vadd.f32 %v1166, %v1228
  %v1253 = vadd.f32 %v1167, %v1216
  %v1254 = vadd.f32 %v1168, %v1220
  %v1255 = vadd.f32 %v1169, %v1224
  %v1256 = vadd.f32 %v1170, %v1228
  %v1257 = vadd.f32 %v1171, %v1216
  %v1258 = vadd.f32 %v1172, %v1220
  %v1259 = vadd.f32 %v1173, %v1224
  %v1260 = vadd.f32 %v1174, %v1228
  %v1261 = vadd.f32 %v1175, %v1216
  %v1262 = vadd.f32 %v1176, %v1220
  %v1263 = vadd.f32 %v1177, %v1224
  %v1264 = vadd.f32 %v1178, %v1228
  %v1265 = vadd.f32 %v1179, %v1216
  %v1266 = vadd.f32 %v1180, %v1220
  %v1267 = vadd.f32 %v1181, %v1224
  %v1268 = vadd.f32 %v1182, %v1228
  %v1269 = vadd.f32 %v1183, %v1216
  %v1270 = vadd.f32 %v1184, %v1220
  %v1271 = vadd.f32 %v1185, %v1224
  %v1272 = vadd.f32 %v1186, %v1228
  %v1273 = vadd.f32 %v1187, %v1216
  %v1274 = vadd.f32 %v1188, %v1220
  %v1275 = vadd.f32 %v1189, %v1224
  %v1276 = vadd.f32 %v1190, %v1228
  %v1277 = vadd.f32 %v1191, %v1216
  %v1278 = vadd.f32 %v1192, %v1220
  %v1279 = vadd.f32 %v1193, %v1224
  %v1280 = vadd.f32 %v1194, %v1228
  %v1281 = vadd.f32 %v1195, %v1216
  %v1282 = vadd.f32 %v1196, %v1220
  %v1283 = vadd.f32 %v1197, %v1224
  %v1284 = vadd.f32 %v1198, %v1228
  %v1285 = vadd.f32 %v1199, %v1216
  %v1286 = vadd.f32 %v1200, %v1220
  %v1287 = vadd.f32 %v1201, %v1224
  %v1288 = vadd.f32 %v1202, %v1228
  %v1289 = vadd.f32 %v1203, %v1216
  %v1290 = vadd.f32 %v1204, %v1220
  %v1291 = vadd.f32 %v1205, %v1224
  %v1292 = vadd.f32 %v1206, %v1228
  %v1293 = vadd.f32 %v1207, %v1216
  %v1294 = vadd.f32 %v1208, %v1220
  %v1295 = vadd.f32 %v1209, %v1224
  %v1296 = vadd.f32 %v1210, %v1228
  %v1297 = vmax.f32 %v1233, 0.0
  %v1298 = vmax.f32 %v1234, 0.0
  %v1299 = vmax.f32 %v1235, 0.0
  %v1300 = vmax.f32 %v1236, 0.0
  %v1301 = vmax.f32 %v1237, 0.0
  %v1302 = vmax.f32 %v1238, 0.0
  %v1303 = vmax.f32 %v1239, 0.0
  %v1304 = vmax.f32 %v1240, 0.0
  %v1305 = vmax.f32 %v1241, 0.0
  %v1306 = vmax.f32 %v1242, 0.0
  %v1307 = vmax.f32 %v1243, 0.0
  %v1308 = vmax.f32 %v1244, 0.0
  %v1309 = vmax.f32 %v1245, 0.0
  %v1310 = vmax.f32 %v1246, 0.0
  %v1311 = vmax.f32 %v1247, 0.0
  %v1312 = vmax.f32 %v1248, 0.0
  %v1313 = vmax.f32 %v1249, 0.0
  %v1314 = vmax.f32 %v1250, 0.0
  %v1315 = vmax.f32 %v1251, 0.0
  %v1316 = vmax.f32 %v1252, 0.0
  %v1317 = vmax.f32 %v1253, 0.0
  %v1318 = vmax.f32 %v1254, 0.0
  %v1319 = vmax.f32 %v1255, 0.0
  %v1320 = vmax.f32 %v1256, 0.0
  %v1321 = vmax.f32 %v1257, 0.0
  %v1322 = vmax.f32 %v1258, 0.0
  %v1323 = vmax.f32 %v1259, 0.0
  %v1324 = vmax.f32 %v1260, 0.0
  %v1325 = vmax.f32 %v1261, 0.0
  %v1326 = vmax.f32 %v1262, 0.0
  %v1327 = vmax.f32 %v1263, 0.0
  %v1328 = vmax.f32 %v1264, 0.0
  %v1329 = vmax.f32 %v1265, 0.0
  %v1330 = vmax.f32 %v1266, 0.0
  %v1331 = vmax.f32 %v1267, 0.0
  %v1332 = vmax.f32 %v1268, 0.0
  %v1333 = vmax.f32 %v1269, 0.0
  %v1334 = vmax.f32 %v1270, 0.0
  %v1335 = vmax.f32 %v1271, 0.0
  %v1336 = vmax.f32 %v1272, 0.0
  %v1337 = vmax.f32 %v1273, 0.0
  %v1338 = vmax.f32 %v1274, 0.0
  %v1339 = vmax.f32 %v1275, 0.0
  %v1340 = vmax.f32 %v1276, 0.0
  %v1341 = vmax.f32 %v1277, 0.0
  %v1342 = vmax.f32 %v1278, 0.0
  %v1343 = vmax.f32 %v1279, 0.0
  %v1344 = vmax.f32 %v1280, 0.0
  %v1345 = vmax.f32 %v1281, 0.0
  %v1346 = vmax.f32 %v1282, 0.0
  %v1347 = vmax.f32 %v1283, 0.0
  %v1348 = vmax.f32 %v1284, 0.0
  %v1349 = vmax.f32 %v1285, 0.0
  %v1350 = vmax.f32 %v1286, 0.0
  %v1351 = vmax.f32 %v1287, 0.0
  %v1352 = vmax.f32 %v1288, 0.0
  %v1353 = vmax.f32 %v1289, 0.0
  %v1354 = vmax.f32 %v1290, 0.0
  %v1355 = vmax.f32 %v1291, 0.0
  %v1356 = vmax.f32 %v1292, 0.0
  %v1357 = vmax.f32 %v1293, 0.0
  %v1358 = vmax.f32 %v1294, 0.0
  %v1359 = vmax.f32 %v1295, 0.0
  %v1360 = vmax.f32 %v1296, 0.0
  %v1361 = vmax.f32 %v1297, %v1299
  %v1362 = vmax.f32 %v1298, %v1300
  %v1363 = vmax.f32 %v1301, %v1303
  %v1364 = vmax.f32 %v1302, %v1304
  %v1365 = vmax.f32 %v1305, %v1307
  %v1366 = vmax.f32 %v1306, %v1308
  %v1367 = vmax.f32 %v1309, %v1311
  %v1368 = vmax.f32 %v1310, %v1312
  %v1369 = vmax.f32 %v1313, %v1315
  %v1370 = vmax.f32 %v1314, %v1316
  %v1371 = vmax.f32 %v1317, %v1319
  %v1372 = vmax.f32 %v1318, %v1320
  %v1373 = vmax.f32 %v1321, %v1323
  %v1374 = vmax.f32 %v1322, %v1324
  %v1375 = vmax.f32 %v1325, %v1327
  %v1376 = vmax.f32 %v1326, %v1328
  %v1377 = vmax.f32 %v1329, %v1331
  %v1378 = vmax.f32 %v1330, %v1332
  %v1379 = vmax.f32 %v1333, %v1335
  %v1380 = vmax.f32 %v1334, %v1336
  %v1381 = vmax.f32 %v1337, %v1339
  %v1382 = vmax.f32 %v1338, %v1340
  %v1383 = vmax.f32 %v1341, %v1343
  %v1384 = vmax.f32 %v1342, %v1344
  %v1385 = vmax.f32 %v1345, %v1347
  %v1386 = vmax.f32 %v1346, %v1348
  %v1387 = vmax.f32 %v1349, %v1351
  %v1388 = vmax.f32 %v1350, %v1352
  %v1389 = vmax.f32 %v1353, %v1355
  %v1390 = vmax.f32 %v1354, %v1356
  %v1391 = vmax.f32 %v1357, %v1359
  %v1392 = vmax.f32 %v1358, %v1360
  %v1393 = vpack.c.bf16 %v1363, %v1361
  %v1394 = vpack.c.bf16 %v1364, %v1362
  %v1395 = vpack.c.bf16 %v1367, %v1365
  %v1396 = vpack.c.bf16 %v1368, %v1366
  %v1397 = vpack.c.bf16 %v1371, %v1369
  %v1398 = vpack.c.bf16 %v1372, %v1370
  %v1399 = vpack.c.bf16 %v1375, %v1373
  %v1400 = vpack.c.bf16 %v1376, %v1374
  %v1401 = vpack.c.bf16 %v1379, %v1377
  %v1402 = vpack.c.bf16 %v1380, %v1378
  %v1403 = vpack.c.bf16 %v1383, %v1381
  %v1404 = vpack.c.bf16 %v1384, %v1382
  %v1405 = vpack.c.bf16 %v1387, %v1385
  %v1406 = vpack.c.bf16 %v1388, %v1386
  %v1407 = vpack.c.bf16 %v1391, %v1389
  %v1408 = vpack.c.bf16 %v1392, %v1390
  %v1425 = vunpack.c.l.b16 %v1393
  %v1426 = vunpack.c.l.b16 %v1394
  %v1427 = vunpack.c.h.b16 %v1393
  %v1428 = vunpack.c.h.b16 %v1394
  %v1429 = vunpack.c.l.b16 %v1395
  %v1430 = vunpack.c.l.b16 %v1396
  %v1431 = vunpack.c.h.b16 %v1395
  %v1432 = vunpack.c.h.b16 %v1396
  %v1433 = vunpack.c.l.b16 %v1397
  %v1434 = vunpack.c.l.b16 %v1398
  %v1435 = vunpack.c.h.b16 %v1397
  %v1436 = vunpack.c.h.b16 %v1398
  %v1437 = vunpack.c.l.b16 %v1399
  %v1438 = vunpack.c.l.b16 %v1400
  %v1439 = vunpack.c.h.b16 %v1399
  %v1440 = vunpack.c.h.b16 %v1400
  %v1441 = vunpack.c.l.b16 %v1401
  %v1442 = vunpack.c.l.b16 %v1402
  %v1443 = vunpack.c.h.b16 %v1401
  %v1444 = vunpack.c.h.b16 %v1402
  %v1445 = vunpack.c.l.b16 %v1403
  %v1446 = vunpack.c.l.b16 %v1404
  %v1447 = vunpack.c.h.b16 %v1403
  %v1448 = vunpack.c.h.b16 %v1404
  %v1449 = vunpack.c.l.b16 %v1405
  %v1450 = vunpack.c.l.b16 %v1406
  %v1451 = vunpack.c.h.b16 %v1405
  %v1452 = vunpack.c.h.b16 %v1406
  %v1453 = vunpack.c.l.b16 %v1407
  %v1454 = vunpack.c.l.b16 %v1408
  %v1455 = vunpack.c.h.b16 %v1407
  %v1456 = vunpack.c.h.b16 %v1408
  %v1457 = vpack.c.b16 %v1426, %v1425
  %v1458 = vpack.c.b16 %v1428, %v1427
  %v1459 = vpack.c.b16 %v1430, %v1429
  %v1460 = vpack.c.b16 %v1432, %v1431
  %v1461 = vpack.c.b16 %v1434, %v1433
  %v1462 = vpack.c.b16 %v1436, %v1435
  %v1463 = vpack.c.b16 %v1438, %v1437
  %v1464 = vpack.c.b16 %v1440, %v1439
  %v1465 = vpack.c.b16 %v1442, %v1441
  %v1466 = vpack.c.b16 %v1444, %v1443
  %v1467 = vpack.c.b16 %v1446, %v1445
  %v1468 = vpack.c.b16 %v1448, %v1447
  %v1469 = vpack.c.b16 %v1450, %v1449
  %v1470 = vpack.c.b16 %v1452, %v1451
  %v1471 = vpack.c.b16 %v1454, %v1453
  %v1472 = vpack.c.b16 %v1456, %v1455
  %1489 = vst [vmem:[%s5] sm:$0xff] %v1457
  %1490 = vst [vmem:[%s5 + $0x8] sm:$0xff] %v1458
  %1491 = vst [vmem:[%s5 + $0x10] sm:$0xff] %v1459
  %1492 = vst [vmem:[%s5 + $0x18] sm:$0xff] %v1460
  %1493 = vst [vmem:[%s5 + $0x20] sm:$0xff] %v1461
  %1494 = vst [vmem:[%s5 + $0x28] sm:$0xff] %v1462
  %1495 = vst [vmem:[%s5 + $0x30] sm:$0xff] %v1463
  %1496 = vst [vmem:[%s5 + $0x38] sm:$0xff] %v1464
  %1497 = vst [vmem:[%s5 + $0x40] sm:$0xff] %v1465
  %1498 = vst [vmem:[%s5 + $0x48] sm:$0xff] %v1466
  %1499 = vst [vmem:[%s5 + $0x50] sm:$0xff] %v1467
  %1500 = vst [vmem:[%s5 + $0x58] sm:$0xff] %v1468
  %1501 = vst [vmem:[%s5 + $0x60] sm:$0xff] %v1469
  %1502 = vst [vmem:[%s5 + $0x68] sm:$0xff] %v1470
  %1503 = vst [vmem:[%s5 + $0x70] sm:$0xff] %v1471
  %1504 = vst [vmem:[%s5 + $0x78] sm:$0xff] %v1472
  // Predicated region
  $region22: #{cnn_forward.3} parent=0 // pred_check
    _
  $region23: #{cnn_forward.3} parent=0 // pred_check_branch
    %1506 = sbr.rel (0) target = $region25
  $region24: #{cnn_forward.3} parent=0 // pred_region
    _
  $region25: #{cnn_forward.3} parent=0 // pred_fallthru
    _
  // Predicated region
  $region26: #{cnn_forward.3} parent=0 // pred_check
    _
  $region27: #{cnn_forward.3} parent=0 // pred_check_branch
    %1508 = sbr.rel (0) target = $region29
  $region28: #{cnn_forward.3} parent=0 // pred_region
    _
  $region29: #{cnn_forward.3} parent=0 // pred_fallthru
    _

// kernel: cnn_forward.4
$region0: #{cnn_forward.4}
  #allocation0 [shape = 'u32[]', space=smem, size = 0x4, offset = 0x4, fixed_abs, tag = 'smem constant byte address 0x4 - core index']
  #allocation1 [shape = 'u32[144,128]{1,0:T(1,128)}', space=vmem, size = 0x12000, scoped, tag = 'internal scratch']
  %s0 = inlined_call_operand.vmem [shape: bf16[72,256], index: 0, kind: input, shape index: {}]
  %s1 = inlined_call_operand.vmem [shape: bf16[72,256], index: 1, kind: input, shape index: {}]
  %s2 = inlined_call_operand.vmem [shape: bf16[1280,512], index: 2, kind: input, shape index: {}]
  %s3 = inlined_call_operand.vmem [shape: bf16[1280,512], index: 3, kind: input, shape index: {}]
  %s4 = inlined_call_operand.vmem [shape: f32[1,512], index: 4, kind: input, shape index: {}]
  %s5 = inlined_call_operand.vmem [shape: bf16[72,256], index: 5, kind: output, shape index: {}]
  %s6 = sld [smem:[#allocation0]]
  $region30: #{cnn_forward.4} parent=0
    _
  %s8 = ssub.s32 1, %s6
  %s9 = scalar_select 0, %s8, %s6
  // Predicated region
  $region2: #{cnn_forward.4} parent=0 // pred_check
    _
  $region3: #{cnn_forward.4} parent=0 // pred_check_branch
    %11 = sbr.rel (0) target = $region5
  $region4: #{cnn_forward.4} parent=0 // pred_region
    _
  $region5: #{cnn_forward.4} parent=0 // pred_fallthru
    _
  // Predicated region
  $region6: #{cnn_forward.4} parent=0 // pred_check
    _
  $region7: #{cnn_forward.4} parent=0 // pred_check_branch
    %13 = sbr.rel (0) target = $region9
  $region8: #{cnn_forward.4} parent=0 // pred_region
    _
  $region9: #{cnn_forward.4} parent=0 // pred_fallthru
    _
  // Predicated region
  $region10: #{cnn_forward.4} parent=0 // pred_check
    _
  $region11: #{cnn_forward.4} parent=0 // pred_check_branch
    %15 = sbr.rel (0) target = $region13
  $region12: #{cnn_forward.4} parent=0 // pred_region
    _
  $region13: #{cnn_forward.4} parent=0 // pred_fallthru
    _
  // Predicated region
  $region14: #{cnn_forward.4} parent=0 // pred_check
    _
  $region15: #{cnn_forward.4} parent=0 // pred_check_branch
    %17 = sbr.rel (0) target = $region17
  $region16: #{cnn_forward.4} parent=0 // pred_region
    _
  $region17: #{cnn_forward.4} parent=0 // pred_fallthru
    _
  // Predicated region
  $region18: #{cnn_forward.4} parent=0 // pred_check
    _
  $region19: #{cnn_forward.4} parent=0 // pred_check_branch
    %19 = sbr.rel (0) target = $region21
  $region20: #{cnn_forward.4} parent=0 // pred_region
    _
  $region21: #{cnn_forward.4} parent=0 // pred_fallthru
    _
  %v21 = vld [vmem:[%s0] sm:$0xff]
  %v22 = vld [vmem:[%s0 + $0x8] sm:$0xff]
  %v23 = vld [vmem:[%s0 + $0x10] sm:$0xff]
  %v24 = vld [vmem:[%s0 + $0x18] sm:$0xff]
  %v25 = vld [vmem:[%s0 + $0x20] sm:$0xff]
  %v26 = vld [vmem:[%s0 + $0x28] sm:$0xff]
  %v27 = vld [vmem:[%s0 + $0x30] sm:$0xff]
  %v28 = vld [vmem:[%s0 + $0x38] sm:$0xff]
  %v29 = vld [vmem:[%s0 + $0x40] sm:$0x77]
  %v30 = vld [vmem:[%s0 + $0x40] sm:$0xff]
  %v31 = vld [vmem:[%s0] sm:$0xee]
  %v32 = vld [vmem:[%s1] sm:$0xff]
  %v33 = vld [vmem:[%s1 + $0x8] sm:$0xff]
  %v34 = vld [vmem:[%s1 + $0x10] sm:$0xff]
  %v35 = vld [vmem:[%s1 + $0x18] sm:$0xff]
  %v36 = vld [vmem:[%s1 + $0x20] sm:$0xff]
  %v37 = vld [vmem:[%s1 + $0x28] sm:$0xff]
  %v38 = vld [vmem:[%s1 + $0x30] sm:$0xff]
  %v39 = vld [vmem:[%s1 + $0x38] sm:$0xff]
  %v40 = vld [vmem:[%s1 + $0x40] sm:$0x77]
  %v41 = vld [vmem:[%s1 + $0x40] sm:$0xff]
  %v42 = vld [vmem:[%s1] sm:$0xee]
  %v52 = vunpack.c.l.b16 %v21
  %v53 = vunpack.c.h.b16 %v21
  %v54 = vunpack.c.l.b16 %v22
  %v55 = vunpack.c.h.b16 %v22
  %v56 = vunpack.c.l.b16 %v23
  %v57 = vunpack.c.h.b16 %v23
  %v58 = vunpack.c.l.b16 %v24
  %v59 = vunpack.c.h.b16 %v24
  %v60 = vunpack.c.l.b16 %v25
  %v61 = vunpack.c.h.b16 %v25
  %v62 = vunpack.c.l.b16 %v26
  %v63 = vunpack.c.h.b16 %v26
  %v64 = vunpack.c.l.b16 %v27
  %v65 = vunpack.c.h.b16 %v27
  %v66 = vunpack.c.l.b16 %v28
  %v67 = vunpack.c.h.b16 %v28
  %v68 = vunpack.c.l.b16 %v29
  %v69 = vunpack.c.h.b16 %v29
  %v70 = vpack.c.b16 %v54, %v52
  %v71 = vpack.c.b16 %v55, %v53
  %v72 = vpack.c.b16 %v58, %v56
  %v73 = vpack.c.b16 %v59, %v57
  %v74 = vpack.c.b16 %v62, %v60
  %v75 = vpack.c.b16 %v63, %v61
  %v76 = vpack.c.b16 %v66, %v64
  %v77 = vpack.c.b16 %v67, %v65
  %v78 = vpack.c.b16 %v68, %v68
  %v79 = vpack.c.b16 %v69, %v69
  %v91 = vunpack.c.l.b16 %v30
  %v92 = vunpack.c.h.b16 %v30
  %v93 = vpack.c.b16 %v91, %v91
  %v94 = vpack.c.b16 %v92, %v92
  %vm95 = vsmask.f32 7424
  %v97 = vshrl.u32 %v70, 16
  %v99 = vshll.u32 %v70, 16
  %v101 = vrot.slane %v99, 1
  %v102 = vor.u32 %v97, %v101
  %v104 = vshll.u32 %v72, 16
  %v106 = vrot.slane %v104, 1
  %v107 = vsel %vm95, %v102, %v106
  %v109 = vshrl.u32 %v71, 16
  %v111 = vshll.u32 %v71, 16
  %v113 = vrot.slane %v111, 1
  %v114 = vor.u32 %v109, %v113
  %v116 = vshll.u32 %v73, 16
  %v118 = vrot.slane %v116, 1
  %v119 = vsel %vm95, %v114, %v118
  %v120 = vshrl.u32 %v72, 16
  %v122 = vor.u32 %v120, %v106
  %v124 = vshll.u32 %v74, 16
  %v126 = vrot.slane %v124, 1
  %v127 = vsel %vm95, %v122, %v126
  %v128 = vshrl.u32 %v73, 16
  %v130 = vor.u32 %v128, %v118
  %v132 = vshll.u32 %v75, 16
  %v134 = vrot.slane %v132, 1
  %v135 = vsel %vm95, %v130, %v134
  %v136 = vshrl.u32 %v74, 16
  %v138 = vor.u32 %v136, %v126
  %v140 = vshll.u32 %v76, 16
  %v142 = vrot.slane %v140, 1
  %v143 = vsel %vm95, %v138, %v142
  %v144 = vshrl.u32 %v75, 16
  %v146 = vor.u32 %v144, %v134
  %v148 = vshll.u32 %v77, 16
  %v150 = vrot.slane %v148, 1
  %v151 = vsel %vm95, %v146, %v150
  %v152 = vshrl.u32 %v76, 16
  %v154 = vor.u32 %v152, %v142
  %v156 = vshll.u32 %v93, 16
  %v158 = vrot.slane %v156, 1
  %v159 = vsel %vm95, %v154, %v158
  %v160 = vshrl.u32 %v77, 16
  %v162 = vor.u32 %v160, %v150
  %v164 = vshll.u32 %v94, 16
  %v166 = vrot.slane %v164, 1
  %v167 = vsel %vm95, %v162, %v166
  %v168 = vshrl.u32 %v93, 16
  %v170 = vor.u32 %v168, %v158
  %v171 = vshrl.u32 %v94, 16
  %v173 = vor.u32 %v171, %v166
  %v185 = vunpack.c.l.b16 %v31
  %v186 = vunpack.c.h.b16 %v31
  %v187 = vpack.c.b16 %v54, %v185
  %v188 = vpack.c.b16 %v55, %v186
  %vm189 = vcmask 1046528
  %v190 = vrot.slane %v187, 1
  %v191 = vrot.slane %v72, 1
  %v192 = vsel %vm189, %v190, %v191
  %v193 = vrot.slane %v188, 1
  %v194 = vrot.slane %v73, 1
  %v195 = vsel %vm189, %v193, %v194
  %v196 = vrot.slane %v74, 1
  %v197 = vsel %vm189, %v191, %v196
  %v198 = vrot.slane %v75, 1
  %v199 = vsel %vm189, %v194, %v198
  %v200 = vrot.slane %v76, 1
  %v201 = vsel %vm189, %v196, %v200
  %v202 = vrot.slane %v77, 1
  %v203 = vsel %vm189, %v198, %v202
  %v204 = vrot.slane %v93, 1
  %v205 = vsel %vm189, %v200, %v204
  %v206 = vrot.slane %v94, 1
  %v207 = vsel %vm189, %v202, %v206
  %v227 = vunpack.c.l.b16 %v32
  %v228 = vunpack.c.h.b16 %v32
  %v229 = vunpack.c.l.b16 %v33
  %v230 = vunpack.c.h.b16 %v33
  %v231 = vunpack.c.l.b16 %v34
  %v232 = vunpack.c.h.b16 %v34
  %v233 = vunpack.c.l.b16 %v35
  %v234 = vunpack.c.h.b16 %v35
  %v235 = vunpack.c.l.b16 %v36
  %v236 = vunpack.c.h.b16 %v36
  %v237 = vunpack.c.l.b16 %v37
  %v238 = vunpack.c.h.b16 %v37
  %v239 = vunpack.c.l.b16 %v38
  %v240 = vunpack.c.h.b16 %v38
  %v241 = vunpack.c.l.b16 %v39
  %v242 = vunpack.c.h.b16 %v39
  %v243 = vunpack.c.l.b16 %v40
  %v244 = vunpack.c.h.b16 %v40
  %v245 = vpack.c.b16 %v229, %v227
  %v246 = vpack.c.b16 %v230, %v228
  %v247 = vpack.c.b16 %v233, %v231
  %v248 = vpack.c.b16 %v234, %v232
  %v249 = vpack.c.b16 %v237, %v235
  %v250 = vpack.c.b16 %v238, %v236
  %v251 = vpack.c.b16 %v241, %v239
  %v252 = vpack.c.b16 %v242, %v240
  %v253 = vpack.c.b16 %v243, %v243
  %v254 = vpack.c.b16 %v244, %v244
  %v266 = vunpack.c.l.b16 %v41
  %v267 = vunpack.c.h.b16 %v41
  %v268 = vpack.c.b16 %v266, %v266
  %v269 = vpack.c.b16 %v267, %v267
  %v271 = vshrl.u32 %v245, 16
  %v273 = vshll.u32 %v245, 16
  %v275 = vrot.slane %v273, 1
  %v276 = vor.u32 %v271, %v275
  %v278 = vshll.u32 %v247, 16
  %v280 = vrot.slane %v278, 1
  %v281 = vsel %vm95, %v276, %v280
  %v283 = vshrl.u32 %v246, 16
  %v285 = vshll.u32 %v246, 16
  %v287 = vrot.slane %v285, 1
  %v288 = vor.u32 %v283, %v287
  %v290 = vshll.u32 %v248, 16
  %v292 = vrot.slane %v290, 1
  %v293 = vsel %vm95, %v288, %v292
  %v294 = vshrl.u32 %v247, 16
  %v296 = vor.u32 %v294, %v280
  %v298 = vshll.u32 %v249, 16
  %v300 = vrot.slane %v298, 1
  %v301 = vsel %vm95, %v296, %v300
  %v302 = vshrl.u32 %v248, 16
  %v304 = vor.u32 %v302, %v292
  %v306 = vshll.u32 %v250, 16
  %v308 = vrot.slane %v306, 1
  %v309 = vsel %vm95, %v304, %v308
  %v310 = vshrl.u32 %v249, 16
  %v312 = vor.u32 %v310, %v300
  %v314 = vshll.u32 %v251, 16
  %v316 = vrot.slane %v314, 1
  %v317 = vsel %vm95, %v312, %v316
  %v318 = vshrl.u32 %v250, 16
  %v320 = vor.u32 %v318, %v308
  %v322 = vshll.u32 %v252, 16
  %v324 = vrot.slane %v322, 1
  %v325 = vsel %vm95, %v320, %v324
  %v326 = vshrl.u32 %v251, 16
  %v328 = vor.u32 %v326, %v316
  %v330 = vshll.u32 %v268, 16
  %v332 = vrot.slane %v330, 1
  %v333 = vsel %vm95, %v328, %v332
  %v334 = vshrl.u32 %v252, 16
  %v336 = vor.u32 %v334, %v324
  %v338 = vshll.u32 %v269, 16
  %v340 = vrot.slane %v338, 1
  %v341 = vsel %vm95, %v336, %v340
  %v342 = vshrl.u32 %v268, 16
  %v344 = vor.u32 %v342, %v332
  %v345 = vshrl.u32 %v269, 16
  %v347 = vor.u32 %v345, %v340
  %v359 = vshrl.u32 %v187, 16
  %v361 = vshll.u32 %v187, 16
  %v363 = vrot.slane %v361, 1
  %v364 = vor.u32 %v359, %v363
  %v365 = vsel %vm95, %v364, %v106
  %v367 = vshrl.u32 %v188, 16
  %v369 = vshll.u32 %v188, 16
  %v371 = vrot.slane %v369, 1
  %v372 = vor.u32 %v367, %v371
  %v373 = vsel %vm95, %v372, %v118
  %vm374 = vsmask.f32 256
  %v375 = vrot.slane %v271, 7
  %v376 = vor.u32 %v375, %v273
  %v377 = vrot.slane %v283, 7
  %v378 = vor.u32 %v377, %v285
  %v379 = vrot.slane %v294, 7
  %v380 = vor.u32 %v379, %v278
  %v381 = vsel %vm374, %v375, %v380
  %v382 = vrot.slane %v302, 7
  %v383 = vor.u32 %v382, %v290
  %v384 = vsel %vm374, %v377, %v383
  %v385 = vrot.slane %v310, 7
  %v386 = vor.u32 %v385, %v298
  %v387 = vsel %vm374, %v379, %v386
  %v388 = vrot.slane %v318, 7
  %v389 = vor.u32 %v388, %v306
  %v390 = vsel %vm374, %v382, %v389
  %v391 = vrot.slane %v326, 7
  %v392 = vor.u32 %v391, %v314
  %v393 = vsel %vm374, %v385, %v392
  %v394 = vrot.slane %v334, 7
  %v395 = vor.u32 %v394, %v322
  %v396 = vsel %vm374, %v388, %v395
  %v398 = vshrl.u32 %v253, 16
  %v400 = vrot.slane %v398, 7
  %v401 = vshll.u32 %v253, 16
  %v403 = vor.u32 %v400, %v401
  %v404 = vsel %vm374, %v391, %v403
  %v406 = vshrl.u32 %v254, 16
  %v408 = vrot.slane %v406, 7
  %v409 = vshll.u32 %v254, 16
  %v411 = vor.u32 %v408, %v409
  %v412 = vsel %vm374, %v394, %v411
  %v414 = vunpack.c.l.b16 %v42
  %v415 = vunpack.c.h.b16 %v42
  %v416 = vpack.c.b16 %v229, %v414
  %v417 = vpack.c.b16 %v230, %v415
  %v419 = vshrl.u32 %v416, 16
  %v421 = vshll.u32 %v416, 16
  %v423 = vrot.slane %v421, 1
  %v424 = vor.u32 %v419, %v423
  %v425 = vsel %vm95, %v424, %v280
  %v427 = vshrl.u32 %v417, 16
  %v429 = vshll.u32 %v417, 16
  %v431 = vrot.slane %v429, 1
  %v432 = vor.u32 %v427, %v431
  %v433 = vsel %vm95, %v432, %v292
  %v434 = vld [vmem:[%s2] sm:$0xff]
  %v435 = vld [vmem:[%s2 + $0x8] sm:$0xff]
  %v436 = vld [vmem:[%s2 + $0x10] sm:$0xff]
  %v437 = vld [vmem:[%s2 + $0x18] sm:$0xff]
  %v438 = vld [vmem:[%s2 + $0x20] sm:$0xff]
  %v439 = vld [vmem:[%s2 + $0x28] sm:$0xff]
  %v440 = vld [vmem:[%s2 + $0x30] sm:$0xff]
  %v441 = vld [vmem:[%s2 + $0x38] sm:$0xff]
  %v442 = vld [vmem:[%s2 + $0x40] sm:$0xff]
  %v443 = vld [vmem:[%s2 + $0x48] sm:$0xff]
  %v444 = vld [vmem:[%s2 + $0x50] sm:$0xff]
  %v445 = vld [vmem:[%s2 + $0x58] sm:$0xff]
  %v446 = vld [vmem:[%s2 + $0x60] sm:$0xff]
  %v447 = vld [vmem:[%s2 + $0x68] sm:$0xff]
  %v448 = vld [vmem:[%s2 + $0x70] sm:$0xff]
  %v449 = vld [vmem:[%s2 + $0x78] sm:$0xff]
  %v450 = vld [vmem:[%s2 + $0x80] sm:$0xff]
  %v451 = vld [vmem:[%s2 + $0x88] sm:$0xff]
  %v452 = vld [vmem:[%s2 + $0x90] sm:$0xff]
  %v453 = vld [vmem:[%s2 + $0x98] sm:$0xff]
  %v454 = vld [vmem:[%s2 + $0xa0] sm:$0xff]
  %v455 = vld [vmem:[%s2 + $0xa8] sm:$0xff]
  %v456 = vld [vmem:[%s2 + $0xb0] sm:$0xff]
  %v457 = vld [vmem:[%s2 + $0xb8] sm:$0xff]
  %v458 = vld [vmem:[%s2 + $0xc0] sm:$0xff]
  %v459 = vld [vmem:[%s2 + $0xc8] sm:$0xff]
  %v460 = vld [vmem:[%s2 + $0xd0] sm:$0xff]
  %v461 = vld [vmem:[%s2 + $0xd8] sm:$0xff]
  %v462 = vld [vmem:[%s2 + $0xe0] sm:$0xff]
  %v463 = vld [vmem:[%s2 + $0xe8] sm:$0xff]
  %v464 = vld [vmem:[%s2 + $0xf0] sm:$0xff]
  %v465 = vld [vmem:[%s2 + $0xf8] sm:$0xff]
  %v466 = vld [vmem:[%s2 + $0x100] sm:$0xff]
  %v467 = vld [vmem:[%s2 + $0x108] sm:$0xff]
  %v468 = vld [vmem:[%s2 + $0x110] sm:$0xff]
  %v469 = vld [vmem:[%s2 + $0x118] sm:$0xff]
  %v470 = vld [vmem:[%s2 + $0x120] sm:$0xff]
  %v471 = vld [vmem:[%s2 + $0x128] sm:$0xff]
  %v472 = vld [vmem:[%s2 + $0x130] sm:$0xff]
  %v473 = vld [vmem:[%s2 + $0x138] sm:$0xff]
  %v474 = vld [vmem:[%s2 + $0x140] sm:$0xff]
  %v475 = vld [vmem:[%s2 + $0x148] sm:$0xff]
  %v476 = vld [vmem:[%s2 + $0x150] sm:$0xff]
  %v477 = vld [vmem:[%s2 + $0x158] sm:$0xff]
  %v478 = vld [vmem:[%s2 + $0x160] sm:$0xff]
  %v479 = vld [vmem:[%s2 + $0x168] sm:$0xff]
  %v480 = vld [vmem:[%s2 + $0x170] sm:$0xff]
  %v481 = vld [vmem:[%s2 + $0x178] sm:$0xff]
  %v482 = vld [vmem:[%s2 + $0x180] sm:$0xff]
  %v483 = vld [vmem:[%s2 + $0x188] sm:$0xff]
  %v484 = vld [vmem:[%s2 + $0x190] sm:$0xff]
  %v485 = vld [vmem:[%s2 + $0x198] sm:$0xff]
  %v486 = vld [vmem:[%s2 + $0x1a0] sm:$0xff]
  %v487 = vld [vmem:[%s2 + $0x1a8] sm:$0xff]
  %v488 = vld [vmem:[%s2 + $0x1b0] sm:$0xff]
  %v489 = vld [vmem:[%s2 + $0x1b8] sm:$0xff]
  %v490 = vld [vmem:[%s2 + $0x1c0] sm:$0xff]
  %v491 = vld [vmem:[%s2 + $0x1c8] sm:$0xff]
  %v492 = vld [vmem:[%s2 + $0x1d0] sm:$0xff]
  %v493 = vld [vmem:[%s2 + $0x1d8] sm:$0xff]
  %v494 = vld [vmem:[%s2 + $0x1e0] sm:$0xff]
  %v495 = vld [vmem:[%s2 + $0x1e8] sm:$0xff]
  %v496 = vld [vmem:[%s2 + $0x1f0] sm:$0xff]
  %v497 = vld [vmem:[%s2 + $0x1f8] sm:$0xff]
  %v498 = vld [vmem:[%s2 + $0x200] sm:$0xff]
  %v499 = vld [vmem:[%s2 + $0x208] sm:$0xff]
  %v500 = vld [vmem:[%s2 + $0x210] sm:$0xff]
  %v501 = vld [vmem:[%s2 + $0x218] sm:$0xff]
  %v502 = vld [vmem:[%s2 + $0x220] sm:$0xff]
  %v503 = vld [vmem:[%s2 + $0x228] sm:$0xff]
  %v504 = vld [vmem:[%s2 + $0x230] sm:$0xff]
  %v505 = vld [vmem:[%s2 + $0x238] sm:$0xff]
  %v506 = vld [vmem:[%s2 + $0x240] sm:$0xff]
  %v507 = vld [vmem:[%s2 + $0x248] sm:$0xff]
  %v508 = vld [vmem:[%s2 + $0x250] sm:$0xff]
  %v509 = vld [vmem:[%s2 + $0x258] sm:$0xff]
  %v510 = vld [vmem:[%s2 + $0x260] sm:$0xff]
  %v511 = vld [vmem:[%s2 + $0x268] sm:$0xff]
  %v512 = vld [vmem:[%s2 + $0x270] sm:$0xff]
  %v513 = vld [vmem:[%s2 + $0x278] sm:$0xff]
  %v514 = vld [vmem:[%s2 + $0x280] sm:$0xff]
  %v515 = vld [vmem:[%s2 + $0x288] sm:$0xff]
  %v516 = vld [vmem:[%s2 + $0x290] sm:$0xff]
  %v517 = vld [vmem:[%s2 + $0x298] sm:$0xff]
  %v518 = vld [vmem:[%s2 + $0x2a0] sm:$0xff]
  %v519 = vld [vmem:[%s2 + $0x2a8] sm:$0xff]
  %v520 = vld [vmem:[%s2 + $0x2b0] sm:$0xff]
  %v521 = vld [vmem:[%s2 + $0x2b8] sm:$0xff]
  %v522 = vld [vmem:[%s2 + $0x2c0] sm:$0xff]
  %v523 = vld [vmem:[%s2 + $0x2c8] sm:$0xff]
  %v524 = vld [vmem:[%s2 + $0x2d0] sm:$0xff]
  %v525 = vld [vmem:[%s2 + $0x2d8] sm:$0xff]
  %v526 = vld [vmem:[%s2 + $0x2e0] sm:$0xff]
  %v527 = vld [vmem:[%s2 + $0x2e8] sm:$0xff]
  %v528 = vld [vmem:[%s2 + $0x2f0] sm:$0xff]
  %v529 = vld [vmem:[%s2 + $0x2f8] sm:$0xff]
  %v530 = vld [vmem:[%s2 + $0x300] sm:$0xff]
  %v531 = vld [vmem:[%s2 + $0x308] sm:$0xff]
  %v532 = vld [vmem:[%s2 + $0x310] sm:$0xff]
  %v533 = vld [vmem:[%s2 + $0x318] sm:$0xff]
  %v534 = vld [vmem:[%s2 + $0x320] sm:$0xff]
  %v535 = vld [vmem:[%s2 + $0x328] sm:$0xff]
  %v536 = vld [vmem:[%s2 + $0x330] sm:$0xff]
  %v537 = vld [vmem:[%s2 + $0x338] sm:$0xff]
  %v538 = vld [vmem:[%s2 + $0x340] sm:$0xff]
  %v539 = vld [vmem:[%s2 + $0x348] sm:$0xff]
  %v540 = vld [vmem:[%s2 + $0x350] sm:$0xff]
  %v541 = vld [vmem:[%s2 + $0x358] sm:$0xff]
  %v542 = vld [vmem:[%s2 + $0x360] sm:$0xff]
  %v543 = vld [vmem:[%s2 + $0x368] sm:$0xff]
  %v544 = vld [vmem:[%s2 + $0x370] sm:$0xff]
  %v545 = vld [vmem:[%s2 + $0x378] sm:$0xff]
  %v546 = vld [vmem:[%s2 + $0x380] sm:$0xff]
  %v547 = vld [vmem:[%s2 + $0x388] sm:$0xff]
  %v548 = vld [vmem:[%s2 + $0x390] sm:$0xff]
  %v549 = vld [vmem:[%s2 + $0x398] sm:$0xff]
  %v550 = vld [vmem:[%s2 + $0x3a0] sm:$0xff]
  %v551 = vld [vmem:[%s2 + $0x3a8] sm:$0xff]
  %v552 = vld [vmem:[%s2 + $0x3b0] sm:$0xff]
  %v553 = vld [vmem:[%s2 + $0x3b8] sm:$0xff]
  %v554 = vld [vmem:[%s2 + $0x3c0] sm:$0xff]
  %v555 = vld [vmem:[%s2 + $0x3c8] sm:$0xff]
  %v556 = vld [vmem:[%s2 + $0x3d0] sm:$0xff]
  %v557 = vld [vmem:[%s2 + $0x3d8] sm:$0xff]
  %v558 = vld [vmem:[%s2 + $0x3e0] sm:$0xff]
  %v559 = vld [vmem:[%s2 + $0x3e8] sm:$0xff]
  %v560 = vld [vmem:[%s2 + $0x3f0] sm:$0xff]
  %v561 = vld [vmem:[%s2 + $0x3f8] sm:$0xff]
  %v562 = vld [vmem:[%s2 + $0x400] sm:$0xff]
  %v563 = vld [vmem:[%s2 + $0x408] sm:$0xff]
  %v564 = vld [vmem:[%s2 + $0x410] sm:$0xff]
  %v565 = vld [vmem:[%s2 + $0x418] sm:$0xff]
  %v566 = vld [vmem:[%s2 + $0x420] sm:$0xff]
  %v567 = vld [vmem:[%s2 + $0x428] sm:$0xff]
  %v568 = vld [vmem:[%s2 + $0x430] sm:$0xff]
  %v569 = vld [vmem:[%s2 + $0x438] sm:$0xff]
  %v570 = vld [vmem:[%s2 + $0x440] sm:$0xff]
  %v571 = vld [vmem:[%s2 + $0x448] sm:$0xff]
  %v572 = vld [vmem:[%s2 + $0x450] sm:$0xff]
  %v573 = vld [vmem:[%s2 + $0x458] sm:$0xff]
  %v574 = vld [vmem:[%s2 + $0x460] sm:$0xff]
  %v575 = vld [vmem:[%s2 + $0x468] sm:$0xff]
  %v576 = vld [vmem:[%s2 + $0x470] sm:$0xff]
  %v577 = vld [vmem:[%s2 + $0x478] sm:$0xff]
  %v578 = vld [vmem:[%s2 + $0x480] sm:$0xff]
  %v579 = vld [vmem:[%s2 + $0x488] sm:$0xff]
  %v580 = vld [vmem:[%s2 + $0x490] sm:$0xff]
  %v581 = vld [vmem:[%s2 + $0x498] sm:$0xff]
  %v582 = vld [vmem:[%s2 + $0x4a0] sm:$0xff]
  %v583 = vld [vmem:[%s2 + $0x4a8] sm:$0xff]
  %v584 = vld [vmem:[%s2 + $0x4b0] sm:$0xff]
  %v585 = vld [vmem:[%s2 + $0x4b8] sm:$0xff]
  %v586 = vld [vmem:[%s2 + $0x4c0] sm:$0xff]
  %v587 = vld [vmem:[%s2 + $0x4c8] sm:$0xff]
  %v588 = vld [vmem:[%s2 + $0x4d0] sm:$0xff]
  %v589 = vld [vmem:[%s2 + $0x4d8] sm:$0xff]
  %v590 = vld [vmem:[%s2 + $0x4e0] sm:$0xff]
  %v591 = vld [vmem:[%s2 + $0x4e8] sm:$0xff]
  %v592 = vld [vmem:[%s2 + $0x4f0] sm:$0xff]
  %v593 = vld [vmem:[%s2 + $0x4f8] sm:$0xff]
  %v594 = vld [vmem:[%s2 + $0x500] sm:$0xff]
  %v595 = vld [vmem:[%s2 + $0x508] sm:$0xff]
  %v596 = vld [vmem:[%s2 + $0x510] sm:$0xff]
  %v597 = vld [vmem:[%s2 + $0x518] sm:$0xff]
  %v598 = vld [vmem:[%s2 + $0x520] sm:$0xff]
  %v599 = vld [vmem:[%s2 + $0x528] sm:$0xff]
  %v600 = vld [vmem:[%s2 + $0x530] sm:$0xff]
  %v601 = vld [vmem:[%s2 + $0x538] sm:$0xff]
  %v602 = vld [vmem:[%s2 + $0x540] sm:$0xff]
  %v603 = vld [vmem:[%s2 + $0x548] sm:$0xff]
  %v604 = vld [vmem:[%s2 + $0x550] sm:$0xff]
  %v605 = vld [vmem:[%s2 + $0x558] sm:$0xff]
  %v606 = vld [vmem:[%s2 + $0x560] sm:$0xff]
  %v607 = vld [vmem:[%s2 + $0x568] sm:$0xff]
  %v608 = vld [vmem:[%s2 + $0x570] sm:$0xff]
  %v609 = vld [vmem:[%s2 + $0x578] sm:$0xff]
  %v610 = vld [vmem:[%s2 + $0x580] sm:$0xff]
  %v611 = vld [vmem:[%s2 + $0x588] sm:$0xff]
  %v612 = vld [vmem:[%s2 + $0x590] sm:$0xff]
  %v613 = vld [vmem:[%s2 + $0x598] sm:$0xff]
  %v614 = vld [vmem:[%s2 + $0x5a0] sm:$0xff]
  %v615 = vld [vmem:[%s2 + $0x5a8] sm:$0xff]
  %v616 = vld [vmem:[%s2 + $0x5b0] sm:$0xff]
  %v617 = vld [vmem:[%s2 + $0x5b8] sm:$0xff]
  %v618 = vld [vmem:[%s2 + $0x5c0] sm:$0xff]
  %v619 = vld [vmem:[%s2 + $0x5c8] sm:$0xff]
  %v620 = vld [vmem:[%s2 + $0x5d0] sm:$0xff]
  %v621 = vld [vmem:[%s2 + $0x5d8] sm:$0xff]
  %v622 = vld [vmem:[%s2 + $0x5e0] sm:$0xff]
  %v623 = vld [vmem:[%s2 + $0x5e8] sm:$0xff]
  %v624 = vld [vmem:[%s2 + $0x5f0] sm:$0xff]
  %v625 = vld [vmem:[%s2 + $0x5f8] sm:$0xff]
  %v626 = vld [vmem:[%s2 + $0x600] sm:$0xff]
  %v627 = vld [vmem:[%s2 + $0x608] sm:$0xff]
  %v628 = vld [vmem:[%s2 + $0x610] sm:$0xff]
  %v629 = vld [vmem:[%s2 + $0x618] sm:$0xff]
  %v630 = vld [vmem:[%s2 + $0x620] sm:$0xff]
  %v631 = vld [vmem:[%s2 + $0x628] sm:$0xff]
  %v632 = vld [vmem:[%s2 + $0x630] sm:$0xff]
  %v633 = vld [vmem:[%s2 + $0x638] sm:$0xff]
  %v634 = vld [vmem:[%s2 + $0x640] sm:$0xff]
  %v635 = vld [vmem:[%s2 + $0x648] sm:$0xff]
  %v636 = vld [vmem:[%s2 + $0x650] sm:$0xff]
  %v637 = vld [vmem:[%s2 + $0x658] sm:$0xff]
  %v638 = vld [vmem:[%s2 + $0x660] sm:$0xff]
  %v639 = vld [vmem:[%s2 + $0x668] sm:$0xff]
  %v640 = vld [vmem:[%s2 + $0x670] sm:$0xff]
  %v641 = vld [vmem:[%s2 + $0x678] sm:$0xff]
  %v642 = vld [vmem:[%s2 + $0x680] sm:$0xff]
  %v643 = vld [vmem:[%s2 + $0x688] sm:$0xff]
  %v644 = vld [vmem:[%s2 + $0x690] sm:$0xff]
  %v645 = vld [vmem:[%s2 + $0x698] sm:$0xff]
  %v646 = vld [vmem:[%s2 + $0x6a0] sm:$0xff]
  %v647 = vld [vmem:[%s2 + $0x6a8] sm:$0xff]
  %v648 = vld [vmem:[%s2 + $0x6b0] sm:$0xff]
  %v649 = vld [vmem:[%s2 + $0x6b8] sm:$0xff]
  %v650 = vld [vmem:[%s2 + $0x6c0] sm:$0xff]
  %v651 = vld [vmem:[%s2 + $0x6c8] sm:$0xff]
  %v652 = vld [vmem:[%s2 + $0x6d0] sm:$0xff]
  %v653 = vld [vmem:[%s2 + $0x6d8] sm:$0xff]
  %v654 = vld [vmem:[%s2 + $0x6e0] sm:$0xff]
  %v655 = vld [vmem:[%s2 + $0x6e8] sm:$0xff]
  %v656 = vld [vmem:[%s2 + $0x6f0] sm:$0xff]
  %v657 = vld [vmem:[%s2 + $0x6f8] sm:$0xff]
  %v658 = vld [vmem:[%s2 + $0x700] sm:$0xff]
  %v659 = vld [vmem:[%s2 + $0x708] sm:$0xff]
  %v660 = vld [vmem:[%s2 + $0x710] sm:$0xff]
  %v661 = vld [vmem:[%s2 + $0x718] sm:$0xff]
  %v662 = vld [vmem:[%s2 + $0x720] sm:$0xff]
  %v663 = vld [vmem:[%s2 + $0x728] sm:$0xff]
  %v664 = vld [vmem:[%s2 + $0x730] sm:$0xff]
  %v665 = vld [vmem:[%s2 + $0x738] sm:$0xff]
  %v666 = vld [vmem:[%s2 + $0x740] sm:$0xff]
  %v667 = vld [vmem:[%s2 + $0x748] sm:$0xff]
  %v668 = vld [vmem:[%s2 + $0x750] sm:$0xff]
  %v669 = vld [vmem:[%s2 + $0x758] sm:$0xff]
  %v670 = vld [vmem:[%s2 + $0x760] sm:$0xff]
  %v671 = vld [vmem:[%s2 + $0x768] sm:$0xff]
  %v672 = vld [vmem:[%s2 + $0x770] sm:$0xff]
  %v673 = vld [vmem:[%s2 + $0x778] sm:$0xff]
  %v674 = vld [vmem:[%s2 + $0x780] sm:$0xff]
  %v675 = vld [vmem:[%s2 + $0x788] sm:$0xff]
  %v676 = vld [vmem:[%s2 + $0x790] sm:$0xff]
  %v677 = vld [vmem:[%s2 + $0x798] sm:$0xff]
  %v678 = vld [vmem:[%s2 + $0x7a0] sm:$0xff]
  %v679 = vld [vmem:[%s2 + $0x7a8] sm:$0xff]
  %v680 = vld [vmem:[%s2 + $0x7b0] sm:$0xff]
  %v681 = vld [vmem:[%s2 + $0x7b8] sm:$0xff]
  %v682 = vld [vmem:[%s2 + $0x7c0] sm:$0xff]
  %v683 = vld [vmem:[%s2 + $0x7c8] sm:$0xff]
  %v684 = vld [vmem:[%s2 + $0x7d0] sm:$0xff]
  %v685 = vld [vmem:[%s2 + $0x7d8] sm:$0xff]
  %v686 = vld [vmem:[%s2 + $0x7e0] sm:$0xff]
  %v687 = vld [vmem:[%s2 + $0x7e8] sm:$0xff]
  %v688 = vld [vmem:[%s2 + $0x7f0] sm:$0xff]
  %v689 = vld [vmem:[%s2 + $0x7f8] sm:$0xff]
  %v690 = vld [vmem:[%s2 + $0x800] sm:$0xff]
  %v691 = vld [vmem:[%s2 + $0x808] sm:$0xff]
  %v692 = vld [vmem:[%s2 + $0x810] sm:$0xff]
  %v693 = vld [vmem:[%s2 + $0x818] sm:$0xff]
  %v694 = vld [vmem:[%s2 + $0x820] sm:$0xff]
  %v695 = vld [vmem:[%s2 + $0x828] sm:$0xff]
  %v696 = vld [vmem:[%s2 + $0x830] sm:$0xff]
  %v697 = vld [vmem:[%s2 + $0x838] sm:$0xff]
  %v698 = vld [vmem:[%s2 + $0x840] sm:$0xff]
  %v699 = vld [vmem:[%s2 + $0x848] sm:$0xff]
  %v700 = vld [vmem:[%s2 + $0x850] sm:$0xff]
  %v701 = vld [vmem:[%s2 + $0x858] sm:$0xff]
  %v702 = vld [vmem:[%s2 + $0x860] sm:$0xff]
  %v703 = vld [vmem:[%s2 + $0x868] sm:$0xff]
  %v704 = vld [vmem:[%s2 + $0x870] sm:$0xff]
  %v705 = vld [vmem:[%s2 + $0x878] sm:$0xff]
  %v706 = vld [vmem:[%s2 + $0x880] sm:$0xff]
  %v707 = vld [vmem:[%s2 + $0x888] sm:$0xff]
  %v708 = vld [vmem:[%s2 + $0x890] sm:$0xff]
  %v709 = vld [vmem:[%s2 + $0x898] sm:$0xff]
  %v710 = vld [vmem:[%s2 + $0x8a0] sm:$0xff]
  %v711 = vld [vmem:[%s2 + $0x8a8] sm:$0xff]
  %v712 = vld [vmem:[%s2 + $0x8b0] sm:$0xff]
  %v713 = vld [vmem:[%s2 + $0x8b8] sm:$0xff]
  %v714 = vld [vmem:[%s2 + $0x8c0] sm:$0xff]
  %v715 = vld [vmem:[%s2 + $0x8c8] sm:$0xff]
  %v716 = vld [vmem:[%s2 + $0x8d0] sm:$0xff]
  %v717 = vld [vmem:[%s2 + $0x8d8] sm:$0xff]
  %v718 = vld [vmem:[%s2 + $0x8e0] sm:$0xff]
  %v719 = vld [vmem:[%s2 + $0x8e8] sm:$0xff]
  %v720 = vld [vmem:[%s2 + $0x8f0] sm:$0xff]
  %v721 = vld [vmem:[%s2 + $0x8f8] sm:$0xff]
  %v722 = vld [vmem:[%s2 + $0x900] sm:$0xff]
  %v723 = vld [vmem:[%s2 + $0x908] sm:$0xff]
  %v724 = vld [vmem:[%s2 + $0x910] sm:$0xff]
  %v725 = vld [vmem:[%s2 + $0x918] sm:$0xff]
  %v726 = vld [vmem:[%s2 + $0x920] sm:$0xff]
  %v727 = vld [vmem:[%s2 + $0x928] sm:$0xff]
  %v728 = vld [vmem:[%s2 + $0x930] sm:$0xff]
  %v729 = vld [vmem:[%s2 + $0x938] sm:$0xff]
  %v730 = vld [vmem:[%s2 + $0x940] sm:$0xff]
  %v731 = vld [vmem:[%s2 + $0x948] sm:$0xff]
  %v732 = vld [vmem:[%s2 + $0x950] sm:$0xff]
  %v733 = vld [vmem:[%s2 + $0x958] sm:$0xff]
  %v734 = vld [vmem:[%s2 + $0x960] sm:$0xff]
  %v735 = vld [vmem:[%s2 + $0x968] sm:$0xff]
  %v736 = vld [vmem:[%s2 + $0x970] sm:$0xff]
  %v737 = vld [vmem:[%s2 + $0x978] sm:$0xff]
  %v738 = vld [vmem:[%s2 + $0x980] sm:$0xff]
  %v739 = vld [vmem:[%s2 + $0x988] sm:$0xff]
  %v740 = vld [vmem:[%s2 + $0x990] sm:$0xff]
  %v741 = vld [vmem:[%s2 + $0x998] sm:$0xff]
  %v742 = vld [vmem:[%s2 + $0x9a0] sm:$0xff]
  %v743 = vld [vmem:[%s2 + $0x9a8] sm:$0xff]
  %v744 = vld [vmem:[%s2 + $0x9b0] sm:$0xff]
  %v745 = vld [vmem:[%s2 + $0x9b8] sm:$0xff]
  %v746 = vld [vmem:[%s2 + $0x9c0] sm:$0xff]
  %v747 = vld [vmem:[%s2 + $0x9c8] sm:$0xff]
  %v748 = vld [vmem:[%s2 + $0x9d0] sm:$0xff]
  %v749 = vld [vmem:[%s2 + $0x9d8] sm:$0xff]
  %v750 = vld [vmem:[%s2 + $0x9e0] sm:$0xff]
  %v751 = vld [vmem:[%s2 + $0x9e8] sm:$0xff]
  %v752 = vld [vmem:[%s2 + $0x9f0] sm:$0xff]
  %v753 = vld [vmem:[%s2 + $0x9f8] sm:$0xff]
  %v1074 = vunpack.c.l.b16 %v434
  %v1075 = vunpack.c.h.b16 %v434
  %v1076 = vunpack.c.l.b16 %v435
  %v1077 = vunpack.c.h.b16 %v435
  %v1078 = vunpack.c.l.b16 %v436
  %v1079 = vunpack.c.h.b16 %v436
  %v1080 = vunpack.c.l.b16 %v437
  %v1081 = vunpack.c.h.b16 %v437
  %v1082 = vunpack.c.l.b16 %v438
  %v1083 = vunpack.c.h.b16 %v438
  %v1084 = vunpack.c.l.b16 %v439
  %v1085 = vunpack.c.h.b16 %v439
  %v1086 = vunpack.c.l.b16 %v440
  %v1087 = vunpack.c.h.b16 %v440
  %v1088 = vunpack.c.l.b16 %v441
  %v1089 = vunpack.c.h.b16 %v441
  %v1090 = vunpack.c.l.b16 %v442
  %v1091 = vunpack.c.h.b16 %v442
  %v1092 = vunpack.c.l.b16 %v443
  %v1093 = vunpack.c.h.b16 %v443
  %v1094 = vunpack.c.l.b16 %v444
  %v1095 = vunpack.c.h.b16 %v444
  %v1096 = vunpack.c.l.b16 %v445
  %v1097 = vunpack.c.h.b16 %v445
  %v1098 = vunpack.c.l.b16 %v446
  %v1099 = vunpack.c.h.b16 %v446
  %v1100 = vunpack.c.l.b16 %v447
  %v1101 = vunpack.c.h.b16 %v447
  %v1102 = vunpack.c.l.b16 %v448
  %v1103 = vunpack.c.h.b16 %v448
  %v1104 = vunpack.c.l.b16 %v449
  %v1105 = vunpack.c.h.b16 %v449
  %v1106 = vunpack.c.l.b16 %v450
  %v1107 = vunpack.c.h.b16 %v450
  %v1108 = vunpack.c.l.b16 %v451
  %v1109 = vunpack.c.h.b16 %v451
  %v1110 = vunpack.c.l.b16 %v452
  %v1111 = vunpack.c.h.b16 %v452
  %v1112 = vunpack.c.l.b16 %v453
  %v1113 = vunpack.c.h.b16 %v453
  %v1114 = vunpack.c.l.b16 %v454
  %v1115 = vunpack.c.h.b16 %v454
  %v1116 = vunpack.c.l.b16 %v455
  %v1117 = vunpack.c.h.b16 %v455
  %v1118 = vunpack.c.l.b16 %v456
  %v1119 = vunpack.c.h.b16 %v456
  %v1120 = vunpack.c.l.b16 %v457
  %v1121 = vunpack.c.h.b16 %v457
  %v1122 = vunpack.c.l.b16 %v458
  %v1123 = vunpack.c.h.b16 %v458
  %v1124 = vunpack.c.l.b16 %v459
  %v1125 = vunpack.c.h.b16 %v459
  %v1126 = vunpack.c.l.b16 %v460
  %v1127 = vunpack.c.h.b16 %v460
  %v1128 = vunpack.c.l.b16 %v461
  %v1129 = vunpack.c.h.b16 %v461
  %v1130 = vunpack.c.l.b16 %v462
  %v1131 = vunpack.c.h.b16 %v462
  %v1132 = vunpack.c.l.b16 %v463
  %v1133 = vunpack.c.h.b16 %v463
  %v1134 = vunpack.c.l.b16 %v464
  %v1135 = vunpack.c.h.b16 %v464
  %v1136 = vunpack.c.l.b16 %v465
  %v1137 = vunpack.c.h.b16 %v465
  %v1138 = vunpack.c.l.b16 %v466
  %v1139 = vunpack.c.h.b16 %v466
  %v1140 = vunpack.c.l.b16 %v467
  %v1141 = vunpack.c.h.b16 %v467
  %v1142 = vunpack.c.l.b16 %v468
  %v1143 = vunpack.c.h.b16 %v468
  %v1144 = vunpack.c.l.b16 %v469
  %v1145 = vunpack.c.h.b16 %v469
  %v1146 = vunpack.c.l.b16 %v470
  %v1147 = vunpack.c.h.b16 %v470
  %v1148 = vunpack.c.l.b16 %v471
  %v1149 = vunpack.c.h.b16 %v471
  %v1150 = vunpack.c.l.b16 %v472
  %v1151 = vunpack.c.h.b16 %v472
  %v1152 = vunpack.c.l.b16 %v473
  %v1153 = vunpack.c.h.b16 %v473
  %v1154 = vunpack.c.l.b16 %v474
  %v1155 = vunpack.c.h.b16 %v474
  %v1156 = vunpack.c.l.b16 %v475
  %v1157 = vunpack.c.h.b16 %v475
  %v1158 = vunpack.c.l.b16 %v476
  %v1159 = vunpack.c.h.b16 %v476
  %v1160 = vunpack.c.l.b16 %v477
  %v1161 = vunpack.c.h.b16 %v477
  %v1162 = vunpack.c.l.b16 %v478
  %v1163 = vunpack.c.h.b16 %v478
  %v1164 = vunpack.c.l.b16 %v479
  %v1165 = vunpack.c.h.b16 %v479
  %v1166 = vunpack.c.l.b16 %v480
  %v1167 = vunpack.c.h.b16 %v480
  %v1168 = vunpack.c.l.b16 %v481
  %v1169 = vunpack.c.h.b16 %v481
  %v1170 = vunpack.c.l.b16 %v482
  %v1171 = vunpack.c.h.b16 %v482
  %v1172 = vunpack.c.l.b16 %v483
  %v1173 = vunpack.c.h.b16 %v483
  %v1174 = vunpack.c.l.b16 %v484
  %v1175 = vunpack.c.h.b16 %v484
  %v1176 = vunpack.c.l.b16 %v485
  %v1177 = vunpack.c.h.b16 %v485
  %v1178 = vunpack.c.l.b16 %v486
  %v1179 = vunpack.c.h.b16 %v486
  %v1180 = vunpack.c.l.b16 %v487
  %v1181 = vunpack.c.h.b16 %v487
  %v1182 = vunpack.c.l.b16 %v488
  %v1183 = vunpack.c.h.b16 %v488
  %v1184 = vunpack.c.l.b16 %v489
  %v1185 = vunpack.c.h.b16 %v489
  %v1186 = vunpack.c.l.b16 %v490
  %v1187 = vunpack.c.h.b16 %v490
  %v1188 = vunpack.c.l.b16 %v491
  %v1189 = vunpack.c.h.b16 %v491
  %v1190 = vunpack.c.l.b16 %v492
  %v1191 = vunpack.c.h.b16 %v492
  %v1192 = vunpack.c.l.b16 %v493
  %v1193 = vunpack.c.h.b16 %v493
  %v1194 = vunpack.c.l.b16 %v494
  %v1195 = vunpack.c.h.b16 %v494
  %v1196 = vunpack.c.l.b16 %v495
  %v1197 = vunpack.c.h.b16 %v495
  %v1198 = vunpack.c.l.b16 %v496
  %v1199 = vunpack.c.h.b16 %v496
  %v1200 = vunpack.c.l.b16 %v497
  %v1201 = vunpack.c.h.b16 %v497
  %v1202 = vunpack.c.l.b16 %v498
  %v1203 = vunpack.c.h.b16 %v498
  %v1204 = vunpack.c.l.b16 %v499
  %v1205 = vunpack.c.h.b16 %v499
  %v1206 = vunpack.c.l.b16 %v500
  %v1207 = vunpack.c.h.b16 %v500
  %v1208 = vunpack.c.l.b16 %v501
  %v1209 = vunpack.c.h.b16 %v501
  %v1210 = vunpack.c.l.b16 %v502
  %v1211 = vunpack.c.h.b16 %v502
  %v1212 = vunpack.c.l.b16 %v503
  %v1213 = vunpack.c.h.b16 %v503
  %v1214 = vunpack.c.l.b16 %v504
  %v1215 = vunpack.c.h.b16 %v504
  %v1216 = vunpack.c.l.b16 %v505
  %v1217 = vunpack.c.h.b16 %v505
  %v1218 = vunpack.c.l.b16 %v506
  %v1219 = vunpack.c.h.b16 %v506
  %v1220 = vunpack.c.l.b16 %v507
  %v1221 = vunpack.c.h.b16 %v507
  %v1222 = vunpack.c.l.b16 %v508
  %v1223 = vunpack.c.h.b16 %v508
  %v1224 = vunpack.c.l.b16 %v509
  %v1225 = vunpack.c.h.b16 %v509
  %v1226 = vunpack.c.l.b16 %v510
  %v1227 = vunpack.c.h.b16 %v510
  %v1228 = vunpack.c.l.b16 %v511
  %v1229 = vunpack.c.h.b16 %v511
  %v1230 = vunpack.c.l.b16 %v512
  %v1231 = vunpack.c.h.b16 %v512
  %v1232 = vunpack.c.l.b16 %v513
  %v1233 = vunpack.c.h.b16 %v513
  %v1234 = vunpack.c.l.b16 %v514
  %v1235 = vunpack.c.h.b16 %v514
  %v1236 = vunpack.c.l.b16 %v515
  %v1237 = vunpack.c.h.b16 %v515
  %v1238 = vunpack.c.l.b16 %v516
  %v1239 = vunpack.c.h.b16 %v516
  %v1240 = vunpack.c.l.b16 %v517
  %v1241 = vunpack.c.h.b16 %v517
  %v1242 = vunpack.c.l.b16 %v518
  %v1243 = vunpack.c.h.b16 %v518
  %v1244 = vunpack.c.l.b16 %v519
  %v1245 = vunpack.c.h.b16 %v519
  %v1246 = vunpack.c.l.b16 %v520
  %v1247 = vunpack.c.h.b16 %v520
  %v1248 = vunpack.c.l.b16 %v521
  %v1249 = vunpack.c.h.b16 %v521
  %v1250 = vunpack.c.l.b16 %v522
  %v1251 = vunpack.c.h.b16 %v522
  %v1252 = vunpack.c.l.b16 %v523
  %v1253 = vunpack.c.h.b16 %v523
  %v1254 = vunpack.c.l.b16 %v524
  %v1255 = vunpack.c.h.b16 %v524
  %v1256 = vunpack.c.l.b16 %v525
  %v1257 = vunpack.c.h.b16 %v525
  %v1258 = vunpack.c.l.b16 %v526
  %v1259 = vunpack.c.h.b16 %v526
  %v1260 = vunpack.c.l.b16 %v527
  %v1261 = vunpack.c.h.b16 %v527
  %v1262 = vunpack.c.l.b16 %v528
  %v1263 = vunpack.c.h.b16 %v528
  %v1264 = vunpack.c.l.b16 %v529
  %v1265 = vunpack.c.h.b16 %v529
  %v1266 = vunpack.c.l.b16 %v530
  %v1267 = vunpack.c.h.b16 %v530
  %v1268 = vunpack.c.l.b16 %v531
  %v1269 = vunpack.c.h.b16 %v531
  %v1270 = vunpack.c.l.b16 %v532
  %v1271 = vunpack.c.h.b16 %v532
  %v1272 = vunpack.c.l.b16 %v533
  %v1273 = vunpack.c.h.b16 %v533
  %v1274 = vunpack.c.l.b16 %v534
  %v1275 = vunpack.c.h.b16 %v534
  %v1276 = vunpack.c.l.b16 %v535
  %v1277 = vunpack.c.h.b16 %v535
  %v1278 = vunpack.c.l.b16 %v536
  %v1279 = vunpack.c.h.b16 %v536
  %v1280 = vunpack.c.l.b16 %v537
  %v1281 = vunpack.c.h.b16 %v537
  %v1282 = vunpack.c.l.b16 %v538
  %v1283 = vunpack.c.h.b16 %v538
  %v1284 = vunpack.c.l.b16 %v539
  %v1285 = vunpack.c.h.b16 %v539
  %v1286 = vunpack.c.l.b16 %v540
  %v1287 = vunpack.c.h.b16 %v540
  %v1288 = vunpack.c.l.b16 %v541
  %v1289 = vunpack.c.h.b16 %v541
  %v1290 = vunpack.c.l.b16 %v542
  %v1291 = vunpack.c.h.b16 %v542
  %v1292 = vunpack.c.l.b16 %v543
  %v1293 = vunpack.c.h.b16 %v543
  %v1294 = vunpack.c.l.b16 %v544
  %v1295 = vunpack.c.h.b16 %v544
  %v1296 = vunpack.c.l.b16 %v545
  %v1297 = vunpack.c.h.b16 %v545
  %v1298 = vunpack.c.l.b16 %v546
  %v1299 = vunpack.c.h.b16 %v546
  %v1300 = vunpack.c.l.b16 %v547
  %v1301 = vunpack.c.h.b16 %v547
  %v1302 = vunpack.c.l.b16 %v548
  %v1303 = vunpack.c.h.b16 %v548
  %v1304 = vunpack.c.l.b16 %v549
  %v1305 = vunpack.c.h.b16 %v549
  %v1306 = vunpack.c.l.b16 %v550
  %v1307 = vunpack.c.h.b16 %v550
  %v1308 = vunpack.c.l.b16 %v551
  %v1309 = vunpack.c.h.b16 %v551
  %v1310 = vunpack.c.l.b16 %v552
  %v1311 = vunpack.c.h.b16 %v552
  %v1312 = vunpack.c.l.b16 %v553
  %v1313 = vunpack.c.h.b16 %v553
  %v1314 = vunpack.c.l.b16 %v554
  %v1315 = vunpack.c.h.b16 %v554
  %v1316 = vunpack.c.l.b16 %v555
  %v1317 = vunpack.c.h.b16 %v555
  %v1318 = vunpack.c.l.b16 %v556
  %v1319 = vunpack.c.h.b16 %v556
  %v1320 = vunpack.c.l.b16 %v557
  %v1321 = vunpack.c.h.b16 %v557
  %v1322 = vunpack.c.l.b16 %v558
  %v1323 = vunpack.c.h.b16 %v558
  %v1324 = vunpack.c.l.b16 %v559
  %v1325 = vunpack.c.h.b16 %v559
  %v1326 = vunpack.c.l.b16 %v560
  %v1327 = vunpack.c.h.b16 %v560
  %v1328 = vunpack.c.l.b16 %v561
  %v1329 = vunpack.c.h.b16 %v561
  %v1330 = vunpack.c.l.b16 %v562
  %v1331 = vunpack.c.h.b16 %v562
  %v1332 = vunpack.c.l.b16 %v563
  %v1333 = vunpack.c.h.b16 %v563
  %v1334 = vunpack.c.l.b16 %v564
  %v1335 = vunpack.c.h.b16 %v564
  %v1336 = vunpack.c.l.b16 %v565
  %v1337 = vunpack.c.h.b16 %v565
  %v1338 = vunpack.c.l.b16 %v566
  %v1339 = vunpack.c.h.b16 %v566
  %v1340 = vunpack.c.l.b16 %v567
  %v1341 = vunpack.c.h.b16 %v567
  %v1342 = vunpack.c.l.b16 %v568
  %v1343 = vunpack.c.h.b16 %v568
  %v1344 = vunpack.c.l.b16 %v569
  %v1345 = vunpack.c.h.b16 %v569
  %v1346 = vunpack.c.l.b16 %v570
  %v1347 = vunpack.c.h.b16 %v570
  %v1348 = vunpack.c.l.b16 %v571
  %v1349 = vunpack.c.h.b16 %v571
  %v1350 = vunpack.c.l.b16 %v572
  %v1351 = vunpack.c.h.b16 %v572
  %v1352 = vunpack.c.l.b16 %v573
  %v1353 = vunpack.c.h.b16 %v573
  %v1354 = vunpack.c.l.b16 %v574
  %v1355 = vunpack.c.h.b16 %v574
  %v1356 = vunpack.c.l.b16 %v575
  %v1357 = vunpack.c.h.b16 %v575
  %v1358 = vunpack.c.l.b16 %v576
  %v1359 = vunpack.c.h.b16 %v576
  %v1360 = vunpack.c.l.b16 %v577
  %v1361 = vunpack.c.h.b16 %v577
  %v1362 = vunpack.c.l.b16 %v578
  %v1363 = vunpack.c.h.b16 %v578
  %v1364 = vunpack.c.l.b16 %v579
  %v1365 = vunpack.c.h.b16 %v579
  %v1366 = vunpack.c.l.b16 %v580
  %v1367 = vunpack.c.h.b16 %v580
  %v1368 = vunpack.c.l.b16 %v581
  %v1369 = vunpack.c.h.b16 %v581
  %v1370 = vunpack.c.l.b16 %v582
  %v1371 = vunpack.c.h.b16 %v582
  %v1372 = vunpack.c.l.b16 %v583
  %v1373 = vunpack.c.h.b16 %v583
  %v1374 = vunpack.c.l.b16 %v584
  %v1375 = vunpack.c.h.b16 %v584
  %v1376 = vunpack.c.l.b16 %v585
  %v1377 = vunpack.c.h.b16 %v585
  %v1378 = vunpack.c.l.b16 %v586
  %v1379 = vunpack.c.h.b16 %v586
  %v1380 = vunpack.c.l.b16 %v587
  %v1381 = vunpack.c.h.b16 %v587
  %v1382 = vunpack.c.l.b16 %v588
  %v1383 = vunpack.c.h.b16 %v588
  %v1384 = vunpack.c.l.b16 %v589
  %v1385 = vunpack.c.h.b16 %v589
  %v1386 = vunpack.c.l.b16 %v590
  %v1387 = vunpack.c.h.b16 %v590
  %v1388 = vunpack.c.l.b16 %v591
  %v1389 = vunpack.c.h.b16 %v591
  %v1390 = vunpack.c.l.b16 %v592
  %v1391 = vunpack.c.h.b16 %v592
  %v1392 = vunpack.c.l.b16 %v593
  %v1393 = vunpack.c.h.b16 %v593
  %v1394 = vunpack.c.l.b16 %v594
  %v1395 = vunpack.c.h.b16 %v594
  %v1396 = vunpack.c.l.b16 %v595
  %v1397 = vunpack.c.h.b16 %v595
  %v1398 = vunpack.c.l.b16 %v596
  %v1399 = vunpack.c.h.b16 %v596
  %v1400 = vunpack.c.l.b16 %v597
  %v1401 = vunpack.c.h.b16 %v597
  %v1402 = vunpack.c.l.b16 %v598
  %v1403 = vunpack.c.h.b16 %v598
  %v1404 = vunpack.c.l.b16 %v599
  %v1405 = vunpack.c.h.b16 %v599
  %v1406 = vunpack.c.l.b16 %v600
  %v1407 = vunpack.c.h.b16 %v600
  %v1408 = vunpack.c.l.b16 %v601
  %v1409 = vunpack.c.h.b16 %v601
  %v1410 = vunpack.c.l.b16 %v602
  %v1411 = vunpack.c.h.b16 %v602
  %v1412 = vunpack.c.l.b16 %v603
  %v1413 = vunpack.c.h.b16 %v603
  %v1414 = vunpack.c.l.b16 %v604
  %v1415 = vunpack.c.h.b16 %v604
  %v1416 = vunpack.c.l.b16 %v605
  %v1417 = vunpack.c.h.b16 %v605
  %v1418 = vunpack.c.l.b16 %v606
  %v1419 = vunpack.c.h.b16 %v606
  %v1420 = vunpack.c.l.b16 %v607
  %v1421 = vunpack.c.h.b16 %v607
  %v1422 = vunpack.c.l.b16 %v608
  %v1423 = vunpack.c.h.b16 %v608
  %v1424 = vunpack.c.l.b16 %v609
  %v1425 = vunpack.c.h.b16 %v609
  %v1426 = vunpack.c.l.b16 %v610
  %v1427 = vunpack.c.h.b16 %v610
  %v1428 = vunpack.c.l.b16 %v611
  %v1429 = vunpack.c.h.b16 %v611
  %v1430 = vunpack.c.l.b16 %v612
  %v1431 = vunpack.c.h.b16 %v612
  %v1432 = vunpack.c.l.b16 %v613
  %v1433 = vunpack.c.h.b16 %v613
  %v1434 = vunpack.c.l.b16 %v614
  %v1435 = vunpack.c.h.b16 %v614
  %v1436 = vunpack.c.l.b16 %v615
  %v1437 = vunpack.c.h.b16 %v615
  %v1438 = vunpack.c.l.b16 %v616
  %v1439 = vunpack.c.h.b16 %v616
  %v1440 = vunpack.c.l.b16 %v617
  %v1441 = vunpack.c.h.b16 %v617
  %v1442 = vunpack.c.l.b16 %v618
  %v1443 = vunpack.c.h.b16 %v618
  %v1444 = vunpack.c.l.b16 %v619
  %v1445 = vunpack.c.h.b16 %v619
  %v1446 = vunpack.c.l.b16 %v620
  %v1447 = vunpack.c.h.b16 %v620
  %v1448 = vunpack.c.l.b16 %v621
  %v1449 = vunpack.c.h.b16 %v621
  %v1450 = vunpack.c.l.b16 %v622
  %v1451 = vunpack.c.h.b16 %v622
  %v1452 = vunpack.c.l.b16 %v623
  %v1453 = vunpack.c.h.b16 %v623
  %v1454 = vunpack.c.l.b16 %v624
  %v1455 = vunpack.c.h.b16 %v624
  %v1456 = vunpack.c.l.b16 %v625
  %v1457 = vunpack.c.h.b16 %v625
  %v1458 = vunpack.c.l.b16 %v626
  %v1459 = vunpack.c.h.b16 %v626
  %v1460 = vunpack.c.l.b16 %v627
  %v1461 = vunpack.c.h.b16 %v627
  %v1462 = vunpack.c.l.b16 %v628
  %v1463 = vunpack.c.h.b16 %v628
  %v1464 = vunpack.c.l.b16 %v629
  %v1465 = vunpack.c.h.b16 %v629
  %v1466 = vunpack.c.l.b16 %v630
  %v1467 = vunpack.c.h.b16 %v630
  %v1468 = vunpack.c.l.b16 %v631
  %v1469 = vunpack.c.h.b16 %v631
  %v1470 = vunpack.c.l.b16 %v632
  %v1471 = vunpack.c.h.b16 %v632
  %v1472 = vunpack.c.l.b16 %v633
  %v1473 = vunpack.c.h.b16 %v633
  %v1474 = vunpack.c.l.b16 %v634
  %v1475 = vunpack.c.h.b16 %v634
  %v1476 = vunpack.c.l.b16 %v635
  %v1477 = vunpack.c.h.b16 %v635
  %v1478 = vunpack.c.l.b16 %v636
  %v1479 = vunpack.c.h.b16 %v636
  %v1480 = vunpack.c.l.b16 %v637
  %v1481 = vunpack.c.h.b16 %v637
  %v1482 = vunpack.c.l.b16 %v638
  %v1483 = vunpack.c.h.b16 %v638
  %v1484 = vunpack.c.l.b16 %v639
  %v1485 = vunpack.c.h.b16 %v639
  %v1486 = vunpack.c.l.b16 %v640
  %v1487 = vunpack.c.h.b16 %v640
  %v1488 = vunpack.c.l.b16 %v641
  %v1489 = vunpack.c.h.b16 %v641
  %v1490 = vunpack.c.l.b16 %v642
  %v1491 = vunpack.c.h.b16 %v642
  %v1492 = vunpack.c.l.b16 %v643
  %v1493 = vunpack.c.h.b16 %v643
  %v1494 = vunpack.c.l.b16 %v644
  %v1495 = vunpack.c.h.b16 %v644
  %v1496 = vunpack.c.l.b16 %v645
  %v1497 = vunpack.c.h.b16 %v645
  %v1498 = vunpack.c.l.b16 %v646
  %v1499 = vunpack.c.h.b16 %v646
  %v1500 = vunpack.c.l.b16 %v647
  %v1501 = vunpack.c.h.b16 %v647
  %v1502 = vunpack.c.l.b16 %v648
  %v1503 = vunpack.c.h.b16 %v648
  %v1504 = vunpack.c.l.b16 %v649
  %v1505 = vunpack.c.h.b16 %v649
  %v1506 = vunpack.c.l.b16 %v650
  %v1507 = vunpack.c.h.b16 %v650
  %v1508 = vunpack.c.l.b16 %v651
  %v1509 = vunpack.c.h.b16 %v651
  %v1510 = vunpack.c.l.b16 %v652
  %v1511 = vunpack.c.h.b16 %v652
  %v1512 = vunpack.c.l.b16 %v653
  %v1513 = vunpack.c.h.b16 %v653
  %v1514 = vunpack.c.l.b16 %v654
  %v1515 = vunpack.c.h.b16 %v654
  %v1516 = vunpack.c.l.b16 %v655
  %v1517 = vunpack.c.h.b16 %v655
  %v1518 = vunpack.c.l.b16 %v656
  %v1519 = vunpack.c.h.b16 %v656
  %v1520 = vunpack.c.l.b16 %v657
  %v1521 = vunpack.c.h.b16 %v657
  %v1522 = vunpack.c.l.b16 %v658
  %v1523 = vunpack.c.h.b16 %v658
  %v1524 = vunpack.c.l.b16 %v659
  %v1525 = vunpack.c.h.b16 %v659
  %v1526 = vunpack.c.l.b16 %v660
  %v1527 = vunpack.c.h.b16 %v660
  %v1528 = vunpack.c.l.b16 %v661
  %v1529 = vunpack.c.h.b16 %v661
  %v1530 = vunpack.c.l.b16 %v662
  %v1531 = vunpack.c.h.b16 %v662
  %v1532 = vunpack.c.l.b16 %v663
  %v1533 = vunpack.c.h.b16 %v663
  %v1534 = vunpack.c.l.b16 %v664
  %v1535 = vunpack.c.h.b16 %v664
  %v1536 = vunpack.c.l.b16 %v665
  %v1537 = vunpack.c.h.b16 %v665
  %v1538 = vunpack.c.l.b16 %v666
  %v1539 = vunpack.c.h.b16 %v666
  %v1540 = vunpack.c.l.b16 %v667
  %v1541 = vunpack.c.h.b16 %v667
  %v1542 = vunpack.c.l.b16 %v668
  %v1543 = vunpack.c.h.b16 %v668
  %v1544 = vunpack.c.l.b16 %v669
  %v1545 = vunpack.c.h.b16 %v669
  %v1546 = vunpack.c.l.b16 %v670
  %v1547 = vunpack.c.h.b16 %v670
  %v1548 = vunpack.c.l.b16 %v671
  %v1549 = vunpack.c.h.b16 %v671
  %v1550 = vunpack.c.l.b16 %v672
  %v1551 = vunpack.c.h.b16 %v672
  %v1552 = vunpack.c.l.b16 %v673
  %v1553 = vunpack.c.h.b16 %v673
  %v1554 = vunpack.c.l.b16 %v674
  %v1555 = vunpack.c.h.b16 %v674
  %v1556 = vunpack.c.l.b16 %v675
  %v1557 = vunpack.c.h.b16 %v675
  %v1558 = vunpack.c.l.b16 %v676
  %v1559 = vunpack.c.h.b16 %v676
  %v1560 = vunpack.c.l.b16 %v677
  %v1561 = vunpack.c.h.b16 %v677
  %v1562 = vunpack.c.l.b16 %v678
  %v1563 = vunpack.c.h.b16 %v678
  %v1564 = vunpack.c.l.b16 %v679
  %v1565 = vunpack.c.h.b16 %v679
  %v1566 = vunpack.c.l.b16 %v680
  %v1567 = vunpack.c.h.b16 %v680
  %v1568 = vunpack.c.l.b16 %v681
  %v1569 = vunpack.c.h.b16 %v681
  %v1570 = vunpack.c.l.b16 %v682
  %v1571 = vunpack.c.h.b16 %v682
  %v1572 = vunpack.c.l.b16 %v683
  %v1573 = vunpack.c.h.b16 %v683
  %v1574 = vunpack.c.l.b16 %v684
  %v1575 = vunpack.c.h.b16 %v684
  %v1576 = vunpack.c.l.b16 %v685
  %v1577 = vunpack.c.h.b16 %v685
  %v1578 = vunpack.c.l.b16 %v686
  %v1579 = vunpack.c.h.b16 %v686
  %v1580 = vunpack.c.l.b16 %v687
  %v1581 = vunpack.c.h.b16 %v687
  %v1582 = vunpack.c.l.b16 %v688
  %v1583 = vunpack.c.h.b16 %v688
  %v1584 = vunpack.c.l.b16 %v689
  %v1585 = vunpack.c.h.b16 %v689
  %v1586 = vunpack.c.l.b16 %v690
  %v1587 = vunpack.c.h.b16 %v690
  %v1588 = vunpack.c.l.b16 %v691
  %v1589 = vunpack.c.h.b16 %v691
  %v1590 = vunpack.c.l.b16 %v692
  %v1591 = vunpack.c.h.b16 %v692
  %v1592 = vunpack.c.l.b16 %v693
  %v1593 = vunpack.c.h.b16 %v693
  %v1594 = vunpack.c.l.b16 %v694
  %v1595 = vunpack.c.h.b16 %v694
  %v1596 = vunpack.c.l.b16 %v695
  %v1597 = vunpack.c.h.b16 %v695
  %v1598 = vunpack.c.l.b16 %v696
  %v1599 = vunpack.c.h.b16 %v696
  %v1600 = vunpack.c.l.b16 %v697
  %v1601 = vunpack.c.h.b16 %v697
  %v1602 = vunpack.c.l.b16 %v698
  %v1603 = vunpack.c.h.b16 %v698
  %v1604 = vunpack.c.l.b16 %v699
  %v1605 = vunpack.c.h.b16 %v699
  %v1606 = vunpack.c.l.b16 %v700
  %v1607 = vunpack.c.h.b16 %v700
  %v1608 = vunpack.c.l.b16 %v701
  %v1609 = vunpack.c.h.b16 %v701
  %v1610 = vunpack.c.l.b16 %v702
  %v1611 = vunpack.c.h.b16 %v702
  %v1612 = vunpack.c.l.b16 %v703
  %v1613 = vunpack.c.h.b16 %v703
  %v1614 = vunpack.c.l.b16 %v704
  %v1615 = vunpack.c.h.b16 %v704
  %v1616 = vunpack.c.l.b16 %v705
  %v1617 = vunpack.c.h.b16 %v705
  %v1618 = vunpack.c.l.b16 %v706
  %v1619 = vunpack.c.h.b16 %v706
  %v1620 = vunpack.c.l.b16 %v707
  %v1621 = vunpack.c.h.b16 %v707
  %v1622 = vunpack.c.l.b16 %v708
  %v1623 = vunpack.c.h.b16 %v708
  %v1624 = vunpack.c.l.b16 %v709
  %v1625 = vunpack.c.h.b16 %v709
  %v1626 = vunpack.c.l.b16 %v710
  %v1627 = vunpack.c.h.b16 %v710
  %v1628 = vunpack.c.l.b16 %v711
  %v1629 = vunpack.c.h.b16 %v711
  %v1630 = vunpack.c.l.b16 %v712
  %v1631 = vunpack.c.h.b16 %v712
  %v1632 = vunpack.c.l.b16 %v713
  %v1633 = vunpack.c.h.b16 %v713
  %v1634 = vunpack.c.l.b16 %v714
  %v1635 = vunpack.c.h.b16 %v714
  %v1636 = vunpack.c.l.b16 %v715
  %v1637 = vunpack.c.h.b16 %v715
  %v1638 = vunpack.c.l.b16 %v716
  %v1639 = vunpack.c.h.b16 %v716
  %v1640 = vunpack.c.l.b16 %v717
  %v1641 = vunpack.c.h.b16 %v717
  %v1642 = vunpack.c.l.b16 %v718
  %v1643 = vunpack.c.h.b16 %v718
  %v1644 = vunpack.c.l.b16 %v719
  %v1645 = vunpack.c.h.b16 %v719
  %v1646 = vunpack.c.l.b16 %v720
  %v1647 = vunpack.c.h.b16 %v720
  %v1648 = vunpack.c.l.b16 %v721
  %v1649 = vunpack.c.h.b16 %v721
  %v1650 = vunpack.c.l.b16 %v722
  %v1651 = vunpack.c.h.b16 %v722
  %v1652 = vunpack.c.l.b16 %v723
  %v1653 = vunpack.c.h.b16 %v723
  %v1654 = vunpack.c.l.b16 %v724
  %v1655 = vunpack.c.h.b16 %v724
  %v1656 = vunpack.c.l.b16 %v725
  %v1657 = vunpack.c.h.b16 %v725
  %v1658 = vunpack.c.l.b16 %v726
  %v1659 = vunpack.c.h.b16 %v726
  %v1660 = vunpack.c.l.b16 %v727
  %v1661 = vunpack.c.h.b16 %v727
  %v1662 = vunpack.c.l.b16 %v728
  %v1663 = vunpack.c.h.b16 %v728
  %v1664 = vunpack.c.l.b16 %v729
  %v1665 = vunpack.c.h.b16 %v729
  %v1666 = vunpack.c.l.b16 %v730
  %v1667 = vunpack.c.h.b16 %v730
  %v1668 = vunpack.c.l.b16 %v731
  %v1669 = vunpack.c.h.b16 %v731
  %v1670 = vunpack.c.l.b16 %v732
  %v1671 = vunpack.c.h.b16 %v732
  %v1672 = vunpack.c.l.b16 %v733
  %v1673 = vunpack.c.h.b16 %v733
  %v1674 = vunpack.c.l.b16 %v734
  %v1675 = vunpack.c.h.b16 %v734
  %v1676 = vunpack.c.l.b16 %v735
  %v1677 = vunpack.c.h.b16 %v735
  %v1678 = vunpack.c.l.b16 %v736
  %v1679 = vunpack.c.h.b16 %v736
  %v1680 = vunpack.c.l.b16 %v737
  %v1681 = vunpack.c.h.b16 %v737
  %v1682 = vunpack.c.l.b16 %v738
  %v1683 = vunpack.c.h.b16 %v738
  %v1684 = vunpack.c.l.b16 %v739
  %v1685 = vunpack.c.h.b16 %v739
  %v1686 = vunpack.c.l.b16 %v740
  %v1687 = vunpack.c.h.b16 %v740
  %v1688 = vunpack.c.l.b16 %v741
  %v1689 = vunpack.c.h.b16 %v741
  %v1690 = vunpack.c.l.b16 %v742
  %v1691 = vunpack.c.h.b16 %v742
  %v1692 = vunpack.c.l.b16 %v743
  %v1693 = vunpack.c.h.b16 %v743
  %v1694 = vunpack.c.l.b16 %v744
  %v1695 = vunpack.c.h.b16 %v744
  %v1696 = vunpack.c.l.b16 %v745
  %v1697 = vunpack.c.h.b16 %v745
  %v1698 = vunpack.c.l.b16 %v746
  %v1699 = vunpack.c.h.b16 %v746
  %v1700 = vunpack.c.l.b16 %v747
  %v1701 = vunpack.c.h.b16 %v747
  %v1702 = vunpack.c.l.b16 %v748
  %v1703 = vunpack.c.h.b16 %v748
  %v1704 = vunpack.c.l.b16 %v749
  %v1705 = vunpack.c.h.b16 %v749
  %v1706 = vunpack.c.l.b16 %v750
  %v1707 = vunpack.c.h.b16 %v750
  %v1708 = vunpack.c.l.b16 %v751
  %v1709 = vunpack.c.h.b16 %v751
  %v1710 = vunpack.c.l.b16 %v752
  %v1711 = vunpack.c.h.b16 %v752
  %v1712 = vunpack.c.l.b16 %v753
  %v1713 = vunpack.c.h.b16 %v753
  %v1714 = vpack.c.b16 %v1078, %v1074
  %v1715 = vpack.c.b16 %v1079, %v1075
  %v1716 = vpack.c.b16 %v1080, %v1076
  %v1717 = vpack.c.b16 %v1081, %v1077
  %v1718 = vpack.c.b16 %v1086, %v1082
  %v1719 = vpack.c.b16 %v1087, %v1083
  %v1720 = vpack.c.b16 %v1088, %v1084
  %v1721 = vpack.c.b16 %v1089, %v1085
  %v1722 = vpack.c.b16 %v1094, %v1090
  %v1723 = vpack.c.b16 %v1095, %v1091
  %v1724 = vpack.c.b16 %v1096, %v1092
  %v1725 = vpack.c.b16 %v1097, %v1093
  %v1726 = vpack.c.b16 %v1102, %v1098
  %v1727 = vpack.c.b16 %v1103, %v1099
  %v1728 = vpack.c.b16 %v1104, %v1100
  %v1729 = vpack.c.b16 %v1105, %v1101
  %v1730 = vpack.c.b16 %v1110, %v1106
  %v1731 = vpack.c.b16 %v1111, %v1107
  %v1732 = vpack.c.b16 %v1112, %v1108
  %v1733 = vpack.c.b16 %v1113, %v1109
  %v1734 = vpack.c.b16 %v1118, %v1114
  %v1735 = vpack.c.b16 %v1119, %v1115
  %v1736 = vpack.c.b16 %v1120, %v1116
  %v1737 = vpack.c.b16 %v1121, %v1117
  %v1738 = vpack.c.b16 %v1126, %v1122
  %v1739 = vpack.c.b16 %v1127, %v1123
  %v1740 = vpack.c.b16 %v1128, %v1124
  %v1741 = vpack.c.b16 %v1129, %v1125
  %v1742 = vpack.c.b16 %v1134, %v1130
  %v1743 = vpack.c.b16 %v1135, %v1131
  %v1744 = vpack.c.b16 %v1136, %v1132
  %v1745 = vpack.c.b16 %v1137, %v1133
  %v1746 = vpack.c.b16 %v1142, %v1138
  %v1747 = vpack.c.b16 %v1143, %v1139
  %v1748 = vpack.c.b16 %v1144, %v1140
  %v1749 = vpack.c.b16 %v1145, %v1141
  %v1750 = vpack.c.b16 %v1150, %v1146
  %v1751 = vpack.c.b16 %v1151, %v1147
  %v1752 = vpack.c.b16 %v1152, %v1148
  %v1753 = vpack.c.b16 %v1153, %v1149
  %v1754 = vpack.c.b16 %v1158, %v1154
  %v1755 = vpack.c.b16 %v1159, %v1155
  %v1756 = vpack.c.b16 %v1160, %v1156
  %v1757 = vpack.c.b16 %v1161, %v1157
  %v1758 = vpack.c.b16 %v1166, %v1162
  %v1759 = vpack.c.b16 %v1167, %v1163
  %v1760 = vpack.c.b16 %v1168, %v1164
  %v1761 = vpack.c.b16 %v1169, %v1165
  %v1762 = vpack.c.b16 %v1174, %v1170
  %v1763 = vpack.c.b16 %v1175, %v1171
  %v1764 = vpack.c.b16 %v1176, %v1172
  %v1765 = vpack.c.b16 %v1177, %v1173
  %v1766 = vpack.c.b16 %v1182, %v1178
  %v1767 = vpack.c.b16 %v1183, %v1179
  %v1768 = vpack.c.b16 %v1184, %v1180
  %v1769 = vpack.c.b16 %v1185, %v1181
  %v1770 = vpack.c.b16 %v1190, %v1186
  %v1771 = vpack.c.b16 %v1191, %v1187
  %v1772 = vpack.c.b16 %v1192, %v1188
  %v1773 = vpack.c.b16 %v1193, %v1189
  %v1774 = vpack.c.b16 %v1198, %v1194
  %v1775 = vpack.c.b16 %v1199, %v1195
  %v1776 = vpack.c.b16 %v1200, %v1196
  %v1777 = vpack.c.b16 %v1201, %v1197
  %v1778 = vpack.c.b16 %v1206, %v1202
  %v1779 = vpack.c.b16 %v1207, %v1203
  %v1780 = vpack.c.b16 %v1208, %v1204
  %v1781 = vpack.c.b16 %v1209, %v1205
  %v1782 = vpack.c.b16 %v1214, %v1210
  %v1783 = vpack.c.b16 %v1215, %v1211
  %v1784 = vpack.c.b16 %v1216, %v1212
  %v1785 = vpack.c.b16 %v1217, %v1213
  %v1786 = vpack.c.b16 %v1222, %v1218
  %v1787 = vpack.c.b16 %v1223, %v1219
  %v1788 = vpack.c.b16 %v1224, %v1220
  %v1789 = vpack.c.b16 %v1225, %v1221
  %v1790 = vpack.c.b16 %v1230, %v1226
  %v1791 = vpack.c.b16 %v1231, %v1227
  %v1792 = vpack.c.b16 %v1232, %v1228
  %v1793 = vpack.c.b16 %v1233, %v1229
  %v1794 = vpack.c.b16 %v1238, %v1234
  %v1795 = vpack.c.b16 %v1239, %v1235
  %v1796 = vpack.c.b16 %v1240, %v1236
  %v1797 = vpack.c.b16 %v1241, %v1237
  %v1798 = vpack.c.b16 %v1246, %v1242
  %v1799 = vpack.c.b16 %v1247, %v1243
  %v1800 = vpack.c.b16 %v1248, %v1244
  %v1801 = vpack.c.b16 %v1249, %v1245
  %v1802 = vpack.c.b16 %v1254, %v1250
  %v1803 = vpack.c.b16 %v1255, %v1251
  %v1804 = vpack.c.b16 %v1256, %v1252
  %v1805 = vpack.c.b16 %v1257, %v1253
  %v1806 = vpack.c.b16 %v1262, %v1258
  %v1807 = vpack.c.b16 %v1263, %v1259
  %v1808 = vpack.c.b16 %v1264, %v1260
  %v1809 = vpack.c.b16 %v1265, %v1261
  %v1810 = vpack.c.b16 %v1270, %v1266
  %v1811 = vpack.c.b16 %v1271, %v1267
  %v1812 = vpack.c.b16 %v1272, %v1268
  %v1813 = vpack.c.b16 %v1273, %v1269
  %v1814 = vpack.c.b16 %v1278, %v1274
  %v1815 = vpack.c.b16 %v1279, %v1275
  %v1816 = vpack.c.b16 %v1280, %v1276
  %v1817 = vpack.c.b16 %v1281, %v1277
  %v1818 = vpack.c.b16 %v1286, %v1282
  %v1819 = vpack.c.b16 %v1287, %v1283
  %v1820 = vpack.c.b16 %v1288, %v1284
  %v1821 = vpack.c.b16 %v1289, %v1285
  %v1822 = vpack.c.b16 %v1294, %v1290
  %v1823 = vpack.c.b16 %v1295, %v1291
  %v1824 = vpack.c.b16 %v1296, %v1292
  %v1825 = vpack.c.b16 %v1297, %v1293
  %v1826 = vpack.c.b16 %v1302, %v1298
  %v1827 = vpack.c.b16 %v1303, %v1299
  %v1828 = vpack.c.b16 %v1304, %v1300
  %v1829 = vpack.c.b16 %v1305, %v1301
  %v1830 = vpack.c.b16 %v1310, %v1306
  %v1831 = vpack.c.b16 %v1311, %v1307
  %v1832 = vpack.c.b16 %v1312, %v1308
  %v1833 = vpack.c.b16 %v1313, %v1309
  %v1834 = vpack.c.b16 %v1318, %v1314
  %v1835 = vpack.c.b16 %v1319, %v1315
  %v1836 = vpack.c.b16 %v1320, %v1316
  %v1837 = vpack.c.b16 %v1321, %v1317
  %v1838 = vpack.c.b16 %v1326, %v1322
  %v1839 = vpack.c.b16 %v1327, %v1323
  %v1840 = vpack.c.b16 %v1328, %v1324
  %v1841 = vpack.c.b16 %v1329, %v1325
  %v1842 = vpack.c.b16 %v1334, %v1330
  %v1843 = vpack.c.b16 %v1335, %v1331
  %v1844 = vpack.c.b16 %v1336, %v1332
  %v1845 = vpack.c.b16 %v1337, %v1333
  %v1846 = vpack.c.b16 %v1342, %v1338
  %v1847 = vpack.c.b16 %v1343, %v1339
  %v1848 = vpack.c.b16 %v1344, %v1340
  %v1849 = vpack.c.b16 %v1345, %v1341
  %v1850 = vpack.c.b16 %v1350, %v1346
  %v1851 = vpack.c.b16 %v1351, %v1347
  %v1852 = vpack.c.b16 %v1352, %v1348
  %v1853 = vpack.c.b16 %v1353, %v1349
  %v1854 = vpack.c.b16 %v1358, %v1354
  %v1855 = vpack.c.b16 %v1359, %v1355
  %v1856 = vpack.c.b16 %v1360, %v1356
  %v1857 = vpack.c.b16 %v1361, %v1357
  %v1858 = vpack.c.b16 %v1366, %v1362
  %v1859 = vpack.c.b16 %v1367, %v1363
  %v1860 = vpack.c.b16 %v1368, %v1364
  %v1861 = vpack.c.b16 %v1369, %v1365
  %v1862 = vpack.c.b16 %v1374, %v1370
  %v1863 = vpack.c.b16 %v1375, %v1371
  %v1864 = vpack.c.b16 %v1376, %v1372
  %v1865 = vpack.c.b16 %v1377, %v1373
  %v1866 = vpack.c.b16 %v1382, %v1378
  %v1867 = vpack.c.b16 %v1383, %v1379
  %v1868 = vpack.c.b16 %v1384, %v1380
  %v1869 = vpack.c.b16 %v1385, %v1381
  %v1870 = vpack.c.b16 %v1390, %v1386
  %v1871 = vpack.c.b16 %v1391, %v1387
  %v1872 = vpack.c.b16 %v1392, %v1388
  %v1873 = vpack.c.b16 %v1393, %v1389
  %v1874 = vpack.c.b16 %v1398, %v1394
  %v1875 = vpack.c.b16 %v1399, %v1395
  %v1876 = vpack.c.b16 %v1400, %v1396
  %v1877 = vpack.c.b16 %v1401, %v1397
  %v1878 = vpack.c.b16 %v1406, %v1402
  %v1879 = vpack.c.b16 %v1407, %v1403
  %v1880 = vpack.c.b16 %v1408, %v1404
  %v1881 = vpack.c.b16 %v1409, %v1405
  %v1882 = vpack.c.b16 %v1414, %v1410
  %v1883 = vpack.c.b16 %v1415, %v1411
  %v1884 = vpack.c.b16 %v1416, %v1412
  %v1885 = vpack.c.b16 %v1417, %v1413
  %v1886 = vpack.c.b16 %v1422, %v1418
  %v1887 = vpack.c.b16 %v1423, %v1419
  %v1888 = vpack.c.b16 %v1424, %v1420
  %v1889 = vpack.c.b16 %v1425, %v1421
  %v1890 = vpack.c.b16 %v1430, %v1426
  %v1891 = vpack.c.b16 %v1431, %v1427
  %v1892 = vpack.c.b16 %v1432, %v1428
  %v1893 = vpack.c.b16 %v1433, %v1429
  %v1894 = vpack.c.b16 %v1438, %v1434
  %v1895 = vpack.c.b16 %v1439, %v1435
  %v1896 = vpack.c.b16 %v1440, %v1436
  %v1897 = vpack.c.b16 %v1441, %v1437
  %v1898 = vpack.c.b16 %v1446, %v1442
  %v1899 = vpack.c.b16 %v1447, %v1443
  %v1900 = vpack.c.b16 %v1448, %v1444
  %v1901 = vpack.c.b16 %v1449, %v1445
  %v1902 = vpack.c.b16 %v1454, %v1450
  %v1903 = vpack.c.b16 %v1455, %v1451
  %v1904 = vpack.c.b16 %v1456, %v1452
  %v1905 = vpack.c.b16 %v1457, %v1453
  %v1906 = vpack.c.b16 %v1462, %v1458
  %v1907 = vpack.c.b16 %v1463, %v1459
  %v1908 = vpack.c.b16 %v1464, %v1460
  %v1909 = vpack.c.b16 %v1465, %v1461
  %v1910 = vpack.c.b16 %v1470, %v1466
  %v1911 = vpack.c.b16 %v1471, %v1467
  %v1912 = vpack.c.b16 %v1472, %v1468
  %v1913 = vpack.c.b16 %v1473, %v1469
  %v1914 = vpack.c.b16 %v1478, %v1474
  %v1915 = vpack.c.b16 %v1479, %v1475
  %v1916 = vpack.c.b16 %v1480, %v1476
  %v1917 = vpack.c.b16 %v1481, %v1477
  %v1918 = vpack.c.b16 %v1486, %v1482
  %v1919 = vpack.c.b16 %v1487, %v1483
  %v1920 = vpack.c.b16 %v1488, %v1484
  %v1921 = vpack.c.b16 %v1489, %v1485
  %v1922 = vpack.c.b16 %v1494, %v1490
  %v1923 = vpack.c.b16 %v1495, %v1491
  %v1924 = vpack.c.b16 %v1496, %v1492
  %v1925 = vpack.c.b16 %v1497, %v1493
  %v1926 = vpack.c.b16 %v1502, %v1498
  %v1927 = vpack.c.b16 %v1503, %v1499
  %v1928 = vpack.c.b16 %v1504, %v1500
  %v1929 = vpack.c.b16 %v1505, %v1501
  %v1930 = vpack.c.b16 %v1510, %v1506
  %v1931 = vpack.c.b16 %v1511, %v1507
  %v1932 = vpack.c.b16 %v1512, %v1508
  %v1933 = vpack.c.b16 %v1513, %v1509
  %v1934 = vpack.c.b16 %v1518, %v1514
  %v1935 = vpack.c.b16 %v1519, %v1515
  %v1936 = vpack.c.b16 %v1520, %v1516
  %v1937 = vpack.c.b16 %v1521, %v1517
  %v1938 = vpack.c.b16 %v1526, %v1522
  %v1939 = vpack.c.b16 %v1527, %v1523
  %v1940 = vpack.c.b16 %v1528, %v1524
  %v1941 = vpack.c.b16 %v1529, %v1525
  %v1942 = vpack.c.b16 %v1534, %v1530
  %v1943 = vpack.c.b16 %v1535, %v1531
  %v1944 = vpack.c.b16 %v1536, %v1532
  %v1945 = vpack.c.b16 %v1537, %v1533
  %v1946 = vpack.c.b16 %v1542, %v1538
  %v1947 = vpack.c.b16 %v1543, %v1539
  %v1948 = vpack.c.b16 %v1544, %v1540
  %v1949 = vpack.c.b16 %v1545, %v1541
  %v1950 = vpack.c.b16 %v1550, %v1546
  %v1951 = vpack.c.b16 %v1551, %v1547
  %v1952 = vpack.c.b16 %v1552, %v1548
  %v1953 = vpack.c.b16 %v1553, %v1549
  %v1954 = vpack.c.b16 %v1558, %v1554
  %v1955 = vpack.c.b16 %v1559, %v1555
  %v1956 = vpack.c.b16 %v1560, %v1556
  %v1957 = vpack.c.b16 %v1561, %v1557
  %v1958 = vpack.c.b16 %v1566, %v1562
  %v1959 = vpack.c.b16 %v1567, %v1563
  %v1960 = vpack.c.b16 %v1568, %v1564
  %v1961 = vpack.c.b16 %v1569, %v1565
  %v1962 = vpack.c.b16 %v1574, %v1570
  %v1963 = vpack.c.b16 %v1575, %v1571
  %v1964 = vpack.c.b16 %v1576, %v1572
  %v1965 = vpack.c.b16 %v1577, %v1573
  %v1966 = vpack.c.b16 %v1582, %v1578
  %v1967 = vpack.c.b16 %v1583, %v1579
  %v1968 = vpack.c.b16 %v1584, %v1580
  %v1969 = vpack.c.b16 %v1585, %v1581
  %v1970 = vpack.c.b16 %v1590, %v1586
  %v1971 = vpack.c.b16 %v1591, %v1587
  %v1972 = vpack.c.b16 %v1592, %v1588
  %v1973 = vpack.c.b16 %v1593, %v1589
  %v1974 = vpack.c.b16 %v1598, %v1594
  %v1975 = vpack.c.b16 %v1599, %v1595
  %v1976 = vpack.c.b16 %v1600, %v1596
  %v1977 = vpack.c.b16 %v1601, %v1597
  %v1978 = vpack.c.b16 %v1606, %v1602
  %v1979 = vpack.c.b16 %v1607, %v1603
  %v1980 = vpack.c.b16 %v1608, %v1604
  %v1981 = vpack.c.b16 %v1609, %v1605
  %v1982 = vpack.c.b16 %v1614, %v1610
  %v1983 = vpack.c.b16 %v1615, %v1611
  %v1984 = vpack.c.b16 %v1616, %v1612
  %v1985 = vpack.c.b16 %v1617, %v1613
  %v1986 = vpack.c.b16 %v1622, %v1618
  %v1987 = vpack.c.b16 %v1623, %v1619
  %v1988 = vpack.c.b16 %v1624, %v1620
  %v1989 = vpack.c.b16 %v1625, %v1621
  %v1990 = vpack.c.b16 %v1630, %v1626
  %v1991 = vpack.c.b16 %v1631, %v1627
  %v1992 = vpack.c.b16 %v1632, %v1628
  %v1993 = vpack.c.b16 %v1633, %v1629
  %v1994 = vpack.c.b16 %v1638, %v1634
  %v1995 = vpack.c.b16 %v1639, %v1635
  %v1996 = vpack.c.b16 %v1640, %v1636
  %v1997 = vpack.c.b16 %v1641, %v1637
  %v1998 = vpack.c.b16 %v1646, %v1642
  %v1999 = vpack.c.b16 %v1647, %v1643
  %v2000 = vpack.c.b16 %v1648, %v1644
  %v2001 = vpack.c.b16 %v1649, %v1645
  %v2002 = vpack.c.b16 %v1654, %v1650
  %v2003 = vpack.c.b16 %v1655, %v1651
  %v2004 = vpack.c.b16 %v1656, %v1652
  %v2005 = vpack.c.b16 %v1657, %v1653
  %v2006 = vpack.c.b16 %v1662, %v1658
  %v2007 = vpack.c.b16 %v1663, %v1659
  %v2008 = vpack.c.b16 %v1664, %v1660
  %v2009 = vpack.c.b16 %v1665, %v1661
  %v2010 = vpack.c.b16 %v1670, %v1666
  %v2011 = vpack.c.b16 %v1671, %v1667
  %v2012 = vpack.c.b16 %v1672, %v1668
  %v2013 = vpack.c.b16 %v1673, %v1669
  %v2014 = vpack.c.b16 %v1678, %v1674
  %v2015 = vpack.c.b16 %v1679, %v1675
  %v2016 = vpack.c.b16 %v1680, %v1676
  %v2017 = vpack.c.b16 %v1681, %v1677
  %v2018 = vpack.c.b16 %v1686, %v1682
  %v2019 = vpack.c.b16 %v1687, %v1683
  %v2020 = vpack.c.b16 %v1688, %v1684
  %v2021 = vpack.c.b16 %v1689, %v1685
  %v2022 = vpack.c.b16 %v1694, %v1690
  %v2023 = vpack.c.b16 %v1695, %v1691
  %v2024 = vpack.c.b16 %v1696, %v1692
  %v2025 = vpack.c.b16 %v1697, %v1693
  %v2026 = vpack.c.b16 %v1702, %v1698
  %v2027 = vpack.c.b16 %v1703, %v1699
  %v2028 = vpack.c.b16 %v1704, %v1700
  %v2029 = vpack.c.b16 %v1705, %v1701
  %v2030 = vpack.c.b16 %v1710, %v1706
  %v2031 = vpack.c.b16 %v1711, %v1707
  %v2032 = vpack.c.b16 %v1712, %v1708
  %v2033 = vpack.c.b16 %v1713, %v1709
  %2354 = vmatprep.subr.bf16.mxu0 %v1715
  %2355 = vmatpush1.bf16.msra.mxu0 %v1714
  %2356 = vmatprep.subr.bf16.mxu0 %v1719
  %2357 = vmatpush1.bf16.msra.mxu0 %v1718
  %2358 = vmatprep.subr.bf16.mxu0 %v1723
  %2359 = vmatpush1.bf16.msra.mxu0 %v1722
  %2360 = vmatprep.subr.bf16.mxu0 %v1727
  %2361 = vmatpush1.bf16.msra.mxu0 %v1726
  %2362 = vmatprep.subr.bf16.mxu0 %v1731
  %2363 = vmatpush1.bf16.msra.mxu0 %v1730
  %2364 = vmatprep.subr.bf16.mxu0 %v1735
  %2365 = vmatpush1.bf16.msra.mxu0 %v1734
  %2366 = vmatprep.subr.bf16.mxu0 %v1739
  %2367 = vmatpush1.bf16.msra.mxu0 %v1738
  %2368 = vmatprep.subr.bf16.mxu0 %v1743
  %2369 = vmatpush1.bf16.msra.mxu0 %v1742
  %2370 = vmatprep.subr.bf16.mxu0 %v1747
  %2371 = vmatpush1.bf16.msra.mxu0 %v1746
  %2372 = vmatprep.subr.bf16.mxu0 %v1751
  %2373 = vmatpush1.bf16.msra.mxu0 %v1750
  %2374 = vmatprep.subr.bf16.mxu0 %v1755
  %2375 = vmatpush1.bf16.msra.mxu0 %v1754
  %2376 = vmatprep.subr.bf16.mxu0 %v1759
  %2377 = vmatpush1.bf16.msra.mxu0 %v1758
  %2378 = vmatprep.subr.bf16.mxu0 %v1763
  %2379 = vmatpush1.bf16.msra.mxu0 %v1762
  %2380 = vmatprep.subr.bf16.mxu0 %v1767
  %2381 = vmatpush1.bf16.msra.mxu0 %v1766
  %2382 = vmatprep.subr.bf16.mxu0 %v1771
  %2383 = vmatpush1.bf16.msra.mxu0 %v1770
  %2384 = vmatprep.subr.bf16.mxu0 %v1775
  %2385 = vmatpush1.bf16.msra.mxu0 %v1774
  %2386 = vmatprep.mubr.bf16.mxu0 %v71
  %2387 = vmatmul.mubr.bf16.gmra.mrb[0].mxu0 %v70
  %v2388 = vpop.f32.mrb[0].mxu0
  %v2389 = vadd.f32 0.0, %v2388
  %v2390 = vpop.f32.mrb[0].mxu0
  %v2391 = vadd.f32 0.0, %v2390
  %v2392 = vpop.f32.mrb[0].mxu0
  %v2393 = vadd.f32 0.0, %v2392
  %v2394 = vpop.f32.mrb[0].mxu0
  %v2395 = vadd.f32 0.0, %v2394
  %2396 = vmatprep.mubr.bf16.mxu0 %v73
  %2397 = vmatmul.mubr.bf16.gmra.mrb[0].mxu0 %v72
  %v2398 = vpop.f32.mrb[0].mxu0
  %v2399 = vadd.f32 0.0, %v2398
  %v2400 = vpop.f32.mrb[0].mxu0
  %v2401 = vadd.f32 0.0, %v2400
  %v2402 = vpop.f32.mrb[0].mxu0
  %v2403 = vadd.f32 0.0, %v2402
  %v2404 = vpop.f32.mrb[0].mxu0
  %v2405 = vadd.f32 0.0, %v2404
  %2406 = vmatprep.mubr.bf16.mxu0 %v75
  %2407 = vmatmul.mubr.bf16.gmra.mrb[0].mxu0 %v74
  %v2408 = vpop.f32.mrb[0].mxu0
  %v2409 = vadd.f32 0.0, %v2408
  %v2410 = vpop.f32.mrb[0].mxu0
  %v2411 = vadd.f32 0.0, %v2410
  %v2412 = vpop.f32.mrb[0].mxu0
  %v2413 = vadd.f32 0.0, %v2412
  %v2414 = vpop.f32.mrb[0].mxu0
  %v2415 = vadd.f32 0.0, %v2414
  %2416 = vmatprep.mubr.bf16.mxu0 %v77
  %2417 = vmatmul.mubr.bf16.gmra.mrb[0].mxu0 %v76
  %v2418 = vpop.f32.mrb[0].mxu0
  %v2419 = vadd.f32 0.0, %v2418
  %v2420 = vpop.f32.mrb[0].mxu0
  %v2421 = vadd.f32 0.0, %v2420
  %v2422 = vpop.f32.mrb[0].mxu0
  %v2423 = vadd.f32 0.0, %v2422
  %v2424 = vpop.f32.mrb[0].mxu0
  %v2425 = vadd.f32 0.0, %v2424
  %2426 = vmatprep.mubr.bf16.mxu0 %v79
  %2427 = vmatmul.mubr.bf16.gmra.mrb[0].mxu0 %v78
  %v2428 = vpop.f32.mrb[0].mxu0
  %v2429 = vadd.f32 0.0, %v2428
  %v2430 = vpop.f32.mrb[0].mxu0
  %v2431 = vadd.f32 0.0, %v2430
  %v2432 = vpop.f32.mrb[0].mxu0
  %v2433 = vpop.f32.mrb[0].mxu0
  %2434 = vdwg.mxu0
  %2435 = vmatprep.subr.bf16.mxu0 %v1779
  %2436 = vmatpush1.bf16.msra.mxu0 %v1778
  %2437 = vmatprep.subr.bf16.mxu0 %v1783
  %2438 = vmatpush1.bf16.msra.mxu0 %v1782
  %2439 = vmatprep.subr.bf16.mxu0 %v1787
  %2440 = vmatpush1.bf16.msra.mxu0 %v1786
  %2441 = vmatprep.subr.bf16.mxu0 %v1791
  %2442 = vmatpush1.bf16.msra.mxu0 %v1790
  %2443 = vmatprep.subr.bf16.mxu0 %v1795
  %2444 = vmatpush1.bf16.msra.mxu0 %v1794
  %2445 = vmatprep.subr.bf16.mxu0 %v1799
  %2446 = vmatpush1.bf16.msra.mxu0 %v1798
  %2447 = vmatprep.subr.bf16.mxu0 %v1803
  %2448 = vmatpush1.bf16.msra.mxu0 %v1802
  %2449 = vmatprep.subr.bf16.mxu0 %v1807
  %2450 = vmatpush1.bf16.msra.mxu0 %v1806
  %2451 = vmatprep.subr.bf16.mxu0 %v1811
  %2452 = vmatpush1.bf16.msra.mxu0 %v1810
  %2453 = vmatprep.subr.bf16.mxu0 %v1815
  %2454 = vmatpush1.bf16.msra.mxu0 %v1814
  %2455 = vmatprep.subr.bf16.mxu0 %v1819
  %2456 = vmatpush1.bf16.msra.mxu0 %v1818
  %2457 = vmatprep.subr.bf16.mxu0 %v1823
  %2458 = vmatpush1.bf16.msra.mxu0 %v1822
  %2459 = vmatprep.subr.bf16.mxu0 %v1827
  %2460 = vmatpush1.bf16.msra.mxu0 %v1826
  %2461 = vmatprep.subr.bf16.mxu0 %v1831
  %2462 = vmatpush1.bf16.msra.mxu0 %v1830
  %2463 = vmatprep.subr.bf16.mxu0 %v1835
  %2464 = vmatpush1.bf16.msra.mxu0 %v1834
  %2465 = vmatprep.subr.bf16.mxu0 %v1839
  %2466 = vmatpush1.bf16.msra.mxu0 %v1838
  %2467 = vmatprep.mubr.bf16.mxu0 %v119
  %2468 = vmatmul.mubr.bf16.gmra.mrb[0].mxu0 %v107
  %v2469 = vpop.f32.mrb[0].mxu0
  %v2470 = vadd.f32 %v2389, %v2469
  %v2471 = vpop.f32.mrb[0].mxu0
  %v2472 = vadd.f32 %v2391, %v2471
  %v2473 = vpop.f32.mrb[0].mxu0
  %v2474 = vadd.f32 %v2393, %v2473
  %v2475 = vpop.f32.mrb[0].mxu0
  %v2476 = vadd.f32 %v2395, %v2475
  %2477 = vmatprep.mubr.bf16.mxu0 %v135
  %2478 = vmatmul.mubr.bf16.gmra.mrb[0].mxu0 %v127
  %v2479 = vpop.f32.mrb[0].mxu0
  %v2480 = vadd.f32 %v2399, %v2479
  %v2481 = vpop.f32.mrb[0].mxu0
  %v2482 = vadd.f32 %v2401, %v2481
  %v2483 = vpop.f32.mrb[0].mxu0
  %v2484 = vadd.f32 %v2403, %v2483
  %v2485 = vpop.f32.mrb[0].mxu0
  %v2486 = vadd.f32 %v2405, %v2485
  %2487 = vmatprep.mubr.bf16.mxu0 %v151
  %2488 = vmatmul.mubr.bf16.gmra.mrb[0].mxu0 %v143
  %v2489 = vpop.f32.mrb[0].mxu0
  %v2490 = vadd.f32 %v2409, %v2489
  %v2491 = vpop.f32.mrb[0].mxu0
  %v2492 = vadd.f32 %v2411, %v2491
  %v2493 = vpop.f32.mrb[0].mxu0
  %v2494 = vadd.f32 %v2413, %v2493
  %v2495 = vpop.f32.mrb[0].mxu0
  %v2496 = vadd.f32 %v2415, %v2495
  %2497 = vmatprep.mubr.bf16.mxu0 %v167
  %2498 = vmatmul.mubr.bf16.gmra.mrb[0].mxu0 %v159
  %v2499 = vpop.f32.mrb[0].mxu0
  %v2500 = vadd.f32 %v2419, %v2499
  %v2501 = vpop.f32.mrb[0].mxu0
  %v2502 = vadd.f32 %v2421, %v2501
  %v2503 = vpop.f32.mrb[0].mxu0
  %v2504 = vadd.f32 %v2423, %v2503
  %v2505 = vpop.f32.mrb[0].mxu0
  %v2506 = vadd.f32 %v2425, %v2505
  %2507 = vmatprep.mubr.bf16.mxu0 %v173
  %2508 = vmatmul.mubr.bf16.gmra.mrb[0].mxu0 %v170
  %v2509 = vpop.f32.mrb[0].mxu0
  %v2510 = vadd.f32 %v2429, %v2509
  %v2511 = vpop.f32.mrb[0].mxu0
  %v2512 = vadd.f32 %v2431, %v2511
  %v2513 = vpop.f32.mrb[0].mxu0
  %v2514 = vpop.f32.mrb[0].mxu0
  %2515 = vdwg.mxu0
  %2516 = vmatprep.subr.bf16.mxu0 %v1843
  %2517 = vmatpush1.bf16.msra.mxu0 %v1842
  %2518 = vmatprep.subr.bf16.mxu0 %v1847
  %2519 = vmatpush1.bf16.msra.mxu0 %v1846
  %2520 = vmatprep.subr.bf16.mxu0 %v1851
  %2521 = vmatpush1.bf16.msra.mxu0 %v1850
  %2522 = vmatprep.subr.bf16.mxu0 %v1855
  %2523 = vmatpush1.bf16.msra.mxu0 %v1854
  %2524 = vmatprep.subr.bf16.mxu0 %v1859
  %2525 = vmatpush1.bf16.msra.mxu0 %v1858
  %2526 = vmatprep.subr.bf16.mxu0 %v1863
  %2527 = vmatpush1.bf16.msra.mxu0 %v1862
  %2528 = vmatprep.subr.bf16.mxu0 %v1867
  %2529 = vmatpush1.bf16.msra.mxu0 %v1866
  %2530 = vmatprep.subr.bf16.mxu0 %v1871
  %2531 = vmatpush1.bf16.msra.mxu0 %v1870
  %2532 = vmatprep.subr.bf16.mxu0 %v1875
  %2533 = vmatpush1.bf16.msra.mxu0 %v1874
  %2534 = vmatprep.subr.bf16.mxu0 %v1879
  %2535 = vmatpush1.bf16.msra.mxu0 %v1878
  %2536 = vmatprep.subr.bf16.mxu0 %v1883
  %2537 = vmatpush1.bf16.msra.mxu0 %v1882
  %2538 = vmatprep.subr.bf16.mxu0 %v1887
  %2539 = vmatpush1.bf16.msra.mxu0 %v1886
  %2540 = vmatprep.subr.bf16.mxu0 %v1891
  %2541 = vmatpush1.bf16.msra.mxu0 %v1890
  %2542 = vmatprep.subr.bf16.mxu0 %v1895
  %2543 = vmatpush1.bf16.msra.mxu0 %v1894
  %2544 = vmatprep.subr.bf16.mxu0 %v1899
  %2545 = vmatpush1.bf16.msra.mxu0 %v1898
  %2546 = vmatprep.subr.bf16.mxu0 %v1903
  %2547 = vmatpush1.bf16.msra.mxu0 %v1902
  %2548 = vmatprep.mubr.bf16.mxu0 %v195
  %2549 = vmatmul.mubr.bf16.gmra.mrb[0].mxu0 %v192
  %v2550 = vpop.f32.mrb[0].mxu0
  %v2551 = vadd.f32 %v2470, %v2550
  %v2552 = vpop.f32.mrb[0].mxu0
  %v2553 = vadd.f32 %v2472, %v2552
  %v2554 = vpop.f32.mrb[0].mxu0
  %v2555 = vadd.f32 %v2474, %v2554
  %v2556 = vpop.f32.mrb[0].mxu0
  %v2557 = vadd.f32 %v2476, %v2556
  %2558 = vmatprep.mubr.bf16.mxu0 %v199
  %2559 = vmatmul.mubr.bf16.gmra.mrb[0].mxu0 %v197
  %v2560 = vpop.f32.mrb[0].mxu0
  %v2561 = vadd.f32 %v2480, %v2560
  %v2562 = vpop.f32.mrb[0].mxu0
  %v2563 = vadd.f32 %v2482, %v2562
  %v2564 = vpop.f32.mrb[0].mxu0
  %v2565 = vadd.f32 %v2484, %v2564
  %v2566 = vpop.f32.mrb[0].mxu0
  %v2567 = vadd.f32 %v2486, %v2566
  %2568 = vmatprep.mubr.bf16.mxu0 %v203
  %2569 = vmatmul.mubr.bf16.gmra.mrb[0].mxu0 %v201
  %v2570 = vpop.f32.mrb[0].mxu0
  %v2571 = vadd.f32 %v2490, %v2570
  %v2572 = vpop.f32.mrb[0].mxu0
  %v2573 = vadd.f32 %v2492, %v2572
  %v2574 = vpop.f32.mrb[0].mxu0
  %v2575 = vadd.f32 %v2494, %v2574
  %v2576 = vpop.f32.mrb[0].mxu0
  %v2577 = vadd.f32 %v2496, %v2576
  %2578 = vmatprep.mubr.bf16.mxu0 %v207
  %2579 = vmatmul.mubr.bf16.gmra.mrb[0].mxu0 %v205
  %v2580 = vpop.f32.mrb[0].mxu0
  %v2581 = vadd.f32 %v2500, %v2580
  %v2582 = vpop.f32.mrb[0].mxu0
  %v2583 = vadd.f32 %v2502, %v2582
  %v2584 = vpop.f32.mrb[0].mxu0
  %v2585 = vadd.f32 %v2504, %v2584
  %v2586 = vpop.f32.mrb[0].mxu0
  %v2587 = vadd.f32 %v2506, %v2586
  %2588 = vmatprep.mubr.bf16.mxu0 %v206
  %2589 = vmatmul.mubr.bf16.gmra.mrb[0].mxu0 %v204
  %v2590 = vpop.f32.mrb[0].mxu0
  %v2591 = vadd.f32 %v2510, %v2590
  %v2592 = vpop.f32.mrb[0].mxu0
  %v2593 = vadd.f32 %v2512, %v2592
  %v2594 = vpop.f32.mrb[0].mxu0
  %v2595 = vpop.f32.mrb[0].mxu0
  %2596 = vdwg.mxu0
  %2597 = vmatprep.subr.bf16.mxu0 %v1907
  %2598 = vmatpush1.bf16.msra.mxu0 %v1906
  %2599 = vmatprep.subr.bf16.mxu0 %v1911
  %2600 = vmatpush1.bf16.msra.mxu0 %v1910
  %2601 = vmatprep.subr.bf16.mxu0 %v1915
  %2602 = vmatpush1.bf16.msra.mxu0 %v1914
  %2603 = vmatprep.subr.bf16.mxu0 %v1919
  %2604 = vmatpush1.bf16.msra.mxu0 %v1918
  %2605 = vmatprep.subr.bf16.mxu0 %v1923
  %2606 = vmatpush1.bf16.msra.mxu0 %v1922
  %2607 = vmatprep.subr.bf16.mxu0 %v1927
  %2608 = vmatpush1.bf16.msra.mxu0 %v1926
  %2609 = vmatprep.subr.bf16.mxu0 %v1931
  %2610 = vmatpush1.bf16.msra.mxu0 %v1930
  %2611 = vmatprep.subr.bf16.mxu0 %v1935
  %2612 = vmatpush1.bf16.msra.mxu0 %v1934
  %2613 = vmatprep.subr.bf16.mxu0 %v1939
  %2614 = vmatpush1.bf16.msra.mxu0 %v1938
  %2615 = vmatprep.subr.bf16.mxu0 %v1943
  %2616 = vmatpush1.bf16.msra.mxu0 %v1942
  %2617 = vmatprep.subr.bf16.mxu0 %v1947
  %2618 = vmatpush1.bf16.msra.mxu0 %v1946
  %2619 = vmatprep.subr.bf16.mxu0 %v1951
  %2620 = vmatpush1.bf16.msra.mxu0 %v1950
  %2621 = vmatprep.subr.bf16.mxu0 %v1955
  %2622 = vmatpush1.bf16.msra.mxu0 %v1954
  %2623 = vmatprep.subr.bf16.mxu0 %v1959
  %2624 = vmatpush1.bf16.msra.mxu0 %v1958
  %2625 = vmatprep.subr.bf16.mxu0 %v1963
  %2626 = vmatpush1.bf16.msra.mxu0 %v1962
  %2627 = vmatprep.subr.bf16.mxu0 %v1967
  %2628 = vmatpush1.bf16.msra.mxu0 %v1966
  %2629 = vmatprep.mubr.bf16.mxu0 %v246
  %2630 = vmatmul.mubr.bf16.gmra.mrb[0].mxu0 %v245
  %v2631 = vpop.f32.mrb[0].mxu0
  %v2632 = vadd.f32 %v2551, %v2631
  %v2633 = vpop.f32.mrb[0].mxu0
  %v2634 = vadd.f32 %v2553, %v2633
  %v2635 = vpop.f32.mrb[0].mxu0
  %v2636 = vadd.f32 %v2555, %v2635
  %v2637 = vpop.f32.mrb[0].mxu0
  %v2638 = vadd.f32 %v2557, %v2637
  %2639 = vmatprep.mubr.bf16.mxu0 %v248
  %2640 = vmatmul.mubr.bf16.gmra.mrb[0].mxu0 %v247
  %v2641 = vpop.f32.mrb[0].mxu0
  %v2642 = vadd.f32 %v2561, %v2641
  %v2643 = vpop.f32.mrb[0].mxu0
  %v2644 = vadd.f32 %v2563, %v2643
  %v2645 = vpop.f32.mrb[0].mxu0
  %v2646 = vadd.f32 %v2565, %v2645
  %v2647 = vpop.f32.mrb[0].mxu0
  %v2648 = vadd.f32 %v2567, %v2647
  %2649 = vmatprep.mubr.bf16.mxu0 %v250
  %2650 = vmatmul.mubr.bf16.gmra.mrb[0].mxu0 %v249
  %v2651 = vpop.f32.mrb[0].mxu0
  %v2652 = vadd.f32 %v2571, %v2651
  %v2653 = vpop.f32.mrb[0].mxu0
  %v2654 = vadd.f32 %v2573, %v2653
  %v2655 = vpop.f32.mrb[0].mxu0
  %v2656 = vadd.f32 %v2575, %v2655
  %v2657 = vpop.f32.mrb[0].mxu0
  %v2658 = vadd.f32 %v2577, %v2657
  %2659 = vmatprep.mubr.bf16.mxu0 %v252
  %2660 = vmatmul.mubr.bf16.gmra.mrb[0].mxu0 %v251
  %v2661 = vpop.f32.mrb[0].mxu0
  %v2662 = vadd.f32 %v2581, %v2661
  %v2663 = vpop.f32.mrb[0].mxu0
  %v2664 = vadd.f32 %v2583, %v2663
  %v2665 = vpop.f32.mrb[0].mxu0
  %v2666 = vadd.f32 %v2585, %v2665
  %v2667 = vpop.f32.mrb[0].mxu0
  %v2668 = vadd.f32 %v2587, %v2667
  %2669 = vmatprep.mubr.bf16.mxu0 %v254
  %2670 = vmatmul.mubr.bf16.gmra.mrb[0].mxu0 %v253
  %v2671 = vpop.f32.mrb[0].mxu0
  %v2672 = vadd.f32 %v2591, %v2671
  %v2673 = vpop.f32.mrb[0].mxu0
  %v2674 = vadd.f32 %v2593, %v2673
  %v2675 = vpop.f32.mrb[0].mxu0
  %v2676 = vpop.f32.mrb[0].mxu0
  %2677 = vdwg.mxu0
  %2678 = vmatprep.subr.bf16.mxu0 %v1971
  %2679 = vmatpush1.bf16.msra.mxu0 %v1970
  %2680 = vmatprep.subr.bf16.mxu0 %v1975
  %2681 = vmatpush1.bf16.msra.mxu0 %v1974
  %2682 = vmatprep.subr.bf16.mxu0 %v1979
  %2683 = vmatpush1.bf16.msra.mxu0 %v1978
  %2684 = vmatprep.subr.bf16.mxu0 %v1983
  %2685 = vmatpush1.bf16.msra.mxu0 %v1982
  %2686 = vmatprep.subr.bf16.mxu0 %v1987
  %2687 = vmatpush1.bf16.msra.mxu0 %v1986
  %2688 = vmatprep.subr.bf16.mxu0 %v1991
  %2689 = vmatpush1.bf16.msra.mxu0 %v1990
  %2690 = vmatprep.subr.bf16.mxu0 %v1995
  %2691 = vmatpush1.bf16.msra.mxu0 %v1994
  %2692 = vmatprep.subr.bf16.mxu0 %v1999
  %2693 = vmatpush1.bf16.msra.mxu0 %v1998
  %2694 = vmatprep.subr.bf16.mxu0 %v2003
  %2695 = vmatpush1.bf16.msra.mxu0 %v2002
  %2696 = vmatprep.subr.bf16.mxu0 %v2007
  %2697 = vmatpush1.bf16.msra.mxu0 %v2006
  %2698 = vmatprep.subr.bf16.mxu0 %v2011
  %2699 = vmatpush1.bf16.msra.mxu0 %v2010
  %2700 = vmatprep.subr.bf16.mxu0 %v2015
  %2701 = vmatpush1.bf16.msra.mxu0 %v2014
  %2702 = vmatprep.subr.bf16.mxu0 %v2019
  %2703 = vmatpush1.bf16.msra.mxu0 %v2018
  %2704 = vmatprep.subr.bf16.mxu0 %v2023
  %2705 = vmatpush1.bf16.msra.mxu0 %v2022
  %2706 = vmatprep.subr.bf16.mxu0 %v2027
  %2707 = vmatpush1.bf16.msra.mxu0 %v2026
  %2708 = vmatprep.subr.bf16.mxu0 %v2031
  %2709 = vmatpush1.bf16.msra.mxu0 %v2030
  %2710 = vmatprep.mubr.bf16.mxu0 %v293
  %2711 = vmatmul.mubr.bf16.gmra.mrb[0].mxu0 %v281
  %v2712 = vpop.f32.mrb[0].mxu0
  %v2713 = vadd.f32 %v2632, %v2712
  %v2714 = vpop.f32.mrb[0].mxu0
  %v2715 = vadd.f32 %v2634, %v2714
  %v2716 = vpop.f32.mrb[0].mxu0
  %v2717 = vadd.f32 %v2636, %v2716
  %v2718 = vpop.f32.mrb[0].mxu0
  %v2719 = vadd.f32 %v2638, %v2718
  %2720 = vmatprep.mubr.bf16.mxu0 %v309
  %2721 = vmatmul.mubr.bf16.gmra.mrb[0].mxu0 %v301
  %v2722 = vpop.f32.mrb[0].mxu0
  %v2723 = vadd.f32 %v2642, %v2722
  %v2724 = vpop.f32.mrb[0].mxu0
  %v2725 = vadd.f32 %v2644, %v2724
  %v2726 = vpop.f32.mrb[0].mxu0
  %v2727 = vadd.f32 %v2646, %v2726
  %v2728 = vpop.f32.mrb[0].mxu0
  %v2729 = vadd.f32 %v2648, %v2728
  %2730 = vmatprep.mubr.bf16.mxu0 %v325
  %2731 = vmatmul.mubr.bf16.gmra.mrb[0].mxu0 %v317
  %v2732 = vpop.f32.mrb[0].mxu0
  %v2733 = vadd.f32 %v2652, %v2732
  %v2734 = vpop.f32.mrb[0].mxu0
  %v2735 = vadd.f32 %v2654, %v2734
  %v2736 = vpop.f32.mrb[0].mxu0
  %v2737 = vadd.f32 %v2656, %v2736
  %v2738 = vpop.f32.mrb[0].mxu0
  %v2739 = vadd.f32 %v2658, %v2738
  %2740 = vmatprep.mubr.bf16.mxu0 %v341
  %2741 = vmatmul.mubr.bf16.gmra.mrb[0].mxu0 %v333
  %v2742 = vpop.f32.mrb[0].mxu0
  %v2743 = vadd.f32 %v2662, %v2742
  %v2744 = vpop.f32.mrb[0].mxu0
  %v2745 = vadd.f32 %v2664, %v2744
  %v2746 = vpop.f32.mrb[0].mxu0
  %v2747 = vadd.f32 %v2666, %v2746
  %v2748 = vpop.f32.mrb[0].mxu0
  %v2749 = vadd.f32 %v2668, %v2748
  %2750 = vmatprep.mubr.bf16.mxu0 %v347
  %2751 = vmatmul.mubr.bf16.gmra.mrb[0].mxu0 %v344
  %v2752 = vpop.f32.mrb[0].mxu0
  %v2753 = vadd.f32 %v2672, %v2752
  %v2754 = vpop.f32.mrb[0].mxu0
  %v2755 = vadd.f32 %v2674, %v2754
  %v2756 = vpop.f32.mrb[0].mxu0
  %v2757 = vpop.f32.mrb[0].mxu0
  %2758 = vdwg.mxu0
  %2759 = vmatprep.subr.bf16.mxu0 %v1717
  %2760 = vmatpush1.bf16.msra.mxu0 %v1716
  %2761 = vmatprep.subr.bf16.mxu0 %v1721
  %2762 = vmatpush1.bf16.msra.mxu0 %v1720
  %2763 = vmatprep.subr.bf16.mxu0 %v1725
  %2764 = vmatpush1.bf16.msra.mxu0 %v1724
  %2765 = vmatprep.subr.bf16.mxu0 %v1729
  %2766 = vmatpush1.bf16.msra.mxu0 %v1728
  %2767 = vmatprep.subr.bf16.mxu0 %v1733
  %2768 = vmatpush1.bf16.msra.mxu0 %v1732
  %2769 = vmatprep.subr.bf16.mxu0 %v1737
  %2770 = vmatpush1.bf16.msra.mxu0 %v1736
  %2771 = vmatprep.subr.bf16.mxu0 %v1741
  %2772 = vmatpush1.bf16.msra.mxu0 %v1740
  %2773 = vmatprep.subr.bf16.mxu0 %v1745
  %2774 = vmatpush1.bf16.msra.mxu0 %v1744
  %2775 = vmatprep.subr.bf16.mxu0 %v1749
  %2776 = vmatpush1.bf16.msra.mxu0 %v1748
  %2777 = vmatprep.subr.bf16.mxu0 %v1753
  %2778 = vmatpush1.bf16.msra.mxu0 %v1752
  %2779 = vmatprep.subr.bf16.mxu0 %v1757
  %2780 = vmatpush1.bf16.msra.mxu0 %v1756
  %2781 = vmatprep.subr.bf16.mxu0 %v1761
  %2782 = vmatpush1.bf16.msra.mxu0 %v1760
  %2783 = vmatprep.subr.bf16.mxu0 %v1765
  %2784 = vmatpush1.bf16.msra.mxu0 %v1764
  %2785 = vmatprep.subr.bf16.mxu0 %v1769
  %2786 = vmatpush1.bf16.msra.mxu0 %v1768
  %2787 = vmatprep.subr.bf16.mxu0 %v1773
  %2788 = vmatpush1.bf16.msra.mxu0 %v1772
  %2789 = vmatprep.subr.bf16.mxu0 %v1777
  %2790 = vmatpush1.bf16.msra.mxu0 %v1776
  %2791 = vmatprep.mubr.bf16.mxu0 %v71
  %2792 = vmatmul.mubr.bf16.gmra.mrb[0].mxu0 %v70
  %v2793 = vpop.f32.mrb[0].mxu0
  %v2794 = vadd.f32 0.0, %v2793
  %v2795 = vpop.f32.mrb[0].mxu0
  %v2796 = vadd.f32 0.0, %v2795
  %v2797 = vpop.f32.mrb[0].mxu0
  %v2798 = vadd.f32 0.0, %v2797
  %v2799 = vpop.f32.mrb[0].mxu0
  %v2800 = vadd.f32 0.0, %v2799
  %2801 = vmatprep.mubr.bf16.mxu0 %v73
  %2802 = vmatmul.mubr.bf16.gmra.mrb[0].mxu0 %v72
  %v2803 = vpop.f32.mrb[0].mxu0
  %v2804 = vadd.f32 0.0, %v2803
  %v2805 = vpop.f32.mrb[0].mxu0
  %v2806 = vadd.f32 0.0, %v2805
  %v2807 = vpop.f32.mrb[0].mxu0
  %v2808 = vadd.f32 0.0, %v2807
  %v2809 = vpop.f32.mrb[0].mxu0
  %v2810 = vadd.f32 0.0, %v2809
  %2811 = vmatprep.mubr.bf16.mxu0 %v75
  %2812 = vmatmul.mubr.bf16.gmra.mrb[0].mxu0 %v74
  %v2813 = vpop.f32.mrb[0].mxu0
  %v2814 = vadd.f32 0.0, %v2813
  %v2815 = vpop.f32.mrb[0].mxu0
  %v2816 = vadd.f32 0.0, %v2815
  %v2817 = vpop.f32.mrb[0].mxu0
  %v2818 = vadd.f32 0.0, %v2817
  %v2819 = vpop.f32.mrb[0].mxu0
  %v2820 = vadd.f32 0.0, %v2819
  %2821 = vmatprep.mubr.bf16.mxu0 %v77
  %2822 = vmatmul.mubr.bf16.gmra.mrb[0].mxu0 %v76
  %v2823 = vpop.f32.mrb[0].mxu0
  %v2824 = vadd.f32 0.0, %v2823
  %v2825 = vpop.f32.mrb[0].mxu0
  %v2826 = vadd.f32 0.0, %v2825
  %v2827 = vpop.f32.mrb[0].mxu0
  %v2828 = vadd.f32 0.0, %v2827
  %v2829 = vpop.f32.mrb[0].mxu0
  %v2830 = vadd.f32 0.0, %v2829
  %2831 = vmatprep.mubr.bf16.mxu0 %v79
  %2832 = vmatmul.mubr.bf16.gmra.mrb[0].mxu0 %v78
  %v2833 = vpop.f32.mrb[0].mxu0
  %v2834 = vadd.f32 0.0, %v2833
  %v2835 = vpop.f32.mrb[0].mxu0
  %v2836 = vadd.f32 0.0, %v2835
  %v2837 = vpop.f32.mrb[0].mxu0
  %v2838 = vpop.f32.mrb[0].mxu0
  %2839 = vdwg.mxu0
  %2840 = vmatprep.subr.bf16.mxu0 %v1781
  %2841 = vmatpush1.bf16.msra.mxu0 %v1780
  %2842 = vmatprep.subr.bf16.mxu0 %v1785
  %2843 = vmatpush1.bf16.msra.mxu0 %v1784
  %2844 = vmatprep.subr.bf16.mxu0 %v1789
  %2845 = vmatpush1.bf16.msra.mxu0 %v1788
  %2846 = vmatprep.subr.bf16.mxu0 %v1793
  %2847 = vmatpush1.bf16.msra.mxu0 %v1792
  %2848 = vmatprep.subr.bf16.mxu0 %v1797
  %2849 = vmatpush1.bf16.msra.mxu0 %v1796
  %2850 = vmatprep.subr.bf16.mxu0 %v1801
  %2851 = vmatpush1.bf16.msra.mxu0 %v1800
  %2852 = vmatprep.subr.bf16.mxu0 %v1805
  %2853 = vmatpush1.bf16.msra.mxu0 %v1804
  %2854 = vmatprep.subr.bf16.mxu0 %v1809
  %2855 = vmatpush1.bf16.msra.mxu0 %v1808
  %2856 = vmatprep.subr.bf16.mxu0 %v1813
  %2857 = vmatpush1.bf16.msra.mxu0 %v1812
  %2858 = vmatprep.subr.bf16.mxu0 %v1817
  %2859 = vmatpush1.bf16.msra.mxu0 %v1816
  %2860 = vmatprep.subr.bf16.mxu0 %v1821
  %2861 = vmatpush1.bf16.msra.mxu0 %v1820
  %2862 = vmatprep.subr.bf16.mxu0 %v1825
  %2863 = vmatpush1.bf16.msra.mxu0 %v1824
  %2864 = vmatprep.subr.bf16.mxu0 %v1829
  %2865 = vmatpush1.bf16.msra.mxu0 %v1828
  %2866 = vmatprep.subr.bf16.mxu0 %v1833
  %2867 = vmatpush1.bf16.msra.mxu0 %v1832
  %2868 = vmatprep.subr.bf16.mxu0 %v1837
  %2869 = vmatpush1.bf16.msra.mxu0 %v1836
  %2870 = vmatprep.subr.bf16.mxu0 %v1841
  %2871 = vmatpush1.bf16.msra.mxu0 %v1840
  %2872 = vmatprep.mubr.bf16.mxu0 %v119
  %2873 = vmatmul.mubr.bf16.gmra.mrb[0].mxu0 %v107
  %v2874 = vpop.f32.mrb[0].mxu0
  %v2875 = vadd.f32 %v2794, %v2874
  %v2876 = vpop.f32.mrb[0].mxu0
  %v2877 = vadd.f32 %v2796, %v2876
  %v2878 = vpop.f32.mrb[0].mxu0
  %v2879 = vadd.f32 %v2798, %v2878
  %v2880 = vpop.f32.mrb[0].mxu0
  %v2881 = vadd.f32 %v2800, %v2880
  %2882 = vmatprep.mubr.bf16.mxu0 %v135
  %2883 = vmatmul.mubr.bf16.gmra.mrb[0].mxu0 %v127
  %v2884 = vpop.f32.mrb[0].mxu0
  %v2885 = vadd.f32 %v2804, %v2884
  %v2886 = vpop.f32.mrb[0].mxu0
  %v2887 = vadd.f32 %v2806, %v2886
  %v2888 = vpop.f32.mrb[0].mxu0
  %v2889 = vadd.f32 %v2808, %v2888
  %v2890 = vpop.f32.mrb[0].mxu0
  %v2891 = vadd.f32 %v2810, %v2890
  %2892 = vmatprep.mubr.bf16.mxu0 %v151
  %2893 = vmatmul.mubr.bf16.gmra.mrb[0].mxu0 %v143
  %v2894 = vpop.f32.mrb[0].mxu0
  %v2895 = vadd.f32 %v2814, %v2894
  %v2896 = vpop.f32.mrb[0].mxu0
  %v2897 = vadd.f32 %v2816, %v2896
  %v2898 = vpop.f32.mrb[0].mxu0
  %v2899 = vadd.f32 %v2818, %v2898
  %v2900 = vpop.f32.mrb[0].mxu0
  %v2901 = vadd.f32 %v2820, %v2900
  %2902 = vmatprep.mubr.bf16.mxu0 %v167
  %2903 = vmatmul.mubr.bf16.gmra.mrb[0].mxu0 %v159
  %v2904 = vpop.f32.mrb[0].mxu0
  %v2905 = vadd.f32 %v2824, %v2904
  %v2906 = vpop.f32.mrb[0].mxu0
  %v2907 = vadd.f32 %v2826, %v2906
  %v2908 = vpop.f32.mrb[0].mxu0
  %v2909 = vadd.f32 %v2828, %v2908
  %v2910 = vpop.f32.mrb[0].mxu0
  %v2911 = vadd.f32 %v2830, %v2910
  %2912 = vmatprep.mubr.bf16.mxu0 %v173
  %2913 = vmatmul.mubr.bf16.gmra.mrb[0].mxu0 %v170
  %v2914 = vpop.f32.mrb[0].mxu0
  %v2915 = vadd.f32 %v2834, %v2914
  %v2916 = vpop.f32.mrb[0].mxu0
  %v2917 = vadd.f32 %v2836, %v2916
  %v2918 = vpop.f32.mrb[0].mxu0
  %v2919 = vpop.f32.mrb[0].mxu0
  %2920 = vdwg.mxu0
  %2921 = vmatprep.subr.bf16.mxu0 %v1845
  %2922 = vmatpush1.bf16.msra.mxu0 %v1844
  %2923 = vmatprep.subr.bf16.mxu0 %v1849
  %2924 = vmatpush1.bf16.msra.mxu0 %v1848
  %2925 = vmatprep.subr.bf16.mxu0 %v1853
  %2926 = vmatpush1.bf16.msra.mxu0 %v1852
  %2927 = vmatprep.subr.bf16.mxu0 %v1857
  %2928 = vmatpush1.bf16.msra.mxu0 %v1856
  %2929 = vmatprep.subr.bf16.mxu0 %v1861
  %2930 = vmatpush1.bf16.msra.mxu0 %v1860
  %2931 = vmatprep.subr.bf16.mxu0 %v1865
  %2932 = vmatpush1.bf16.msra.mxu0 %v1864
  %2933 = vmatprep.subr.bf16.mxu0 %v1869
  %2934 = vmatpush1.bf16.msra.mxu0 %v1868
  %2935 = vmatprep.subr.bf16.mxu0 %v1873
  %2936 = vmatpush1.bf16.msra.mxu0 %v1872
  %2937 = vmatprep.subr.bf16.mxu0 %v1877
  %2938 = vmatpush1.bf16.msra.mxu0 %v1876
  %2939 = vmatprep.subr.bf16.mxu0 %v1881
  %2940 = vmatpush1.bf16.msra.mxu0 %v1880
  %2941 = vmatprep.subr.bf16.mxu0 %v1885
  %2942 = vmatpush1.bf16.msra.mxu0 %v1884
  %2943 = vmatprep.subr.bf16.mxu0 %v1889
  %2944 = vmatpush1.bf16.msra.mxu0 %v1888
  %2945 = vmatprep.subr.bf16.mxu0 %v1893
  %2946 = vmatpush1.bf16.msra.mxu0 %v1892
  %2947 = vmatprep.subr.bf16.mxu0 %v1897
  %2948 = vmatpush1.bf16.msra.mxu0 %v1896
  %2949 = vmatprep.subr.bf16.mxu0 %v1901
  %2950 = vmatpush1.bf16.msra.mxu0 %v1900
  %2951 = vmatprep.subr.bf16.mxu0 %v1905
  %2952 = vmatpush1.bf16.msra.mxu0 %v1904
  %2953 = vmatprep.mubr.bf16.mxu0 %v195
  %2954 = vmatmul.mubr.bf16.gmra.mrb[0].mxu0 %v192
  %v2955 = vpop.f32.mrb[0].mxu0
  %v2956 = vadd.f32 %v2875, %v2955
  %v2957 = vpop.f32.mrb[0].mxu0
  %v2958 = vadd.f32 %v2877, %v2957
  %v2959 = vpop.f32.mrb[0].mxu0
  %v2960 = vadd.f32 %v2879, %v2959
  %v2961 = vpop.f32.mrb[0].mxu0
  %v2962 = vadd.f32 %v2881, %v2961
  %2963 = vmatprep.mubr.bf16.mxu0 %v199
  %2964 = vmatmul.mubr.bf16.gmra.mrb[0].mxu0 %v197
  %v2965 = vpop.f32.mrb[0].mxu0
  %v2966 = vadd.f32 %v2885, %v2965
  %v2967 = vpop.f32.mrb[0].mxu0
  %v2968 = vadd.f32 %v2887, %v2967
  %v2969 = vpop.f32.mrb[0].mxu0
  %v2970 = vadd.f32 %v2889, %v2969
  %v2971 = vpop.f32.mrb[0].mxu0
  %v2972 = vadd.f32 %v2891, %v2971
  %2973 = vmatprep.mubr.bf16.mxu0 %v203
  %2974 = vmatmul.mubr.bf16.gmra.mrb[0].mxu0 %v201
  %v2975 = vpop.f32.mrb[0].mxu0
  %v2976 = vadd.f32 %v2895, %v2975
  %v2977 = vpop.f32.mrb[0].mxu0
  %v2978 = vadd.f32 %v2897, %v2977
  %v2979 = vpop.f32.mrb[0].mxu0
  %v2980 = vadd.f32 %v2899, %v2979
  %v2981 = vpop.f32.mrb[0].mxu0
  %v2982 = vadd.f32 %v2901, %v2981
  %2983 = vmatprep.mubr.bf16.mxu0 %v207
  %2984 = vmatmul.mubr.bf16.gmra.mrb[0].mxu0 %v205
  %v2985 = vpop.f32.mrb[0].mxu0
  %v2986 = vadd.f32 %v2905, %v2985
  %v2987 = vpop.f32.mrb[0].mxu0
  %v2988 = vadd.f32 %v2907, %v2987
  %v2989 = vpop.f32.mrb[0].mxu0
  %v2990 = vadd.f32 %v2909, %v2989
  %v2991 = vpop.f32.mrb[0].mxu0
  %v2992 = vadd.f32 %v2911, %v2991
  %2993 = vmatprep.mubr.bf16.mxu0 %v206
  %2994 = vmatmul.mubr.bf16.gmra.mrb[0].mxu0 %v204
  %v2995 = vpop.f32.mrb[0].mxu0
  %v2996 = vadd.f32 %v2915, %v2995
  %v2997 = vpop.f32.mrb[0].mxu0
  %v2998 = vadd.f32 %v2917, %v2997
  %v2999 = vpop.f32.mrb[0].mxu0
  %v3000 = vpop.f32.mrb[0].mxu0
  %3001 = vdwg.mxu0
  %3002 = vmatprep.subr.bf16.mxu0 %v1909
  %3003 = vmatpush1.bf16.msra.mxu0 %v1908
  %3004 = vmatprep.subr.bf16.mxu0 %v1913
  %3005 = vmatpush1.bf16.msra.mxu0 %v1912
  %3006 = vmatprep.subr.bf16.mxu0 %v1917
  %3007 = vmatpush1.bf16.msra.mxu0 %v1916
  %3008 = vmatprep.subr.bf16.mxu0 %v1921
  %3009 = vmatpush1.bf16.msra.mxu0 %v1920
  %3010 = vmatprep.subr.bf16.mxu0 %v1925
  %3011 = vmatpush1.bf16.msra.mxu0 %v1924
  %3012 = vmatprep.subr.bf16.mxu0 %v1929
  %3013 = vmatpush1.bf16.msra.mxu0 %v1928
  %3014 = vmatprep.subr.bf16.mxu0 %v1933
  %3015 = vmatpush1.bf16.msra.mxu0 %v1932
  %3016 = vmatprep.subr.bf16.mxu0 %v1937
  %3017 = vmatpush1.bf16.msra.mxu0 %v1936
  %3018 = vmatprep.subr.bf16.mxu0 %v1941
  %3019 = vmatpush1.bf16.msra.mxu0 %v1940
  %3020 = vmatprep.subr.bf16.mxu0 %v1945
  %3021 = vmatpush1.bf16.msra.mxu0 %v1944
  %3022 = vmatprep.subr.bf16.mxu0 %v1949
  %3023 = vmatpush1.bf16.msra.mxu0 %v1948
  %3024 = vmatprep.subr.bf16.mxu0 %v1953
  %3025 = vmatpush1.bf16.msra.mxu0 %v1952
  %3026 = vmatprep.subr.bf16.mxu0 %v1957
  %3027 = vmatpush1.bf16.msra.mxu0 %v1956
  %3028 = vmatprep.subr.bf16.mxu0 %v1961
  %3029 = vmatpush1.bf16.msra.mxu0 %v1960
  %3030 = vmatprep.subr.bf16.mxu0 %v1965
  %3031 = vmatpush1.bf16.msra.mxu0 %v1964
  %3032 = vmatprep.subr.bf16.mxu0 %v1969
  %3033 = vmatpush1.bf16.msra.mxu0 %v1968
  %3034 = vmatprep.mubr.bf16.mxu0 %v246
  %3035 = vmatmul.mubr.bf16.gmra.mrb[0].mxu0 %v245
  %v3036 = vpop.f32.mrb[0].mxu0
  %v3037 = vadd.f32 %v2956, %v3036
  %v3038 = vpop.f32.mrb[0].mxu0
  %v3039 = vadd.f32 %v2958, %v3038
  %v3040 = vpop.f32.mrb[0].mxu0
  %v3041 = vadd.f32 %v2960, %v3040
  %v3042 = vpop.f32.mrb[0].mxu0
  %v3043 = vadd.f32 %v2962, %v3042
  %3044 = vmatprep.mubr.bf16.mxu0 %v248
  %3045 = vmatmul.mubr.bf16.gmra.mrb[0].mxu0 %v247
  %v3046 = vpop.f32.mrb[0].mxu0
  %v3047 = vadd.f32 %v2966, %v3046
  %v3048 = vpop.f32.mrb[0].mxu0
  %v3049 = vadd.f32 %v2968, %v3048
  %v3050 = vpop.f32.mrb[0].mxu0
  %v3051 = vadd.f32 %v2970, %v3050
  %v3052 = vpop.f32.mrb[0].mxu0
  %v3053 = vadd.f32 %v2972, %v3052
  %3054 = vmatprep.mubr.bf16.mxu0 %v250
  %3055 = vmatmul.mubr.bf16.gmra.mrb[0].mxu0 %v249
  %v3056 = vpop.f32.mrb[0].mxu0
  %v3057 = vadd.f32 %v2976, %v3056
  %v3058 = vpop.f32.mrb[0].mxu0
  %v3059 = vadd.f32 %v2978, %v3058
  %v3060 = vpop.f32.mrb[0].mxu0
  %v3061 = vadd.f32 %v2980, %v3060
  %v3062 = vpop.f32.mrb[0].mxu0
  %v3063 = vadd.f32 %v2982, %v3062
  %3064 = vmatprep.mubr.bf16.mxu0 %v252
  %3065 = vmatmul.mubr.bf16.gmra.mrb[0].mxu0 %v251
  %v3066 = vpop.f32.mrb[0].mxu0
  %v3067 = vadd.f32 %v2986, %v3066
  %v3068 = vpop.f32.mrb[0].mxu0
  %v3069 = vadd.f32 %v2988, %v3068
  %v3070 = vpop.f32.mrb[0].mxu0
  %v3071 = vadd.f32 %v2990, %v3070
  %v3072 = vpop.f32.mrb[0].mxu0
  %v3073 = vadd.f32 %v2992, %v3072
  %3074 = vmatprep.mubr.bf16.mxu0 %v254
  %3075 = vmatmul.mubr.bf16.gmra.mrb[0].mxu0 %v253
  %v3076 = vpop.f32.mrb[0].mxu0
  %v3077 = vadd.f32 %v2996, %v3076
  %v3078 = vpop.f32.mrb[0].mxu0
  %v3079 = vadd.f32 %v2998, %v3078
  %v3080 = vpop.f32.mrb[0].mxu0
  %v3081 = vpop.f32.mrb[0].mxu0
  %3082 = vdwg.mxu0
  %3083 = vmatprep.subr.bf16.mxu0 %v1973
  %3084 = vmatpush1.bf16.msra.mxu0 %v1972
  %3085 = vmatprep.subr.bf16.mxu0 %v1977
  %3086 = vmatpush1.bf16.msra.mxu0 %v1976
  %3087 = vmatprep.subr.bf16.mxu0 %v1981
  %3088 = vmatpush1.bf16.msra.mxu0 %v1980
  %3089 = vmatprep.subr.bf16.mxu0 %v1985
  %3090 = vmatpush1.bf16.msra.mxu0 %v1984
  %3091 = vmatprep.subr.bf16.mxu0 %v1989
  %3092 = vmatpush1.bf16.msra.mxu0 %v1988
  %3093 = vmatprep.subr.bf16.mxu0 %v1993
  %3094 = vmatpush1.bf16.msra.mxu0 %v1992
  %3095 = vmatprep.subr.bf16.mxu0 %v1997
  %3096 = vmatpush1.bf16.msra.mxu0 %v1996
  %3097 = vmatprep.subr.bf16.mxu0 %v2001
  %3098 = vmatpush1.bf16.msra.mxu0 %v2000
  %3099 = vmatprep.subr.bf16.mxu0 %v2005
  %3100 = vmatpush1.bf16.msra.mxu0 %v2004
  %3101 = vmatprep.subr.bf16.mxu0 %v2009
  %3102 = vmatpush1.bf16.msra.mxu0 %v2008
  %3103 = vmatprep.subr.bf16.mxu0 %v2013
  %3104 = vmatpush1.bf16.msra.mxu0 %v2012
  %3105 = vmatprep.subr.bf16.mxu0 %v2017
  %3106 = vmatpush1.bf16.msra.mxu0 %v2016
  %3107 = vmatprep.subr.bf16.mxu0 %v2021
  %3108 = vmatpush1.bf16.msra.mxu0 %v2020
  %3109 = vmatprep.subr.bf16.mxu0 %v2025
  %3110 = vmatpush1.bf16.msra.mxu0 %v2024
  %3111 = vmatprep.subr.bf16.mxu0 %v2029
  %3112 = vmatpush1.bf16.msra.mxu0 %v2028
  %3113 = vmatprep.subr.bf16.mxu0 %v2033
  %3114 = vmatpush1.bf16.msra.mxu0 %v2032
  %3115 = vmatprep.mubr.bf16.mxu0 %v293
  %3116 = vmatmul.mubr.bf16.gmra.mrb[0].mxu0 %v281
  %v3117 = vpop.f32.mrb[0].mxu0
  %v3118 = vadd.f32 %v3037, %v3117
  %v3119 = vpop.f32.mrb[0].mxu0
  %v3120 = vadd.f32 %v3039, %v3119
  %v3121 = vpop.f32.mrb[0].mxu0
  %v3122 = vadd.f32 %v3041, %v3121
  %v3123 = vpop.f32.mrb[0].mxu0
  %v3124 = vadd.f32 %v3043, %v3123
  %3125 = vmatprep.mubr.bf16.mxu0 %v309
  %3126 = vmatmul.mubr.bf16.gmra.mrb[0].mxu0 %v301
  %v3127 = vpop.f32.mrb[0].mxu0
  %v3128 = vadd.f32 %v3047, %v3127
  %v3129 = vpop.f32.mrb[0].mxu0
  %v3130 = vadd.f32 %v3049, %v3129
  %v3131 = vpop.f32.mrb[0].mxu0
  %v3132 = vadd.f32 %v3051, %v3131
  %v3133 = vpop.f32.mrb[0].mxu0
  %v3134 = vadd.f32 %v3053, %v3133
  %3135 = vmatprep.mubr.bf16.mxu0 %v325
  %3136 = vmatmul.mubr.bf16.gmra.mrb[0].mxu0 %v317
  %v3137 = vpop.f32.mrb[0].mxu0
  %v3138 = vadd.f32 %v3057, %v3137
  %v3139 = vpop.f32.mrb[0].mxu0
  %v3140 = vadd.f32 %v3059, %v3139
  %v3141 = vpop.f32.mrb[0].mxu0
  %v3142 = vadd.f32 %v3061, %v3141
  %v3143 = vpop.f32.mrb[0].mxu0
  %v3144 = vadd.f32 %v3063, %v3143
  %3145 = vmatprep.mubr.bf16.mxu0 %v341
  %3146 = vmatmul.mubr.bf16.gmra.mrb[0].mxu0 %v333
  %v3147 = vpop.f32.mrb[0].mxu0
  %v3148 = vadd.f32 %v3067, %v3147
  %v3149 = vpop.f32.mrb[0].mxu0
  %v3150 = vadd.f32 %v3069, %v3149
  %v3151 = vpop.f32.mrb[0].mxu0
  %v3152 = vadd.f32 %v3071, %v3151
  %v3153 = vpop.f32.mrb[0].mxu0
  %v3154 = vadd.f32 %v3073, %v3153
  %3155 = vmatprep.mubr.bf16.mxu0 %v347
  %3156 = vmatmul.mubr.bf16.gmra.mrb[0].mxu0 %v344
  %v3157 = vpop.f32.mrb[0].mxu0
  %v3158 = vadd.f32 %v3077, %v3157
  %v3159 = vpop.f32.mrb[0].mxu0
  %v3160 = vadd.f32 %v3079, %v3159
  %v3161 = vpop.f32.mrb[0].mxu0
  %v3162 = vpop.f32.mrb[0].mxu0
  %3163 = vdwg.mxu0
  %v3164 = vld [vmem:[%s3] sm:$0xff]
  %v3165 = vld [vmem:[%s3 + $0x8] sm:$0xff]
  %v3166 = vld [vmem:[%s3 + $0x10] sm:$0xff]
  %v3167 = vld [vmem:[%s3 + $0x18] sm:$0xff]
  %v3168 = vld [vmem:[%s3 + $0x20] sm:$0xff]
  %v3169 = vld [vmem:[%s3 + $0x28] sm:$0xff]
  %v3170 = vld [vmem:[%s3 + $0x30] sm:$0xff]
  %v3171 = vld [vmem:[%s3 + $0x38] sm:$0xff]
  %v3172 = vld [vmem:[%s3 + $0x40] sm:$0xff]
  %v3173 = vld [vmem:[%s3 + $0x48] sm:$0xff]
  %v3174 = vld [vmem:[%s3 + $0x50] sm:$0xff]
  %v3175 = vld [vmem:[%s3 + $0x58] sm:$0xff]
  %v3176 = vld [vmem:[%s3 + $0x60] sm:$0xff]
  %v3177 = vld [vmem:[%s3 + $0x68] sm:$0xff]
  %v3178 = vld [vmem:[%s3 + $0x70] sm:$0xff]
  %v3179 = vld [vmem:[%s3 + $0x78] sm:$0xff]
  %v3180 = vld [vmem:[%s3 + $0x80] sm:$0xff]
  %v3181 = vld [vmem:[%s3 + $0x88] sm:$0xff]
  %v3182 = vld [vmem:[%s3 + $0x90] sm:$0xff]
  %v3183 = vld [vmem:[%s3 + $0x98] sm:$0xff]
  %v3184 = vld [vmem:[%s3 + $0xa0] sm:$0xff]
  %v3185 = vld [vmem:[%s3 + $0xa8] sm:$0xff]
  %v3186 = vld [vmem:[%s3 + $0xb0] sm:$0xff]
  %v3187 = vld [vmem:[%s3 + $0xb8] sm:$0xff]
  %v3188 = vld [vmem:[%s3 + $0xc0] sm:$0xff]
  %v3189 = vld [vmem:[%s3 + $0xc8] sm:$0xff]
  %v3190 = vld [vmem:[%s3 + $0xd0] sm:$0xff]
  %v3191 = vld [vmem:[%s3 + $0xd8] sm:$0xff]
  %v3192 = vld [vmem:[%s3 + $0xe0] sm:$0xff]
  %v3193 = vld [vmem:[%s3 + $0xe8] sm:$0xff]
  %v3194 = vld [vmem:[%s3 + $0xf0] sm:$0xff]
  %v3195 = vld [vmem:[%s3 + $0xf8] sm:$0xff]
  %v3196 = vld [vmem:[%s3 + $0x100] sm:$0xff]
  %v3197 = vld [vmem:[%s3 + $0x108] sm:$0xff]
  %v3198 = vld [vmem:[%s3 + $0x110] sm:$0xff]
  %v3199 = vld [vmem:[%s3 + $0x118] sm:$0xff]
  %v3200 = vld [vmem:[%s3 + $0x120] sm:$0xff]
  %v3201 = vld [vmem:[%s3 + $0x128] sm:$0xff]
  %v3202 = vld [vmem:[%s3 + $0x130] sm:$0xff]
  %v3203 = vld [vmem:[%s3 + $0x138] sm:$0xff]
  %v3204 = vld [vmem:[%s3 + $0x140] sm:$0xff]
  %v3205 = vld [vmem:[%s3 + $0x148] sm:$0xff]
  %v3206 = vld [vmem:[%s3 + $0x150] sm:$0xff]
  %v3207 = vld [vmem:[%s3 + $0x158] sm:$0xff]
  %v3208 = vld [vmem:[%s3 + $0x160] sm:$0xff]
  %v3209 = vld [vmem:[%s3 + $0x168] sm:$0xff]
  %v3210 = vld [vmem:[%s3 + $0x170] sm:$0xff]
  %v3211 = vld [vmem:[%s3 + $0x178] sm:$0xff]
  %v3212 = vld [vmem:[%s3 + $0x180] sm:$0xff]
  %v3213 = vld [vmem:[%s3 + $0x188] sm:$0xff]
  %v3214 = vld [vmem:[%s3 + $0x190] sm:$0xff]
  %v3215 = vld [vmem:[%s3 + $0x198] sm:$0xff]
  %v3216 = vld [vmem:[%s3 + $0x1a0] sm:$0xff]
  %v3217 = vld [vmem:[%s3 + $0x1a8] sm:$0xff]
  %v3218 = vld [vmem:[%s3 + $0x1b0] sm:$0xff]
  %v3219 = vld [vmem:[%s3 + $0x1b8] sm:$0xff]
  %v3220 = vld [vmem:[%s3 + $0x1c0] sm:$0xff]
  %v3221 = vld [vmem:[%s3 + $0x1c8] sm:$0xff]
  %v3222 = vld [vmem:[%s3 + $0x1d0] sm:$0xff]
  %v3223 = vld [vmem:[%s3 + $0x1d8] sm:$0xff]
  %v3224 = vld [vmem:[%s3 + $0x1e0] sm:$0xff]
  %v3225 = vld [vmem:[%s3 + $0x1e8] sm:$0xff]
  %v3226 = vld [vmem:[%s3 + $0x1f0] sm:$0xff]
  %v3227 = vld [vmem:[%s3 + $0x1f8] sm:$0xff]
  %v3228 = vld [vmem:[%s3 + $0x200] sm:$0xff]
  %v3229 = vld [vmem:[%s3 + $0x208] sm:$0xff]
  %v3230 = vld [vmem:[%s3 + $0x210] sm:$0xff]
  %v3231 = vld [vmem:[%s3 + $0x218] sm:$0xff]
  %v3232 = vld [vmem:[%s3 + $0x220] sm:$0xff]
  %v3233 = vld [vmem:[%s3 + $0x228] sm:$0xff]
  %v3234 = vld [vmem:[%s3 + $0x230] sm:$0xff]
  %v3235 = vld [vmem:[%s3 + $0x238] sm:$0xff]
  %v3236 = vld [vmem:[%s3 + $0x240] sm:$0xff]
  %v3237 = vld [vmem:[%s3 + $0x248] sm:$0xff]
  %v3238 = vld [vmem:[%s3 + $0x250] sm:$0xff]
  %v3239 = vld [vmem:[%s3 + $0x258] sm:$0xff]
  %v3240 = vld [vmem:[%s3 + $0x260] sm:$0xff]
  %v3241 = vld [vmem:[%s3 + $0x268] sm:$0xff]
  %v3242 = vld [vmem:[%s3 + $0x270] sm:$0xff]
  %v3243 = vld [vmem:[%s3 + $0x278] sm:$0xff]
  %v3244 = vld [vmem:[%s3 + $0x280] sm:$0xff]
  %v3245 = vld [vmem:[%s3 + $0x288] sm:$0xff]
  %v3246 = vld [vmem:[%s3 + $0x290] sm:$0xff]
  %v3247 = vld [vmem:[%s3 + $0x298] sm:$0xff]
  %v3248 = vld [vmem:[%s3 + $0x2a0] sm:$0xff]
  %v3249 = vld [vmem:[%s3 + $0x2a8] sm:$0xff]
  %v3250 = vld [vmem:[%s3 + $0x2b0] sm:$0xff]
  %v3251 = vld [vmem:[%s3 + $0x2b8] sm:$0xff]
  %v3252 = vld [vmem:[%s3 + $0x2c0] sm:$0xff]
  %v3253 = vld [vmem:[%s3 + $0x2c8] sm:$0xff]
  %v3254 = vld [vmem:[%s3 + $0x2d0] sm:$0xff]
  %v3255 = vld [vmem:[%s3 + $0x2d8] sm:$0xff]
  %v3256 = vld [vmem:[%s3 + $0x2e0] sm:$0xff]
  %v3257 = vld [vmem:[%s3 + $0x2e8] sm:$0xff]
  %v3258 = vld [vmem:[%s3 + $0x2f0] sm:$0xff]
  %v3259 = vld [vmem:[%s3 + $0x2f8] sm:$0xff]
  %v3260 = vld [vmem:[%s3 + $0x300] sm:$0xff]
  %v3261 = vld [vmem:[%s3 + $0x308] sm:$0xff]
  %v3262 = vld [vmem:[%s3 + $0x310] sm:$0xff]
  %v3263 = vld [vmem:[%s3 + $0x318] sm:$0xff]
  %v3264 = vld [vmem:[%s3 + $0x320] sm:$0xff]
  %v3265 = vld [vmem:[%s3 + $0x328] sm:$0xff]
  %v3266 = vld [vmem:[%s3 + $0x330] sm:$0xff]
  %v3267 = vld [vmem:[%s3 + $0x338] sm:$0xff]
  %v3268 = vld [vmem:[%s3 + $0x340] sm:$0xff]
  %v3269 = vld [vmem:[%s3 + $0x348] sm:$0xff]
  %v3270 = vld [vmem:[%s3 + $0x350] sm:$0xff]
  %v3271 = vld [vmem:[%s3 + $0x358] sm:$0xff]
  %v3272 = vld [vmem:[%s3 + $0x360] sm:$0xff]
  %v3273 = vld [vmem:[%s3 + $0x368] sm:$0xff]
  %v3274 = vld [vmem:[%s3 + $0x370] sm:$0xff]
  %v3275 = vld [vmem:[%s3 + $0x378] sm:$0xff]
  %v3276 = vld [vmem:[%s3 + $0x380] sm:$0xff]
  %v3277 = vld [vmem:[%s3 + $0x388] sm:$0xff]
  %v3278 = vld [vmem:[%s3 + $0x390] sm:$0xff]
  %v3279 = vld [vmem:[%s3 + $0x398] sm:$0xff]
  %v3280 = vld [vmem:[%s3 + $0x3a0] sm:$0xff]
  %v3281 = vld [vmem:[%s3 + $0x3a8] sm:$0xff]
  %v3282 = vld [vmem:[%s3 + $0x3b0] sm:$0xff]
  %v3283 = vld [vmem:[%s3 + $0x3b8] sm:$0xff]
  %v3284 = vld [vmem:[%s3 + $0x3c0] sm:$0xff]
  %v3285 = vld [vmem:[%s3 + $0x3c8] sm:$0xff]
  %v3286 = vld [vmem:[%s3 + $0x3d0] sm:$0xff]
  %v3287 = vld [vmem:[%s3 + $0x3d8] sm:$0xff]
  %v3288 = vld [vmem:[%s3 + $0x3e0] sm:$0xff]
  %v3289 = vld [vmem:[%s3 + $0x3e8] sm:$0xff]
  %v3290 = vld [vmem:[%s3 + $0x3f0] sm:$0xff]
  %v3291 = vld [vmem:[%s3 + $0x3f8] sm:$0xff]
  %v3292 = vld [vmem:[%s3 + $0x400] sm:$0xff]
  %v3293 = vld [vmem:[%s3 + $0x408] sm:$0xff]
  %v3294 = vld [vmem:[%s3 + $0x410] sm:$0xff]
  %v3295 = vld [vmem:[%s3 + $0x418] sm:$0xff]
  %v3296 = vld [vmem:[%s3 + $0x420] sm:$0xff]
  %v3297 = vld [vmem:[%s3 + $0x428] sm:$0xff]
  %v3298 = vld [vmem:[%s3 + $0x430] sm:$0xff]
  %v3299 = vld [vmem:[%s3 + $0x438] sm:$0xff]
  %v3300 = vld [vmem:[%s3 + $0x440] sm:$0xff]
  %v3301 = vld [vmem:[%s3 + $0x448] sm:$0xff]
  %v3302 = vld [vmem:[%s3 + $0x450] sm:$0xff]
  %v3303 = vld [vmem:[%s3 + $0x458] sm:$0xff]
  %v3304 = vld [vmem:[%s3 + $0x460] sm:$0xff]
  %v3305 = vld [vmem:[%s3 + $0x468] sm:$0xff]
  %v3306 = vld [vmem:[%s3 + $0x470] sm:$0xff]
  %v3307 = vld [vmem:[%s3 + $0x478] sm:$0xff]
  %v3308 = vld [vmem:[%s3 + $0x480] sm:$0xff]
  %v3309 = vld [vmem:[%s3 + $0x488] sm:$0xff]
  %v3310 = vld [vmem:[%s3 + $0x490] sm:$0xff]
  %v3311 = vld [vmem:[%s3 + $0x498] sm:$0xff]
  %v3312 = vld [vmem:[%s3 + $0x4a0] sm:$0xff]
  %v3313 = vld [vmem:[%s3 + $0x4a8] sm:$0xff]
  %v3314 = vld [vmem:[%s3 + $0x4b0] sm:$0xff]
  %v3315 = vld [vmem:[%s3 + $0x4b8] sm:$0xff]
  %v3316 = vld [vmem:[%s3 + $0x4c0] sm:$0xff]
  %v3317 = vld [vmem:[%s3 + $0x4c8] sm:$0xff]
  %v3318 = vld [vmem:[%s3 + $0x4d0] sm:$0xff]
  %v3319 = vld [vmem:[%s3 + $0x4d8] sm:$0xff]
  %v3320 = vld [vmem:[%s3 + $0x4e0] sm:$0xff]
  %v3321 = vld [vmem:[%s3 + $0x4e8] sm:$0xff]
  %v3322 = vld [vmem:[%s3 + $0x4f0] sm:$0xff]
  %v3323 = vld [vmem:[%s3 + $0x4f8] sm:$0xff]
  %v3324 = vld [vmem:[%s3 + $0x500] sm:$0xff]
  %v3325 = vld [vmem:[%s3 + $0x508] sm:$0xff]
  %v3326 = vld [vmem:[%s3 + $0x510] sm:$0xff]
  %v3327 = vld [vmem:[%s3 + $0x518] sm:$0xff]
  %v3328 = vld [vmem:[%s3 + $0x520] sm:$0xff]
  %v3329 = vld [vmem:[%s3 + $0x528] sm:$0xff]
  %v3330 = vld [vmem:[%s3 + $0x530] sm:$0xff]
  %v3331 = vld [vmem:[%s3 + $0x538] sm:$0xff]
  %v3332 = vld [vmem:[%s3 + $0x540] sm:$0xff]
  %v3333 = vld [vmem:[%s3 + $0x548] sm:$0xff]
  %v3334 = vld [vmem:[%s3 + $0x550] sm:$0xff]
  %v3335 = vld [vmem:[%s3 + $0x558] sm:$0xff]
  %v3336 = vld [vmem:[%s3 + $0x560] sm:$0xff]
  %v3337 = vld [vmem:[%s3 + $0x568] sm:$0xff]
  %v3338 = vld [vmem:[%s3 + $0x570] sm:$0xff]
  %v3339 = vld [vmem:[%s3 + $0x578] sm:$0xff]
  %v3340 = vld [vmem:[%s3 + $0x580] sm:$0xff]
  %v3341 = vld [vmem:[%s3 + $0x588] sm:$0xff]
  %v3342 = vld [vmem:[%s3 + $0x590] sm:$0xff]
  %v3343 = vld [vmem:[%s3 + $0x598] sm:$0xff]
  %v3344 = vld [vmem:[%s3 + $0x5a0] sm:$0xff]
  %v3345 = vld [vmem:[%s3 + $0x5a8] sm:$0xff]
  %v3346 = vld [vmem:[%s3 + $0x5b0] sm:$0xff]
  %v3347 = vld [vmem:[%s3 + $0x5b8] sm:$0xff]
  %v3348 = vld [vmem:[%s3 + $0x5c0] sm:$0xff]
  %v3349 = vld [vmem:[%s3 + $0x5c8] sm:$0xff]
  %v3350 = vld [vmem:[%s3 + $0x5d0] sm:$0xff]
  %v3351 = vld [vmem:[%s3 + $0x5d8] sm:$0xff]
  %v3352 = vld [vmem:[%s3 + $0x5e0] sm:$0xff]
  %v3353 = vld [vmem:[%s3 + $0x5e8] sm:$0xff]
  %v3354 = vld [vmem:[%s3 + $0x5f0] sm:$0xff]
  %v3355 = vld [vmem:[%s3 + $0x5f8] sm:$0xff]
  %v3356 = vld [vmem:[%s3 + $0x600] sm:$0xff]
  %v3357 = vld [vmem:[%s3 + $0x608] sm:$0xff]
  %v3358 = vld [vmem:[%s3 + $0x610] sm:$0xff]
  %v3359 = vld [vmem:[%s3 + $0x618] sm:$0xff]
  %v3360 = vld [vmem:[%s3 + $0x620] sm:$0xff]
  %v3361 = vld [vmem:[%s3 + $0x628] sm:$0xff]
  %v3362 = vld [vmem:[%s3 + $0x630] sm:$0xff]
  %v3363 = vld [vmem:[%s3 + $0x638] sm:$0xff]
  %v3364 = vld [vmem:[%s3 + $0x640] sm:$0xff]
  %v3365 = vld [vmem:[%s3 + $0x648] sm:$0xff]
  %v3366 = vld [vmem:[%s3 + $0x650] sm:$0xff]
  %v3367 = vld [vmem:[%s3 + $0x658] sm:$0xff]
  %v3368 = vld [vmem:[%s3 + $0x660] sm:$0xff]
  %v3369 = vld [vmem:[%s3 + $0x668] sm:$0xff]
  %v3370 = vld [vmem:[%s3 + $0x670] sm:$0xff]
  %v3371 = vld [vmem:[%s3 + $0x678] sm:$0xff]
  %v3372 = vld [vmem:[%s3 + $0x680] sm:$0xff]
  %v3373 = vld [vmem:[%s3 + $0x688] sm:$0xff]
  %v3374 = vld [vmem:[%s3 + $0x690] sm:$0xff]
  %v3375 = vld [vmem:[%s3 + $0x698] sm:$0xff]
  %v3376 = vld [vmem:[%s3 + $0x6a0] sm:$0xff]
  %v3377 = vld [vmem:[%s3 + $0x6a8] sm:$0xff]
  %v3378 = vld [vmem:[%s3 + $0x6b0] sm:$0xff]
  %v3379 = vld [vmem:[%s3 + $0x6b8] sm:$0xff]
  %v3380 = vld [vmem:[%s3 + $0x6c0] sm:$0xff]
  %v3381 = vld [vmem:[%s3 + $0x6c8] sm:$0xff]
  %v3382 = vld [vmem:[%s3 + $0x6d0] sm:$0xff]
  %v3383 = vld [vmem:[%s3 + $0x6d8] sm:$0xff]
  %v3384 = vld [vmem:[%s3 + $0x6e0] sm:$0xff]
  %v3385 = vld [vmem:[%s3 + $0x6e8] sm:$0xff]
  %v3386 = vld [vmem:[%s3 + $0x6f0] sm:$0xff]
  %v3387 = vld [vmem:[%s3 + $0x6f8] sm:$0xff]
  %v3388 = vld [vmem:[%s3 + $0x700] sm:$0xff]
  %v3389 = vld [vmem:[%s3 + $0x708] sm:$0xff]
  %v3390 = vld [vmem:[%s3 + $0x710] sm:$0xff]
  %v3391 = vld [vmem:[%s3 + $0x718] sm:$0xff]
  %v3392 = vld [vmem:[%s3 + $0x720] sm:$0xff]
  %v3393 = vld [vmem:[%s3 + $0x728] sm:$0xff]
  %v3394 = vld [vmem:[%s3 + $0x730] sm:$0xff]
  %v3395 = vld [vmem:[%s3 + $0x738] sm:$0xff]
  %v3396 = vld [vmem:[%s3 + $0x740] sm:$0xff]
  %v3397 = vld [vmem:[%s3 + $0x748] sm:$0xff]
  %v3398 = vld [vmem:[%s3 + $0x750] sm:$0xff]
  %v3399 = vld [vmem:[%s3 + $0x758] sm:$0xff]
  %v3400 = vld [vmem:[%s3 + $0x760] sm:$0xff]
  %v3401 = vld [vmem:[%s3 + $0x768] sm:$0xff]
  %v3402 = vld [vmem:[%s3 + $0x770] sm:$0xff]
  %v3403 = vld [vmem:[%s3 + $0x778] sm:$0xff]
  %v3404 = vld [vmem:[%s3 + $0x780] sm:$0xff]
  %v3405 = vld [vmem:[%s3 + $0x788] sm:$0xff]
  %v3406 = vld [vmem:[%s3 + $0x790] sm:$0xff]
  %v3407 = vld [vmem:[%s3 + $0x798] sm:$0xff]
  %v3408 = vld [vmem:[%s3 + $0x7a0] sm:$0xff]
  %v3409 = vld [vmem:[%s3 + $0x7a8] sm:$0xff]
  %v3410 = vld [vmem:[%s3 + $0x7b0] sm:$0xff]
  %v3411 = vld [vmem:[%s3 + $0x7b8] sm:$0xff]
  %v3412 = vld [vmem:[%s3 + $0x7c0] sm:$0xff]
  %v3413 = vld [vmem:[%s3 + $0x7c8] sm:$0xff]
  %v3414 = vld [vmem:[%s3 + $0x7d0] sm:$0xff]
  %v3415 = vld [vmem:[%s3 + $0x7d8] sm:$0xff]
  %v3416 = vld [vmem:[%s3 + $0x7e0] sm:$0xff]
  %v3417 = vld [vmem:[%s3 + $0x7e8] sm:$0xff]
  %v3418 = vld [vmem:[%s3 + $0x7f0] sm:$0xff]
  %v3419 = vld [vmem:[%s3 + $0x7f8] sm:$0xff]
  %v3420 = vld [vmem:[%s3 + $0x800] sm:$0xff]
  %v3421 = vld [vmem:[%s3 + $0x808] sm:$0xff]
  %v3422 = vld [vmem:[%s3 + $0x810] sm:$0xff]
  %v3423 = vld [vmem:[%s3 + $0x818] sm:$0xff]
  %v3424 = vld [vmem:[%s3 + $0x820] sm:$0xff]
  %v3425 = vld [vmem:[%s3 + $0x828] sm:$0xff]
  %v3426 = vld [vmem:[%s3 + $0x830] sm:$0xff]
  %v3427 = vld [vmem:[%s3 + $0x838] sm:$0xff]
  %v3428 = vld [vmem:[%s3 + $0x840] sm:$0xff]
  %v3429 = vld [vmem:[%s3 + $0x848] sm:$0xff]
  %v3430 = vld [vmem:[%s3 + $0x850] sm:$0xff]
  %v3431 = vld [vmem:[%s3 + $0x858] sm:$0xff]
  %v3432 = vld [vmem:[%s3 + $0x860] sm:$0xff]
  %v3433 = vld [vmem:[%s3 + $0x868] sm:$0xff]
  %v3434 = vld [vmem:[%s3 + $0x870] sm:$0xff]
  %v3435 = vld [vmem:[%s3 + $0x878] sm:$0xff]
  %v3436 = vld [vmem:[%s3 + $0x880] sm:$0xff]
  %v3437 = vld [vmem:[%s3 + $0x888] sm:$0xff]
  %v3438 = vld [vmem:[%s3 + $0x890] sm:$0xff]
  %v3439 = vld [vmem:[%s3 + $0x898] sm:$0xff]
  %v3440 = vld [vmem:[%s3 + $0x8a0] sm:$0xff]
  %v3441 = vld [vmem:[%s3 + $0x8a8] sm:$0xff]
  %v3442 = vld [vmem:[%s3 + $0x8b0] sm:$0xff]
  %v3443 = vld [vmem:[%s3 + $0x8b8] sm:$0xff]
  %v3444 = vld [vmem:[%s3 + $0x8c0] sm:$0xff]
  %v3445 = vld [vmem:[%s3 + $0x8c8] sm:$0xff]
  %v3446 = vld [vmem:[%s3 + $0x8d0] sm:$0xff]
  %v3447 = vld [vmem:[%s3 + $0x8d8] sm:$0xff]
  %v3448 = vld [vmem:[%s3 + $0x8e0] sm:$0xff]
  %v3449 = vld [vmem:[%s3 + $0x8e8] sm:$0xff]
  %v3450 = vld [vmem:[%s3 + $0x8f0] sm:$0xff]
  %v3451 = vld [vmem:[%s3 + $0x8f8] sm:$0xff]
  %v3452 = vld [vmem:[%s3 + $0x900] sm:$0xff]
  %v3453 = vld [vmem:[%s3 + $0x908] sm:$0xff]
  %v3454 = vld [vmem:[%s3 + $0x910] sm:$0xff]
  %v3455 = vld [vmem:[%s3 + $0x918] sm:$0xff]
  %v3456 = vld [vmem:[%s3 + $0x920] sm:$0xff]
  %v3457 = vld [vmem:[%s3 + $0x928] sm:$0xff]
  %v3458 = vld [vmem:[%s3 + $0x930] sm:$0xff]
  %v3459 = vld [vmem:[%s3 + $0x938] sm:$0xff]
  %v3460 = vld [vmem:[%s3 + $0x940] sm:$0xff]
  %v3461 = vld [vmem:[%s3 + $0x948] sm:$0xff]
  %v3462 = vld [vmem:[%s3 + $0x950] sm:$0xff]
  %v3463 = vld [vmem:[%s3 + $0x958] sm:$0xff]
  %v3464 = vld [vmem:[%s3 + $0x960] sm:$0xff]
  %v3465 = vld [vmem:[%s3 + $0x968] sm:$0xff]
  %v3466 = vld [vmem:[%s3 + $0x970] sm:$0xff]
  %v3467 = vld [vmem:[%s3 + $0x978] sm:$0xff]
  %v3468 = vld [vmem:[%s3 + $0x980] sm:$0xff]
  %v3469 = vld [vmem:[%s3 + $0x988] sm:$0xff]
  %v3470 = vld [vmem:[%s3 + $0x990] sm:$0xff]
  %v3471 = vld [vmem:[%s3 + $0x998] sm:$0xff]
  %v3472 = vld [vmem:[%s3 + $0x9a0] sm:$0xff]
  %v3473 = vld [vmem:[%s3 + $0x9a8] sm:$0xff]
  %v3474 = vld [vmem:[%s3 + $0x9b0] sm:$0xff]
  %v3475 = vld [vmem:[%s3 + $0x9b8] sm:$0xff]
  %v3476 = vld [vmem:[%s3 + $0x9c0] sm:$0xff]
  %v3477 = vld [vmem:[%s3 + $0x9c8] sm:$0xff]
  %v3478 = vld [vmem:[%s3 + $0x9d0] sm:$0xff]
  %v3479 = vld [vmem:[%s3 + $0x9d8] sm:$0xff]
  %v3480 = vld [vmem:[%s3 + $0x9e0] sm:$0xff]
  %v3481 = vld [vmem:[%s3 + $0x9e8] sm:$0xff]
  %v3482 = vld [vmem:[%s3 + $0x9f0] sm:$0xff]
  %v3483 = vld [vmem:[%s3 + $0x9f8] sm:$0xff]
  %v3485 = vshrl.u32 %v365, 16
  %v3487 = vshll.u32 %v365, 16
  %v3489 = vrot.slane %v3487, 1
  %v3490 = vor.u32 %v3485, %v3489
  %v3492 = vshll.u32 %v127, 16
  %v3494 = vrot.slane %v3492, 1
  %v3495 = vsel %vm95, %v3490, %v3494
  %v3497 = vshrl.u32 %v373, 16
  %v3499 = vshll.u32 %v373, 16
  %v3501 = vrot.slane %v3499, 1
  %v3502 = vor.u32 %v3497, %v3501
  %v3504 = vshll.u32 %v135, 16
  %v3506 = vrot.slane %v3504, 1
  %v3507 = vsel %vm95, %v3502, %v3506
  %v3509 = vshrl.u32 %v376, 16
  %v3511 = vshll.u32 %v376, 16
  %v3513 = vrot.slane %v3511, 1
  %v3514 = vor.u32 %v3509, %v3513
  %v3516 = vshll.u32 %v381, 16
  %v3518 = vrot.slane %v3516, 1
  %v3519 = vsel %vm95, %v3514, %v3518
  %v3521 = vshrl.u32 %v378, 16
  %v3523 = vshll.u32 %v378, 16
  %v3525 = vrot.slane %v3523, 1
  %v3526 = vor.u32 %v3521, %v3525
  %v3528 = vshll.u32 %v384, 16
  %v3530 = vrot.slane %v3528, 1
  %v3531 = vsel %vm95, %v3526, %v3530
  %v3533 = vshrl.u32 %v425, 16
  %v3535 = vshll.u32 %v425, 16
  %v3537 = vrot.slane %v3535, 1
  %v3538 = vor.u32 %v3533, %v3537
  %v3540 = vshll.u32 %v301, 16
  %v3542 = vrot.slane %v3540, 1
  %v3543 = vsel %vm95, %v3538, %v3542
  %v3545 = vshrl.u32 %v433, 16
  %v3547 = vshll.u32 %v433, 16
  %v3549 = vrot.slane %v3547, 1
  %v3550 = vor.u32 %v3545, %v3549
  %v3552 = vshll.u32 %v309, 16
  %v3554 = vrot.slane %v3552, 1
  %v3555 = vsel %vm95, %v3550, %v3554
  %v3556 = vshrl.u32 %v127, 16
  %v3558 = vor.u32 %v3556, %v3494
  %v3560 = vshll.u32 %v143, 16
  %v3562 = vrot.slane %v3560, 1
  %v3563 = vsel %vm95, %v3558, %v3562
  %v3564 = vshrl.u32 %v135, 16
  %v3566 = vor.u32 %v3564, %v3506
  %v3568 = vshll.u32 %v151, 16
  %v3570 = vrot.slane %v3568, 1
  %v3571 = vsel %vm95, %v3566, %v3570
  %v3572 = vshrl.u32 %v381, 16
  %v3574 = vor.u32 %v3572, %v3518
  %v3576 = vshll.u32 %v387, 16
  %v3578 = vrot.slane %v3576, 1
  %v3579 = vsel %vm95, %v3574, %v3578
  %v3580 = vshrl.u32 %v384, 16
  %v3582 = vor.u32 %v3580, %v3530
  %v3584 = vshll.u32 %v390, 16
  %v3586 = vrot.slane %v3584, 1
  %v3587 = vsel %vm95, %v3582, %v3586
  %v3588 = vshrl.u32 %v301, 16
  %v3590 = vor.u32 %v3588, %v3542
  %v3592 = vshll.u32 %v317, 16
  %v3594 = vrot.slane %v3592, 1
  %v3595 = vsel %vm95, %v3590, %v3594
  %v3596 = vshrl.u32 %v309, 16
  %v3598 = vor.u32 %v3596, %v3554
  %v3600 = vshll.u32 %v325, 16
  %v3602 = vrot.slane %v3600, 1
  %v3603 = vsel %vm95, %v3598, %v3602
  %v3604 = vshrl.u32 %v143, 16
  %v3606 = vor.u32 %v3604, %v3562
  %v3608 = vshll.u32 %v159, 16
  %v3610 = vrot.slane %v3608, 1
  %v3611 = vsel %vm95, %v3606, %v3610
  %v3612 = vshrl.u32 %v151, 16
  %v3614 = vor.u32 %v3612, %v3570
  %v3616 = vshll.u32 %v167, 16
  %v3618 = vrot.slane %v3616, 1
  %v3619 = vsel %vm95, %v3614, %v3618
  %v3620 = vshrl.u32 %v387, 16
  %v3622 = vor.u32 %v3620, %v3578
  %v3624 = vshll.u32 %v393, 16
  %v3626 = vrot.slane %v3624, 1
  %v3627 = vsel %vm95, %v3622, %v3626
  %v3628 = vshrl.u32 %v390, 16
  %v3630 = vor.u32 %v3628, %v3586
  %v3632 = vshll.u32 %v396, 16
  %v3634 = vrot.slane %v3632, 1
  %v3635 = vsel %vm95, %v3630, %v3634
  %v3636 = vshrl.u32 %v317, 16
  %v3638 = vor.u32 %v3636, %v3594
  %v3640 = vshll.u32 %v333, 16
  %v3642 = vrot.slane %v3640, 1
  %v3643 = vsel %vm95, %v3638, %v3642
  %v3644 = vshrl.u32 %v325, 16
  %v3646 = vor.u32 %v3644, %v3602
  %v3648 = vshll.u32 %v341, 16
  %v3650 = vrot.slane %v3648, 1
  %v3651 = vsel %vm95, %v3646, %v3650
  %v3652 = vshrl.u32 %v159, 16
  %v3654 = vor.u32 %v3652, %v3610
  %v3656 = vshll.u32 %v170, 16
  %v3658 = vrot.slane %v3656, 1
  %v3659 = vsel %vm95, %v3654, %v3658
  %v3660 = vshrl.u32 %v167, 16
  %v3662 = vor.u32 %v3660, %v3618
  %v3664 = vshll.u32 %v173, 16
  %v3666 = vrot.slane %v3664, 1
  %v3667 = vsel %vm95, %v3662, %v3666
  %v3668 = vshrl.u32 %v393, 16
  %v3670 = vor.u32 %v3668, %v3626
  %v3672 = vshll.u32 %v404, 16
  %v3674 = vrot.slane %v3672, 1
  %v3675 = vsel %vm95, %v3670, %v3674
  %v3676 = vshrl.u32 %v396, 16
  %v3678 = vor.u32 %v3676, %v3634
  %v3680 = vshll.u32 %v412, 16
  %v3682 = vrot.slane %v3680, 1
  %v3683 = vsel %vm95, %v3678, %v3682
  %v3684 = vshrl.u32 %v333, 16
  %v3686 = vor.u32 %v3684, %v3642
  %v3688 = vshll.u32 %v344, 16
  %v3690 = vrot.slane %v3688, 1
  %v3691 = vsel %vm95, %v3686, %v3690
  %v3692 = vshrl.u32 %v341, 16
  %v3694 = vor.u32 %v3692, %v3650
  %v3696 = vshll.u32 %v347, 16
  %v3698 = vrot.slane %v3696, 1
  %v3699 = vsel %vm95, %v3694, %v3698
  %v3700 = vshrl.u32 %v170, 16
  %v3702 = vor.u32 %v3700, %v3658
  %v3703 = vshrl.u32 %v173, 16
  %v3705 = vor.u32 %v3703, %v3666
  %v3706 = vshrl.u32 %v404, 16
  %v3708 = vor.u32 %v3706, %v3674
  %v3709 = vshrl.u32 %v412, 16
  %v3711 = vor.u32 %v3709, %v3682
  %v3712 = vshrl.u32 %v344, 16
  %v3714 = vor.u32 %v3712, %v3690
  %v3715 = vshrl.u32 %v347, 16
  %v3717 = vor.u32 %v3715, %v3698
  %v4068 = vunpack.c.l.b16 %v3164
  %v4069 = vunpack.c.h.b16 %v3164
  %v4070 = vunpack.c.l.b16 %v3165
  %v4071 = vunpack.c.h.b16 %v3165
  %v4072 = vunpack.c.l.b16 %v3166
  %v4073 = vunpack.c.h.b16 %v3166
  %v4074 = vunpack.c.l.b16 %v3167
  %v4075 = vunpack.c.h.b16 %v3167
  %v4076 = vunpack.c.l.b16 %v3168
  %v4077 = vunpack.c.h.b16 %v3168
  %v4078 = vunpack.c.l.b16 %v3169
  %v4079 = vunpack.c.h.b16 %v3169
  %v4080 = vunpack.c.l.b16 %v3170
  %v4081 = vunpack.c.h.b16 %v3170
  %v4082 = vunpack.c.l.b16 %v3171
  %v4083 = vunpack.c.h.b16 %v3171
  %v4084 = vunpack.c.l.b16 %v3172
  %v4085 = vunpack.c.h.b16 %v3172
  %v4086 = vunpack.c.l.b16 %v3173
  %v4087 = vunpack.c.h.b16 %v3173
  %v4088 = vunpack.c.l.b16 %v3174
  %v4089 = vunpack.c.h.b16 %v3174
  %v4090 = vunpack.c.l.b16 %v3175
  %v4091 = vunpack.c.h.b16 %v3175
  %v4092 = vunpack.c.l.b16 %v3176
  %v4093 = vunpack.c.h.b16 %v3176
  %v4094 = vunpack.c.l.b16 %v3177
  %v4095 = vunpack.c.h.b16 %v3177
  %v4096 = vunpack.c.l.b16 %v3178
  %v4097 = vunpack.c.h.b16 %v3178
  %v4098 = vunpack.c.l.b16 %v3179
  %v4099 = vunpack.c.h.b16 %v3179
  %v4100 = vunpack.c.l.b16 %v3180
  %v4101 = vunpack.c.h.b16 %v3180
  %v4102 = vunpack.c.l.b16 %v3181
  %v4103 = vunpack.c.h.b16 %v3181
  %v4104 = vunpack.c.l.b16 %v3182
  %v4105 = vunpack.c.h.b16 %v3182
  %v4106 = vunpack.c.l.b16 %v3183
  %v4107 = vunpack.c.h.b16 %v3183
  %v4108 = vunpack.c.l.b16 %v3184
  %v4109 = vunpack.c.h.b16 %v3184
  %v4110 = vunpack.c.l.b16 %v3185
  %v4111 = vunpack.c.h.b16 %v3185
  %v4112 = vunpack.c.l.b16 %v3186
  %v4113 = vunpack.c.h.b16 %v3186
  %v4114 = vunpack.c.l.b16 %v3187
  %v4115 = vunpack.c.h.b16 %v3187
  %v4116 = vunpack.c.l.b16 %v3188
  %v4117 = vunpack.c.h.b16 %v3188
  %v4118 = vunpack.c.l.b16 %v3189
  %v4119 = vunpack.c.h.b16 %v3189
  %v4120 = vunpack.c.l.b16 %v3190
  %v4121 = vunpack.c.h.b16 %v3190
  %v4122 = vunpack.c.l.b16 %v3191
  %v4123 = vunpack.c.h.b16 %v3191
  %v4124 = vunpack.c.l.b16 %v3192
  %v4125 = vunpack.c.h.b16 %v3192
  %v4126 = vunpack.c.l.b16 %v3193
  %v4127 = vunpack.c.h.b16 %v3193
  %v4128 = vunpack.c.l.b16 %v3194
  %v4129 = vunpack.c.h.b16 %v3194
  %v4130 = vunpack.c.l.b16 %v3195
  %v4131 = vunpack.c.h.b16 %v3195
  %v4132 = vunpack.c.l.b16 %v3196
  %v4133 = vunpack.c.h.b16 %v3196
  %v4134 = vunpack.c.l.b16 %v3197
  %v4135 = vunpack.c.h.b16 %v3197
  %v4136 = vunpack.c.l.b16 %v3198
  %v4137 = vunpack.c.h.b16 %v3198
  %v4138 = vunpack.c.l.b16 %v3199
  %v4139 = vunpack.c.h.b16 %v3199
  %v4140 = vunpack.c.l.b16 %v3200
  %v4141 = vunpack.c.h.b16 %v3200
  %v4142 = vunpack.c.l.b16 %v3201
  %v4143 = vunpack.c.h.b16 %v3201
  %v4144 = vunpack.c.l.b16 %v3202
  %v4145 = vunpack.c.h.b16 %v3202
  %v4146 = vunpack.c.l.b16 %v3203
  %v4147 = vunpack.c.h.b16 %v3203
  %v4148 = vunpack.c.l.b16 %v3204
  %v4149 = vunpack.c.h.b16 %v3204
  %v4150 = vunpack.c.l.b16 %v3205
  %v4151 = vunpack.c.h.b16 %v3205
  %v4152 = vunpack.c.l.b16 %v3206
  %v4153 = vunpack.c.h.b16 %v3206
  %v4154 = vunpack.c.l.b16 %v3207
  %v4155 = vunpack.c.h.b16 %v3207
  %v4156 = vunpack.c.l.b16 %v3208
  %v4157 = vunpack.c.h.b16 %v3208
  %v4158 = vunpack.c.l.b16 %v3209
  %v4159 = vunpack.c.h.b16 %v3209
  %v4160 = vunpack.c.l.b16 %v3210
  %v4161 = vunpack.c.h.b16 %v3210
  %v4162 = vunpack.c.l.b16 %v3211
  %v4163 = vunpack.c.h.b16 %v3211
  %v4164 = vunpack.c.l.b16 %v3212
  %v4165 = vunpack.c.h.b16 %v3212
  %v4166 = vunpack.c.l.b16 %v3213
  %v4167 = vunpack.c.h.b16 %v3213
  %v4168 = vunpack.c.l.b16 %v3214
  %v4169 = vunpack.c.h.b16 %v3214
  %v4170 = vunpack.c.l.b16 %v3215
  %v4171 = vunpack.c.h.b16 %v3215
  %v4172 = vunpack.c.l.b16 %v3216
  %v4173 = vunpack.c.h.b16 %v3216
  %v4174 = vunpack.c.l.b16 %v3217
  %v4175 = vunpack.c.h.b16 %v3217
  %v4176 = vunpack.c.l.b16 %v3218
  %v4177 = vunpack.c.h.b16 %v3218
  %v4178 = vunpack.c.l.b16 %v3219
  %v4179 = vunpack.c.h.b16 %v3219
  %v4180 = vunpack.c.l.b16 %v3220
  %v4181 = vunpack.c.h.b16 %v3220
  %v4182 = vunpack.c.l.b16 %v3221
  %v4183 = vunpack.c.h.b16 %v3221
  %v4184 = vunpack.c.l.b16 %v3222
  %v4185 = vunpack.c.h.b16 %v3222
  %v4186 = vunpack.c.l.b16 %v3223
  %v4187 = vunpack.c.h.b16 %v3223
  %v4188 = vunpack.c.l.b16 %v3224
  %v4189 = vunpack.c.h.b16 %v3224
  %v4190 = vunpack.c.l.b16 %v3225
  %v4191 = vunpack.c.h.b16 %v3225
  %v4192 = vunpack.c.l.b16 %v3226
  %v4193 = vunpack.c.h.b16 %v3226
  %v4194 = vunpack.c.l.b16 %v3227
  %v4195 = vunpack.c.h.b16 %v3227
  %v4196 = vunpack.c.l.b16 %v3228
  %v4197 = vunpack.c.h.b16 %v3228
  %v4198 = vunpack.c.l.b16 %v3229
  %v4199 = vunpack.c.h.b16 %v3229
  %v4200 = vunpack.c.l.b16 %v3230
  %v4201 = vunpack.c.h.b16 %v3230
  %v4202 = vunpack.c.l.b16 %v3231
  %v4203 = vunpack.c.h.b16 %v3231
  %v4204 = vunpack.c.l.b16 %v3232
  %v4205 = vunpack.c.h.b16 %v3232
  %v4206 = vunpack.c.l.b16 %v3233
  %v4207 = vunpack.c.h.b16 %v3233
  %v4208 = vunpack.c.l.b16 %v3234
  %v4209 = vunpack.c.h.b16 %v3234
  %v4210 = vunpack.c.l.b16 %v3235
  %v4211 = vunpack.c.h.b16 %v3235
  %v4212 = vunpack.c.l.b16 %v3236
  %v4213 = vunpack.c.h.b16 %v3236
  %v4214 = vunpack.c.l.b16 %v3237
  %v4215 = vunpack.c.h.b16 %v3237
  %v4216 = vunpack.c.l.b16 %v3238
  %v4217 = vunpack.c.h.b16 %v3238
  %v4218 = vunpack.c.l.b16 %v3239
  %v4219 = vunpack.c.h.b16 %v3239
  %v4220 = vunpack.c.l.b16 %v3240
  %v4221 = vunpack.c.h.b16 %v3240
  %v4222 = vunpack.c.l.b16 %v3241
  %v4223 = vunpack.c.h.b16 %v3241
  %v4224 = vunpack.c.l.b16 %v3242
  %v4225 = vunpack.c.h.b16 %v3242
  %v4226 = vunpack.c.l.b16 %v3243
  %v4227 = vunpack.c.h.b16 %v3243
  %v4228 = vunpack.c.l.b16 %v3244
  %v4229 = vunpack.c.h.b16 %v3244
  %v4230 = vunpack.c.l.b16 %v3245
  %v4231 = vunpack.c.h.b16 %v3245
  %v4232 = vunpack.c.l.b16 %v3246
  %v4233 = vunpack.c.h.b16 %v3246
  %v4234 = vunpack.c.l.b16 %v3247
  %v4235 = vunpack.c.h.b16 %v3247
  %v4236 = vunpack.c.l.b16 %v3248
  %v4237 = vunpack.c.h.b16 %v3248
  %v4238 = vunpack.c.l.b16 %v3249
  %v4239 = vunpack.c.h.b16 %v3249
  %v4240 = vunpack.c.l.b16 %v3250
  %v4241 = vunpack.c.h.b16 %v3250
  %v4242 = vunpack.c.l.b16 %v3251
  %v4243 = vunpack.c.h.b16 %v3251
  %v4244 = vunpack.c.l.b16 %v3252
  %v4245 = vunpack.c.h.b16 %v3252
  %v4246 = vunpack.c.l.b16 %v3253
  %v4247 = vunpack.c.h.b16 %v3253
  %v4248 = vunpack.c.l.b16 %v3254
  %v4249 = vunpack.c.h.b16 %v3254
  %v4250 = vunpack.c.l.b16 %v3255
  %v4251 = vunpack.c.h.b16 %v3255
  %v4252 = vunpack.c.l.b16 %v3256
  %v4253 = vunpack.c.h.b16 %v3256
  %v4254 = vunpack.c.l.b16 %v3257
  %v4255 = vunpack.c.h.b16 %v3257
  %v4256 = vunpack.c.l.b16 %v3258
  %v4257 = vunpack.c.h.b16 %v3258
  %v4258 = vunpack.c.l.b16 %v3259
  %v4259 = vunpack.c.h.b16 %v3259
  %v4260 = vunpack.c.l.b16 %v3260
  %v4261 = vunpack.c.h.b16 %v3260
  %v4262 = vunpack.c.l.b16 %v3261
  %v4263 = vunpack.c.h.b16 %v3261
  %v4264 = vunpack.c.l.b16 %v3262
  %v4265 = vunpack.c.h.b16 %v3262
  %v4266 = vunpack.c.l.b16 %v3263
  %v4267 = vunpack.c.h.b16 %v3263
  %v4268 = vunpack.c.l.b16 %v3264
  %v4269 = vunpack.c.h.b16 %v3264
  %v4270 = vunpack.c.l.b16 %v3265
  %v4271 = vunpack.c.h.b16 %v3265
  %v4272 = vunpack.c.l.b16 %v3266
  %v4273 = vunpack.c.h.b16 %v3266
  %v4274 = vunpack.c.l.b16 %v3267
  %v4275 = vunpack.c.h.b16 %v3267
  %v4276 = vunpack.c.l.b16 %v3268
  %v4277 = vunpack.c.h.b16 %v3268
  %v4278 = vunpack.c.l.b16 %v3269
  %v4279 = vunpack.c.h.b16 %v3269
  %v4280 = vunpack.c.l.b16 %v3270
  %v4281 = vunpack.c.h.b16 %v3270
  %v4282 = vunpack.c.l.b16 %v3271
  %v4283 = vunpack.c.h.b16 %v3271
  %v4284 = vunpack.c.l.b16 %v3272
  %v4285 = vunpack.c.h.b16 %v3272
  %v4286 = vunpack.c.l.b16 %v3273
  %v4287 = vunpack.c.h.b16 %v3273
  %v4288 = vunpack.c.l.b16 %v3274
  %v4289 = vunpack.c.h.b16 %v3274
  %v4290 = vunpack.c.l.b16 %v3275
  %v4291 = vunpack.c.h.b16 %v3275
  %v4292 = vunpack.c.l.b16 %v3276
  %v4293 = vunpack.c.h.b16 %v3276
  %v4294 = vunpack.c.l.b16 %v3277
  %v4295 = vunpack.c.h.b16 %v3277
  %v4296 = vunpack.c.l.b16 %v3278
  %v4297 = vunpack.c.h.b16 %v3278
  %v4298 = vunpack.c.l.b16 %v3279
  %v4299 = vunpack.c.h.b16 %v3279
  %v4300 = vunpack.c.l.b16 %v3280
  %v4301 = vunpack.c.h.b16 %v3280
  %v4302 = vunpack.c.l.b16 %v3281
  %v4303 = vunpack.c.h.b16 %v3281
  %v4304 = vunpack.c.l.b16 %v3282
  %v4305 = vunpack.c.h.b16 %v3282
  %v4306 = vunpack.c.l.b16 %v3283
  %v4307 = vunpack.c.h.b16 %v3283
  %v4308 = vunpack.c.l.b16 %v3284
  %v4309 = vunpack.c.h.b16 %v3284
  %v4310 = vunpack.c.l.b16 %v3285
  %v4311 = vunpack.c.h.b16 %v3285
  %v4312 = vunpack.c.l.b16 %v3286
  %v4313 = vunpack.c.h.b16 %v3286
  %v4314 = vunpack.c.l.b16 %v3287
  %v4315 = vunpack.c.h.b16 %v3287
  %v4316 = vunpack.c.l.b16 %v3288
  %v4317 = vunpack.c.h.b16 %v3288
  %v4318 = vunpack.c.l.b16 %v3289
  %v4319 = vunpack.c.h.b16 %v3289
  %v4320 = vunpack.c.l.b16 %v3290
  %v4321 = vunpack.c.h.b16 %v3290
  %v4322 = vunpack.c.l.b16 %v3291
  %v4323 = vunpack.c.h.b16 %v3291
  %v4324 = vunpack.c.l.b16 %v3292
  %v4325 = vunpack.c.h.b16 %v3292
  %v4326 = vunpack.c.l.b16 %v3293
  %v4327 = vunpack.c.h.b16 %v3293
  %v4328 = vunpack.c.l.b16 %v3294
  %v4329 = vunpack.c.h.b16 %v3294
  %v4330 = vunpack.c.l.b16 %v3295
  %v4331 = vunpack.c.h.b16 %v3295
  %v4332 = vunpack.c.l.b16 %v3296
  %v4333 = vunpack.c.h.b16 %v3296
  %v4334 = vunpack.c.l.b16 %v3297
  %v4335 = vunpack.c.h.b16 %v3297
  %v4336 = vunpack.c.l.b16 %v3298
  %v4337 = vunpack.c.h.b16 %v3298
  %v4338 = vunpack.c.l.b16 %v3299
  %v4339 = vunpack.c.h.b16 %v3299
  %v4340 = vunpack.c.l.b16 %v3300
  %v4341 = vunpack.c.h.b16 %v3300
  %v4342 = vunpack.c.l.b16 %v3301
  %v4343 = vunpack.c.h.b16 %v3301
  %v4344 = vunpack.c.l.b16 %v3302
  %v4345 = vunpack.c.h.b16 %v3302
  %v4346 = vunpack.c.l.b16 %v3303
  %v4347 = vunpack.c.h.b16 %v3303
  %v4348 = vunpack.c.l.b16 %v3304
  %v4349 = vunpack.c.h.b16 %v3304
  %v4350 = vunpack.c.l.b16 %v3305
  %v4351 = vunpack.c.h.b16 %v3305
  %v4352 = vunpack.c.l.b16 %v3306
  %v4353 = vunpack.c.h.b16 %v3306
  %v4354 = vunpack.c.l.b16 %v3307
  %v4355 = vunpack.c.h.b16 %v3307
  %v4356 = vunpack.c.l.b16 %v3308
  %v4357 = vunpack.c.h.b16 %v3308
  %v4358 = vunpack.c.l.b16 %v3309
  %v4359 = vunpack.c.h.b16 %v3309
  %v4360 = vunpack.c.l.b16 %v3310
  %v4361 = vunpack.c.h.b16 %v3310
  %v4362 = vunpack.c.l.b16 %v3311
  %v4363 = vunpack.c.h.b16 %v3311
  %v4364 = vunpack.c.l.b16 %v3312
  %v4365 = vunpack.c.h.b16 %v3312
  %v4366 = vunpack.c.l.b16 %v3313
  %v4367 = vunpack.c.h.b16 %v3313
  %v4368 = vunpack.c.l.b16 %v3314
  %v4369 = vunpack.c.h.b16 %v3314
  %v4370 = vunpack.c.l.b16 %v3315
  %v4371 = vunpack.c.h.b16 %v3315
  %v4372 = vunpack.c.l.b16 %v3316
  %v4373 = vunpack.c.h.b16 %v3316
  %v4374 = vunpack.c.l.b16 %v3317
  %v4375 = vunpack.c.h.b16 %v3317
  %v4376 = vunpack.c.l.b16 %v3318
  %v4377 = vunpack.c.h.b16 %v3318
  %v4378 = vunpack.c.l.b16 %v3319
  %v4379 = vunpack.c.h.b16 %v3319
  %v4380 = vunpack.c.l.b16 %v3320
  %v4381 = vunpack.c.h.b16 %v3320
  %v4382 = vunpack.c.l.b16 %v3321
  %v4383 = vunpack.c.h.b16 %v3321
  %v4384 = vunpack.c.l.b16 %v3322
  %v4385 = vunpack.c.h.b16 %v3322
  %v4386 = vunpack.c.l.b16 %v3323
  %v4387 = vunpack.c.h.b16 %v3323
  %v4388 = vunpack.c.l.b16 %v3324
  %v4389 = vunpack.c.h.b16 %v3324
  %v4390 = vunpack.c.l.b16 %v3325
  %v4391 = vunpack.c.h.b16 %v3325
  %v4392 = vunpack.c.l.b16 %v3326
  %v4393 = vunpack.c.h.b16 %v3326
  %v4394 = vunpack.c.l.b16 %v3327
  %v4395 = vunpack.c.h.b16 %v3327
  %v4396 = vunpack.c.l.b16 %v3328
  %v4397 = vunpack.c.h.b16 %v3328
  %v4398 = vunpack.c.l.b16 %v3329
  %v4399 = vunpack.c.h.b16 %v3329
  %v4400 = vunpack.c.l.b16 %v3330
  %v4401 = vunpack.c.h.b16 %v3330
  %v4402 = vunpack.c.l.b16 %v3331
  %v4403 = vunpack.c.h.b16 %v3331
  %v4404 = vunpack.c.l.b16 %v3332
  %v4405 = vunpack.c.h.b16 %v3332
  %v4406 = vunpack.c.l.b16 %v3333
  %v4407 = vunpack.c.h.b16 %v3333
  %v4408 = vunpack.c.l.b16 %v3334
  %v4409 = vunpack.c.h.b16 %v3334
  %v4410 = vunpack.c.l.b16 %v3335
  %v4411 = vunpack.c.h.b16 %v3335
  %v4412 = vunpack.c.l.b16 %v3336
  %v4413 = vunpack.c.h.b16 %v3336
  %v4414 = vunpack.c.l.b16 %v3337
  %v4415 = vunpack.c.h.b16 %v3337
  %v4416 = vunpack.c.l.b16 %v3338
  %v4417 = vunpack.c.h.b16 %v3338
  %v4418 = vunpack.c.l.b16 %v3339
  %v4419 = vunpack.c.h.b16 %v3339
  %v4420 = vunpack.c.l.b16 %v3340
  %v4421 = vunpack.c.h.b16 %v3340
  %v4422 = vunpack.c.l.b16 %v3341
  %v4423 = vunpack.c.h.b16 %v3341
  %v4424 = vunpack.c.l.b16 %v3342
  %v4425 = vunpack.c.h.b16 %v3342
  %v4426 = vunpack.c.l.b16 %v3343
  %v4427 = vunpack.c.h.b16 %v3343
  %v4428 = vunpack.c.l.b16 %v3344
  %v4429 = vunpack.c.h.b16 %v3344
  %v4430 = vunpack.c.l.b16 %v3345
  %v4431 = vunpack.c.h.b16 %v3345
  %v4432 = vunpack.c.l.b16 %v3346
  %v4433 = vunpack.c.h.b16 %v3346
  %v4434 = vunpack.c.l.b16 %v3347
  %v4435 = vunpack.c.h.b16 %v3347
  %v4436 = vunpack.c.l.b16 %v3348
  %v4437 = vunpack.c.h.b16 %v3348
  %v4438 = vunpack.c.l.b16 %v3349
  %v4439 = vunpack.c.h.b16 %v3349
  %v4440 = vunpack.c.l.b16 %v3350
  %v4441 = vunpack.c.h.b16 %v3350
  %v4442 = vunpack.c.l.b16 %v3351
  %v4443 = vunpack.c.h.b16 %v3351
  %v4444 = vunpack.c.l.b16 %v3352
  %v4445 = vunpack.c.h.b16 %v3352
  %v4446 = vunpack.c.l.b16 %v3353
  %v4447 = vunpack.c.h.b16 %v3353
  %v4448 = vunpack.c.l.b16 %v3354
  %v4449 = vunpack.c.h.b16 %v3354
  %v4450 = vunpack.c.l.b16 %v3355
  %v4451 = vunpack.c.h.b16 %v3355
  %v4452 = vunpack.c.l.b16 %v3356
  %v4453 = vunpack.c.h.b16 %v3356
  %v4454 = vunpack.c.l.b16 %v3357
  %v4455 = vunpack.c.h.b16 %v3357
  %v4456 = vunpack.c.l.b16 %v3358
  %v4457 = vunpack.c.h.b16 %v3358
  %v4458 = vunpack.c.l.b16 %v3359
  %v4459 = vunpack.c.h.b16 %v3359
  %v4460 = vunpack.c.l.b16 %v3360
  %v4461 = vunpack.c.h.b16 %v3360
  %v4462 = vunpack.c.l.b16 %v3361
  %v4463 = vunpack.c.h.b16 %v3361
  %v4464 = vunpack.c.l.b16 %v3362
  %v4465 = vunpack.c.h.b16 %v3362
  %v4466 = vunpack.c.l.b16 %v3363
  %v4467 = vunpack.c.h.b16 %v3363
  %v4468 = vunpack.c.l.b16 %v3364
  %v4469 = vunpack.c.h.b16 %v3364
  %v4470 = vunpack.c.l.b16 %v3365
  %v4471 = vunpack.c.h.b16 %v3365
  %v4472 = vunpack.c.l.b16 %v3366
  %v4473 = vunpack.c.h.b16 %v3366
  %v4474 = vunpack.c.l.b16 %v3367
  %v4475 = vunpack.c.h.b16 %v3367
  %v4476 = vunpack.c.l.b16 %v3368
  %v4477 = vunpack.c.h.b16 %v3368
  %v4478 = vunpack.c.l.b16 %v3369
  %v4479 = vunpack.c.h.b16 %v3369
  %v4480 = vunpack.c.l.b16 %v3370
  %v4481 = vunpack.c.h.b16 %v3370
  %v4482 = vunpack.c.l.b16 %v3371
  %v4483 = vunpack.c.h.b16 %v3371
  %v4484 = vunpack.c.l.b16 %v3372
  %v4485 = vunpack.c.h.b16 %v3372
  %v4486 = vunpack.c.l.b16 %v3373
  %v4487 = vunpack.c.h.b16 %v3373
  %v4488 = vunpack.c.l.b16 %v3374
  %v4489 = vunpack.c.h.b16 %v3374
  %v4490 = vunpack.c.l.b16 %v3375
  %v4491 = vunpack.c.h.b16 %v3375
  %v4492 = vunpack.c.l.b16 %v3376
  %v4493 = vunpack.c.h.b16 %v3376
  %v4494 = vunpack.c.l.b16 %v3377
  %v4495 = vunpack.c.h.b16 %v3377
  %v4496 = vunpack.c.l.b16 %v3378
  %v4497 = vunpack.c.h.b16 %v3378
  %v4498 = vunpack.c.l.b16 %v3379
  %v4499 = vunpack.c.h.b16 %v3379
  %v4500 = vunpack.c.l.b16 %v3380
  %v4501 = vunpack.c.h.b16 %v3380
  %v4502 = vunpack.c.l.b16 %v3381
  %v4503 = vunpack.c.h.b16 %v3381
  %v4504 = vunpack.c.l.b16 %v3382
  %v4505 = vunpack.c.h.b16 %v3382
  %v4506 = vunpack.c.l.b16 %v3383
  %v4507 = vunpack.c.h.b16 %v3383
  %v4508 = vunpack.c.l.b16 %v3384
  %v4509 = vunpack.c.h.b16 %v3384
  %v4510 = vunpack.c.l.b16 %v3385
  %v4511 = vunpack.c.h.b16 %v3385
  %v4512 = vunpack.c.l.b16 %v3386
  %v4513 = vunpack.c.h.b16 %v3386
  %v4514 = vunpack.c.l.b16 %v3387
  %v4515 = vunpack.c.h.b16 %v3387
  %v4516 = vunpack.c.l.b16 %v3388
  %v4517 = vunpack.c.h.b16 %v3388
  %v4518 = vunpack.c.l.b16 %v3389
  %v4519 = vunpack.c.h.b16 %v3389
  %v4520 = vunpack.c.l.b16 %v3390
  %v4521 = vunpack.c.h.b16 %v3390
  %v4522 = vunpack.c.l.b16 %v3391
  %v4523 = vunpack.c.h.b16 %v3391
  %v4524 = vunpack.c.l.b16 %v3392
  %v4525 = vunpack.c.h.b16 %v3392
  %v4526 = vunpack.c.l.b16 %v3393
  %v4527 = vunpack.c.h.b16 %v3393
  %v4528 = vunpack.c.l.b16 %v3394
  %v4529 = vunpack.c.h.b16 %v3394
  %v4530 = vunpack.c.l.b16 %v3395
  %v4531 = vunpack.c.h.b16 %v3395
  %v4532 = vunpack.c.l.b16 %v3396
  %v4533 = vunpack.c.h.b16 %v3396
  %v4534 = vunpack.c.l.b16 %v3397
  %v4535 = vunpack.c.h.b16 %v3397
  %v4536 = vunpack.c.l.b16 %v3398
  %v4537 = vunpack.c.h.b16 %v3398
  %v4538 = vunpack.c.l.b16 %v3399
  %v4539 = vunpack.c.h.b16 %v3399
  %v4540 = vunpack.c.l.b16 %v3400
  %v4541 = vunpack.c.h.b16 %v3400
  %v4542 = vunpack.c.l.b16 %v3401
  %v4543 = vunpack.c.h.b16 %v3401
  %v4544 = vunpack.c.l.b16 %v3402
  %v4545 = vunpack.c.h.b16 %v3402
  %v4546 = vunpack.c.l.b16 %v3403
  %v4547 = vunpack.c.h.b16 %v3403
  %v4548 = vunpack.c.l.b16 %v3404
  %v4549 = vunpack.c.h.b16 %v3404
  %v4550 = vunpack.c.l.b16 %v3405
  %v4551 = vunpack.c.h.b16 %v3405
  %v4552 = vunpack.c.l.b16 %v3406
  %v4553 = vunpack.c.h.b16 %v3406
  %v4554 = vunpack.c.l.b16 %v3407
  %v4555 = vunpack.c.h.b16 %v3407
  %v4556 = vunpack.c.l.b16 %v3408
  %v4557 = vunpack.c.h.b16 %v3408
  %v4558 = vunpack.c.l.b16 %v3409
  %v4559 = vunpack.c.h.b16 %v3409
  %v4560 = vunpack.c.l.b16 %v3410
  %v4561 = vunpack.c.h.b16 %v3410
  %v4562 = vunpack.c.l.b16 %v3411
  %v4563 = vunpack.c.h.b16 %v3411
  %v4564 = vunpack.c.l.b16 %v3412
  %v4565 = vunpack.c.h.b16 %v3412
  %v4566 = vunpack.c.l.b16 %v3413
  %v4567 = vunpack.c.h.b16 %v3413
  %v4568 = vunpack.c.l.b16 %v3414
  %v4569 = vunpack.c.h.b16 %v3414
  %v4570 = vunpack.c.l.b16 %v3415
  %v4571 = vunpack.c.h.b16 %v3415
  %v4572 = vunpack.c.l.b16 %v3416
  %v4573 = vunpack.c.h.b16 %v3416
  %v4574 = vunpack.c.l.b16 %v3417
  %v4575 = vunpack.c.h.b16 %v3417
  %v4576 = vunpack.c.l.b16 %v3418
  %v4577 = vunpack.c.h.b16 %v3418
  %v4578 = vunpack.c.l.b16 %v3419
  %v4579 = vunpack.c.h.b16 %v3419
  %v4580 = vunpack.c.l.b16 %v3420
  %v4581 = vunpack.c.h.b16 %v3420
  %v4582 = vunpack.c.l.b16 %v3421
  %v4583 = vunpack.c.h.b16 %v3421
  %v4584 = vunpack.c.l.b16 %v3422
  %v4585 = vunpack.c.h.b16 %v3422
  %v4586 = vunpack.c.l.b16 %v3423
  %v4587 = vunpack.c.h.b16 %v3423
  %v4588 = vunpack.c.l.b16 %v3424
  %v4589 = vunpack.c.h.b16 %v3424
  %v4590 = vunpack.c.l.b16 %v3425
  %v4591 = vunpack.c.h.b16 %v3425
  %v4592 = vunpack.c.l.b16 %v3426
  %v4593 = vunpack.c.h.b16 %v3426
  %v4594 = vunpack.c.l.b16 %v3427
  %v4595 = vunpack.c.h.b16 %v3427
  %v4596 = vunpack.c.l.b16 %v3428
  %v4597 = vunpack.c.h.b16 %v3428
  %v4598 = vunpack.c.l.b16 %v3429
  %v4599 = vunpack.c.h.b16 %v3429
  %v4600 = vunpack.c.l.b16 %v3430
  %v4601 = vunpack.c.h.b16 %v3430
  %v4602 = vunpack.c.l.b16 %v3431
  %v4603 = vunpack.c.h.b16 %v3431
  %v4604 = vunpack.c.l.b16 %v3432
  %v4605 = vunpack.c.h.b16 %v3432
  %v4606 = vunpack.c.l.b16 %v3433
  %v4607 = vunpack.c.h.b16 %v3433
  %v4608 = vunpack.c.l.b16 %v3434
  %v4609 = vunpack.c.h.b16 %v3434
  %v4610 = vunpack.c.l.b16 %v3435
  %v4611 = vunpack.c.h.b16 %v3435
  %v4612 = vunpack.c.l.b16 %v3436
  %v4613 = vunpack.c.h.b16 %v3436
  %v4614 = vunpack.c.l.b16 %v3437
  %v4615 = vunpack.c.h.b16 %v3437
  %v4616 = vunpack.c.l.b16 %v3438
  %v4617 = vunpack.c.h.b16 %v3438
  %v4618 = vunpack.c.l.b16 %v3439
  %v4619 = vunpack.c.h.b16 %v3439
  %v4620 = vunpack.c.l.b16 %v3440
  %v4621 = vunpack.c.h.b16 %v3440
  %v4622 = vunpack.c.l.b16 %v3441
  %v4623 = vunpack.c.h.b16 %v3441
  %v4624 = vunpack.c.l.b16 %v3442
  %v4625 = vunpack.c.h.b16 %v3442
  %v4626 = vunpack.c.l.b16 %v3443
  %v4627 = vunpack.c.h.b16 %v3443
  %v4628 = vunpack.c.l.b16 %v3444
  %v4629 = vunpack.c.h.b16 %v3444
  %v4630 = vunpack.c.l.b16 %v3445
  %v4631 = vunpack.c.h.b16 %v3445
  %v4632 = vunpack.c.l.b16 %v3446
  %v4633 = vunpack.c.h.b16 %v3446
  %v4634 = vunpack.c.l.b16 %v3447
  %v4635 = vunpack.c.h.b16 %v3447
  %v4636 = vunpack.c.l.b16 %v3448
  %v4637 = vunpack.c.h.b16 %v3448
  %v4638 = vunpack.c.l.b16 %v3449
  %v4639 = vunpack.c.h.b16 %v3449
  %v4640 = vunpack.c.l.b16 %v3450
  %v4641 = vunpack.c.h.b16 %v3450
  %v4642 = vunpack.c.l.b16 %v3451
  %v4643 = vunpack.c.h.b16 %v3451
  %v4644 = vunpack.c.l.b16 %v3452
  %v4645 = vunpack.c.h.b16 %v3452
  %v4646 = vunpack.c.l.b16 %v3453
  %v4647 = vunpack.c.h.b16 %v3453
  %v4648 = vunpack.c.l.b16 %v3454
  %v4649 = vunpack.c.h.b16 %v3454
  %v4650 = vunpack.c.l.b16 %v3455
  %v4651 = vunpack.c.h.b16 %v3455
  %v4652 = vunpack.c.l.b16 %v3456
  %v4653 = vunpack.c.h.b16 %v3456
  %v4654 = vunpack.c.l.b16 %v3457
  %v4655 = vunpack.c.h.b16 %v3457
  %v4656 = vunpack.c.l.b16 %v3458
  %v4657 = vunpack.c.h.b16 %v3458
  %v4658 = vunpack.c.l.b16 %v3459
  %v4659 = vunpack.c.h.b16 %v3459
  %v4660 = vunpack.c.l.b16 %v3460
  %v4661 = vunpack.c.h.b16 %v3460
  %v4662 = vunpack.c.l.b16 %v3461
  %v4663 = vunpack.c.h.b16 %v3461
  %v4664 = vunpack.c.l.b16 %v3462
  %v4665 = vunpack.c.h.b16 %v3462
  %v4666 = vunpack.c.l.b16 %v3463
  %v4667 = vunpack.c.h.b16 %v3463
  %v4668 = vunpack.c.l.b16 %v3464
  %v4669 = vunpack.c.h.b16 %v3464
  %v4670 = vunpack.c.l.b16 %v3465
  %v4671 = vunpack.c.h.b16 %v3465
  %v4672 = vunpack.c.l.b16 %v3466
  %v4673 = vunpack.c.h.b16 %v3466
  %v4674 = vunpack.c.l.b16 %v3467
  %v4675 = vunpack.c.h.b16 %v3467
  %v4676 = vunpack.c.l.b16 %v3468
  %v4677 = vunpack.c.h.b16 %v3468
  %v4678 = vunpack.c.l.b16 %v3469
  %v4679 = vunpack.c.h.b16 %v3469
  %v4680 = vunpack.c.l.b16 %v3470
  %v4681 = vunpack.c.h.b16 %v3470
  %v4682 = vunpack.c.l.b16 %v3471
  %v4683 = vunpack.c.h.b16 %v3471
  %v4684 = vunpack.c.l.b16 %v3472
  %v4685 = vunpack.c.h.b16 %v3472
  %v4686 = vunpack.c.l.b16 %v3473
  %v4687 = vunpack.c.h.b16 %v3473
  %v4688 = vunpack.c.l.b16 %v3474
  %v4689 = vunpack.c.h.b16 %v3474
  %v4690 = vunpack.c.l.b16 %v3475
  %v4691 = vunpack.c.h.b16 %v3475
  %v4692 = vunpack.c.l.b16 %v3476
  %v4693 = vunpack.c.h.b16 %v3476
  %v4694 = vunpack.c.l.b16 %v3477
  %v4695 = vunpack.c.h.b16 %v3477
  %v4696 = vunpack.c.l.b16 %v3478
  %v4697 = vunpack.c.h.b16 %v3478
  %v4698 = vunpack.c.l.b16 %v3479
  %v4699 = vunpack.c.h.b16 %v3479
  %v4700 = vunpack.c.l.b16 %v3480
  %v4701 = vunpack.c.h.b16 %v3480
  %v4702 = vunpack.c.l.b16 %v3481
  %v4703 = vunpack.c.h.b16 %v3481
  %v4704 = vunpack.c.l.b16 %v3482
  %v4705 = vunpack.c.h.b16 %v3482
  %v4706 = vunpack.c.l.b16 %v3483
  %v4707 = vunpack.c.h.b16 %v3483
  %v4708 = vpack.c.b16 %v4072, %v4068
  %v4709 = vpack.c.b16 %v4073, %v4069
  %v4710 = vpack.c.b16 %v4074, %v4070
  %v4711 = vpack.c.b16 %v4075, %v4071
  %v4712 = vpack.c.b16 %v4080, %v4076
  %v4713 = vpack.c.b16 %v4081, %v4077
  %v4714 = vpack.c.b16 %v4082, %v4078
  %v4715 = vpack.c.b16 %v4083, %v4079
  %v4716 = vpack.c.b16 %v4088, %v4084
  %v4717 = vpack.c.b16 %v4089, %v4085
  %v4718 = vpack.c.b16 %v4090, %v4086
  %v4719 = vpack.c.b16 %v4091, %v4087
  %v4720 = vpack.c.b16 %v4096, %v4092
  %v4721 = vpack.c.b16 %v4097, %v4093
  %v4722 = vpack.c.b16 %v4098, %v4094
  %v4723 = vpack.c.b16 %v4099, %v4095
  %v4724 = vpack.c.b16 %v4104, %v4100
  %v4725 = vpack.c.b16 %v4105, %v4101
  %v4726 = vpack.c.b16 %v4106, %v4102
  %v4727 = vpack.c.b16 %v4107, %v4103
  %v4728 = vpack.c.b16 %v4112, %v4108
  %v4729 = vpack.c.b16 %v4113, %v4109
  %v4730 = vpack.c.b16 %v4114, %v4110
  %v4731 = vpack.c.b16 %v4115, %v4111
  %v4732 = vpack.c.b16 %v4120, %v4116
  %v4733 = vpack.c.b16 %v4121, %v4117
  %v4734 = vpack.c.b16 %v4122, %v4118
  %v4735 = vpack.c.b16 %v4123, %v4119
  %v4736 = vpack.c.b16 %v4128, %v4124
  %v4737 = vpack.c.b16 %v4129, %v4125
  %v4738 = vpack.c.b16 %v4130, %v4126
  %v4739 = vpack.c.b16 %v4131, %v4127
  %v4740 = vpack.c.b16 %v4136, %v4132
  %v4741 = vpack.c.b16 %v4137, %v4133
  %v4742 = vpack.c.b16 %v4138, %v4134
  %v4743 = vpack.c.b16 %v4139, %v4135
  %v4744 = vpack.c.b16 %v4144, %v4140
  %v4745 = vpack.c.b16 %v4145, %v4141
  %v4746 = vpack.c.b16 %v4146, %v4142
  %v4747 = vpack.c.b16 %v4147, %v4143
  %v4748 = vpack.c.b16 %v4152, %v4148
  %v4749 = vpack.c.b16 %v4153, %v4149
  %v4750 = vpack.c.b16 %v4154, %v4150
  %v4751 = vpack.c.b16 %v4155, %v4151
  %v4752 = vpack.c.b16 %v4160, %v4156
  %v4753 = vpack.c.b16 %v4161, %v4157
  %v4754 = vpack.c.b16 %v4162, %v4158
  %v4755 = vpack.c.b16 %v4163, %v4159
  %v4756 = vpack.c.b16 %v4168, %v4164
  %v4757 = vpack.c.b16 %v4169, %v4165
  %v4758 = vpack.c.b16 %v4170, %v4166
  %v4759 = vpack.c.b16 %v4171, %v4167
  %v4760 = vpack.c.b16 %v4176, %v4172
  %v4761 = vpack.c.b16 %v4177, %v4173
  %v4762 = vpack.c.b16 %v4178, %v4174
  %v4763 = vpack.c.b16 %v4179, %v4175
  %v4764 = vpack.c.b16 %v4184, %v4180
  %v4765 = vpack.c.b16 %v4185, %v4181
  %v4766 = vpack.c.b16 %v4186, %v4182
  %v4767 = vpack.c.b16 %v4187, %v4183
  %v4768 = vpack.c.b16 %v4192, %v4188
  %v4769 = vpack.c.b16 %v4193, %v4189
  %v4770 = vpack.c.b16 %v4194, %v4190
  %v4771 = vpack.c.b16 %v4195, %v4191
  %v4772 = vpack.c.b16 %v4200, %v4196
  %v4773 = vpack.c.b16 %v4201, %v4197
  %v4774 = vpack.c.b16 %v4202, %v4198
  %v4775 = vpack.c.b16 %v4203, %v4199
  %v4776 = vpack.c.b16 %v4208, %v4204
  %v4777 = vpack.c.b16 %v4209, %v4205
  %v4778 = vpack.c.b16 %v4210, %v4206
  %v4779 = vpack.c.b16 %v4211, %v4207
  %v4780 = vpack.c.b16 %v4216, %v4212
  %v4781 = vpack.c.b16 %v4217, %v4213
  %v4782 = vpack.c.b16 %v4218, %v4214
  %v4783 = vpack.c.b16 %v4219, %v4215
  %v4784 = vpack.c.b16 %v4224, %v4220
  %v4785 = vpack.c.b16 %v4225, %v4221
  %v4786 = vpack.c.b16 %v4226, %v4222
  %v4787 = vpack.c.b16 %v4227, %v4223
  %v4788 = vpack.c.b16 %v4232, %v4228
  %v4789 = vpack.c.b16 %v4233, %v4229
  %v4790 = vpack.c.b16 %v4234, %v4230
  %v4791 = vpack.c.b16 %v4235, %v4231
  %v4792 = vpack.c.b16 %v4240, %v4236
  %v4793 = vpack.c.b16 %v4241, %v4237
  %v4794 = vpack.c.b16 %v4242, %v4238
  %v4795 = vpack.c.b16 %v4243, %v4239
  %v4796 = vpack.c.b16 %v4248, %v4244
  %v4797 = vpack.c.b16 %v4249, %v4245
  %v4798 = vpack.c.b16 %v4250, %v4246
  %v4799 = vpack.c.b16 %v4251, %v4247
  %v4800 = vpack.c.b16 %v4256, %v4252
  %v4801 = vpack.c.b16 %v4257, %v4253
  %v4802 = vpack.c.b16 %v4258, %v4254
  %v4803 = vpack.c.b16 %v4259, %v4255
  %v4804 = vpack.c.b16 %v4264, %v4260
  %v4805 = vpack.c.b16 %v4265, %v4261
  %v4806 = vpack.c.b16 %v4266, %v4262
  %v4807 = vpack.c.b16 %v4267, %v4263
  %v4808 = vpack.c.b16 %v4272, %v4268
  %v4809 = vpack.c.b16 %v4273, %v4269
  %v4810 = vpack.c.b16 %v4274, %v4270
  %v4811 = vpack.c.b16 %v4275, %v4271
  %v4812 = vpack.c.b16 %v4280, %v4276
  %v4813 = vpack.c.b16 %v4281, %v4277
  %v4814 = vpack.c.b16 %v4282, %v4278
  %v4815 = vpack.c.b16 %v4283, %v4279
  %v4816 = vpack.c.b16 %v4288, %v4284
  %v4817 = vpack.c.b16 %v4289, %v4285
  %v4818 = vpack.c.b16 %v4290, %v4286
  %v4819 = vpack.c.b16 %v4291, %v4287
  %v4820 = vpack.c.b16 %v4296, %v4292
  %v4821 = vpack.c.b16 %v4297, %v4293
  %v4822 = vpack.c.b16 %v4298, %v4294
  %v4823 = vpack.c.b16 %v4299, %v4295
  %v4824 = vpack.c.b16 %v4304, %v4300
  %v4825 = vpack.c.b16 %v4305, %v4301
  %v4826 = vpack.c.b16 %v4306, %v4302
  %v4827 = vpack.c.b16 %v4307, %v4303
  %v4828 = vpack.c.b16 %v4312, %v4308
  %v4829 = vpack.c.b16 %v4313, %v4309
  %v4830 = vpack.c.b16 %v4314, %v4310
  %v4831 = vpack.c.b16 %v4315, %v4311
  %v4832 = vpack.c.b16 %v4320, %v4316
  %v4833 = vpack.c.b16 %v4321, %v4317
  %v4834 = vpack.c.b16 %v4322, %v4318
  %v4835 = vpack.c.b16 %v4323, %v4319
  %v4836 = vpack.c.b16 %v4328, %v4324
  %v4837 = vpack.c.b16 %v4329, %v4325
  %v4838 = vpack.c.b16 %v4330, %v4326
  %v4839 = vpack.c.b16 %v4331, %v4327
  %v4840 = vpack.c.b16 %v4336, %v4332
  %v4841 = vpack.c.b16 %v4337, %v4333
  %v4842 = vpack.c.b16 %v4338, %v4334
  %v4843 = vpack.c.b16 %v4339, %v4335
  %v4844 = vpack.c.b16 %v4344, %v4340
  %v4845 = vpack.c.b16 %v4345, %v4341
  %v4846 = vpack.c.b16 %v4346, %v4342
  %v4847 = vpack.c.b16 %v4347, %v4343
  %v4848 = vpack.c.b16 %v4352, %v4348
  %v4849 = vpack.c.b16 %v4353, %v4349
  %v4850 = vpack.c.b16 %v4354, %v4350
  %v4851 = vpack.c.b16 %v4355, %v4351
  %v4852 = vpack.c.b16 %v4360, %v4356
  %v4853 = vpack.c.b16 %v4361, %v4357
  %v4854 = vpack.c.b16 %v4362, %v4358
  %v4855 = vpack.c.b16 %v4363, %v4359
  %v4856 = vpack.c.b16 %v4368, %v4364
  %v4857 = vpack.c.b16 %v4369, %v4365
  %v4858 = vpack.c.b16 %v4370, %v4366
  %v4859 = vpack.c.b16 %v4371, %v4367
  %v4860 = vpack.c.b16 %v4376, %v4372
  %v4861 = vpack.c.b16 %v4377, %v4373
  %v4862 = vpack.c.b16 %v4378, %v4374
  %v4863 = vpack.c.b16 %v4379, %v4375
  %v4864 = vpack.c.b16 %v4384, %v4380
  %v4865 = vpack.c.b16 %v4385, %v4381
  %v4866 = vpack.c.b16 %v4386, %v4382
  %v4867 = vpack.c.b16 %v4387, %v4383
  %v4868 = vpack.c.b16 %v4392, %v4388
  %v4869 = vpack.c.b16 %v4393, %v4389
  %v4870 = vpack.c.b16 %v4394, %v4390
  %v4871 = vpack.c.b16 %v4395, %v4391
  %v4872 = vpack.c.b16 %v4400, %v4396
  %v4873 = vpack.c.b16 %v4401, %v4397
  %v4874 = vpack.c.b16 %v4402, %v4398
  %v4875 = vpack.c.b16 %v4403, %v4399
  %v4876 = vpack.c.b16 %v4408, %v4404
  %v4877 = vpack.c.b16 %v4409, %v4405
  %v4878 = vpack.c.b16 %v4410, %v4406
  %v4879 = vpack.c.b16 %v4411, %v4407
  %v4880 = vpack.c.b16 %v4416, %v4412
  %v4881 = vpack.c.b16 %v4417, %v4413
  %v4882 = vpack.c.b16 %v4418, %v4414
  %v4883 = vpack.c.b16 %v4419, %v4415
  %v4884 = vpack.c.b16 %v4424, %v4420
  %v4885 = vpack.c.b16 %v4425, %v4421
  %v4886 = vpack.c.b16 %v4426, %v4422
  %v4887 = vpack.c.b16 %v4427, %v4423
  %v4888 = vpack.c.b16 %v4432, %v4428
  %v4889 = vpack.c.b16 %v4433, %v4429
  %v4890 = vpack.c.b16 %v4434, %v4430
  %v4891 = vpack.c.b16 %v4435, %v4431
  %v4892 = vpack.c.b16 %v4440, %v4436
  %v4893 = vpack.c.b16 %v4441, %v4437
  %v4894 = vpack.c.b16 %v4442, %v4438
  %v4895 = vpack.c.b16 %v4443, %v4439
  %v4896 = vpack.c.b16 %v4448, %v4444
  %v4897 = vpack.c.b16 %v4449, %v4445
  %v4898 = vpack.c.b16 %v4450, %v4446
  %v4899 = vpack.c.b16 %v4451, %v4447
  %v4900 = vpack.c.b16 %v4456, %v4452
  %v4901 = vpack.c.b16 %v4457, %v4453
  %v4902 = vpack.c.b16 %v4458, %v4454
  %v4903 = vpack.c.b16 %v4459, %v4455
  %v4904 = vpack.c.b16 %v4464, %v4460
  %v4905 = vpack.c.b16 %v4465, %v4461
  %v4906 = vpack.c.b16 %v4466, %v4462
  %v4907 = vpack.c.b16 %v4467, %v4463
  %v4908 = vpack.c.b16 %v4472, %v4468
  %v4909 = vpack.c.b16 %v4473, %v4469
  %v4910 = vpack.c.b16 %v4474, %v4470
  %v4911 = vpack.c.b16 %v4475, %v4471
  %v4912 = vpack.c.b16 %v4480, %v4476
  %v4913 = vpack.c.b16 %v4481, %v4477
  %v4914 = vpack.c.b16 %v4482, %v4478
  %v4915 = vpack.c.b16 %v4483, %v4479
  %v4916 = vpack.c.b16 %v4488, %v4484
  %v4917 = vpack.c.b16 %v4489, %v4485
  %v4918 = vpack.c.b16 %v4490, %v4486
  %v4919 = vpack.c.b16 %v4491, %v4487
  %v4920 = vpack.c.b16 %v4496, %v4492
  %v4921 = vpack.c.b16 %v4497, %v4493
  %v4922 = vpack.c.b16 %v4498, %v4494
  %v4923 = vpack.c.b16 %v4499, %v4495
  %v4924 = vpack.c.b16 %v4504, %v4500
  %v4925 = vpack.c.b16 %v4505, %v4501
  %v4926 = vpack.c.b16 %v4506, %v4502
  %v4927 = vpack.c.b16 %v4507, %v4503
  %v4928 = vpack.c.b16 %v4512, %v4508
  %v4929 = vpack.c.b16 %v4513, %v4509
  %v4930 = vpack.c.b16 %v4514, %v4510
  %v4931 = vpack.c.b16 %v4515, %v4511
  %v4932 = vpack.c.b16 %v4520, %v4516
  %v4933 = vpack.c.b16 %v4521, %v4517
  %v4934 = vpack.c.b16 %v4522, %v4518
  %v4935 = vpack.c.b16 %v4523, %v4519
  %v4936 = vpack.c.b16 %v4528, %v4524
  %v4937 = vpack.c.b16 %v4529, %v4525
  %v4938 = vpack.c.b16 %v4530, %v4526
  %v4939 = vpack.c.b16 %v4531, %v4527
  %v4940 = vpack.c.b16 %v4536, %v4532
  %v4941 = vpack.c.b16 %v4537, %v4533
  %v4942 = vpack.c.b16 %v4538, %v4534
  %v4943 = vpack.c.b16 %v4539, %v4535
  %v4944 = vpack.c.b16 %v4544, %v4540
  %v4945 = vpack.c.b16 %v4545, %v4541
  %v4946 = vpack.c.b16 %v4546, %v4542
  %v4947 = vpack.c.b16 %v4547, %v4543
  %v4948 = vpack.c.b16 %v4552, %v4548
  %v4949 = vpack.c.b16 %v4553, %v4549
  %v4950 = vpack.c.b16 %v4554, %v4550
  %v4951 = vpack.c.b16 %v4555, %v4551
  %v4952 = vpack.c.b16 %v4560, %v4556
  %v4953 = vpack.c.b16 %v4561, %v4557
  %v4954 = vpack.c.b16 %v4562, %v4558
  %v4955 = vpack.c.b16 %v4563, %v4559
  %v4956 = vpack.c.b16 %v4568, %v4564
  %v4957 = vpack.c.b16 %v4569, %v4565
  %v4958 = vpack.c.b16 %v4570, %v4566
  %v4959 = vpack.c.b16 %v4571, %v4567
  %v4960 = vpack.c.b16 %v4576, %v4572
  %v4961 = vpack.c.b16 %v4577, %v4573
  %v4962 = vpack.c.b16 %v4578, %v4574
  %v4963 = vpack.c.b16 %v4579, %v4575
  %v4964 = vpack.c.b16 %v4584, %v4580
  %v4965 = vpack.c.b16 %v4585, %v4581
  %v4966 = vpack.c.b16 %v4586, %v4582
  %v4967 = vpack.c.b16 %v4587, %v4583
  %v4968 = vpack.c.b16 %v4592, %v4588
  %v4969 = vpack.c.b16 %v4593, %v4589
  %v4970 = vpack.c.b16 %v4594, %v4590
  %v4971 = vpack.c.b16 %v4595, %v4591
  %v4972 = vpack.c.b16 %v4600, %v4596
  %v4973 = vpack.c.b16 %v4601, %v4597
  %v4974 = vpack.c.b16 %v4602, %v4598
  %v4975 = vpack.c.b16 %v4603, %v4599
  %v4976 = vpack.c.b16 %v4608, %v4604
  %v4977 = vpack.c.b16 %v4609, %v4605
  %v4978 = vpack.c.b16 %v4610, %v4606
  %v4979 = vpack.c.b16 %v4611, %v4607
  %v4980 = vpack.c.b16 %v4616, %v4612
  %v4981 = vpack.c.b16 %v4617, %v4613
  %v4982 = vpack.c.b16 %v4618, %v4614
  %v4983 = vpack.c.b16 %v4619, %v4615
  %v4984 = vpack.c.b16 %v4624, %v4620
  %v4985 = vpack.c.b16 %v4625, %v4621
  %v4986 = vpack.c.b16 %v4626, %v4622
  %v4987 = vpack.c.b16 %v4627, %v4623
  %v4988 = vpack.c.b16 %v4632, %v4628
  %v4989 = vpack.c.b16 %v4633, %v4629
  %v4990 = vpack.c.b16 %v4634, %v4630
  %v4991 = vpack.c.b16 %v4635, %v4631
  %v4992 = vpack.c.b16 %v4640, %v4636
  %v4993 = vpack.c.b16 %v4641, %v4637
  %v4994 = vpack.c.b16 %v4642, %v4638
  %v4995 = vpack.c.b16 %v4643, %v4639
  %v4996 = vpack.c.b16 %v4648, %v4644
  %v4997 = vpack.c.b16 %v4649, %v4645
  %v4998 = vpack.c.b16 %v4650, %v4646
  %v4999 = vpack.c.b16 %v4651, %v4647
  %v5000 = vpack.c.b16 %v4656, %v4652
  %v5001 = vpack.c.b16 %v4657, %v4653
  %v5002 = vpack.c.b16 %v4658, %v4654
  %v5003 = vpack.c.b16 %v4659, %v4655
  %v5004 = vpack.c.b16 %v4664, %v4660
  %v5005 = vpack.c.b16 %v4665, %v4661
  %v5006 = vpack.c.b16 %v4666, %v4662
  %v5007 = vpack.c.b16 %v4667, %v4663
  %v5008 = vpack.c.b16 %v4672, %v4668
  %v5009 = vpack.c.b16 %v4673, %v4669
  %v5010 = vpack.c.b16 %v4674, %v4670
  %v5011 = vpack.c.b16 %v4675, %v4671
  %v5012 = vpack.c.b16 %v4680, %v4676
  %v5013 = vpack.c.b16 %v4681, %v4677
  %v5014 = vpack.c.b16 %v4682, %v4678
  %v5015 = vpack.c.b16 %v4683, %v4679
  %v5016 = vpack.c.b16 %v4688, %v4684
  %v5017 = vpack.c.b16 %v4689, %v4685
  %v5018 = vpack.c.b16 %v4690, %v4686
  %v5019 = vpack.c.b16 %v4691, %v4687
  %v5020 = vpack.c.b16 %v4696, %v4692
  %v5021 = vpack.c.b16 %v4697, %v4693
  %v5022 = vpack.c.b16 %v4698, %v4694
  %v5023 = vpack.c.b16 %v4699, %v4695
  %v5024 = vpack.c.b16 %v4704, %v4700
  %v5025 = vpack.c.b16 %v4705, %v4701
  %v5026 = vpack.c.b16 %v4706, %v4702
  %v5027 = vpack.c.b16 %v4707, %v4703
  %5348 = vmatprep.subr.bf16.mxu0 %v4709
  %5349 = vmatpush1.bf16.msra.mxu0 %v4708
  %5350 = vmatprep.subr.bf16.mxu0 %v4713
  %5351 = vmatpush1.bf16.msra.mxu0 %v4712
  %5352 = vmatprep.subr.bf16.mxu0 %v4717
  %5353 = vmatpush1.bf16.msra.mxu0 %v4716
  %5354 = vmatprep.subr.bf16.mxu0 %v4721
  %5355 = vmatpush1.bf16.msra.mxu0 %v4720
  %5356 = vmatprep.subr.bf16.mxu0 %v4725
  %5357 = vmatpush1.bf16.msra.mxu0 %v4724
  %5358 = vmatprep.subr.bf16.mxu0 %v4729
  %5359 = vmatpush1.bf16.msra.mxu0 %v4728
  %5360 = vmatprep.subr.bf16.mxu0 %v4733
  %5361 = vmatpush1.bf16.msra.mxu0 %v4732
  %5362 = vmatprep.subr.bf16.mxu0 %v4737
  %5363 = vmatpush1.bf16.msra.mxu0 %v4736
  %5364 = vmatprep.subr.bf16.mxu0 %v4741
  %5365 = vmatpush1.bf16.msra.mxu0 %v4740
  %5366 = vmatprep.subr.bf16.mxu0 %v4745
  %5367 = vmatpush1.bf16.msra.mxu0 %v4744
  %5368 = vmatprep.subr.bf16.mxu0 %v4749
  %5369 = vmatpush1.bf16.msra.mxu0 %v4748
  %5370 = vmatprep.subr.bf16.mxu0 %v4753
  %5371 = vmatpush1.bf16.msra.mxu0 %v4752
  %5372 = vmatprep.subr.bf16.mxu0 %v4757
  %5373 = vmatpush1.bf16.msra.mxu0 %v4756
  %5374 = vmatprep.subr.bf16.mxu0 %v4761
  %5375 = vmatpush1.bf16.msra.mxu0 %v4760
  %5376 = vmatprep.subr.bf16.mxu0 %v4765
  %5377 = vmatpush1.bf16.msra.mxu0 %v4764
  %5378 = vmatprep.subr.bf16.mxu0 %v4769
  %5379 = vmatpush1.bf16.msra.mxu0 %v4768
  %5380 = vmatprep.mubr.bf16.mxu0 %v119
  %5381 = vmatmul.mubr.bf16.gmra.mrb[0].mxu0 %v107
  %v5382 = vpop.f32.mrb[0].mxu0
  %v5383 = vadd.f32 0.0, %v5382
  %v5384 = vpop.f32.mrb[0].mxu0
  %v5385 = vadd.f32 0.0, %v5384
  %v5386 = vpop.f32.mrb[0].mxu0
  %v5387 = vadd.f32 0.0, %v5386
  %v5388 = vpop.f32.mrb[0].mxu0
  %v5389 = vadd.f32 0.0, %v5388
  %5390 = vmatprep.mubr.bf16.mxu0 %v135
  %5391 = vmatmul.mubr.bf16.gmra.mrb[0].mxu0 %v127
  %v5392 = vpop.f32.mrb[0].mxu0
  %v5393 = vadd.f32 0.0, %v5392
  %v5394 = vpop.f32.mrb[0].mxu0
  %v5395 = vadd.f32 0.0, %v5394
  %v5396 = vpop.f32.mrb[0].mxu0
  %v5397 = vadd.f32 0.0, %v5396
  %v5398 = vpop.f32.mrb[0].mxu0
  %v5399 = vadd.f32 0.0, %v5398
  %5400 = vmatprep.mubr.bf16.mxu0 %v151
  %5401 = vmatmul.mubr.bf16.gmra.mrb[0].mxu0 %v143
  %v5402 = vpop.f32.mrb[0].mxu0
  %v5403 = vadd.f32 0.0, %v5402
  %v5404 = vpop.f32.mrb[0].mxu0
  %v5405 = vadd.f32 0.0, %v5404
  %v5406 = vpop.f32.mrb[0].mxu0
  %v5407 = vadd.f32 0.0, %v5406
  %v5408 = vpop.f32.mrb[0].mxu0
  %v5409 = vadd.f32 0.0, %v5408
  %5410 = vmatprep.mubr.bf16.mxu0 %v167
  %5411 = vmatmul.mubr.bf16.gmra.mrb[0].mxu0 %v159
  %v5412 = vpop.f32.mrb[0].mxu0
  %v5413 = vadd.f32 0.0, %v5412
  %v5414 = vpop.f32.mrb[0].mxu0
  %v5415 = vadd.f32 0.0, %v5414
  %v5416 = vpop.f32.mrb[0].mxu0
  %v5417 = vadd.f32 0.0, %v5416
  %v5418 = vpop.f32.mrb[0].mxu0
  %v5419 = vadd.f32 0.0, %v5418
  %5420 = vmatprep.mubr.bf16.mxu0 %v173
  %5421 = vmatmul.mubr.bf16.gmra.mrb[0].mxu0 %v170
  %v5422 = vpop.f32.mrb[0].mxu0
  %v5423 = vadd.f32 0.0, %v5422
  %v5424 = vpop.f32.mrb[0].mxu0
  %v5425 = vadd.f32 0.0, %v5424
  %v5426 = vpop.f32.mrb[0].mxu0
  %v5427 = vpop.f32.mrb[0].mxu0
  %5428 = vdwg.mxu0
  %5429 = vmatprep.subr.bf16.mxu0 %v4773
  %5430 = vmatpush1.bf16.msra.mxu0 %v4772
  %5431 = vmatprep.subr.bf16.mxu0 %v4777
  %5432 = vmatpush1.bf16.msra.mxu0 %v4776
  %5433 = vmatprep.subr.bf16.mxu0 %v4781
  %5434 = vmatpush1.bf16.msra.mxu0 %v4780
  %5435 = vmatprep.subr.bf16.mxu0 %v4785
  %5436 = vmatpush1.bf16.msra.mxu0 %v4784
  %5437 = vmatprep.subr.bf16.mxu0 %v4789
  %5438 = vmatpush1.bf16.msra.mxu0 %v4788
  %5439 = vmatprep.subr.bf16.mxu0 %v4793
  %5440 = vmatpush1.bf16.msra.mxu0 %v4792
  %5441 = vmatprep.subr.bf16.mxu0 %v4797
  %5442 = vmatpush1.bf16.msra.mxu0 %v4796
  %5443 = vmatprep.subr.bf16.mxu0 %v4801
  %5444 = vmatpush1.bf16.msra.mxu0 %v4800
  %5445 = vmatprep.subr.bf16.mxu0 %v4805
  %5446 = vmatpush1.bf16.msra.mxu0 %v4804
  %5447 = vmatprep.subr.bf16.mxu0 %v4809
  %5448 = vmatpush1.bf16.msra.mxu0 %v4808
  %5449 = vmatprep.subr.bf16.mxu0 %v4813
  %5450 = vmatpush1.bf16.msra.mxu0 %v4812
  %5451 = vmatprep.subr.bf16.mxu0 %v4817
  %5452 = vmatpush1.bf16.msra.mxu0 %v4816
  %5453 = vmatprep.subr.bf16.mxu0 %v4821
  %5454 = vmatpush1.bf16.msra.mxu0 %v4820
  %5455 = vmatprep.subr.bf16.mxu0 %v4825
  %5456 = vmatpush1.bf16.msra.mxu0 %v4824
  %5457 = vmatprep.subr.bf16.mxu0 %v4829
  %5458 = vmatpush1.bf16.msra.mxu0 %v4828
  %5459 = vmatprep.subr.bf16.mxu0 %v4833
  %5460 = vmatpush1.bf16.msra.mxu0 %v4832
  %5461 = vmatprep.mubr.bf16.mxu0 %v3507
  %5462 = vmatmul.mubr.bf16.gmra.mrb[0].mxu0 %v3495
  %v5463 = vpop.f32.mrb[0].mxu0
  %v5464 = vadd.f32 %v5383, %v5463
  %v5465 = vpop.f32.mrb[0].mxu0
  %v5466 = vadd.f32 %v5385, %v5465
  %v5467 = vpop.f32.mrb[0].mxu0
  %v5468 = vadd.f32 %v5387, %v5467
  %v5469 = vpop.f32.mrb[0].mxu0
  %v5470 = vadd.f32 %v5389, %v5469
  %5471 = vmatprep.mubr.bf16.mxu0 %v3571
  %5472 = vmatmul.mubr.bf16.gmra.mrb[0].mxu0 %v3563
  %v5473 = vpop.f32.mrb[0].mxu0
  %v5474 = vadd.f32 %v5393, %v5473
  %v5475 = vpop.f32.mrb[0].mxu0
  %v5476 = vadd.f32 %v5395, %v5475
  %v5477 = vpop.f32.mrb[0].mxu0
  %v5478 = vadd.f32 %v5397, %v5477
  %v5479 = vpop.f32.mrb[0].mxu0
  %v5480 = vadd.f32 %v5399, %v5479
  %5481 = vmatprep.mubr.bf16.mxu0 %v3619
  %5482 = vmatmul.mubr.bf16.gmra.mrb[0].mxu0 %v3611
  %v5483 = vpop.f32.mrb[0].mxu0
  %v5484 = vadd.f32 %v5403, %v5483
  %v5485 = vpop.f32.mrb[0].mxu0
  %v5486 = vadd.f32 %v5405, %v5485
  %v5487 = vpop.f32.mrb[0].mxu0
  %v5488 = vadd.f32 %v5407, %v5487
  %v5489 = vpop.f32.mrb[0].mxu0
  %v5490 = vadd.f32 %v5409, %v5489
  %5491 = vmatprep.mubr.bf16.mxu0 %v3667
  %5492 = vmatmul.mubr.bf16.gmra.mrb[0].mxu0 %v3659
  %v5493 = vpop.f32.mrb[0].mxu0
  %v5494 = vadd.f32 %v5413, %v5493
  %v5495 = vpop.f32.mrb[0].mxu0
  %v5496 = vadd.f32 %v5415, %v5495
  %v5497 = vpop.f32.mrb[0].mxu0
  %v5498 = vadd.f32 %v5417, %v5497
  %v5499 = vpop.f32.mrb[0].mxu0
  %v5500 = vadd.f32 %v5419, %v5499
  %5501 = vmatprep.mubr.bf16.mxu0 %v3705
  %5502 = vmatmul.mubr.bf16.gmra.mrb[0].mxu0 %v3702
  %v5503 = vpop.f32.mrb[0].mxu0
  %v5504 = vadd.f32 %v5423, %v5503
  %v5505 = vpop.f32.mrb[0].mxu0
  %v5506 = vadd.f32 %v5425, %v5505
  %v5507 = vpop.f32.mrb[0].mxu0
  %v5508 = vpop.f32.mrb[0].mxu0
  %5509 = vdwg.mxu0
  %5510 = vmatprep.subr.bf16.mxu0 %v4837
  %5511 = vmatpush1.bf16.msra.mxu0 %v4836
  %5512 = vmatprep.subr.bf16.mxu0 %v4841
  %5513 = vmatpush1.bf16.msra.mxu0 %v4840
  %5514 = vmatprep.subr.bf16.mxu0 %v4845
  %5515 = vmatpush1.bf16.msra.mxu0 %v4844
  %5516 = vmatprep.subr.bf16.mxu0 %v4849
  %5517 = vmatpush1.bf16.msra.mxu0 %v4848
  %5518 = vmatprep.subr.bf16.mxu0 %v4853
  %5519 = vmatpush1.bf16.msra.mxu0 %v4852
  %5520 = vmatprep.subr.bf16.mxu0 %v4857
  %5521 = vmatpush1.bf16.msra.mxu0 %v4856
  %5522 = vmatprep.subr.bf16.mxu0 %v4861
  %5523 = vmatpush1.bf16.msra.mxu0 %v4860
  %5524 = vmatprep.subr.bf16.mxu0 %v4865
  %5525 = vmatpush1.bf16.msra.mxu0 %v4864
  %5526 = vmatprep.subr.bf16.mxu0 %v4869
  %5527 = vmatpush1.bf16.msra.mxu0 %v4868
  %5528 = vmatprep.subr.bf16.mxu0 %v4873
  %5529 = vmatpush1.bf16.msra.mxu0 %v4872
  %5530 = vmatprep.subr.bf16.mxu0 %v4877
  %5531 = vmatpush1.bf16.msra.mxu0 %v4876
  %5532 = vmatprep.subr.bf16.mxu0 %v4881
  %5533 = vmatpush1.bf16.msra.mxu0 %v4880
  %5534 = vmatprep.subr.bf16.mxu0 %v4885
  %5535 = vmatpush1.bf16.msra.mxu0 %v4884
  %5536 = vmatprep.subr.bf16.mxu0 %v4889
  %5537 = vmatpush1.bf16.msra.mxu0 %v4888
  %5538 = vmatprep.subr.bf16.mxu0 %v4893
  %5539 = vmatpush1.bf16.msra.mxu0 %v4892
  %5540 = vmatprep.subr.bf16.mxu0 %v4897
  %5541 = vmatpush1.bf16.msra.mxu0 %v4896
  %5542 = vmatprep.mubr.bf16.mxu0 %v3531
  %5543 = vmatmul.mubr.bf16.gmra.mrb[0].mxu0 %v3519
  %v5544 = vpop.f32.mrb[0].mxu0
  %v5545 = vadd.f32 %v5464, %v5544
  %v5546 = vpop.f32.mrb[0].mxu0
  %v5547 = vadd.f32 %v5466, %v5546
  %v5548 = vpop.f32.mrb[0].mxu0
  %v5549 = vadd.f32 %v5468, %v5548
  %v5550 = vpop.f32.mrb[0].mxu0
  %v5551 = vadd.f32 %v5470, %v5550
  %5552 = vmatprep.mubr.bf16.mxu0 %v3587
  %5553 = vmatmul.mubr.bf16.gmra.mrb[0].mxu0 %v3579
  %v5554 = vpop.f32.mrb[0].mxu0
  %v5555 = vadd.f32 %v5474, %v5554
  %v5556 = vpop.f32.mrb[0].mxu0
  %v5557 = vadd.f32 %v5476, %v5556
  %v5558 = vpop.f32.mrb[0].mxu0
  %v5559 = vadd.f32 %v5478, %v5558
  %v5560 = vpop.f32.mrb[0].mxu0
  %v5561 = vadd.f32 %v5480, %v5560
  %5562 = vmatprep.mubr.bf16.mxu0 %v3635
  %5563 = vmatmul.mubr.bf16.gmra.mrb[0].mxu0 %v3627
  %v5564 = vpop.f32.mrb[0].mxu0
  %v5565 = vadd.f32 %v5484, %v5564
  %v5566 = vpop.f32.mrb[0].mxu0
  %v5567 = vadd.f32 %v5486, %v5566
  %v5568 = vpop.f32.mrb[0].mxu0
  %v5569 = vadd.f32 %v5488, %v5568
  %v5570 = vpop.f32.mrb[0].mxu0
  %v5571 = vadd.f32 %v5490, %v5570
  %5572 = vmatprep.mubr.bf16.mxu0 %v3683
  %5573 = vmatmul.mubr.bf16.gmra.mrb[0].mxu0 %v3675
  %v5574 = vpop.f32.mrb[0].mxu0
  %v5575 = vadd.f32 %v5494, %v5574
  %v5576 = vpop.f32.mrb[0].mxu0
  %v5577 = vadd.f32 %v5496, %v5576
  %v5578 = vpop.f32.mrb[0].mxu0
  %v5579 = vadd.f32 %v5498, %v5578
  %v5580 = vpop.f32.mrb[0].mxu0
  %v5581 = vadd.f32 %v5500, %v5580
  %5582 = vmatprep.mubr.bf16.mxu0 %v3711
  %5583 = vmatmul.mubr.bf16.gmra.mrb[0].mxu0 %v3708
  %v5584 = vpop.f32.mrb[0].mxu0
  %v5585 = vadd.f32 %v5504, %v5584
  %v5586 = vpop.f32.mrb[0].mxu0
  %v5587 = vadd.f32 %v5506, %v5586
  %v5588 = vpop.f32.mrb[0].mxu0
  %v5589 = vpop.f32.mrb[0].mxu0
  %5590 = vdwg.mxu0
  %5591 = vmatprep.subr.bf16.mxu0 %v4901
  %5592 = vmatpush1.bf16.msra.mxu0 %v4900
  %5593 = vmatprep.subr.bf16.mxu0 %v4905
  %5594 = vmatpush1.bf16.msra.mxu0 %v4904
  %5595 = vmatprep.subr.bf16.mxu0 %v4909
  %5596 = vmatpush1.bf16.msra.mxu0 %v4908
  %5597 = vmatprep.subr.bf16.mxu0 %v4913
  %5598 = vmatpush1.bf16.msra.mxu0 %v4912
  %5599 = vmatprep.subr.bf16.mxu0 %v4917
  %5600 = vmatpush1.bf16.msra.mxu0 %v4916
  %5601 = vmatprep.subr.bf16.mxu0 %v4921
  %5602 = vmatpush1.bf16.msra.mxu0 %v4920
  %5603 = vmatprep.subr.bf16.mxu0 %v4925
  %5604 = vmatpush1.bf16.msra.mxu0 %v4924
  %5605 = vmatprep.subr.bf16.mxu0 %v4929
  %5606 = vmatpush1.bf16.msra.mxu0 %v4928
  %5607 = vmatprep.subr.bf16.mxu0 %v4933
  %5608 = vmatpush1.bf16.msra.mxu0 %v4932
  %5609 = vmatprep.subr.bf16.mxu0 %v4937
  %5610 = vmatpush1.bf16.msra.mxu0 %v4936
  %5611 = vmatprep.subr.bf16.mxu0 %v4941
  %5612 = vmatpush1.bf16.msra.mxu0 %v4940
  %5613 = vmatprep.subr.bf16.mxu0 %v4945
  %5614 = vmatpush1.bf16.msra.mxu0 %v4944
  %5615 = vmatprep.subr.bf16.mxu0 %v4949
  %5616 = vmatpush1.bf16.msra.mxu0 %v4948
  %5617 = vmatprep.subr.bf16.mxu0 %v4953
  %5618 = vmatpush1.bf16.msra.mxu0 %v4952
  %5619 = vmatprep.subr.bf16.mxu0 %v4957
  %5620 = vmatpush1.bf16.msra.mxu0 %v4956
  %5621 = vmatprep.subr.bf16.mxu0 %v4961
  %5622 = vmatpush1.bf16.msra.mxu0 %v4960
  %5623 = vmatprep.mubr.bf16.mxu0 %v293
  %5624 = vmatmul.mubr.bf16.gmra.mrb[0].mxu0 %v281
  %v5625 = vpop.f32.mrb[0].mxu0
  %v5626 = vadd.f32 %v5545, %v5625
  %v5627 = vpop.f32.mrb[0].mxu0
  %v5628 = vadd.f32 %v5547, %v5627
  %v5629 = vpop.f32.mrb[0].mxu0
  %v5630 = vadd.f32 %v5549, %v5629
  %v5631 = vpop.f32.mrb[0].mxu0
  %v5632 = vadd.f32 %v5551, %v5631
  %5633 = vmatprep.mubr.bf16.mxu0 %v309
  %5634 = vmatmul.mubr.bf16.gmra.mrb[0].mxu0 %v301
  %v5635 = vpop.f32.mrb[0].mxu0
  %v5636 = vadd.f32 %v5555, %v5635
  %v5637 = vpop.f32.mrb[0].mxu0
  %v5638 = vadd.f32 %v5557, %v5637
  %v5639 = vpop.f32.mrb[0].mxu0
  %v5640 = vadd.f32 %v5559, %v5639
  %v5641 = vpop.f32.mrb[0].mxu0
  %v5642 = vadd.f32 %v5561, %v5641
  %5643 = vmatprep.mubr.bf16.mxu0 %v325
  %5644 = vmatmul.mubr.bf16.gmra.mrb[0].mxu0 %v317
  %v5645 = vpop.f32.mrb[0].mxu0
  %v5646 = vadd.f32 %v5565, %v5645
  %v5647 = vpop.f32.mrb[0].mxu0
  %v5648 = vadd.f32 %v5567, %v5647
  %v5649 = vpop.f32.mrb[0].mxu0
  %v5650 = vadd.f32 %v5569, %v5649
  %v5651 = vpop.f32.mrb[0].mxu0
  %v5652 = vadd.f32 %v5571, %v5651
  %5653 = vmatprep.mubr.bf16.mxu0 %v341
  %5654 = vmatmul.mubr.bf16.gmra.mrb[0].mxu0 %v333
  %v5655 = vpop.f32.mrb[0].mxu0
  %v5656 = vadd.f32 %v5575, %v5655
  %v5657 = vpop.f32.mrb[0].mxu0
  %v5658 = vadd.f32 %v5577, %v5657
  %v5659 = vpop.f32.mrb[0].mxu0
  %v5660 = vadd.f32 %v5579, %v5659
  %v5661 = vpop.f32.mrb[0].mxu0
  %v5662 = vadd.f32 %v5581, %v5661
  %5663 = vmatprep.mubr.bf16.mxu0 %v347
  %5664 = vmatmul.mubr.bf16.gmra.mrb[0].mxu0 %v344
  %v5665 = vpop.f32.mrb[0].mxu0
  %v5666 = vadd.f32 %v5585, %v5665
  %v5667 = vpop.f32.mrb[0].mxu0
  %v5668 = vadd.f32 %v5587, %v5667
  %v5669 = vpop.f32.mrb[0].mxu0
  %v5670 = vpop.f32.mrb[0].mxu0
  %5671 = vdwg.mxu0
  %5672 = vmatprep.subr.bf16.mxu0 %v4965
  %5673 = vmatpush1.bf16.msra.mxu0 %v4964
  %5674 = vmatprep.subr.bf16.mxu0 %v4969
  %5675 = vmatpush1.bf16.msra.mxu0 %v4968
  %5676 = vmatprep.subr.bf16.mxu0 %v4973
  %5677 = vmatpush1.bf16.msra.mxu0 %v4972
  %5678 = vmatprep.subr.bf16.mxu0 %v4977
  %5679 = vmatpush1.bf16.msra.mxu0 %v4976
  %5680 = vmatprep.subr.bf16.mxu0 %v4981
  %5681 = vmatpush1.bf16.msra.mxu0 %v4980
  %5682 = vmatprep.subr.bf16.mxu0 %v4985
  %5683 = vmatpush1.bf16.msra.mxu0 %v4984
  %5684 = vmatprep.subr.bf16.mxu0 %v4989
  %5685 = vmatpush1.bf16.msra.mxu0 %v4988
  %5686 = vmatprep.subr.bf16.mxu0 %v4993
  %5687 = vmatpush1.bf16.msra.mxu0 %v4992
  %5688 = vmatprep.subr.bf16.mxu0 %v4997
  %5689 = vmatpush1.bf16.msra.mxu0 %v4996
  %5690 = vmatprep.subr.bf16.mxu0 %v5001
  %5691 = vmatpush1.bf16.msra.mxu0 %v5000
  %5692 = vmatprep.subr.bf16.mxu0 %v5005
  %5693 = vmatpush1.bf16.msra.mxu0 %v5004
  %5694 = vmatprep.subr.bf16.mxu0 %v5009
  %5695 = vmatpush1.bf16.msra.mxu0 %v5008
  %5696 = vmatprep.subr.bf16.mxu0 %v5013
  %5697 = vmatpush1.bf16.msra.mxu0 %v5012
  %5698 = vmatprep.subr.bf16.mxu0 %v5017
  %5699 = vmatpush1.bf16.msra.mxu0 %v5016
  %5700 = vmatprep.subr.bf16.mxu0 %v5021
  %5701 = vmatpush1.bf16.msra.mxu0 %v5020
  %5702 = vmatprep.subr.bf16.mxu0 %v5025
  %5703 = vmatpush1.bf16.msra.mxu0 %v5024
  %5704 = vmatprep.mubr.bf16.mxu0 %v3555
  %5705 = vmatmul.mubr.bf16.gmra.mrb[0].mxu0 %v3543
  %v5706 = vpop.f32.mrb[0].mxu0
  %v5707 = vadd.f32 %v5626, %v5706
  %v5708 = vpop.f32.mrb[0].mxu0
  %v5709 = vadd.f32 %v5628, %v5708
  %v5710 = vpop.f32.mrb[0].mxu0
  %v5711 = vadd.f32 %v5630, %v5710
  %v5712 = vpop.f32.mrb[0].mxu0
  %v5713 = vadd.f32 %v5632, %v5712
  %5714 = vmatprep.mubr.bf16.mxu0 %v3603
  %5715 = vmatmul.mubr.bf16.gmra.mrb[0].mxu0 %v3595
  %v5716 = vpop.f32.mrb[0].mxu0
  %v5717 = vadd.f32 %v5636, %v5716
  %v5718 = vpop.f32.mrb[0].mxu0
  %v5719 = vadd.f32 %v5638, %v5718
  %v5720 = vpop.f32.mrb[0].mxu0
  %v5721 = vadd.f32 %v5640, %v5720
  %v5722 = vpop.f32.mrb[0].mxu0
  %v5723 = vadd.f32 %v5642, %v5722
  %5724 = vmatprep.mubr.bf16.mxu0 %v3651
  %5725 = vmatmul.mubr.bf16.gmra.mrb[0].mxu0 %v3643
  %v5726 = vpop.f32.mrb[0].mxu0
  %v5727 = vadd.f32 %v5646, %v5726
  %v5728 = vpop.f32.mrb[0].mxu0
  %v5729 = vadd.f32 %v5648, %v5728
  %v5730 = vpop.f32.mrb[0].mxu0
  %v5731 = vadd.f32 %v5650, %v5730
  %v5732 = vpop.f32.mrb[0].mxu0
  %v5733 = vadd.f32 %v5652, %v5732
  %5734 = vmatprep.mubr.bf16.mxu0 %v3699
  %5735 = vmatmul.mubr.bf16.gmra.mrb[0].mxu0 %v3691
  %v5736 = vpop.f32.mrb[0].mxu0
  %v5737 = vadd.f32 %v5656, %v5736
  %v5738 = vpop.f32.mrb[0].mxu0
  %v5739 = vadd.f32 %v5658, %v5738
  %v5740 = vpop.f32.mrb[0].mxu0
  %v5741 = vadd.f32 %v5660, %v5740
  %v5742 = vpop.f32.mrb[0].mxu0
  %v5743 = vadd.f32 %v5662, %v5742
  %5744 = vmatprep.mubr.bf16.mxu0 %v3717
  %5745 = vmatmul.mubr.bf16.gmra.mrb[0].mxu0 %v3714
  %v5746 = vpop.f32.mrb[0].mxu0
  %v5747 = vadd.f32 %v5666, %v5746
  %v5748 = vpop.f32.mrb[0].mxu0
  %v5749 = vadd.f32 %v5668, %v5748
  %v5750 = vpop.f32.mrb[0].mxu0
  %v5751 = vpop.f32.mrb[0].mxu0
  %5752 = vdwg.mxu0
  %5753 = vmatprep.subr.bf16.mxu0 %v4711
  %5754 = vmatpush1.bf16.msra.mxu0 %v4710
  %5755 = vmatprep.subr.bf16.mxu0 %v4715
  %5756 = vmatpush1.bf16.msra.mxu0 %v4714
  %5757 = vmatprep.subr.bf16.mxu0 %v4719
  %5758 = vmatpush1.bf16.msra.mxu0 %v4718
  %5759 = vmatprep.subr.bf16.mxu0 %v4723
  %5760 = vmatpush1.bf16.msra.mxu0 %v4722
  %5761 = vmatprep.subr.bf16.mxu0 %v4727
  %5762 = vmatpush1.bf16.msra.mxu0 %v4726
  %5763 = vmatprep.subr.bf16.mxu0 %v4731
  %5764 = vmatpush1.bf16.msra.mxu0 %v4730
  %5765 = vmatprep.subr.bf16.mxu0 %v4735
  %5766 = vmatpush1.bf16.msra.mxu0 %v4734
  %5767 = vmatprep.subr.bf16.mxu0 %v4739
  %5768 = vmatpush1.bf16.msra.mxu0 %v4738
  %5769 = vmatprep.subr.bf16.mxu0 %v4743
  %5770 = vmatpush1.bf16.msra.mxu0 %v4742
  %5771 = vmatprep.subr.bf16.mxu0 %v4747
  %5772 = vmatpush1.bf16.msra.mxu0 %v4746
  %5773 = vmatprep.subr.bf16.mxu0 %v4751
  %5774 = vmatpush1.bf16.msra.mxu0 %v4750
  %5775 = vmatprep.subr.bf16.mxu0 %v4755
  %5776 = vmatpush1.bf16.msra.mxu0 %v4754
  %5777 = vmatprep.subr.bf16.mxu0 %v4759
  %5778 = vmatpush1.bf16.msra.mxu0 %v4758
  %5779 = vmatprep.subr.bf16.mxu0 %v4763
  %5780 = vmatpush1.bf16.msra.mxu0 %v4762
  %5781 = vmatprep.subr.bf16.mxu0 %v4767
  %5782 = vmatpush1.bf16.msra.mxu0 %v4766
  %5783 = vmatprep.subr.bf16.mxu0 %v4771
  %5784 = vmatpush1.bf16.msra.mxu0 %v4770
  %5785 = vmatprep.mubr.bf16.mxu0 %v119
  %5786 = vmatmul.mubr.bf16.gmra.mrb[0].mxu0 %v107
  %v5787 = vpop.f32.mrb[0].mxu0
  %v5788 = vadd.f32 0.0, %v5787
  %v5789 = vpop.f32.mrb[0].mxu0
  %v5790 = vadd.f32 0.0, %v5789
  %v5791 = vpop.f32.mrb[0].mxu0
  %v5792 = vadd.f32 0.0, %v5791
  %v5793 = vpop.f32.mrb[0].mxu0
  %v5794 = vadd.f32 0.0, %v5793
  %5795 = vmatprep.mubr.bf16.mxu0 %v135
  %5796 = vmatmul.mubr.bf16.gmra.mrb[0].mxu0 %v127
  %v5797 = vpop.f32.mrb[0].mxu0
  %v5798 = vadd.f32 0.0, %v5797
  %v5799 = vpop.f32.mrb[0].mxu0
  %v5800 = vadd.f32 0.0, %v5799
  %v5801 = vpop.f32.mrb[0].mxu0
  %v5802 = vadd.f32 0.0, %v5801
  %v5803 = vpop.f32.mrb[0].mxu0
  %v5804 = vadd.f32 0.0, %v5803
  %5805 = vmatprep.mubr.bf16.mxu0 %v151
  %5806 = vmatmul.mubr.bf16.gmra.mrb[0].mxu0 %v143
  %v5807 = vpop.f32.mrb[0].mxu0
  %v5808 = vadd.f32 0.0, %v5807
  %v5809 = vpop.f32.mrb[0].mxu0
  %v5810 = vadd.f32 0.0, %v5809
  %v5811 = vpop.f32.mrb[0].mxu0
  %v5812 = vadd.f32 0.0, %v5811
  %v5813 = vpop.f32.mrb[0].mxu0
  %v5814 = vadd.f32 0.0, %v5813
  %5815 = vmatprep.mubr.bf16.mxu0 %v167
  %5816 = vmatmul.mubr.bf16.gmra.mrb[0].mxu0 %v159
  %v5817 = vpop.f32.mrb[0].mxu0
  %v5818 = vadd.f32 0.0, %v5817
  %v5819 = vpop.f32.mrb[0].mxu0
  %v5820 = vadd.f32 0.0, %v5819
  %v5821 = vpop.f32.mrb[0].mxu0
  %v5822 = vadd.f32 0.0, %v5821
  %v5823 = vpop.f32.mrb[0].mxu0
  %v5824 = vadd.f32 0.0, %v5823
  %5825 = vmatprep.mubr.bf16.mxu0 %v173
  %5826 = vmatmul.mubr.bf16.gmra.mrb[0].mxu0 %v170
  %v5827 = vpop.f32.mrb[0].mxu0
  %v5828 = vadd.f32 0.0, %v5827
  %v5829 = vpop.f32.mrb[0].mxu0
  %v5830 = vadd.f32 0.0, %v5829
  %v5831 = vpop.f32.mrb[0].mxu0
  %v5832 = vpop.f32.mrb[0].mxu0
  %5833 = vdwg.mxu0
  %5834 = vmatprep.subr.bf16.mxu0 %v4775
  %5835 = vmatpush1.bf16.msra.mxu0 %v4774
  %5836 = vmatprep.subr.bf16.mxu0 %v4779
  %5837 = vmatpush1.bf16.msra.mxu0 %v4778
  %5838 = vmatprep.subr.bf16.mxu0 %v4783
  %5839 = vmatpush1.bf16.msra.mxu0 %v4782
  %5840 = vmatprep.subr.bf16.mxu0 %v4787
  %5841 = vmatpush1.bf16.msra.mxu0 %v4786
  %5842 = vmatprep.subr.bf16.mxu0 %v4791
  %5843 = vmatpush1.bf16.msra.mxu0 %v4790
  %5844 = vmatprep.subr.bf16.mxu0 %v4795
  %5845 = vmatpush1.bf16.msra.mxu0 %v4794
  %5846 = vmatprep.subr.bf16.mxu0 %v4799
  %5847 = vmatpush1.bf16.msra.mxu0 %v4798
  %5848 = vmatprep.subr.bf16.mxu0 %v4803
  %5849 = vmatpush1.bf16.msra.mxu0 %v4802
  %5850 = vmatprep.subr.bf16.mxu0 %v4807
  %5851 = vmatpush1.bf16.msra.mxu0 %v4806
  %5852 = vmatprep.subr.bf16.mxu0 %v4811
  %5853 = vmatpush1.bf16.msra.mxu0 %v4810
  %5854 = vmatprep.subr.bf16.mxu0 %v4815
  %5855 = vmatpush1.bf16.msra.mxu0 %v4814
  %5856 = vmatprep.subr.bf16.mxu0 %v4819
  %5857 = vmatpush1.bf16.msra.mxu0 %v4818
  %5858 = vmatprep.subr.bf16.mxu0 %v4823
  %5859 = vmatpush1.bf16.msra.mxu0 %v4822
  %5860 = vmatprep.subr.bf16.mxu0 %v4827
  %5861 = vmatpush1.bf16.msra.mxu0 %v4826
  %5862 = vmatprep.subr.bf16.mxu0 %v4831
  %5863 = vmatpush1.bf16.msra.mxu0 %v4830
  %5864 = vmatprep.subr.bf16.mxu0 %v4835
  %5865 = vmatpush1.bf16.msra.mxu0 %v4834
  %5866 = vmatprep.mubr.bf16.mxu0 %v3507
  %5867 = vmatmul.mubr.bf16.gmra.mrb[0].mxu0 %v3495
  %v5868 = vpop.f32.mrb[0].mxu0
  %v5869 = vadd.f32 %v5788, %v5868
  %v5870 = vpop.f32.mrb[0].mxu0
  %v5871 = vadd.f32 %v5790, %v5870
  %v5872 = vpop.f32.mrb[0].mxu0
  %v5873 = vadd.f32 %v5792, %v5872
  %v5874 = vpop.f32.mrb[0].mxu0
  %v5875 = vadd.f32 %v5794, %v5874
  %5876 = vmatprep.mubr.bf16.mxu0 %v3571
  %5877 = vmatmul.mubr.bf16.gmra.mrb[0].mxu0 %v3563
  %v5878 = vpop.f32.mrb[0].mxu0
  %v5879 = vadd.f32 %v5798, %v5878
  %v5880 = vpop.f32.mrb[0].mxu0
  %v5881 = vadd.f32 %v5800, %v5880
  %v5882 = vpop.f32.mrb[0].mxu0
  %v5883 = vadd.f32 %v5802, %v5882
  %v5884 = vpop.f32.mrb[0].mxu0
  %v5885 = vadd.f32 %v5804, %v5884
  %5886 = vmatprep.mubr.bf16.mxu0 %v3619
  %5887 = vmatmul.mubr.bf16.gmra.mrb[0].mxu0 %v3611
  %v5888 = vpop.f32.mrb[0].mxu0
  %v5889 = vadd.f32 %v5808, %v5888
  %v5890 = vpop.f32.mrb[0].mxu0
  %v5891 = vadd.f32 %v5810, %v5890
  %v5892 = vpop.f32.mrb[0].mxu0
  %v5893 = vadd.f32 %v5812, %v5892
  %v5894 = vpop.f32.mrb[0].mxu0
  %v5895 = vadd.f32 %v5814, %v5894
  %5896 = vmatprep.mubr.bf16.mxu0 %v3667
  %5897 = vmatmul.mubr.bf16.gmra.mrb[0].mxu0 %v3659
  %v5898 = vpop.f32.mrb[0].mxu0
  %v5899 = vadd.f32 %v5818, %v5898
  %v5900 = vpop.f32.mrb[0].mxu0
  %v5901 = vadd.f32 %v5820, %v5900
  %v5902 = vpop.f32.mrb[0].mxu0
  %v5903 = vadd.f32 %v5822, %v5902
  %v5904 = vpop.f32.mrb[0].mxu0
  %v5905 = vadd.f32 %v5824, %v5904
  %5906 = vmatprep.mubr.bf16.mxu0 %v3705
  %5907 = vmatmul.mubr.bf16.gmra.mrb[0].mxu0 %v3702
  %v5908 = vpop.f32.mrb[0].mxu0
  %v5909 = vadd.f32 %v5828, %v5908
  %v5910 = vpop.f32.mrb[0].mxu0
  %v5911 = vadd.f32 %v5830, %v5910
  %v5912 = vpop.f32.mrb[0].mxu0
  %v5913 = vpop.f32.mrb[0].mxu0
  %5914 = vdwg.mxu0
  %5915 = vmatprep.subr.bf16.mxu0 %v4839
  %5916 = vmatpush1.bf16.msra.mxu0 %v4838
  %5917 = vmatprep.subr.bf16.mxu0 %v4843
  %5918 = vmatpush1.bf16.msra.mxu0 %v4842
  %5919 = vmatprep.subr.bf16.mxu0 %v4847
  %5920 = vmatpush1.bf16.msra.mxu0 %v4846
  %5921 = vmatprep.subr.bf16.mxu0 %v4851
  %5922 = vmatpush1.bf16.msra.mxu0 %v4850
  %5923 = vmatprep.subr.bf16.mxu0 %v4855
  %5924 = vmatpush1.bf16.msra.mxu0 %v4854
  %5925 = vmatprep.subr.bf16.mxu0 %v4859
  %5926 = vmatpush1.bf16.msra.mxu0 %v4858
  %5927 = vmatprep.subr.bf16.mxu0 %v4863
  %5928 = vmatpush1.bf16.msra.mxu0 %v4862
  %5929 = vmatprep.subr.bf16.mxu0 %v4867
  %5930 = vmatpush1.bf16.msra.mxu0 %v4866
  %5931 = vmatprep.subr.bf16.mxu0 %v4871
  %5932 = vmatpush1.bf16.msra.mxu0 %v4870
  %5933 = vmatprep.subr.bf16.mxu0 %v4875
  %5934 = vmatpush1.bf16.msra.mxu0 %v4874
  %5935 = vmatprep.subr.bf16.mxu0 %v4879
  %5936 = vmatpush1.bf16.msra.mxu0 %v4878
  %5937 = vmatprep.subr.bf16.mxu0 %v4883
  %5938 = vmatpush1.bf16.msra.mxu0 %v4882
  %5939 = vmatprep.subr.bf16.mxu0 %v4887
  %5940 = vmatpush1.bf16.msra.mxu0 %v4886
  %5941 = vmatprep.subr.bf16.mxu0 %v4891
  %5942 = vmatpush1.bf16.msra.mxu0 %v4890
  %5943 = vmatprep.subr.bf16.mxu0 %v4895
  %5944 = vmatpush1.bf16.msra.mxu0 %v4894
  %5945 = vmatprep.subr.bf16.mxu0 %v4899
  %5946 = vmatpush1.bf16.msra.mxu0 %v4898
  %5947 = vmatprep.mubr.bf16.mxu0 %v3531
  %5948 = vmatmul.mubr.bf16.gmra.mrb[0].mxu0 %v3519
  %v5949 = vpop.f32.mrb[0].mxu0
  %v5950 = vadd.f32 %v5869, %v5949
  %v5951 = vpop.f32.mrb[0].mxu0
  %v5952 = vadd.f32 %v5871, %v5951
  %v5953 = vpop.f32.mrb[0].mxu0
  %v5954 = vadd.f32 %v5873, %v5953
  %v5955 = vpop.f32.mrb[0].mxu0
  %v5956 = vadd.f32 %v5875, %v5955
  %5957 = vmatprep.mubr.bf16.mxu0 %v3587
  %5958 = vmatmul.mubr.bf16.gmra.mrb[0].mxu0 %v3579
  %v5959 = vpop.f32.mrb[0].mxu0
  %v5960 = vadd.f32 %v5879, %v5959
  %v5961 = vpop.f32.mrb[0].mxu0
  %v5962 = vadd.f32 %v5881, %v5961
  %v5963 = vpop.f32.mrb[0].mxu0
  %v5964 = vadd.f32 %v5883, %v5963
  %v5965 = vpop.f32.mrb[0].mxu0
  %v5966 = vadd.f32 %v5885, %v5965
  %5967 = vmatprep.mubr.bf16.mxu0 %v3635
  %5968 = vmatmul.mubr.bf16.gmra.mrb[0].mxu0 %v3627
  %v5969 = vpop.f32.mrb[0].mxu0
  %v5970 = vadd.f32 %v5889, %v5969
  %v5971 = vpop.f32.mrb[0].mxu0
  %v5972 = vadd.f32 %v5891, %v5971
  %v5973 = vpop.f32.mrb[0].mxu0
  %v5974 = vadd.f32 %v5893, %v5973
  %v5975 = vpop.f32.mrb[0].mxu0
  %v5976 = vadd.f32 %v5895, %v5975
  %5977 = vmatprep.mubr.bf16.mxu0 %v3683
  %5978 = vmatmul.mubr.bf16.gmra.mrb[0].mxu0 %v3675
  %v5979 = vpop.f32.mrb[0].mxu0
  %v5980 = vadd.f32 %v5899, %v5979
  %v5981 = vpop.f32.mrb[0].mxu0
  %v5982 = vadd.f32 %v5901, %v5981
  %v5983 = vpop.f32.mrb[0].mxu0
  %v5984 = vadd.f32 %v5903, %v5983
  %v5985 = vpop.f32.mrb[0].mxu0
  %v5986 = vadd.f32 %v5905, %v5985
  %5987 = vmatprep.mubr.bf16.mxu0 %v3711
  %5988 = vmatmul.mubr.bf16.gmra.mrb[0].mxu0 %v3708
  %v5989 = vpop.f32.mrb[0].mxu0
  %v5990 = vadd.f32 %v5909, %v5989
  %v5991 = vpop.f32.mrb[0].mxu0
  %v5992 = vadd.f32 %v5911, %v5991
  %v5993 = vpop.f32.mrb[0].mxu0
  %v5994 = vpop.f32.mrb[0].mxu0
  %5995 = vdwg.mxu0
  %5996 = vmatprep.subr.bf16.mxu0 %v4903
  %5997 = vmatpush1.bf16.msra.mxu0 %v4902
  %5998 = vmatprep.subr.bf16.mxu0 %v4907
  %5999 = vmatpush1.bf16.msra.mxu0 %v4906
  %6000 = vmatprep.subr.bf16.mxu0 %v4911
  %6001 = vmatpush1.bf16.msra.mxu0 %v4910
  %6002 = vmatprep.subr.bf16.mxu0 %v4915
  %6003 = vmatpush1.bf16.msra.mxu0 %v4914
  %6004 = vmatprep.subr.bf16.mxu0 %v4919
  %6005 = vmatpush1.bf16.msra.mxu0 %v4918
  %6006 = vmatprep.subr.bf16.mxu0 %v4923
  %6007 = vmatpush1.bf16.msra.mxu0 %v4922
  %6008 = vmatprep.subr.bf16.mxu0 %v4927
  %6009 = vmatpush1.bf16.msra.mxu0 %v4926
  %6010 = vmatprep.subr.bf16.mxu0 %v4931
  %6011 = vmatpush1.bf16.msra.mxu0 %v4930
  %6012 = vmatprep.subr.bf16.mxu0 %v4935
  %6013 = vmatpush1.bf16.msra.mxu0 %v4934
  %6014 = vmatprep.subr.bf16.mxu0 %v4939
  %6015 = vmatpush1.bf16.msra.mxu0 %v4938
  %6016 = vmatprep.subr.bf16.mxu0 %v4943
  %6017 = vmatpush1.bf16.msra.mxu0 %v4942
  %6018 = vmatprep.subr.bf16.mxu0 %v4947
  %6019 = vmatpush1.bf16.msra.mxu0 %v4946
  %6020 = vmatprep.subr.bf16.mxu0 %v4951
  %6021 = vmatpush1.bf16.msra.mxu0 %v4950
  %6022 = vmatprep.subr.bf16.mxu0 %v4955
  %6023 = vmatpush1.bf16.msra.mxu0 %v4954
  %6024 = vmatprep.subr.bf16.mxu0 %v4959
  %6025 = vmatpush1.bf16.msra.mxu0 %v4958
  %6026 = vmatprep.subr.bf16.mxu0 %v4963
  %6027 = vmatpush1.bf16.msra.mxu0 %v4962
  %6028 = vmatprep.mubr.bf16.mxu0 %v293
  %6029 = vmatmul.mubr.bf16.gmra.mrb[0].mxu0 %v281
  %v6030 = vpop.f32.mrb[0].mxu0
  %v6031 = vadd.f32 %v5950, %v6030
  %v6032 = vpop.f32.mrb[0].mxu0
  %v6033 = vadd.f32 %v5952, %v6032
  %v6034 = vpop.f32.mrb[0].mxu0
  %v6035 = vadd.f32 %v5954, %v6034
  %v6036 = vpop.f32.mrb[0].mxu0
  %v6037 = vadd.f32 %v5956, %v6036
  %6038 = vmatprep.mubr.bf16.mxu0 %v309
  %6039 = vmatmul.mubr.bf16.gmra.mrb[0].mxu0 %v301
  %v6040 = vpop.f32.mrb[0].mxu0
  %v6041 = vadd.f32 %v5960, %v6040
  %v6042 = vpop.f32.mrb[0].mxu0
  %v6043 = vadd.f32 %v5962, %v6042
  %v6044 = vpop.f32.mrb[0].mxu0
  %v6045 = vadd.f32 %v5964, %v6044
  %v6046 = vpop.f32.mrb[0].mxu0
  %v6047 = vadd.f32 %v5966, %v6046
  %6048 = vmatprep.mubr.bf16.mxu0 %v325
  %6049 = vmatmul.mubr.bf16.gmra.mrb[0].mxu0 %v317
  %v6050 = vpop.f32.mrb[0].mxu0
  %v6051 = vadd.f32 %v5970, %v6050
  %v6052 = vpop.f32.mrb[0].mxu0
  %v6053 = vadd.f32 %v5972, %v6052
  %v6054 = vpop.f32.mrb[0].mxu0
  %v6055 = vadd.f32 %v5974, %v6054
  %v6056 = vpop.f32.mrb[0].mxu0
  %v6057 = vadd.f32 %v5976, %v6056
  %6058 = vmatprep.mubr.bf16.mxu0 %v341
  %6059 = vmatmul.mubr.bf16.gmra.mrb[0].mxu0 %v333
  %v6060 = vpop.f32.mrb[0].mxu0
  %v6061 = vadd.f32 %v5980, %v6060
  %v6062 = vpop.f32.mrb[0].mxu0
  %v6063 = vadd.f32 %v5982, %v6062
  %v6064 = vpop.f32.mrb[0].mxu0
  %v6065 = vadd.f32 %v5984, %v6064
  %v6066 = vpop.f32.mrb[0].mxu0
  %v6067 = vadd.f32 %v5986, %v6066
  %6068 = vmatprep.mubr.bf16.mxu0 %v347
  %6069 = vmatmul.mubr.bf16.gmra.mrb[0].mxu0 %v344
  %v6070 = vpop.f32.mrb[0].mxu0
  %v6071 = vadd.f32 %v5990, %v6070
  %v6072 = vpop.f32.mrb[0].mxu0
  %v6073 = vadd.f32 %v5992, %v6072
  %v6074 = vpop.f32.mrb[0].mxu0
  %v6075 = vpop.f32.mrb[0].mxu0
  %6076 = vdwg.mxu0
  %6077 = vmatprep.subr.bf16.mxu0 %v4967
  %6078 = vmatpush1.bf16.msra.mxu0 %v4966
  %6079 = vmatprep.subr.bf16.mxu0 %v4971
  %6080 = vmatpush1.bf16.msra.mxu0 %v4970
  %6081 = vmatprep.subr.bf16.mxu0 %v4975
  %6082 = vmatpush1.bf16.msra.mxu0 %v4974
  %6083 = vmatprep.subr.bf16.mxu0 %v4979
  %6084 = vmatpush1.bf16.msra.mxu0 %v4978
  %6085 = vmatprep.subr.bf16.mxu0 %v4983
  %6086 = vmatpush1.bf16.msra.mxu0 %v4982
  %6087 = vmatprep.subr.bf16.mxu0 %v4987
  %6088 = vmatpush1.bf16.msra.mxu0 %v4986
  %6089 = vmatprep.subr.bf16.mxu0 %v4991
  %6090 = vmatpush1.bf16.msra.mxu0 %v4990
  %6091 = vmatprep.subr.bf16.mxu0 %v4995
  %6092 = vmatpush1.bf16.msra.mxu0 %v4994
  %6093 = vmatprep.subr.bf16.mxu0 %v4999
  %6094 = vmatpush1.bf16.msra.mxu0 %v4998
  %6095 = vmatprep.subr.bf16.mxu0 %v5003
  %6096 = vmatpush1.bf16.msra.mxu0 %v5002
  %6097 = vmatprep.subr.bf16.mxu0 %v5007
  %6098 = vmatpush1.bf16.msra.mxu0 %v5006
  %6099 = vmatprep.subr.bf16.mxu0 %v5011
  %6100 = vmatpush1.bf16.msra.mxu0 %v5010
  %6101 = vmatprep.subr.bf16.mxu0 %v5015
  %6102 = vmatpush1.bf16.msra.mxu0 %v5014
  %6103 = vmatprep.subr.bf16.mxu0 %v5019
  %6104 = vmatpush1.bf16.msra.mxu0 %v5018
  %6105 = vmatprep.subr.bf16.mxu0 %v5023
  %6106 = vmatpush1.bf16.msra.mxu0 %v5022
  %6107 = vmatprep.subr.bf16.mxu0 %v5027
  %6108 = vmatpush1.bf16.msra.mxu0 %v5026
  %6109 = vmatprep.mubr.bf16.mxu0 %v3555
  %6110 = vmatmul.mubr.bf16.gmra.mrb[0].mxu0 %v3543
  %v6111 = vpop.f32.mrb[0].mxu0
  %v6112 = vadd.f32 %v6031, %v6111
  %v6113 = vpop.f32.mrb[0].mxu0
  %v6114 = vadd.f32 %v6033, %v6113
  %v6115 = vpop.f32.mrb[0].mxu0
  %v6116 = vadd.f32 %v6035, %v6115
  %v6117 = vpop.f32.mrb[0].mxu0
  %v6118 = vadd.f32 %v6037, %v6117
  %6119 = vmatprep.mubr.bf16.mxu0 %v3603
  %6120 = vmatmul.mubr.bf16.gmra.mrb[0].mxu0 %v3595
  %v6121 = vpop.f32.mrb[0].mxu0
  %v6122 = vadd.f32 %v6041, %v6121
  %v6123 = vpop.f32.mrb[0].mxu0
  %v6124 = vadd.f32 %v6043, %v6123
  %v6125 = vpop.f32.mrb[0].mxu0
  %v6126 = vadd.f32 %v6045, %v6125
  %v6127 = vpop.f32.mrb[0].mxu0
  %v6128 = vadd.f32 %v6047, %v6127
  %6129 = vmatprep.mubr.bf16.mxu0 %v3651
  %6130 = vmatmul.mubr.bf16.gmra.mrb[0].mxu0 %v3643
  %v6131 = vpop.f32.mrb[0].mxu0
  %v6132 = vadd.f32 %v6051, %v6131
  %v6133 = vpop.f32.mrb[0].mxu0
  %v6134 = vadd.f32 %v6053, %v6133
  %v6135 = vpop.f32.mrb[0].mxu0
  %v6136 = vadd.f32 %v6055, %v6135
  %v6137 = vpop.f32.mrb[0].mxu0
  %v6138 = vadd.f32 %v6057, %v6137
  %6139 = vmatprep.mubr.bf16.mxu0 %v3699
  %6140 = vmatmul.mubr.bf16.gmra.mrb[0].mxu0 %v3691
  %v6141 = vpop.f32.mrb[0].mxu0
  %v6142 = vadd.f32 %v6061, %v6141
  %v6143 = vpop.f32.mrb[0].mxu0
  %v6144 = vadd.f32 %v6063, %v6143
  %v6145 = vpop.f32.mrb[0].mxu0
  %v6146 = vadd.f32 %v6065, %v6145
  %v6147 = vpop.f32.mrb[0].mxu0
  %v6148 = vadd.f32 %v6067, %v6147
  %6149 = vmatprep.mubr.bf16.mxu0 %v3717
  %6150 = vmatmul.mubr.bf16.gmra.mrb[0].mxu0 %v3714
  %v6151 = vpop.f32.mrb[0].mxu0
  %v6152 = vadd.f32 %v6071, %v6151
  %v6153 = vpop.f32.mrb[0].mxu0
  %v6154 = vadd.f32 %v6073, %v6153
  %v6155 = vpop.f32.mrb[0].mxu0
  %v6156 = vpop.f32.mrb[0].mxu0
  %6157 = vdwg.mxu0
  %v6158 = vmax.f32 %v2713, %v5707
  %v6159 = vmax.f32 %v2715, %v5709
  %v6160 = vmax.f32 %v3118, %v6112
  %v6161 = vmax.f32 %v3120, %v6114
  %v6162 = vmax.f32 %v2717, %v5711
  %v6163 = vmax.f32 %v2719, %v5713
  %v6164 = vmax.f32 %v3122, %v6116
  %v6165 = vmax.f32 %v3124, %v6118
  %v6166 = vmax.f32 %v2723, %v5717
  %v6167 = vmax.f32 %v2725, %v5719
  %v6168 = vmax.f32 %v3128, %v6122
  %v6169 = vmax.f32 %v3130, %v6124
  %v6170 = vmax.f32 %v2727, %v5721
  %v6171 = vmax.f32 %v2729, %v5723
  %v6172 = vmax.f32 %v3132, %v6126
  %v6173 = vmax.f32 %v3134, %v6128
  %v6174 = vmax.f32 %v2733, %v5727
  %v6175 = vmax.f32 %v2735, %v5729
  %v6176 = vmax.f32 %v3138, %v6132
  %v6177 = vmax.f32 %v3140, %v6134
  %v6178 = vmax.f32 %v2737, %v5731
  %v6179 = vmax.f32 %v2739, %v5733
  %v6180 = vmax.f32 %v3142, %v6136
  %v6181 = vmax.f32 %v3144, %v6138
  %v6182 = vmax.f32 %v2743, %v5737
  %v6183 = vmax.f32 %v2745, %v5739
  %v6184 = vmax.f32 %v3148, %v6142
  %v6185 = vmax.f32 %v3150, %v6144
  %v6186 = vmax.f32 %v2747, %v5741
  %v6187 = vmax.f32 %v2749, %v5743
  %v6188 = vmax.f32 %v3152, %v6146
  %v6189 = vmax.f32 %v3154, %v6148
  %v6190 = vmax.f32 %v2753, %v5747
  %v6191 = vmax.f32 %v2755, %v5749
  %v6192 = vmax.f32 %v3158, %v6152
  %v6193 = vmax.f32 %v3160, %v6154
  %v6194 = vld [vmem:[%s4] sm:$0xf]
  %v6196 = vlaneseq
  %v6197 = vshrl.u32 %v6196, 7
  %v6198 = vsub.s32 0, %v6197
  %v6199 = vrot.slane %v6194, %v6198
  %v6200 = vlaneseq
  %v6201 = vshrl.u32 %v6200, 7
  %v6202 = vsub.s32 1, %v6201
  %v6203 = vrot.slane %v6194, %v6202
  %v6204 = vlaneseq
  %v6205 = vshrl.u32 %v6204, 7
  %v6206 = vsub.s32 2, %v6205
  %v6207 = vrot.slane %v6194, %v6206
  %v6208 = vlaneseq
  %v6209 = vshrl.u32 %v6208, 7
  %v6210 = vsub.s32 3, %v6209
  %v6211 = vrot.slane %v6194, %v6210
  %v6216 = vadd.f32 %v6158, %v6199
  %v6217 = vadd.f32 %v6159, %v6203
  %v6218 = vadd.f32 %v6160, %v6207
  %v6219 = vadd.f32 %v6161, %v6211
  %v6220 = vadd.f32 %v6162, %v6199
  %v6221 = vadd.f32 %v6163, %v6203
  %v6222 = vadd.f32 %v6164, %v6207
  %v6223 = vadd.f32 %v6165, %v6211
  %v6224 = vadd.f32 %v6166, %v6199
  %v6225 = vadd.f32 %v6167, %v6203
  %v6226 = vadd.f32 %v6168, %v6207
  %v6227 = vadd.f32 %v6169, %v6211
  %v6228 = vadd.f32 %v6170, %v6199
  %v6229 = vadd.f32 %v6171, %v6203
  %v6230 = vadd.f32 %v6172, %v6207
  %v6231 = vadd.f32 %v6173, %v6211
  %v6232 = vadd.f32 %v6174, %v6199
  %v6233 = vadd.f32 %v6175, %v6203
  %v6234 = vadd.f32 %v6176, %v6207
  %v6235 = vadd.f32 %v6177, %v6211
  %v6236 = vadd.f32 %v6178, %v6199
  %v6237 = vadd.f32 %v6179, %v6203
  %v6238 = vadd.f32 %v6180, %v6207
  %v6239 = vadd.f32 %v6181, %v6211
  %v6240 = vadd.f32 %v6182, %v6199
  %v6241 = vadd.f32 %v6183, %v6203
  %v6242 = vadd.f32 %v6184, %v6207
  %v6243 = vadd.f32 %v6185, %v6211
  %v6244 = vadd.f32 %v6186, %v6199
  %v6245 = vadd.f32 %v6187, %v6203
  %v6246 = vadd.f32 %v6188, %v6207
  %v6247 = vadd.f32 %v6189, %v6211
  %v6248 = vadd.f32 %v6190, %v6199
  %v6249 = vadd.f32 %v6191, %v6203
  %v6250 = vadd.f32 %v6192, %v6207
  %v6251 = vadd.f32 %v6193, %v6211
  %v6252 = vmax.f32 %v6216, 0.0
  %v6253 = vmax.f32 %v6217, 0.0
  %v6254 = vmax.f32 %v6218, 0.0
  %v6255 = vmax.f32 %v6219, 0.0
  %v6256 = vmax.f32 %v6220, 0.0
  %v6257 = vmax.f32 %v6221, 0.0
  %v6258 = vmax.f32 %v6222, 0.0
  %v6259 = vmax.f32 %v6223, 0.0
  %v6260 = vmax.f32 %v6224, 0.0
  %v6261 = vmax.f32 %v6225, 0.0
  %v6262 = vmax.f32 %v6226, 0.0
  %v6263 = vmax.f32 %v6227, 0.0
  %v6264 = vmax.f32 %v6228, 0.0
  %v6265 = vmax.f32 %v6229, 0.0
  %v6266 = vmax.f32 %v6230, 0.0
  %v6267 = vmax.f32 %v6231, 0.0
  %v6268 = vmax.f32 %v6232, 0.0
  %v6269 = vmax.f32 %v6233, 0.0
  %v6270 = vmax.f32 %v6234, 0.0
  %v6271 = vmax.f32 %v6235, 0.0
  %v6272 = vmax.f32 %v6236, 0.0
  %v6273 = vmax.f32 %v6237, 0.0
  %v6274 = vmax.f32 %v6238, 0.0
  %v6275 = vmax.f32 %v6239, 0.0
  %v6276 = vmax.f32 %v6240, 0.0
  %v6277 = vmax.f32 %v6241, 0.0
  %v6278 = vmax.f32 %v6242, 0.0
  %v6279 = vmax.f32 %v6243, 0.0
  %v6280 = vmax.f32 %v6244, 0.0
  %v6281 = vmax.f32 %v6245, 0.0
  %v6282 = vmax.f32 %v6246, 0.0
  %v6283 = vmax.f32 %v6247, 0.0
  %v6284 = vmax.f32 %v6248, 0.0
  %v6285 = vmax.f32 %v6249, 0.0
  %v6286 = vmax.f32 %v6250, 0.0
  %v6287 = vmax.f32 %v6251, 0.0
  %v6288 = vmax.f32 %v6252, %v6254
  %v6289 = vmax.f32 %v6253, %v6255
  %v6290 = vmax.f32 %v6256, %v6258
  %v6291 = vmax.f32 %v6257, %v6259
  %v6292 = vmax.f32 %v6260, %v6262
  %v6293 = vmax.f32 %v6261, %v6263
  %v6294 = vmax.f32 %v6264, %v6266
  %v6295 = vmax.f32 %v6265, %v6267
  %v6296 = vmax.f32 %v6268, %v6270
  %v6297 = vmax.f32 %v6269, %v6271
  %v6298 = vmax.f32 %v6272, %v6274
  %v6299 = vmax.f32 %v6273, %v6275
  %v6300 = vmax.f32 %v6276, %v6278
  %v6301 = vmax.f32 %v6277, %v6279
  %v6302 = vmax.f32 %v6280, %v6282
  %v6303 = vmax.f32 %v6281, %v6283
  %v6304 = vmax.f32 %v6284, %v6286
  %v6305 = vmax.f32 %v6285, %v6287
  %v6306 = vpack.c.bf16 %v6290, %v6288
  %v6307 = vpack.c.bf16 %v6291, %v6289
  %v6308 = vpack.c.bf16 %v6294, %v6292
  %v6309 = vpack.c.bf16 %v6295, %v6293
  %v6310 = vpack.c.bf16 %v6298, %v6296
  %v6311 = vpack.c.bf16 %v6299, %v6297
  %v6312 = vpack.c.bf16 %v6302, %v6300
  %v6313 = vpack.c.bf16 %v6303, %v6301
  %v6314 = vpack.c.bf16 %v6304, %v6304
  %v6315 = vpack.c.bf16 %v6305, %v6305
  %v6326 = vunpack.c.l.b16 %v6306
  %v6327 = vunpack.c.l.b16 %v6307
  %v6328 = vunpack.c.h.b16 %v6306
  %v6329 = vunpack.c.h.b16 %v6307
  %v6330 = vunpack.c.l.b16 %v6308
  %v6331 = vunpack.c.l.b16 %v6309
  %v6332 = vunpack.c.h.b16 %v6308
  %v6333 = vunpack.c.h.b16 %v6309
  %v6334 = vunpack.c.l.b16 %v6310
  %v6335 = vunpack.c.l.b16 %v6311
  %v6336 = vunpack.c.h.b16 %v6310
  %v6337 = vunpack.c.h.b16 %v6311
  %v6338 = vunpack.c.l.b16 %v6312
  %v6339 = vunpack.c.l.b16 %v6313
  %v6340 = vunpack.c.h.b16 %v6312
  %v6341 = vunpack.c.h.b16 %v6313
  %v6342 = vunpack.c.l.b16 %v6314
  %v6343 = vunpack.c.l.b16 %v6315
  %v6344 = vpack.c.b16 %v6327, %v6326
  %v6345 = vpack.c.b16 %v6329, %v6328
  %v6346 = vpack.c.b16 %v6331, %v6330
  %v6347 = vpack.c.b16 %v6333, %v6332
  %v6348 = vpack.c.b16 %v6335, %v6334
  %v6349 = vpack.c.b16 %v6337, %v6336
  %v6350 = vpack.c.b16 %v6339, %v6338
  %v6351 = vpack.c.b16 %v6341, %v6340
  %v6352 = vpack.c.b16 %v6343, %v6342
  %6362 = vst [vmem:[%s5] sm:$0xff] %v6344
  %6363 = vst [vmem:[%s5 + $0x8] sm:$0xff] %v6345
  %6364 = vst [vmem:[%s5 + $0x10] sm:$0xff] %v6346
  %6365 = vst [vmem:[%s5 + $0x18] sm:$0xff] %v6347
  %6366 = vst [vmem:[%s5 + $0x20] sm:$0xff] %v6348
  %6367 = vst [vmem:[%s5 + $0x28] sm:$0xff] %v6349
  %6368 = vst [vmem:[%s5 + $0x30] sm:$0xff] %v6350
  %6369 = vst [vmem:[%s5 + $0x38] sm:$0xff] %v6351
  %6370 = vst [vmem:[%s5 + $0x40] sm:$0x77] %v6352
  %6371 = vst [vmem:[%s5 + $0x40] sm:$0x88] 0
  // Predicated region
  $region22: #{cnn_forward.4} parent=0 // pred_check
    _
  $region23: #{cnn_forward.4} parent=0 // pred_check_branch
    %6373 = sbr.rel (0) target = $region25
  $region24: #{cnn_forward.4} parent=0 // pred_region
    _
  $region25: #{cnn_forward.4} parent=0 // pred_fallthru
    _
  // Predicated region
  $region26: #{cnn_forward.4} parent=0 // pred_check
    _
  $region27: #{cnn_forward.4} parent=0 // pred_check_branch
    %6375 = sbr.rel (0) target = $region29
  $region28: #{cnn_forward.4} parent=0 // pred_region
    _
  $region29: #{cnn_forward.4} parent=0 // pred_fallthru
    _

// kernel: cnn_forward.5
$region0: #{cnn_forward.5}
  #allocation0 [shape = 'u32[]', space=smem, size = 0x4, offset = 0x4, fixed_abs, tag = 'smem constant byte address 0x4 - core index']
  #allocation1 [shape = 'u32[144,128]{1,0:T(1,128)}', space=vmem, size = 0x12000, scoped, tag = 'internal scratch']
  %s0 = inlined_call_operand.vmem [shape: bf16[8,2304], index: 0, kind: input, shape index: {}]
  %s1 = inlined_call_operand.vmem [shape: bf16[2304,128], index: 1, kind: input, shape index: {}]
  %s2 = inlined_call_operand.vmem [shape: f32[1,128], index: 2, kind: input, shape index: {}]
  %s3 = inlined_call_operand.vmem [shape: f32[8,128], index: 3, kind: output, shape index: {}]
  %s4 = sld [smem:[#allocation0]]
  $region22: #{cnn_forward.5} parent=0
    _
  %s6 = ssub.s32 1, %s4
  %s7 = scalar_select 0, %s6, %s4
  // Predicated region
  $region2: #{cnn_forward.5} parent=0 // pred_check
    _
  $region3: #{cnn_forward.5} parent=0 // pred_check_branch
    %9 = sbr.rel (0) target = $region5
  $region4: #{cnn_forward.5} parent=0 // pred_region
    _
  $region5: #{cnn_forward.5} parent=0 // pred_fallthru
    _
  // Predicated region
  $region6: #{cnn_forward.5} parent=0 // pred_check
    _
  $region7: #{cnn_forward.5} parent=0 // pred_check_branch
    %11 = sbr.rel (0) target = $region9
  $region8: #{cnn_forward.5} parent=0 // pred_region
    _
  $region9: #{cnn_forward.5} parent=0 // pred_fallthru
    _
  // Predicated region
  $region10: #{cnn_forward.5} parent=0 // pred_check
    _
  $region11: #{cnn_forward.5} parent=0 // pred_check_branch
    %13 = sbr.rel (0) target = $region13
  $region12: #{cnn_forward.5} parent=0 // pred_region
    _
  $region13: #{cnn_forward.5} parent=0 // pred_fallthru
    _
  %v15 = vld [vmem:[%s0] sm:$0xff]
  %v16 = vld [vmem:[%s0 + $0x8] sm:$0xff]
  %v17 = vld [vmem:[%s0 + $0x10] sm:$0xff]
  %v18 = vld [vmem:[%s0 + $0x18] sm:$0xff]
  %v19 = vld [vmem:[%s0 + $0x20] sm:$0xff]
  %v20 = vld [vmem:[%s0 + $0x28] sm:$0xff]
  %v21 = vld [vmem:[%s0 + $0x30] sm:$0xff]
  %v22 = vld [vmem:[%s0 + $0x38] sm:$0xff]
  %v23 = vld [vmem:[%s0 + $0x40] sm:$0xff]
  %v24 = vld [vmem:[%s1] sm:$0xf]
  %v25 = vld [vmem:[%s1 + $0x4] sm:$0xf]
  %v26 = vld [vmem:[%s1 + $0x8] sm:$0xf]
  %v27 = vld [vmem:[%s1 + $0xc] sm:$0xf]
  %v28 = vld [vmem:[%s1 + $0x10] sm:$0xf]
  %v29 = vld [vmem:[%s1 + $0x14] sm:$0xf]
  %v30 = vld [vmem:[%s1 + $0x18] sm:$0xf]
  %v31 = vld [vmem:[%s1 + $0x1c] sm:$0xf]
  %v32 = vld [vmem:[%s1 + $0x20] sm:$0xf]
  %v33 = vld [vmem:[%s1 + $0x24] sm:$0xf]
  %v34 = vld [vmem:[%s1 + $0x28] sm:$0xf]
  %v35 = vld [vmem:[%s1 + $0x2c] sm:$0xf]
  %v36 = vld [vmem:[%s1 + $0x30] sm:$0xf]
  %v37 = vld [vmem:[%s1 + $0x34] sm:$0xf]
  %v38 = vld [vmem:[%s1 + $0x38] sm:$0xf]
  %v39 = vld [vmem:[%s1 + $0x3c] sm:$0xf]
  %v40 = vld [vmem:[%s1 + $0x40] sm:$0xf]
  %v41 = vld [vmem:[%s1 + $0x44] sm:$0xf]
  %v42 = vld [vmem:[%s1 + $0x48] sm:$0xf]
  %v43 = vld [vmem:[%s1 + $0x4c] sm:$0xf]
  %v44 = vld [vmem:[%s1 + $0x50] sm:$0xf]
  %v45 = vld [vmem:[%s1 + $0x54] sm:$0xf]
  %v46 = vld [vmem:[%s1 + $0x58] sm:$0xf]
  %v47 = vld [vmem:[%s1 + $0x5c] sm:$0xf]
  %v48 = vld [vmem:[%s1 + $0x60] sm:$0xf]
  %v49 = vld [vmem:[%s1 + $0x64] sm:$0xf]
  %v50 = vld [vmem:[%s1 + $0x68] sm:$0xf]
  %v51 = vld [vmem:[%s1 + $0x6c] sm:$0xf]
  %v52 = vld [vmem:[%s1 + $0x70] sm:$0xf]
  %v53 = vld [vmem:[%s1 + $0x74] sm:$0xf]
  %v54 = vld [vmem:[%s1 + $0x78] sm:$0xf]
  %v55 = vld [vmem:[%s1 + $0x7c] sm:$0xf]
  %v56 = vld [vmem:[%s1 + $0x80] sm:$0xf]
  %v57 = vld [vmem:[%s1 + $0x84] sm:$0xf]
  %v58 = vld [vmem:[%s1 + $0x88] sm:$0xf]
  %v59 = vld [vmem:[%s1 + $0x8c] sm:$0xf]
  %v60 = vld [vmem:[%s1 + $0x90] sm:$0xf]
  %v61 = vld [vmem:[%s1 + $0x94] sm:$0xf]
  %v62 = vld [vmem:[%s1 + $0x98] sm:$0xf]
  %v63 = vld [vmem:[%s1 + $0x9c] sm:$0xf]
  %v64 = vld [vmem:[%s1 + $0xa0] sm:$0xf]
  %v65 = vld [vmem:[%s1 + $0xa4] sm:$0xf]
  %v66 = vld [vmem:[%s1 + $0xa8] sm:$0xf]
  %v67 = vld [vmem:[%s1 + $0xac] sm:$0xf]
  %v68 = vld [vmem:[%s1 + $0xb0] sm:$0xf]
  %v69 = vld [vmem:[%s1 + $0xb4] sm:$0xf]
  %v70 = vld [vmem:[%s1 + $0xb8] sm:$0xf]
  %v71 = vld [vmem:[%s1 + $0xbc] sm:$0xf]
  %v72 = vld [vmem:[%s1 + $0xc0] sm:$0xf]
  %v73 = vld [vmem:[%s1 + $0xc4] sm:$0xf]
  %v74 = vld [vmem:[%s1 + $0xc8] sm:$0xf]
  %v75 = vld [vmem:[%s1 + $0xcc] sm:$0xf]
  %v76 = vld [vmem:[%s1 + $0xd0] sm:$0xf]
  %v77 = vld [vmem:[%s1 + $0xd4] sm:$0xf]
  %v78 = vld [vmem:[%s1 + $0xd8] sm:$0xf]
  %v79 = vld [vmem:[%s1 + $0xdc] sm:$0xf]
  %v80 = vld [vmem:[%s1 + $0xe0] sm:$0xf]
  %v81 = vld [vmem:[%s1 + $0xe4] sm:$0xf]
  %v82 = vld [vmem:[%s1 + $0xe8] sm:$0xf]
  %v83 = vld [vmem:[%s1 + $0xec] sm:$0xf]
  %v84 = vld [vmem:[%s1 + $0xf0] sm:$0xf]
  %v85 = vld [vmem:[%s1 + $0xf4] sm:$0xf]
  %v86 = vld [vmem:[%s1 + $0xf8] sm:$0xf]
  %v87 = vld [vmem:[%s1 + $0xfc] sm:$0xf]
  %v88 = vld [vmem:[%s1 + $0x100] sm:$0xf]
  %v89 = vld [vmem:[%s1 + $0x104] sm:$0xf]
  %v90 = vld [vmem:[%s1 + $0x108] sm:$0xf]
  %v91 = vld [vmem:[%s1 + $0x10c] sm:$0xf]
  %v92 = vld [vmem:[%s1 + $0x110] sm:$0xf]
  %v93 = vld [vmem:[%s1 + $0x114] sm:$0xf]
  %v94 = vld [vmem:[%s1 + $0x118] sm:$0xf]
  %v95 = vld [vmem:[%s1 + $0x11c] sm:$0xf]
  %v96 = vld [vmem:[%s1 + $0x120] sm:$0xf]
  %v97 = vld [vmem:[%s1 + $0x124] sm:$0xf]
  %v98 = vld [vmem:[%s1 + $0x128] sm:$0xf]
  %v99 = vld [vmem:[%s1 + $0x12c] sm:$0xf]
  %v100 = vld [vmem:[%s1 + $0x130] sm:$0xf]
  %v101 = vld [vmem:[%s1 + $0x134] sm:$0xf]
  %v102 = vld [vmem:[%s1 + $0x138] sm:$0xf]
  %v103 = vld [vmem:[%s1 + $0x13c] sm:$0xf]
  %v104 = vld [vmem:[%s1 + $0x140] sm:$0xf]
  %v105 = vld [vmem:[%s1 + $0x144] sm:$0xf]
  %v106 = vld [vmem:[%s1 + $0x148] sm:$0xf]
  %v107 = vld [vmem:[%s1 + $0x14c] sm:$0xf]
  %v108 = vld [vmem:[%s1 + $0x150] sm:$0xf]
  %v109 = vld [vmem:[%s1 + $0x154] sm:$0xf]
  %v110 = vld [vmem:[%s1 + $0x158] sm:$0xf]
  %v111 = vld [vmem:[%s1 + $0x15c] sm:$0xf]
  %v112 = vld [vmem:[%s1 + $0x160] sm:$0xf]
  %v113 = vld [vmem:[%s1 + $0x164] sm:$0xf]
  %v114 = vld [vmem:[%s1 + $0x168] sm:$0xf]
  %v115 = vld [vmem:[%s1 + $0x16c] sm:$0xf]
  %v116 = vld [vmem:[%s1 + $0x170] sm:$0xf]
  %v117 = vld [vmem:[%s1 + $0x174] sm:$0xf]
  %v118 = vld [vmem:[%s1 + $0x178] sm:$0xf]
  %v119 = vld [vmem:[%s1 + $0x17c] sm:$0xf]
  %v120 = vld [vmem:[%s1 + $0x180] sm:$0xf]
  %v121 = vld [vmem:[%s1 + $0x184] sm:$0xf]
  %v122 = vld [vmem:[%s1 + $0x188] sm:$0xf]
  %v123 = vld [vmem:[%s1 + $0x18c] sm:$0xf]
  %v124 = vld [vmem:[%s1 + $0x190] sm:$0xf]
  %v125 = vld [vmem:[%s1 + $0x194] sm:$0xf]
  %v126 = vld [vmem:[%s1 + $0x198] sm:$0xf]
  %v127 = vld [vmem:[%s1 + $0x19c] sm:$0xf]
  %v128 = vld [vmem:[%s1 + $0x1a0] sm:$0xf]
  %v129 = vld [vmem:[%s1 + $0x1a4] sm:$0xf]
  %v130 = vld [vmem:[%s1 + $0x1a8] sm:$0xf]
  %v131 = vld [vmem:[%s1 + $0x1ac] sm:$0xf]
  %v132 = vld [vmem:[%s1 + $0x1b0] sm:$0xf]
  %v133 = vld [vmem:[%s1 + $0x1b4] sm:$0xf]
  %v134 = vld [vmem:[%s1 + $0x1b8] sm:$0xf]
  %v135 = vld [vmem:[%s1 + $0x1bc] sm:$0xf]
  %v136 = vld [vmem:[%s1 + $0x1c0] sm:$0xf]
  %v137 = vld [vmem:[%s1 + $0x1c4] sm:$0xf]
  %v138 = vld [vmem:[%s1 + $0x1c8] sm:$0xf]
  %v139 = vld [vmem:[%s1 + $0x1cc] sm:$0xf]
  %v140 = vld [vmem:[%s1 + $0x1d0] sm:$0xf]
  %v141 = vld [vmem:[%s1 + $0x1d4] sm:$0xf]
  %v142 = vld [vmem:[%s1 + $0x1d8] sm:$0xf]
  %v143 = vld [vmem:[%s1 + $0x1dc] sm:$0xf]
  %v144 = vld [vmem:[%s1 + $0x1e0] sm:$0xf]
  %v145 = vld [vmem:[%s1 + $0x1e4] sm:$0xf]
  %v146 = vld [vmem:[%s1 + $0x1e8] sm:$0xf]
  %v147 = vld [vmem:[%s1 + $0x1ec] sm:$0xf]
  %v148 = vld [vmem:[%s1 + $0x1f0] sm:$0xf]
  %v149 = vld [vmem:[%s1 + $0x1f4] sm:$0xf]
  %v150 = vld [vmem:[%s1 + $0x1f8] sm:$0xf]
  %v151 = vld [vmem:[%s1 + $0x1fc] sm:$0xf]
  %v152 = vld [vmem:[%s1 + $0x200] sm:$0xf]
  %v153 = vld [vmem:[%s1 + $0x204] sm:$0xf]
  %v154 = vld [vmem:[%s1 + $0x208] sm:$0xf]
  %v155 = vld [vmem:[%s1 + $0x20c] sm:$0xf]
  %v156 = vld [vmem:[%s1 + $0x210] sm:$0xf]
  %v157 = vld [vmem:[%s1 + $0x214] sm:$0xf]
  %v158 = vld [vmem:[%s1 + $0x218] sm:$0xf]
  %v159 = vld [vmem:[%s1 + $0x21c] sm:$0xf]
  %v160 = vld [vmem:[%s1 + $0x220] sm:$0xf]
  %v161 = vld [vmem:[%s1 + $0x224] sm:$0xf]
  %v162 = vld [vmem:[%s1 + $0x228] sm:$0xf]
  %v163 = vld [vmem:[%s1 + $0x22c] sm:$0xf]
  %v164 = vld [vmem:[%s1 + $0x230] sm:$0xf]
  %v165 = vld [vmem:[%s1 + $0x234] sm:$0xf]
  %v166 = vld [vmem:[%s1 + $0x238] sm:$0xf]
  %v167 = vld [vmem:[%s1 + $0x23c] sm:$0xf]
  %v168 = vld [vmem:[%s1 + $0x240] sm:$0xf]
  %v169 = vld [vmem:[%s1 + $0x244] sm:$0xf]
  %v170 = vld [vmem:[%s1 + $0x248] sm:$0xf]
  %v171 = vld [vmem:[%s1 + $0x24c] sm:$0xf]
  %v172 = vld [vmem:[%s1 + $0x250] sm:$0xf]
  %v173 = vld [vmem:[%s1 + $0x254] sm:$0xf]
  %v174 = vld [vmem:[%s1 + $0x258] sm:$0xf]
  %v175 = vld [vmem:[%s1 + $0x25c] sm:$0xf]
  %v176 = vld [vmem:[%s1 + $0x260] sm:$0xf]
  %v177 = vld [vmem:[%s1 + $0x264] sm:$0xf]
  %v178 = vld [vmem:[%s1 + $0x268] sm:$0xf]
  %v179 = vld [vmem:[%s1 + $0x26c] sm:$0xf]
  %v180 = vld [vmem:[%s1 + $0x270] sm:$0xf]
  %v181 = vld [vmem:[%s1 + $0x274] sm:$0xf]
  %v182 = vld [vmem:[%s1 + $0x278] sm:$0xf]
  %v183 = vld [vmem:[%s1 + $0x27c] sm:$0xf]
  %v184 = vld [vmem:[%s1 + $0x280] sm:$0xf]
  %v185 = vld [vmem:[%s1 + $0x284] sm:$0xf]
  %v186 = vld [vmem:[%s1 + $0x288] sm:$0xf]
  %v187 = vld [vmem:[%s1 + $0x28c] sm:$0xf]
  %v188 = vld [vmem:[%s1 + $0x290] sm:$0xf]
  %v189 = vld [vmem:[%s1 + $0x294] sm:$0xf]
  %v190 = vld [vmem:[%s1 + $0x298] sm:$0xf]
  %v191 = vld [vmem:[%s1 + $0x29c] sm:$0xf]
  %v192 = vld [vmem:[%s1 + $0x2a0] sm:$0xf]
  %v193 = vld [vmem:[%s1 + $0x2a4] sm:$0xf]
  %v194 = vld [vmem:[%s1 + $0x2a8] sm:$0xf]
  %v195 = vld [vmem:[%s1 + $0x2ac] sm:$0xf]
  %v196 = vld [vmem:[%s1 + $0x2b0] sm:$0xf]
  %v197 = vld [vmem:[%s1 + $0x2b4] sm:$0xf]
  %v198 = vld [vmem:[%s1 + $0x2b8] sm:$0xf]
  %v199 = vld [vmem:[%s1 + $0x2bc] sm:$0xf]
  %v200 = vld [vmem:[%s1 + $0x2c0] sm:$0xf]
  %v201 = vld [vmem:[%s1 + $0x2c4] sm:$0xf]
  %v202 = vld [vmem:[%s1 + $0x2c8] sm:$0xf]
  %v203 = vld [vmem:[%s1 + $0x2cc] sm:$0xf]
  %v204 = vld [vmem:[%s1 + $0x2d0] sm:$0xf]
  %v205 = vld [vmem:[%s1 + $0x2d4] sm:$0xf]
  %v206 = vld [vmem:[%s1 + $0x2d8] sm:$0xf]
  %v207 = vld [vmem:[%s1 + $0x2dc] sm:$0xf]
  %v208 = vld [vmem:[%s1 + $0x2e0] sm:$0xf]
  %v209 = vld [vmem:[%s1 + $0x2e4] sm:$0xf]
  %v210 = vld [vmem:[%s1 + $0x2e8] sm:$0xf]
  %v211 = vld [vmem:[%s1 + $0x2ec] sm:$0xf]
  %v212 = vld [vmem:[%s1 + $0x2f0] sm:$0xf]
  %v213 = vld [vmem:[%s1 + $0x2f4] sm:$0xf]
  %v214 = vld [vmem:[%s1 + $0x2f8] sm:$0xf]
  %v215 = vld [vmem:[%s1 + $0x2fc] sm:$0xf]
  %v216 = vld [vmem:[%s1 + $0x300] sm:$0xf]
  %v217 = vld [vmem:[%s1 + $0x304] sm:$0xf]
  %v218 = vld [vmem:[%s1 + $0x308] sm:$0xf]
  %v219 = vld [vmem:[%s1 + $0x30c] sm:$0xf]
  %v220 = vld [vmem:[%s1 + $0x310] sm:$0xf]
  %v221 = vld [vmem:[%s1 + $0x314] sm:$0xf]
  %v222 = vld [vmem:[%s1 + $0x318] sm:$0xf]
  %v223 = vld [vmem:[%s1 + $0x31c] sm:$0xf]
  %v224 = vld [vmem:[%s1 + $0x320] sm:$0xf]
  %v225 = vld [vmem:[%s1 + $0x324] sm:$0xf]
  %v226 = vld [vmem:[%s1 + $0x328] sm:$0xf]
  %v227 = vld [vmem:[%s1 + $0x32c] sm:$0xf]
  %v228 = vld [vmem:[%s1 + $0x330] sm:$0xf]
  %v229 = vld [vmem:[%s1 + $0x334] sm:$0xf]
  %v230 = vld [vmem:[%s1 + $0x338] sm:$0xf]
  %v231 = vld [vmem:[%s1 + $0x33c] sm:$0xf]
  %v232 = vld [vmem:[%s1 + $0x340] sm:$0xf]
  %v233 = vld [vmem:[%s1 + $0x344] sm:$0xf]
  %v234 = vld [vmem:[%s1 + $0x348] sm:$0xf]
  %v235 = vld [vmem:[%s1 + $0x34c] sm:$0xf]
  %v236 = vld [vmem:[%s1 + $0x350] sm:$0xf]
  %v237 = vld [vmem:[%s1 + $0x354] sm:$0xf]
  %v238 = vld [vmem:[%s1 + $0x358] sm:$0xf]
  %v239 = vld [vmem:[%s1 + $0x35c] sm:$0xf]
  %v240 = vld [vmem:[%s1 + $0x360] sm:$0xf]
  %v241 = vld [vmem:[%s1 + $0x364] sm:$0xf]
  %v242 = vld [vmem:[%s1 + $0x368] sm:$0xf]
  %v243 = vld [vmem:[%s1 + $0x36c] sm:$0xf]
  %v244 = vld [vmem:[%s1 + $0x370] sm:$0xf]
  %v245 = vld [vmem:[%s1 + $0x374] sm:$0xf]
  %v246 = vld [vmem:[%s1 + $0x378] sm:$0xf]
  %v247 = vld [vmem:[%s1 + $0x37c] sm:$0xf]
  %v248 = vld [vmem:[%s1 + $0x380] sm:$0xf]
  %v249 = vld [vmem:[%s1 + $0x384] sm:$0xf]
  %v250 = vld [vmem:[%s1 + $0x388] sm:$0xf]
  %v251 = vld [vmem:[%s1 + $0x38c] sm:$0xf]
  %v252 = vld [vmem:[%s1 + $0x390] sm:$0xf]
  %v253 = vld [vmem:[%s1 + $0x394] sm:$0xf]
  %v254 = vld [vmem:[%s1 + $0x398] sm:$0xf]
  %v255 = vld [vmem:[%s1 + $0x39c] sm:$0xf]
  %v256 = vld [vmem:[%s1 + $0x3a0] sm:$0xf]
  %v257 = vld [vmem:[%s1 + $0x3a4] sm:$0xf]
  %v258 = vld [vmem:[%s1 + $0x3a8] sm:$0xf]
  %v259 = vld [vmem:[%s1 + $0x3ac] sm:$0xf]
  %v260 = vld [vmem:[%s1 + $0x3b0] sm:$0xf]
  %v261 = vld [vmem:[%s1 + $0x3b4] sm:$0xf]
  %v262 = vld [vmem:[%s1 + $0x3b8] sm:$0xf]
  %v263 = vld [vmem:[%s1 + $0x3bc] sm:$0xf]
  %v264 = vld [vmem:[%s1 + $0x3c0] sm:$0xf]
  %v265 = vld [vmem:[%s1 + $0x3c4] sm:$0xf]
  %v266 = vld [vmem:[%s1 + $0x3c8] sm:$0xf]
  %v267 = vld [vmem:[%s1 + $0x3cc] sm:$0xf]
  %v268 = vld [vmem:[%s1 + $0x3d0] sm:$0xf]
  %v269 = vld [vmem:[%s1 + $0x3d4] sm:$0xf]
  %v270 = vld [vmem:[%s1 + $0x3d8] sm:$0xf]
  %v271 = vld [vmem:[%s1 + $0x3dc] sm:$0xf]
  %v272 = vld [vmem:[%s1 + $0x3e0] sm:$0xf]
  %v273 = vld [vmem:[%s1 + $0x3e4] sm:$0xf]
  %v274 = vld [vmem:[%s1 + $0x3e8] sm:$0xf]
  %v275 = vld [vmem:[%s1 + $0x3ec] sm:$0xf]
  %v276 = vld [vmem:[%s1 + $0x3f0] sm:$0xf]
  %v277 = vld [vmem:[%s1 + $0x3f4] sm:$0xf]
  %v278 = vld [vmem:[%s1 + $0x3f8] sm:$0xf]
  %v279 = vld [vmem:[%s1 + $0x3fc] sm:$0xf]
  %v280 = vld [vmem:[%s1 + $0x400] sm:$0xf]
  %v281 = vld [vmem:[%s1 + $0x404] sm:$0xf]
  %v282 = vld [vmem:[%s1 + $0x408] sm:$0xf]
  %v283 = vld [vmem:[%s1 + $0x40c] sm:$0xf]
  %v284 = vld [vmem:[%s1 + $0x410] sm:$0xf]
  %v285 = vld [vmem:[%s1 + $0x414] sm:$0xf]
  %v286 = vld [vmem:[%s1 + $0x418] sm:$0xf]
  %v287 = vld [vmem:[%s1 + $0x41c] sm:$0xf]
  %v288 = vld [vmem:[%s1 + $0x420] sm:$0xf]
  %v289 = vld [vmem:[%s1 + $0x424] sm:$0xf]
  %v290 = vld [vmem:[%s1 + $0x428] sm:$0xf]
  %v291 = vld [vmem:[%s1 + $0x42c] sm:$0xf]
  %v292 = vld [vmem:[%s1 + $0x430] sm:$0xf]
  %v293 = vld [vmem:[%s1 + $0x434] sm:$0xf]
  %v294 = vld [vmem:[%s1 + $0x438] sm:$0xf]
  %v295 = vld [vmem:[%s1 + $0x43c] sm:$0xf]
  %v296 = vld [vmem:[%s1 + $0x440] sm:$0xf]
  %v297 = vld [vmem:[%s1 + $0x444] sm:$0xf]
  %v298 = vld [vmem:[%s1 + $0x448] sm:$0xf]
  %v299 = vld [vmem:[%s1 + $0x44c] sm:$0xf]
  %v300 = vld [vmem:[%s1 + $0x450] sm:$0xf]
  %v301 = vld [vmem:[%s1 + $0x454] sm:$0xf]
  %v302 = vld [vmem:[%s1 + $0x458] sm:$0xf]
  %v303 = vld [vmem:[%s1 + $0x45c] sm:$0xf]
  %v304 = vld [vmem:[%s1 + $0x460] sm:$0xf]
  %v305 = vld [vmem:[%s1 + $0x464] sm:$0xf]
  %v306 = vld [vmem:[%s1 + $0x468] sm:$0xf]
  %v307 = vld [vmem:[%s1 + $0x46c] sm:$0xf]
  %v308 = vld [vmem:[%s1 + $0x470] sm:$0xf]
  %v309 = vld [vmem:[%s1 + $0x474] sm:$0xf]
  %v310 = vld [vmem:[%s1 + $0x478] sm:$0xf]
  %v311 = vld [vmem:[%s1 + $0x47c] sm:$0xf]
  %v312 = vld [vmem:[%s2] sm:$0x1]
  %v314 = vlaneseq
  %v315 = vshrl.u32 %v314, 7
  %v316 = vsub.s32 0, %v315
  %v317 = vrot.slane %v312, %v316
  %v328 = vunpack.c.l.b16 %v15
  %v329 = vunpack.c.h.b16 %v15
  %v330 = vunpack.c.l.b16 %v16
  %v331 = vunpack.c.h.b16 %v16
  %v332 = vunpack.c.l.b16 %v17
  %v333 = vunpack.c.h.b16 %v17
  %v334 = vunpack.c.l.b16 %v18
  %v335 = vunpack.c.h.b16 %v18
  %v336 = vunpack.c.l.b16 %v19
  %v337 = vunpack.c.h.b16 %v19
  %v338 = vunpack.c.l.b16 %v20
  %v339 = vunpack.c.h.b16 %v20
  %v340 = vunpack.c.l.b16 %v21
  %v341 = vunpack.c.h.b16 %v21
  %v342 = vunpack.c.l.b16 %v22
  %v343 = vunpack.c.h.b16 %v22
  %v344 = vunpack.c.l.b16 %v23
  %v345 = vunpack.c.h.b16 %v23
  %v346 = vpack.c.b16 %v328, %v328
  %v347 = vpack.c.b16 %v329, %v329
  %v348 = vpack.c.b16 %v330, %v330
  %v349 = vpack.c.b16 %v331, %v331
  %v350 = vpack.c.b16 %v332, %v332
  %v351 = vpack.c.b16 %v333, %v333
  %v352 = vpack.c.b16 %v334, %v334
  %v353 = vpack.c.b16 %v335, %v335
  %v354 = vpack.c.b16 %v336, %v336
  %v355 = vpack.c.b16 %v337, %v337
  %v356 = vpack.c.b16 %v338, %v338
  %v357 = vpack.c.b16 %v339, %v339
  %v358 = vpack.c.b16 %v340, %v340
  %v359 = vpack.c.b16 %v341, %v341
  %v360 = vpack.c.b16 %v342, %v342
  %v361 = vpack.c.b16 %v343, %v343
  %v362 = vpack.c.b16 %v344, %v344
  %v363 = vpack.c.b16 %v345, %v345
  %v670 = vunpack.c.l.b16 %v24
  %v671 = vunpack.c.l.b16 %v25
  %v672 = vunpack.c.l.b16 %v26
  %v673 = vunpack.c.l.b16 %v27
  %v674 = vunpack.c.l.b16 %v28
  %v675 = vunpack.c.l.b16 %v29
  %v676 = vunpack.c.l.b16 %v30
  %v677 = vunpack.c.l.b16 %v31
  %v678 = vunpack.c.l.b16 %v32
  %v679 = vunpack.c.l.b16 %v33
  %v680 = vunpack.c.l.b16 %v34
  %v681 = vunpack.c.l.b16 %v35
  %v682 = vunpack.c.l.b16 %v36
  %v683 = vunpack.c.l.b16 %v37
  %v684 = vunpack.c.l.b16 %v38
  %v685 = vunpack.c.l.b16 %v39
  %v686 = vunpack.c.l.b16 %v40
  %v687 = vunpack.c.l.b16 %v41
  %v688 = vunpack.c.l.b16 %v42
  %v689 = vunpack.c.l.b16 %v43
  %v690 = vunpack.c.l.b16 %v44
  %v691 = vunpack.c.l.b16 %v45
  %v692 = vunpack.c.l.b16 %v46
  %v693 = vunpack.c.l.b16 %v47
  %v694 = vunpack.c.l.b16 %v48
  %v695 = vunpack.c.l.b16 %v49
  %v696 = vunpack.c.l.b16 %v50
  %v697 = vunpack.c.l.b16 %v51
  %v698 = vunpack.c.l.b16 %v52
  %v699 = vunpack.c.l.b16 %v53
  %v700 = vunpack.c.l.b16 %v54
  %v701 = vunpack.c.l.b16 %v55
  %v702 = vunpack.c.l.b16 %v56
  %v703 = vunpack.c.l.b16 %v57
  %v704 = vunpack.c.l.b16 %v58
  %v705 = vunpack.c.l.b16 %v59
  %v706 = vunpack.c.l.b16 %v60
  %v707 = vunpack.c.l.b16 %v61
  %v708 = vunpack.c.l.b16 %v62
  %v709 = vunpack.c.l.b16 %v63
  %v710 = vunpack.c.l.b16 %v64
  %v711 = vunpack.c.l.b16 %v65
  %v712 = vunpack.c.l.b16 %v66
  %v713 = vunpack.c.l.b16 %v67
  %v714 = vunpack.c.l.b16 %v68
  %v715 = vunpack.c.l.b16 %v69
  %v716 = vunpack.c.l.b16 %v70
  %v717 = vunpack.c.l.b16 %v71
  %v718 = vunpack.c.l.b16 %v72
  %v719 = vunpack.c.l.b16 %v73
  %v720 = vunpack.c.l.b16 %v74
  %v721 = vunpack.c.l.b16 %v75
  %v722 = vunpack.c.l.b16 %v76
  %v723 = vunpack.c.l.b16 %v77
  %v724 = vunpack.c.l.b16 %v78
  %v725 = vunpack.c.l.b16 %v79
  %v726 = vunpack.c.l.b16 %v80
  %v727 = vunpack.c.l.b16 %v81
  %v728 = vunpack.c.l.b16 %v82
  %v729 = vunpack.c.l.b16 %v83
  %v730 = vunpack.c.l.b16 %v84
  %v731 = vunpack.c.l.b16 %v85
  %v732 = vunpack.c.l.b16 %v86
  %v733 = vunpack.c.l.b16 %v87
  %v734 = vunpack.c.l.b16 %v88
  %v735 = vunpack.c.l.b16 %v89
  %v736 = vunpack.c.l.b16 %v90
  %v737 = vunpack.c.l.b16 %v91
  %v738 = vunpack.c.l.b16 %v92
  %v739 = vunpack.c.l.b16 %v93
  %v740 = vunpack.c.l.b16 %v94
  %v741 = vunpack.c.l.b16 %v95
  %v742 = vunpack.c.l.b16 %v96
  %v743 = vunpack.c.l.b16 %v97
  %v744 = vunpack.c.l.b16 %v98
  %v745 = vunpack.c.l.b16 %v99
  %v746 = vunpack.c.l.b16 %v100
  %v747 = vunpack.c.l.b16 %v101
  %v748 = vunpack.c.l.b16 %v102
  %v749 = vunpack.c.l.b16 %v103
  %v750 = vunpack.c.l.b16 %v104
  %v751 = vunpack.c.l.b16 %v105
  %v752 = vunpack.c.l.b16 %v106
  %v753 = vunpack.c.l.b16 %v107
  %v754 = vunpack.c.l.b16 %v108
  %v755 = vunpack.c.l.b16 %v109
  %v756 = vunpack.c.l.b16 %v110
  %v757 = vunpack.c.l.b16 %v111
  %v758 = vunpack.c.l.b16 %v112
  %v759 = vunpack.c.l.b16 %v113
  %v760 = vunpack.c.l.b16 %v114
  %v761 = vunpack.c.l.b16 %v115
  %v762 = vunpack.c.l.b16 %v116
  %v763 = vunpack.c.l.b16 %v117
  %v764 = vunpack.c.l.b16 %v118
  %v765 = vunpack.c.l.b16 %v119
  %v766 = vunpack.c.l.b16 %v120
  %v767 = vunpack.c.l.b16 %v121
  %v768 = vunpack.c.l.b16 %v122
  %v769 = vunpack.c.l.b16 %v123
  %v770 = vunpack.c.l.b16 %v124
  %v771 = vunpack.c.l.b16 %v125
  %v772 = vunpack.c.l.b16 %v126
  %v773 = vunpack.c.l.b16 %v127
  %v774 = vunpack.c.l.b16 %v128
  %v775 = vunpack.c.l.b16 %v129
  %v776 = vunpack.c.l.b16 %v130
  %v777 = vunpack.c.l.b16 %v131
  %v778 = vunpack.c.l.b16 %v132
  %v779 = vunpack.c.l.b16 %v133
  %v780 = vunpack.c.l.b16 %v134
  %v781 = vunpack.c.l.b16 %v135
  %v782 = vunpack.c.l.b16 %v136
  %v783 = vunpack.c.l.b16 %v137
  %v784 = vunpack.c.l.b16 %v138
  %v785 = vunpack.c.l.b16 %v139
  %v786 = vunpack.c.l.b16 %v140
  %v787 = vunpack.c.l.b16 %v141
  %v788 = vunpack.c.l.b16 %v142
  %v789 = vunpack.c.l.b16 %v143
  %v790 = vunpack.c.l.b16 %v144
  %v791 = vunpack.c.l.b16 %v145
  %v792 = vunpack.c.l.b16 %v146
  %v793 = vunpack.c.l.b16 %v147
  %v794 = vunpack.c.l.b16 %v148
  %v795 = vunpack.c.l.b16 %v149
  %v796 = vunpack.c.l.b16 %v150
  %v797 = vunpack.c.l.b16 %v151
  %v798 = vunpack.c.l.b16 %v152
  %v799 = vunpack.c.l.b16 %v153
  %v800 = vunpack.c.l.b16 %v154
  %v801 = vunpack.c.l.b16 %v155
  %v802 = vunpack.c.l.b16 %v156
  %v803 = vunpack.c.l.b16 %v157
  %v804 = vunpack.c.l.b16 %v158
  %v805 = vunpack.c.l.b16 %v159
  %v806 = vunpack.c.l.b16 %v160
  %v807 = vunpack.c.l.b16 %v161
  %v808 = vunpack.c.l.b16 %v162
  %v809 = vunpack.c.l.b16 %v163
  %v810 = vunpack.c.l.b16 %v164
  %v811 = vunpack.c.l.b16 %v165
  %v812 = vunpack.c.l.b16 %v166
  %v813 = vunpack.c.l.b16 %v167
  %v814 = vunpack.c.l.b16 %v168
  %v815 = vunpack.c.l.b16 %v169
  %v816 = vunpack.c.l.b16 %v170
  %v817 = vunpack.c.l.b16 %v171
  %v818 = vunpack.c.l.b16 %v172
  %v819 = vunpack.c.l.b16 %v173
  %v820 = vunpack.c.l.b16 %v174
  %v821 = vunpack.c.l.b16 %v175
  %v822 = vunpack.c.l.b16 %v176
  %v823 = vunpack.c.l.b16 %v177
  %v824 = vunpack.c.l.b16 %v178
  %v825 = vunpack.c.l.b16 %v179
  %v826 = vunpack.c.l.b16 %v180
  %v827 = vunpack.c.l.b16 %v181
  %v828 = vunpack.c.l.b16 %v182
  %v829 = vunpack.c.l.b16 %v183
  %v830 = vunpack.c.l.b16 %v184
  %v831 = vunpack.c.l.b16 %v185
  %v832 = vunpack.c.l.b16 %v186
  %v833 = vunpack.c.l.b16 %v187
  %v834 = vunpack.c.l.b16 %v188
  %v835 = vunpack.c.l.b16 %v189
  %v836 = vunpack.c.l.b16 %v190
  %v837 = vunpack.c.l.b16 %v191
  %v838 = vunpack.c.l.b16 %v192
  %v839 = vunpack.c.l.b16 %v193
  %v840 = vunpack.c.l.b16 %v194
  %v841 = vunpack.c.l.b16 %v195
  %v842 = vunpack.c.l.b16 %v196
  %v843 = vunpack.c.l.b16 %v197
  %v844 = vunpack.c.l.b16 %v198
  %v845 = vunpack.c.l.b16 %v199
  %v846 = vunpack.c.l.b16 %v200
  %v847 = vunpack.c.l.b16 %v201
  %v848 = vunpack.c.l.b16 %v202
  %v849 = vunpack.c.l.b16 %v203
  %v850 = vunpack.c.l.b16 %v204
  %v851 = vunpack.c.l.b16 %v205
  %v852 = vunpack.c.l.b16 %v206
  %v853 = vunpack.c.l.b16 %v207
  %v854 = vunpack.c.l.b16 %v208
  %v855 = vunpack.c.l.b16 %v209
  %v856 = vunpack.c.l.b16 %v210
  %v857 = vunpack.c.l.b16 %v211
  %v858 = vunpack.c.l.b16 %v212
  %v859 = vunpack.c.l.b16 %v213
  %v860 = vunpack.c.l.b16 %v214
  %v861 = vunpack.c.l.b16 %v215
  %v862 = vunpack.c.l.b16 %v216
  %v863 = vunpack.c.l.b16 %v217
  %v864 = vunpack.c.l.b16 %v218
  %v865 = vunpack.c.l.b16 %v219
  %v866 = vunpack.c.l.b16 %v220
  %v867 = vunpack.c.l.b16 %v221
  %v868 = vunpack.c.l.b16 %v222
  %v869 = vunpack.c.l.b16 %v223
  %v870 = vunpack.c.l.b16 %v224
  %v871 = vunpack.c.l.b16 %v225
  %v872 = vunpack.c.l.b16 %v226
  %v873 = vunpack.c.l.b16 %v227
  %v874 = vunpack.c.l.b16 %v228
  %v875 = vunpack.c.l.b16 %v229
  %v876 = vunpack.c.l.b16 %v230
  %v877 = vunpack.c.l.b16 %v231
  %v878 = vunpack.c.l.b16 %v232
  %v879 = vunpack.c.l.b16 %v233
  %v880 = vunpack.c.l.b16 %v234
  %v881 = vunpack.c.l.b16 %v235
  %v882 = vunpack.c.l.b16 %v236
  %v883 = vunpack.c.l.b16 %v237
  %v884 = vunpack.c.l.b16 %v238
  %v885 = vunpack.c.l.b16 %v239
  %v886 = vunpack.c.l.b16 %v240
  %v887 = vunpack.c.l.b16 %v241
  %v888 = vunpack.c.l.b16 %v242
  %v889 = vunpack.c.l.b16 %v243
  %v890 = vunpack.c.l.b16 %v244
  %v891 = vunpack.c.l.b16 %v245
  %v892 = vunpack.c.l.b16 %v246
  %v893 = vunpack.c.l.b16 %v247
  %v894 = vunpack.c.l.b16 %v248
  %v895 = vunpack.c.l.b16 %v249
  %v896 = vunpack.c.l.b16 %v250
  %v897 = vunpack.c.l.b16 %v251
  %v898 = vunpack.c.l.b16 %v252
  %v899 = vunpack.c.l.b16 %v253
  %v900 = vunpack.c.l.b16 %v254
  %v901 = vunpack.c.l.b16 %v255
  %v902 = vunpack.c.l.b16 %v256
  %v903 = vunpack.c.l.b16 %v257
  %v904 = vunpack.c.l.b16 %v258
  %v905 = vunpack.c.l.b16 %v259
  %v906 = vunpack.c.l.b16 %v260
  %v907 = vunpack.c.l.b16 %v261
  %v908 = vunpack.c.l.b16 %v262
  %v909 = vunpack.c.l.b16 %v263
  %v910 = vunpack.c.l.b16 %v264
  %v911 = vunpack.c.l.b16 %v265
  %v912 = vunpack.c.l.b16 %v266
  %v913 = vunpack.c.l.b16 %v267
  %v914 = vunpack.c.l.b16 %v268
  %v915 = vunpack.c.l.b16 %v269
  %v916 = vunpack.c.l.b16 %v270
  %v917 = vunpack.c.l.b16 %v271
  %v918 = vunpack.c.l.b16 %v272
  %v919 = vunpack.c.l.b16 %v273
  %v920 = vunpack.c.l.b16 %v274
  %v921 = vunpack.c.l.b16 %v275
  %v922 = vunpack.c.l.b16 %v276
  %v923 = vunpack.c.l.b16 %v277
  %v924 = vunpack.c.l.b16 %v278
  %v925 = vunpack.c.l.b16 %v279
  %v926 = vunpack.c.l.b16 %v280
  %v927 = vunpack.c.l.b16 %v281
  %v928 = vunpack.c.l.b16 %v282
  %v929 = vunpack.c.l.b16 %v283
  %v930 = vunpack.c.l.b16 %v284
  %v931 = vunpack.c.l.b16 %v285
  %v932 = vunpack.c.l.b16 %v286
  %v933 = vunpack.c.l.b16 %v287
  %v934 = vunpack.c.l.b16 %v288
  %v935 = vunpack.c.l.b16 %v289
  %v936 = vunpack.c.l.b16 %v290
  %v937 = vunpack.c.l.b16 %v291
  %v938 = vunpack.c.l.b16 %v292
  %v939 = vunpack.c.l.b16 %v293
  %v940 = vunpack.c.l.b16 %v294
  %v941 = vunpack.c.l.b16 %v295
  %v942 = vunpack.c.l.b16 %v296
  %v943 = vunpack.c.l.b16 %v297
  %v944 = vunpack.c.l.b16 %v298
  %v945 = vunpack.c.l.b16 %v299
  %v946 = vunpack.c.l.b16 %v300
  %v947 = vunpack.c.l.b16 %v301
  %v948 = vunpack.c.l.b16 %v302
  %v949 = vunpack.c.l.b16 %v303
  %v950 = vunpack.c.l.b16 %v304
  %v951 = vunpack.c.l.b16 %v305
  %v952 = vunpack.c.l.b16 %v306
  %v953 = vunpack.c.l.b16 %v307
  %v954 = vunpack.c.l.b16 %v308
  %v955 = vunpack.c.l.b16 %v309
  %v956 = vunpack.c.l.b16 %v310
  %v957 = vunpack.c.l.b16 %v311
  %v958 = vpack.c.b16 %v671, %v670
  %v959 = vpack.c.b16 %v673, %v672
  %v960 = vpack.c.b16 %v675, %v674
  %v961 = vpack.c.b16 %v677, %v676
  %v962 = vpack.c.b16 %v679, %v678
  %v963 = vpack.c.b16 %v681, %v680
  %v964 = vpack.c.b16 %v683, %v682
  %v965 = vpack.c.b16 %v685, %v684
  %v966 = vpack.c.b16 %v687, %v686
  %v967 = vpack.c.b16 %v689, %v688
  %v968 = vpack.c.b16 %v691, %v690
  %v969 = vpack.c.b16 %v693, %v692
  %v970 = vpack.c.b16 %v695, %v694
  %v971 = vpack.c.b16 %v697, %v696
  %v972 = vpack.c.b16 %v699, %v698
  %v973 = vpack.c.b16 %v701, %v700
  %v974 = vpack.c.b16 %v703, %v702
  %v975 = vpack.c.b16 %v705, %v704
  %v976 = vpack.c.b16 %v707, %v706
  %v977 = vpack.c.b16 %v709, %v708
  %v978 = vpack.c.b16 %v711, %v710
  %v979 = vpack.c.b16 %v713, %v712
  %v980 = vpack.c.b16 %v715, %v714
  %v981 = vpack.c.b16 %v717, %v716
  %v982 = vpack.c.b16 %v719, %v718
  %v983 = vpack.c.b16 %v721, %v720
  %v984 = vpack.c.b16 %v723, %v722
  %v985 = vpack.c.b16 %v725, %v724
  %v986 = vpack.c.b16 %v727, %v726
  %v987 = vpack.c.b16 %v729, %v728
  %v988 = vpack.c.b16 %v731, %v730
  %v989 = vpack.c.b16 %v733, %v732
  %v990 = vpack.c.b16 %v735, %v734
  %v991 = vpack.c.b16 %v737, %v736
  %v992 = vpack.c.b16 %v739, %v738
  %v993 = vpack.c.b16 %v741, %v740
  %v994 = vpack.c.b16 %v743, %v742
  %v995 = vpack.c.b16 %v745, %v744
  %v996 = vpack.c.b16 %v747, %v746
  %v997 = vpack.c.b16 %v749, %v748
  %v998 = vpack.c.b16 %v751, %v750
  %v999 = vpack.c.b16 %v753, %v752
  %v1000 = vpack.c.b16 %v755, %v754
  %v1001 = vpack.c.b16 %v757, %v756
  %v1002 = vpack.c.b16 %v759, %v758
  %v1003 = vpack.c.b16 %v761, %v760
  %v1004 = vpack.c.b16 %v763, %v762
  %v1005 = vpack.c.b16 %v765, %v764
  %v1006 = vpack.c.b16 %v767, %v766
  %v1007 = vpack.c.b16 %v769, %v768
  %v1008 = vpack.c.b16 %v771, %v770
  %v1009 = vpack.c.b16 %v773, %v772
  %v1010 = vpack.c.b16 %v775, %v774
  %v1011 = vpack.c.b16 %v777, %v776
  %v1012 = vpack.c.b16 %v779, %v778
  %v1013 = vpack.c.b16 %v781, %v780
  %v1014 = vpack.c.b16 %v783, %v782
  %v1015 = vpack.c.b16 %v785, %v784
  %v1016 = vpack.c.b16 %v787, %v786
  %v1017 = vpack.c.b16 %v789, %v788
  %v1018 = vpack.c.b16 %v791, %v790
  %v1019 = vpack.c.b16 %v793, %v792
  %v1020 = vpack.c.b16 %v795, %v794
  %v1021 = vpack.c.b16 %v797, %v796
  %v1022 = vpack.c.b16 %v799, %v798
  %v1023 = vpack.c.b16 %v801, %v800
  %v1024 = vpack.c.b16 %v803, %v802
  %v1025 = vpack.c.b16 %v805, %v804
  %v1026 = vpack.c.b16 %v807, %v806
  %v1027 = vpack.c.b16 %v809, %v808
  %v1028 = vpack.c.b16 %v811, %v810
  %v1029 = vpack.c.b16 %v813, %v812
  %v1030 = vpack.c.b16 %v815, %v814
  %v1031 = vpack.c.b16 %v817, %v816
  %v1032 = vpack.c.b16 %v819, %v818
  %v1033 = vpack.c.b16 %v821, %v820
  %v1034 = vpack.c.b16 %v823, %v822
  %v1035 = vpack.c.b16 %v825, %v824
  %v1036 = vpack.c.b16 %v827, %v826
  %v1037 = vpack.c.b16 %v829, %v828
  %v1038 = vpack.c.b16 %v831, %v830
  %v1039 = vpack.c.b16 %v833, %v832
  %v1040 = vpack.c.b16 %v835, %v834
  %v1041 = vpack.c.b16 %v837, %v836
  %v1042 = vpack.c.b16 %v839, %v838
  %v1043 = vpack.c.b16 %v841, %v840
  %v1044 = vpack.c.b16 %v843, %v842
  %v1045 = vpack.c.b16 %v845, %v844
  %v1046 = vpack.c.b16 %v847, %v846
  %v1047 = vpack.c.b16 %v849, %v848
  %v1048 = vpack.c.b16 %v851, %v850
  %v1049 = vpack.c.b16 %v853, %v852
  %v1050 = vpack.c.b16 %v855, %v854
  %v1051 = vpack.c.b16 %v857, %v856
  %v1052 = vpack.c.b16 %v859, %v858
  %v1053 = vpack.c.b16 %v861, %v860
  %v1054 = vpack.c.b16 %v863, %v862
  %v1055 = vpack.c.b16 %v865, %v864
  %v1056 = vpack.c.b16 %v867, %v866
  %v1057 = vpack.c.b16 %v869, %v868
  %v1058 = vpack.c.b16 %v871, %v870
  %v1059 = vpack.c.b16 %v873, %v872
  %v1060 = vpack.c.b16 %v875, %v874
  %v1061 = vpack.c.b16 %v877, %v876
  %v1062 = vpack.c.b16 %v879, %v878
  %v1063 = vpack.c.b16 %v881, %v880
  %v1064 = vpack.c.b16 %v883, %v882
  %v1065 = vpack.c.b16 %v885, %v884
  %v1066 = vpack.c.b16 %v887, %v886
  %v1067 = vpack.c.b16 %v889, %v888
  %v1068 = vpack.c.b16 %v891, %v890
  %v1069 = vpack.c.b16 %v893, %v892
  %v1070 = vpack.c.b16 %v895, %v894
  %v1071 = vpack.c.b16 %v897, %v896
  %v1072 = vpack.c.b16 %v899, %v898
  %v1073 = vpack.c.b16 %v901, %v900
  %v1074 = vpack.c.b16 %v903, %v902
  %v1075 = vpack.c.b16 %v905, %v904
  %v1076 = vpack.c.b16 %v907, %v906
  %v1077 = vpack.c.b16 %v909, %v908
  %v1078 = vpack.c.b16 %v911, %v910
  %v1079 = vpack.c.b16 %v913, %v912
  %v1080 = vpack.c.b16 %v915, %v914
  %v1081 = vpack.c.b16 %v917, %v916
  %v1082 = vpack.c.b16 %v919, %v918
  %v1083 = vpack.c.b16 %v921, %v920
  %v1084 = vpack.c.b16 %v923, %v922
  %v1085 = vpack.c.b16 %v925, %v924
  %v1086 = vpack.c.b16 %v927, %v926
  %v1087 = vpack.c.b16 %v929, %v928
  %v1088 = vpack.c.b16 %v931, %v930
  %v1089 = vpack.c.b16 %v933, %v932
  %v1090 = vpack.c.b16 %v935, %v934
  %v1091 = vpack.c.b16 %v937, %v936
  %v1092 = vpack.c.b16 %v939, %v938
  %v1093 = vpack.c.b16 %v941, %v940
  %v1094 = vpack.c.b16 %v943, %v942
  %v1095 = vpack.c.b16 %v945, %v944
  %v1096 = vpack.c.b16 %v947, %v946
  %v1097 = vpack.c.b16 %v949, %v948
  %v1098 = vpack.c.b16 %v951, %v950
  %v1099 = vpack.c.b16 %v953, %v952
  %v1100 = vpack.c.b16 %v955, %v954
  %v1101 = vpack.c.b16 %v957, %v956
  %1246 = vmatprep.subr.bf16.mxu0 0
  %1247 = vmatpush1.bf16.msra.mxu0 %v958
  %1248 = vmatprep.subr.bf16.mxu0 0
  %1249 = vmatpush1.bf16.msra.mxu0 %v959
  %1250 = vmatprep.subr.bf16.mxu0 0
  %1251 = vmatpush1.bf16.msra.mxu0 %v960
  %1252 = vmatprep.subr.bf16.mxu0 0
  %1253 = vmatpush1.bf16.msra.mxu0 %v961
  %1254 = vmatprep.subr.bf16.mxu0 0
  %1255 = vmatpush1.bf16.msra.mxu0 %v962
  %1256 = vmatprep.subr.bf16.mxu0 0
  %1257 = vmatpush1.bf16.msra.mxu0 %v963
  %1258 = vmatprep.subr.bf16.mxu0 0
  %1259 = vmatpush1.bf16.msra.mxu0 %v964
  %1260 = vmatprep.subr.bf16.mxu0 0
  %1261 = vmatpush1.bf16.msra.mxu0 %v965
  %1262 = vmatprep.subr.bf16.mxu0 0
  %1263 = vmatpush1.bf16.msra.mxu0 %v966
  %1264 = vmatprep.subr.bf16.mxu0 0
  %1265 = vmatpush1.bf16.msra.mxu0 %v967
  %1266 = vmatprep.subr.bf16.mxu0 0
  %1267 = vmatpush1.bf16.msra.mxu0 %v968
  %1268 = vmatprep.subr.bf16.mxu0 0
  %1269 = vmatpush1.bf16.msra.mxu0 %v969
  %1270 = vmatprep.subr.bf16.mxu0 0
  %1271 = vmatpush1.bf16.msra.mxu0 %v970
  %1272 = vmatprep.subr.bf16.mxu0 0
  %1273 = vmatpush1.bf16.msra.mxu0 %v971
  %1274 = vmatprep.subr.bf16.mxu0 0
  %1275 = vmatpush1.bf16.msra.mxu0 %v972
  %1276 = vmatprep.subr.bf16.mxu0 0
  %1277 = vmatpush1.bf16.msra.mxu0 %v973
  %1278 = vmatprep.mubr.bf16.mxu0 %v347
  %1279 = vmatmul.mubr.bf16.gmra.mrb[0].mxu0 %v346
  %v1280 = vpop.f32.mrb[0].mxu0
  %v1281 = vadd.f32 %v317, %v1280
  %v1282 = vpop.f32.mrb[0].mxu0
  %v1283 = vpop.f32.mrb[0].mxu0
  %v1284 = vpop.f32.mrb[0].mxu0
  %1285 = vdwg.mxu0
  %1286 = vmatprep.subr.bf16.mxu0 0
  %1287 = vmatpush1.bf16.msra.mxu0 %v974
  %1288 = vmatprep.subr.bf16.mxu0 0
  %1289 = vmatpush1.bf16.msra.mxu0 %v975
  %1290 = vmatprep.subr.bf16.mxu0 0
  %1291 = vmatpush1.bf16.msra.mxu0 %v976
  %1292 = vmatprep.subr.bf16.mxu0 0
  %1293 = vmatpush1.bf16.msra.mxu0 %v977
  %1294 = vmatprep.subr.bf16.mxu0 0
  %1295 = vmatpush1.bf16.msra.mxu0 %v978
  %1296 = vmatprep.subr.bf16.mxu0 0
  %1297 = vmatpush1.bf16.msra.mxu0 %v979
  %1298 = vmatprep.subr.bf16.mxu0 0
  %1299 = vmatpush1.bf16.msra.mxu0 %v980
  %1300 = vmatprep.subr.bf16.mxu0 0
  %1301 = vmatpush1.bf16.msra.mxu0 %v981
  %1302 = vmatprep.subr.bf16.mxu0 0
  %1303 = vmatpush1.bf16.msra.mxu0 %v982
  %1304 = vmatprep.subr.bf16.mxu0 0
  %1305 = vmatpush1.bf16.msra.mxu0 %v983
  %1306 = vmatprep.subr.bf16.mxu0 0
  %1307 = vmatpush1.bf16.msra.mxu0 %v984
  %1308 = vmatprep.subr.bf16.mxu0 0
  %1309 = vmatpush1.bf16.msra.mxu0 %v985
  %1310 = vmatprep.subr.bf16.mxu0 0
  %1311 = vmatpush1.bf16.msra.mxu0 %v986
  %1312 = vmatprep.subr.bf16.mxu0 0
  %1313 = vmatpush1.bf16.msra.mxu0 %v987
  %1314 = vmatprep.subr.bf16.mxu0 0
  %1315 = vmatpush1.bf16.msra.mxu0 %v988
  %1316 = vmatprep.subr.bf16.mxu0 0
  %1317 = vmatpush1.bf16.msra.mxu0 %v989
  %1318 = vmatprep.mubr.bf16.mxu0 %v349
  %1319 = vmatmul.mubr.bf16.gmra.mrb[0].mxu0 %v348
  %v1320 = vpop.f32.mrb[0].mxu0
  %v1321 = vadd.f32 %v1281, %v1320
  %v1322 = vpop.f32.mrb[0].mxu0
  %v1323 = vpop.f32.mrb[0].mxu0
  %v1324 = vpop.f32.mrb[0].mxu0
  %1325 = vdwg.mxu0
  %1326 = vmatprep.subr.bf16.mxu0 0
  %1327 = vmatpush1.bf16.msra.mxu0 %v990
  %1328 = vmatprep.subr.bf16.mxu0 0
  %1329 = vmatpush1.bf16.msra.mxu0 %v991
  %1330 = vmatprep.subr.bf16.mxu0 0
  %1331 = vmatpush1.bf16.msra.mxu0 %v992
  %1332 = vmatprep.subr.bf16.mxu0 0
  %1333 = vmatpush1.bf16.msra.mxu0 %v993
  %1334 = vmatprep.subr.bf16.mxu0 0
  %1335 = vmatpush1.bf16.msra.mxu0 %v994
  %1336 = vmatprep.subr.bf16.mxu0 0
  %1337 = vmatpush1.bf16.msra.mxu0 %v995
  %1338 = vmatprep.subr.bf16.mxu0 0
  %1339 = vmatpush1.bf16.msra.mxu0 %v996
  %1340 = vmatprep.subr.bf16.mxu0 0
  %1341 = vmatpush1.bf16.msra.mxu0 %v997
  %1342 = vmatprep.subr.bf16.mxu0 0
  %1343 = vmatpush1.bf16.msra.mxu0 %v998
  %1344 = vmatprep.subr.bf16.mxu0 0
  %1345 = vmatpush1.bf16.msra.mxu0 %v999
  %1346 = vmatprep.subr.bf16.mxu0 0
  %1347 = vmatpush1.bf16.msra.mxu0 %v1000
  %1348 = vmatprep.subr.bf16.mxu0 0
  %1349 = vmatpush1.bf16.msra.mxu0 %v1001
  %1350 = vmatprep.subr.bf16.mxu0 0
  %1351 = vmatpush1.bf16.msra.mxu0 %v1002
  %1352 = vmatprep.subr.bf16.mxu0 0
  %1353 = vmatpush1.bf16.msra.mxu0 %v1003
  %1354 = vmatprep.subr.bf16.mxu0 0
  %1355 = vmatpush1.bf16.msra.mxu0 %v1004
  %1356 = vmatprep.subr.bf16.mxu0 0
  %1357 = vmatpush1.bf16.msra.mxu0 %v1005
  %1358 = vmatprep.mubr.bf16.mxu0 %v351
  %1359 = vmatmul.mubr.bf16.gmra.mrb[0].mxu0 %v350
  %v1360 = vpop.f32.mrb[0].mxu0
  %v1361 = vadd.f32 %v1321, %v1360
  %v1362 = vpop.f32.mrb[0].mxu0
  %v1363 = vpop.f32.mrb[0].mxu0
  %v1364 = vpop.f32.mrb[0].mxu0
  %1365 = vdwg.mxu0
  %1366 = vmatprep.subr.bf16.mxu0 0
  %1367 = vmatpush1.bf16.msra.mxu0 %v1006
  %1368 = vmatprep.subr.bf16.mxu0 0
  %1369 = vmatpush1.bf16.msra.mxu0 %v1007
  %1370 = vmatprep.subr.bf16.mxu0 0
  %1371 = vmatpush1.bf16.msra.mxu0 %v1008
  %1372 = vmatprep.subr.bf16.mxu0 0
  %1373 = vmatpush1.bf16.msra.mxu0 %v1009
  %1374 = vmatprep.subr.bf16.mxu0 0
  %1375 = vmatpush1.bf16.msra.mxu0 %v1010
  %1376 = vmatprep.subr.bf16.mxu0 0
  %1377 = vmatpush1.bf16.msra.mxu0 %v1011
  %1378 = vmatprep.subr.bf16.mxu0 0
  %1379 = vmatpush1.bf16.msra.mxu0 %v1012
  %1380 = vmatprep.subr.bf16.mxu0 0
  %1381 = vmatpush1.bf16.msra.mxu0 %v1013
  %1382 = vmatprep.subr.bf16.mxu0 0
  %1383 = vmatpush1.bf16.msra.mxu0 %v1014
  %1384 = vmatprep.subr.bf16.mxu0 0
  %1385 = vmatpush1.bf16.msra.mxu0 %v1015
  %1386 = vmatprep.subr.bf16.mxu0 0
  %1387 = vmatpush1.bf16.msra.mxu0 %v1016
  %1388 = vmatprep.subr.bf16.mxu0 0
  %1389 = vmatpush1.bf16.msra.mxu0 %v1017
  %1390 = vmatprep.subr.bf16.mxu0 0
  %1391 = vmatpush1.bf16.msra.mxu0 %v1018
  %1392 = vmatprep.subr.bf16.mxu0 0
  %1393 = vmatpush1.bf16.msra.mxu0 %v1019
  %1394 = vmatprep.subr.bf16.mxu0 0
  %1395 = vmatpush1.bf16.msra.mxu0 %v1020
  %1396 = vmatprep.subr.bf16.mxu0 0
  %1397 = vmatpush1.bf16.msra.mxu0 %v1021
  %1398 = vmatprep.mubr.bf16.mxu0 %v353
  %1399 = vmatmul.mubr.bf16.gmra.mrb[0].mxu0 %v352
  %v1400 = vpop.f32.mrb[0].mxu0
  %v1401 = vadd.f32 %v1361, %v1400
  %v1402 = vpop.f32.mrb[0].mxu0
  %v1403 = vpop.f32.mrb[0].mxu0
  %v1404 = vpop.f32.mrb[0].mxu0
  %1405 = vdwg.mxu0
  %1406 = vmatprep.subr.bf16.mxu0 0
  %1407 = vmatpush1.bf16.msra.mxu0 %v1022
  %1408 = vmatprep.subr.bf16.mxu0 0
  %1409 = vmatpush1.bf16.msra.mxu0 %v1023
  %1410 = vmatprep.subr.bf16.mxu0 0
  %1411 = vmatpush1.bf16.msra.mxu0 %v1024
  %1412 = vmatprep.subr.bf16.mxu0 0
  %1413 = vmatpush1.bf16.msra.mxu0 %v1025
  %1414 = vmatprep.subr.bf16.mxu0 0
  %1415 = vmatpush1.bf16.msra.mxu0 %v1026
  %1416 = vmatprep.subr.bf16.mxu0 0
  %1417 = vmatpush1.bf16.msra.mxu0 %v1027
  %1418 = vmatprep.subr.bf16.mxu0 0
  %1419 = vmatpush1.bf16.msra.mxu0 %v1028
  %1420 = vmatprep.subr.bf16.mxu0 0
  %1421 = vmatpush1.bf16.msra.mxu0 %v1029
  %1422 = vmatprep.subr.bf16.mxu0 0
  %1423 = vmatpush1.bf16.msra.mxu0 %v1030
  %1424 = vmatprep.subr.bf16.mxu0 0
  %1425 = vmatpush1.bf16.msra.mxu0 %v1031
  %1426 = vmatprep.subr.bf16.mxu0 0
  %1427 = vmatpush1.bf16.msra.mxu0 %v1032
  %1428 = vmatprep.subr.bf16.mxu0 0
  %1429 = vmatpush1.bf16.msra.mxu0 %v1033
  %1430 = vmatprep.subr.bf16.mxu0 0
  %1431 = vmatpush1.bf16.msra.mxu0 %v1034
  %1432 = vmatprep.subr.bf16.mxu0 0
  %1433 = vmatpush1.bf16.msra.mxu0 %v1035
  %1434 = vmatprep.subr.bf16.mxu0 0
  %1435 = vmatpush1.bf16.msra.mxu0 %v1036
  %1436 = vmatprep.subr.bf16.mxu0 0
  %1437 = vmatpush1.bf16.msra.mxu0 %v1037
  %1438 = vmatprep.mubr.bf16.mxu0 %v355
  %1439 = vmatmul.mubr.bf16.gmra.mrb[0].mxu0 %v354
  %v1440 = vpop.f32.mrb[0].mxu0
  %v1441 = vadd.f32 %v1401, %v1440
  %v1442 = vpop.f32.mrb[0].mxu0
  %v1443 = vpop.f32.mrb[0].mxu0
  %v1444 = vpop.f32.mrb[0].mxu0
  %1445 = vdwg.mxu0
  %1446 = vmatprep.subr.bf16.mxu0 0
  %1447 = vmatpush1.bf16.msra.mxu0 %v1038
  %1448 = vmatprep.subr.bf16.mxu0 0
  %1449 = vmatpush1.bf16.msra.mxu0 %v1039
  %1450 = vmatprep.subr.bf16.mxu0 0
  %1451 = vmatpush1.bf16.msra.mxu0 %v1040
  %1452 = vmatprep.subr.bf16.mxu0 0
  %1453 = vmatpush1.bf16.msra.mxu0 %v1041
  %1454 = vmatprep.subr.bf16.mxu0 0
  %1455 = vmatpush1.bf16.msra.mxu0 %v1042
  %1456 = vmatprep.subr.bf16.mxu0 0
  %1457 = vmatpush1.bf16.msra.mxu0 %v1043
  %1458 = vmatprep.subr.bf16.mxu0 0
  %1459 = vmatpush1.bf16.msra.mxu0 %v1044
  %1460 = vmatprep.subr.bf16.mxu0 0
  %1461 = vmatpush1.bf16.msra.mxu0 %v1045
  %1462 = vmatprep.subr.bf16.mxu0 0
  %1463 = vmatpush1.bf16.msra.mxu0 %v1046
  %1464 = vmatprep.subr.bf16.mxu0 0
  %1465 = vmatpush1.bf16.msra.mxu0 %v1047
  %1466 = vmatprep.subr.bf16.mxu0 0
  %1467 = vmatpush1.bf16.msra.mxu0 %v1048
  %1468 = vmatprep.subr.bf16.mxu0 0
  %1469 = vmatpush1.bf16.msra.mxu0 %v1049
  %1470 = vmatprep.subr.bf16.mxu0 0
  %1471 = vmatpush1.bf16.msra.mxu0 %v1050
  %1472 = vmatprep.subr.bf16.mxu0 0
  %1473 = vmatpush1.bf16.msra.mxu0 %v1051
  %1474 = vmatprep.subr.bf16.mxu0 0
  %1475 = vmatpush1.bf16.msra.mxu0 %v1052
  %1476 = vmatprep.subr.bf16.mxu0 0
  %1477 = vmatpush1.bf16.msra.mxu0 %v1053
  %1478 = vmatprep.mubr.bf16.mxu0 %v357
  %1479 = vmatmul.mubr.bf16.gmra.mrb[0].mxu0 %v356
  %v1480 = vpop.f32.mrb[0].mxu0
  %v1481 = vadd.f32 %v1441, %v1480
  %v1482 = vpop.f32.mrb[0].mxu0
  %v1483 = vpop.f32.mrb[0].mxu0
  %v1484 = vpop.f32.mrb[0].mxu0
  %1485 = vdwg.mxu0
  %1486 = vmatprep.subr.bf16.mxu0 0
  %1487 = vmatpush1.bf16.msra.mxu0 %v1054
  %1488 = vmatprep.subr.bf16.mxu0 0
  %1489 = vmatpush1.bf16.msra.mxu0 %v1055
  %1490 = vmatprep.subr.bf16.mxu0 0
  %1491 = vmatpush1.bf16.msra.mxu0 %v1056
  %1492 = vmatprep.subr.bf16.mxu0 0
  %1493 = vmatpush1.bf16.msra.mxu0 %v1057
  %1494 = vmatprep.subr.bf16.mxu0 0
  %1495 = vmatpush1.bf16.msra.mxu0 %v1058
  %1496 = vmatprep.subr.bf16.mxu0 0
  %1497 = vmatpush1.bf16.msra.mxu0 %v1059
  %1498 = vmatprep.subr.bf16.mxu0 0
  %1499 = vmatpush1.bf16.msra.mxu0 %v1060
  %1500 = vmatprep.subr.bf16.mxu0 0
  %1501 = vmatpush1.bf16.msra.mxu0 %v1061
  %1502 = vmatprep.subr.bf16.mxu0 0
  %1503 = vmatpush1.bf16.msra.mxu0 %v1062
  %1504 = vmatprep.subr.bf16.mxu0 0
  %1505 = vmatpush1.bf16.msra.mxu0 %v1063
  %1506 = vmatprep.subr.bf16.mxu0 0
  %1507 = vmatpush1.bf16.msra.mxu0 %v1064
  %1508 = vmatprep.subr.bf16.mxu0 0
  %1509 = vmatpush1.bf16.msra.mxu0 %v1065
  %1510 = vmatprep.subr.bf16.mxu0 0
  %1511 = vmatpush1.bf16.msra.mxu0 %v1066
  %1512 = vmatprep.subr.bf16.mxu0 0
  %1513 = vmatpush1.bf16.msra.mxu0 %v1067
  %1514 = vmatprep.subr.bf16.mxu0 0
  %1515 = vmatpush1.bf16.msra.mxu0 %v1068
  %1516 = vmatprep.subr.bf16.mxu0 0
  %1517 = vmatpush1.bf16.msra.mxu0 %v1069
  %1518 = vmatprep.mubr.bf16.mxu0 %v359
  %1519 = vmatmul.mubr.bf16.gmra.mrb[0].mxu0 %v358
  %v1520 = vpop.f32.mrb[0].mxu0
  %v1521 = vadd.f32 %v1481, %v1520
  %v1522 = vpop.f32.mrb[0].mxu0
  %v1523 = vpop.f32.mrb[0].mxu0
  %v1524 = vpop.f32.mrb[0].mxu0
  %1525 = vdwg.mxu0
  %1526 = vmatprep.subr.bf16.mxu0 0
  %1527 = vmatpush1.bf16.msra.mxu0 %v1070
  %1528 = vmatprep.subr.bf16.mxu0 0
  %1529 = vmatpush1.bf16.msra.mxu0 %v1071
  %1530 = vmatprep.subr.bf16.mxu0 0
  %1531 = vmatpush1.bf16.msra.mxu0 %v1072
  %1532 = vmatprep.subr.bf16.mxu0 0
  %1533 = vmatpush1.bf16.msra.mxu0 %v1073
  %1534 = vmatprep.subr.bf16.mxu0 0
  %1535 = vmatpush1.bf16.msra.mxu0 %v1074
  %1536 = vmatprep.subr.bf16.mxu0 0
  %1537 = vmatpush1.bf16.msra.mxu0 %v1075
  %1538 = vmatprep.subr.bf16.mxu0 0
  %1539 = vmatpush1.bf16.msra.mxu0 %v1076
  %1540 = vmatprep.subr.bf16.mxu0 0
  %1541 = vmatpush1.bf16.msra.mxu0 %v1077
  %1542 = vmatprep.subr.bf16.mxu0 0
  %1543 = vmatpush1.bf16.msra.mxu0 %v1078
  %1544 = vmatprep.subr.bf16.mxu0 0
  %1545 = vmatpush1.bf16.msra.mxu0 %v1079
  %1546 = vmatprep.subr.bf16.mxu0 0
  %1547 = vmatpush1.bf16.msra.mxu0 %v1080
  %1548 = vmatprep.subr.bf16.mxu0 0
  %1549 = vmatpush1.bf16.msra.mxu0 %v1081
  %1550 = vmatprep.subr.bf16.mxu0 0
  %1551 = vmatpush1.bf16.msra.mxu0 %v1082
  %1552 = vmatprep.subr.bf16.mxu0 0
  %1553 = vmatpush1.bf16.msra.mxu0 %v1083
  %1554 = vmatprep.subr.bf16.mxu0 0
  %1555 = vmatpush1.bf16.msra.mxu0 %v1084
  %1556 = vmatprep.subr.bf16.mxu0 0
  %1557 = vmatpush1.bf16.msra.mxu0 %v1085
  %1558 = vmatprep.mubr.bf16.mxu0 %v361
  %1559 = vmatmul.mubr.bf16.gmra.mrb[0].mxu0 %v360
  %v1560 = vpop.f32.mrb[0].mxu0
  %v1561 = vadd.f32 %v1521, %v1560
  %v1562 = vpop.f32.mrb[0].mxu0
  %v1563 = vpop.f32.mrb[0].mxu0
  %v1564 = vpop.f32.mrb[0].mxu0
  %1565 = vdwg.mxu0
  %1566 = vmatprep.subr.bf16.mxu0 0
  %1567 = vmatpush1.bf16.msra.mxu0 %v1086
  %1568 = vmatprep.subr.bf16.mxu0 0
  %1569 = vmatpush1.bf16.msra.mxu0 %v1087
  %1570 = vmatprep.subr.bf16.mxu0 0
  %1571 = vmatpush1.bf16.msra.mxu0 %v1088
  %1572 = vmatprep.subr.bf16.mxu0 0
  %1573 = vmatpush1.bf16.msra.mxu0 %v1089
  %1574 = vmatprep.subr.bf16.mxu0 0
  %1575 = vmatpush1.bf16.msra.mxu0 %v1090
  %1576 = vmatprep.subr.bf16.mxu0 0
  %1577 = vmatpush1.bf16.msra.mxu0 %v1091
  %1578 = vmatprep.subr.bf16.mxu0 0
  %1579 = vmatpush1.bf16.msra.mxu0 %v1092
  %1580 = vmatprep.subr.bf16.mxu0 0
  %1581 = vmatpush1.bf16.msra.mxu0 %v1093
  %1582 = vmatprep.subr.bf16.mxu0 0
  %1583 = vmatpush1.bf16.msra.mxu0 %v1094
  %1584 = vmatprep.subr.bf16.mxu0 0
  %1585 = vmatpush1.bf16.msra.mxu0 %v1095
  %1586 = vmatprep.subr.bf16.mxu0 0
  %1587 = vmatpush1.bf16.msra.mxu0 %v1096
  %1588 = vmatprep.subr.bf16.mxu0 0
  %1589 = vmatpush1.bf16.msra.mxu0 %v1097
  %1590 = vmatprep.subr.bf16.mxu0 0
  %1591 = vmatpush1.bf16.msra.mxu0 %v1098
  %1592 = vmatprep.subr.bf16.mxu0 0
  %1593 = vmatpush1.bf16.msra.mxu0 %v1099
  %1594 = vmatprep.subr.bf16.mxu0 0
  %1595 = vmatpush1.bf16.msra.mxu0 %v1100
  %1596 = vmatprep.subr.bf16.mxu0 0
  %1597 = vmatpush1.bf16.msra.mxu0 %v1101
  %1598 = vmatprep.mubr.bf16.mxu0 %v363
  %1599 = vmatmul.mubr.bf16.gmra.mrb[0].mxu0 %v362
  %v1600 = vpop.f32.mrb[0].mxu0
  %v1601 = vadd.f32 %v1561, %v1600
  %v1602 = vpop.f32.mrb[0].mxu0
  %v1603 = vpop.f32.mrb[0].mxu0
  %v1604 = vpop.f32.mrb[0].mxu0
  %1605 = vdwg.mxu0
  %1606 = vst [vmem:[%s3] sm:$0xff] %v1601
  // Predicated region
  $region14: #{cnn_forward.5} parent=0 // pred_check
    _
  $region15: #{cnn_forward.5} parent=0 // pred_check_branch
    %1608 = sbr.rel (0) target = $region17
  $region16: #{cnn_forward.5} parent=0 // pred_region
    _
  $region17: #{cnn_forward.5} parent=0 // pred_fallthru
    _
  // Predicated region
  $region18: #{cnn_forward.5} parent=0 // pred_check
    _
  $region19: #{cnn_forward.5} parent=0 // pred_check_branch
    %1610 = sbr.rel (0) target = $region21
  $region20: #{cnn_forward.5} parent=0 // pred_region
    _
  $region21: #{cnn_forward.5} parent=0 // pred_fallthru
    _

</llo_original>
